<compile_context>
chip_gen: v7x
topology: tpu7x:2x2x1
jax: 0.10.0
libtpu: 0.0.40
codegen_flags: <defaults>
</compile_context>

<pallas_src>
import jax
import jax.numpy as jnp
import numpy as np
from jax.experimental import pallas as pl
from jax.experimental.pallas import tpu as pltpu


def _silu(v):
    return v * jax.nn.sigmoid(v)


def head_kernel(x_ref, dw1_ref, pw1_ref, dw2_ref, pw2_ref, fin_ref,
                o_ref, pad1, pad2):
    """Whole head, whole batch, single grid step.

    x_ref:   (B, H, W, Cin)
    dwX_ref: (11, C)        rows 0..8 = 3x3 taps (row-major), 9 = BN scale, 10 = BN bias
    pwX_ref: (Cin+2, Cout)  rows 0..Cin-1 = 1x1 weights, Cin = scale, Cin+1 = bias
    fin_ref: (Cmid+1, 128)  rows 0..Cmid-1 = classifier weights (lane-padded), Cmid = bias
    o_ref:   (B, H, W, 128) lane-padded logits
    pad1/pad2: H-padded scratch buffers for the two depthwise convs.
    """
    B, H, W, Cin = x_ref.shape
    Cmid = pw1_ref.shape[1]
    NCP = fin_ref.shape[1]          # classifier width, padded to 128 lanes

    def dwconv3x3(x, pad_ref, p_ref):
        """Depthwise 3x3 (pad=1) + folded BN + SiLU.  x: (B, H, W, C) f32."""
        Bx, Hx, Wx, C = x.shape
        p = p_ref[...]                                    # (11, C)

        # Scratch padded along H only: aligned full-(W, C) tile reads/writes.
        zrow = jnp.zeros((Bx, 1, Wx, C), jnp.float32)
        pad_ref[:, 0:1, :, :] = zrow                      # zero only the borders
        pad_ref[:, Hx + 1:Hx + 2, :, :] = zrow
        pad_ref[:, 1:Hx + 1, :, :] = x                    # aligned interior write

        # W border masks (hoisted out of the tap loop).
        w_idx = jax.lax.broadcasted_iota(jnp.int32, (Bx, Hx, Wx, C), 2)
        mask_l = w_idx > 0                                # valid for the w-1 tap
        mask_r = w_idx < Wx - 1                           # valid for the w+1 tap

        acc = jnp.zeros((Bx, Hx, Wx, C), jnp.float32)
        for dy in range(3):                               # static unroll, 9 taps
            row = pad_ref[:, dy:dy + Hx, :, :]            # aligned leading-dim slice
            for dx in range(3):
                k = dy * 3 + dx
                if dx == 1:
                    tap = row
                elif dx == 0:                             # needs x[.., w-1, .]
                    tap = jnp.where(mask_l,
                                    pltpu.roll(row, shift=1, axis=2), 0.0)
                else:                                     # dx == 2 -> x[.., w+1, .]
                    tap = jnp.where(mask_r,
                                    pltpu.roll(row, shift=Wx - 1, axis=2), 0.0)
                acc = acc + tap * p[k:k + 1, :].reshape(1, 1, 1, C)
        y = acc * p[9:10, :].reshape(1, 1, 1, C) + p[10:11, :].reshape(1, 1, 1, C)
        return _silu(y)

    def pwconv(x, p_ref):
        """1x1 conv + folded BN + SiLU as one MXU matmul over B*H*W rows."""
        Bx, Hx, Wx, C = x.shape
        Co = p_ref.shape[1]
        p = p_ref[...]                                    # (C + 2, Co)
        y = jnp.dot(x.reshape(Bx * Hx * Wx, C), p[0:C, :],
                    preferred_element_type=jnp.float32)
        y = y * p[C:C + 1, :] + p[C + 1:C + 2, :]
        return _silu(y).reshape(Bx, Hx, Wx, Co)

    x = x_ref[...].astype(jnp.float32)
    h = dwconv3x3(x, pad1, dw1_ref)                       # DWConv(in, in, 3)
    h = pwconv(h, pw1_ref)                                # PWConv(in, mid)
    h = dwconv3x3(h, pad2, dw2_ref)                       # DWConv(mid, mid, 3)
    h = pwconv(h, pw2_ref)                                # PWConv(mid, mid)

    fin = fin_ref[...]                                    # (Cmid + 1, 128)
    logits = jnp.dot(h.reshape(B * H * W, Cmid), fin[0:Cmid, :],
                     preferred_element_type=jnp.float32) + fin[Cmid:Cmid + 1, :]
    o_ref[...] = logits.reshape(B, H, W, NCP)             # full-lane (128) stores


def yolo_v10_cls_head(x_nchw, params):
    """NCHW in, NCHW out (matches the PyTorch module)."""
    B, Cin, H, W = x_nchw.shape
    Cmid = params["pw1_w"].shape[1]
    NC = params["fin_w"].shape[1]
    NCP = ((NC + 127) // 128) * 128                       # lane-dense output width

    x_nhwc = jnp.transpose(x_nchw, (0, 2, 3, 1)).astype(jnp.float32)

    # Consolidate the 14 small parameter arrays into 5 packed arrays.
    dw1 = jnp.concatenate([params["dw1_w"], params["dw1_s"], params["dw1_b"]], axis=0)
    pw1 = jnp.concatenate([params["pw1_w"], params["pw1_s"], params["pw1_b"]], axis=0)
    dw2 = jnp.concatenate([params["dw2_w"], params["dw2_s"], params["dw2_b"]], axis=0)
    pw2 = jnp.concatenate([params["pw2_w"], params["pw2_s"], params["pw2_b"]], axis=0)
    fin = jnp.concatenate([params["fin_w"], params["fin_b"]], axis=0)   # (Cmid+1, NC)
    fin = jnp.pad(fin, ((0, 0), (0, NCP - NC)))                         # lane-pad to 128

    p_list = [dw1, pw1, dw2, pw2, fin]

    def whole_spec(shape):
        nd = len(shape)
        return pl.BlockSpec(shape, lambda i, _n=nd: (0,) * _n)

    out_nhwc = pl.pallas_call(
        head_kernel,
        out_shape=jax.ShapeDtypeStruct((B, H, W, NCP), jnp.float32),
        grid=(1,),                                        # whole batch in one step
        in_specs=[whole_spec(x_nhwc.shape)] + [whole_spec(p.shape) for p in p_list],
        out_specs=whole_spec((B, H, W, NCP)),
        scratch_shapes=[
            pltpu.VMEM((B, H + 2, W, Cin), jnp.float32),  # H-padded only
            pltpu.VMEM((B, H + 2, W, Cmid), jnp.float32),
        ],
        compiler_params=pltpu.CompilerParams(
            dimension_semantics=("arbitrary",)),
    )(x_nhwc, *p_list)

    logits = out_nhwc[..., :NC]                           # drop the lane padding
    return jnp.transpose(logits, (0, 3, 1, 2))


def init_params(key, cin, cmid, nc):
    """Deterministic synthetic weights; BN folded into per-channel scale/bias."""
    ks = list(jax.random.split(key, 22))
    it = iter(ks)

    def bn_fold(c):
        gamma = 1.0 + 0.1 * jax.random.normal(next(it), (1, c), jnp.float32)
        beta = 0.1 * jax.random.normal(next(it), (1, c), jnp.float32)
        mean = 0.1 * jax.random.normal(next(it), (1, c), jnp.float32)
        var = jnp.abs(jax.random.normal(next(it), (1, c), jnp.float32)) + 0.5
        scale = gamma * jax.lax.rsqrt(var + 1e-3)
        bias = beta - mean * scale
        return scale, bias

    p = {}
    p["dw1_w"] = 0.2 * jax.random.normal(next(it), (9, cin), jnp.float32)
    p["dw1_s"], p["dw1_b"] = bn_fold(cin)
    p["pw1_w"] = 0.2 * jax.random.normal(next(it), (cin, cmid), jnp.float32)
    p["pw1_s"], p["pw1_b"] = bn_fold(cmid)
    p["dw2_w"] = 0.2 * jax.random.normal(next(it), (9, cmid), jnp.float32)
    p["dw2_s"], p["dw2_b"] = bn_fold(cmid)
    p["pw2_w"] = 0.2 * jax.random.normal(next(it), (cmid, cmid), jnp.float32)
    p["pw2_s"], p["pw2_b"] = bn_fold(cmid)
    p["fin_w"] = 0.2 * jax.random.normal(next(it), (cmid, nc), jnp.float32)
    p["fin_b"] = 0.1 * jax.random.normal(next(it), (1, nc), jnp.float32)
    return p


def ref_forward(x_nchw, params):
    """Pure-JAX reference (lax conv) for numerical verification."""
    x = jnp.transpose(x_nchw, (0, 2, 3, 1)).astype(jnp.float32)

    def dw(x, w9, s, b):
        C = x.shape[-1]
        w = w9.reshape(3, 3, 1, C)
        y = jax.lax.conv_general_dilated(
            x, w, window_strides=(1, 1), padding="SAME",
            dimension_numbers=("NHWC", "HWIO", "NHWC"),
            feature_group_count=C)
        y = y * s.reshape(1, 1, 1, C) + b.reshape(1, 1, 1, C)
        return y * jax.nn.sigmoid(y)

    def pw(x, w, s, b):
        y = jnp.einsum("bhwc,cd->bhwd", x, w)
        y = y * s.reshape(1, 1, 1, -1) + b.reshape(1, 1, 1, -1)
        return y * jax.nn.sigmoid(y)

    h = dw(x, params["dw1_w"], params["dw1_s"], params["dw1_b"])
    h = pw(h, params["pw1_w"], params["pw1_s"], params["pw1_b"])
    h = dw(h, params["dw2_w"], params["dw2_s"], params["dw2_b"])
    h = pw(h, params["pw2_w"], params["pw2_s"], params["pw2_b"])
    y = jnp.einsum("bhwc,cd->bhwd", h, params["fin_w"]) \
        + params["fin_b"].reshape(1, 1, 1, -1)
    return jnp.transpose(y, (0, 3, 1, 2))


if __name__ == "__main__":
    B, Cin, Cmid, NC, H, W = 2, 32, 64, 16, 16, 16

    key = jax.random.PRNGKey(0)
    k_x, k_p = jax.random.split(key)
    x = jax.random.normal(k_x, (B, Cin, H, W), jnp.float32)
    params = init_params(k_p, Cin, Cmid, NC)

    out = yolo_v10_cls_head(x, params)
    out = jax.block_until_ready(out)

    ref = jax.block_until_ready(ref_forward(x, params))
    np.testing.assert_allclose(np.asarray(out), np.asarray(ref),
                               rtol=2e-3, atol=2e-3)
    assert out.shape == (B, NC, H, W)
    print("KERNEL_OK")
</pallas_src>

<mosaic_0001>
module attributes {stable_mosaic.version = 11 : i64} {
  func.func @head_kernel(%arg0: i32, %arg1: memref<2x16x16x32xf32, #tpu.memory_space<vmem>>, %arg2: memref<11x32xf32, #tpu.memory_space<vmem>>, %arg3: memref<34x64xf32, #tpu.memory_space<vmem>>, %arg4: memref<11x64xf32, #tpu.memory_space<vmem>>, %arg5: memref<66x64xf32, #tpu.memory_space<vmem>>, %arg6: memref<65x128xf32, #tpu.memory_space<vmem>>, %arg7: memref<2x16x16x128xf32, #tpu.memory_space<vmem>>, %arg8: memref<2x18x16x32xf32, #tpu.memory_space<vmem>>, %arg9: memref<2x18x16x64xf32, #tpu.memory_space<vmem>>) attributes {dimension_semantics = [#tpu.dimension_semantics<arbitrary>], iteration_bounds = array<i64: 1>, scalar_prefetch = 0 : i64, scratch_operands = 2 : i64, tpu.core_type = #tpu.core_type<tc>, window_params = [{pipeline_mode = #tpu.pipeline_mode<synchronous>, transform_indices = @transform_0, window_bounds = array<i64: 2, 16, 16, 32>}, {pipeline_mode = #tpu.pipeline_mode<synchronous>, transform_indices = @transform_1, window_bounds = array<i64: 11, 32>}, {pipeline_mode = #tpu.pipeline_mode<synchronous>, transform_indices = @transform_2, window_bounds = array<i64: 34, 64>}, {pipeline_mode = #tpu.pipeline_mode<synchronous>, transform_indices = @transform_3, window_bounds = array<i64: 11, 64>}, {pipeline_mode = #tpu.pipeline_mode<synchronous>, transform_indices = @transform_4, window_bounds = array<i64: 66, 64>}, {pipeline_mode = #tpu.pipeline_mode<synchronous>, transform_indices = @transform_5, window_bounds = array<i64: 65, 128>}, {pipeline_mode = #tpu.pipeline_mode<synchronous>, transform_indices = @transform_6, window_bounds = array<i64: 2, 16, 16, 128>}]} {
    %c0 = arith.constant 0 : index
    %c0_0 = arith.constant 0 : index
    %c0_1 = arith.constant 0 : index
    %c0_2 = arith.constant 0 : index
    %0 = vector.load %arg1[%c0, %c0_0, %c0_1, %c0_2] : memref<2x16x16x32xf32, #tpu.memory_space<vmem>>, vector<2x16x16x32xf32>
    %c0_3 = arith.constant 0 : index
    %c0_4 = arith.constant 0 : index
    %1 = vector.load %arg2[%c0_3, %c0_4] : memref<11x32xf32, #tpu.memory_space<vmem>>, vector<11x32xf32>
    %cst = arith.constant 0.000000e+00 : f32
    %2 = vector.broadcast %cst : f32 to vector<2x1x16x32xf32>
    %c0_5 = arith.constant 0 : index
    %c0_6 = arith.constant 0 : index
    %c0_7 = arith.constant 0 : index
    %c0_8 = arith.constant 0 : index
    %3 = vector.load %arg8[%c0_5, %c0_6, %c0_7, %c0_8] : memref<2x18x16x32xf32, #tpu.memory_space<vmem>>, vector<2x1x16x32xf32>
    tpu.vector_store %arg8[%c0_5, %c0_6, %c0_7, %c0_8], %2 {strides = array<i32>} : memref<2x18x16x32xf32, #tpu.memory_space<vmem>>, vector<2x1x16x32xf32>,
    %c0_9 = arith.constant 0 : index
    %c17 = arith.constant 17 : index
    %c0_10 = arith.constant 0 : index
    %c0_11 = arith.constant 0 : index
    %4 = vector.load %arg8[%c0_9, %c17, %c0_10, %c0_11] : memref<2x18x16x32xf32, #tpu.memory_space<vmem>>, vector<2x1x16x32xf32>
    tpu.vector_store %arg8[%c0_9, %c17, %c0_10, %c0_11], %2 {strides = array<i32>} : memref<2x18x16x32xf32, #tpu.memory_space<vmem>>, vector<2x1x16x32xf32>,
    %c0_12 = arith.constant 0 : index
    %c1 = arith.constant 1 : index
    %c0_13 = arith.constant 0 : index
    %c0_14 = arith.constant 0 : index
    %5 = vector.load %arg8[%c0_12, %c1, %c0_13, %c0_14] : memref<2x18x16x32xf32, #tpu.memory_space<vmem>>, vector<2x16x16x32xf32>
    tpu.vector_store %arg8[%c0_12, %c1, %c0_13, %c0_14], %0 {strides = array<i32>} : memref<2x18x16x32xf32, #tpu.memory_space<vmem>>, vector<2x16x16x32xf32>,
    %6 = tpu.iota {dimensions = array<i32: 2>} : vector<2x16x16x32xi32>
    %c0_i32 = arith.constant 0 : i32
    %7 = vector.broadcast %c0_i32 : i32 to vector<2x16x16x32xi32>
    %8 = arith.cmpi sgt, %6, %7 : vector<2x16x16x32xi32>
    %c15_i32 = arith.constant 15 : i32
    %9 = vector.broadcast %c15_i32 : i32 to vector<2x16x16x32xi32>
    %10 = arith.cmpi slt, %6, %9 : vector<2x16x16x32xi32>
    %cst_15 = arith.constant 0.000000e+00 : f32
    %11 = vector.broadcast %cst_15 : f32 to vector<2x16x16x32xf32>
    %c0_16 = arith.constant 0 : index
    %c0_17 = arith.constant 0 : index
    %c0_18 = arith.constant 0 : index
    %c0_19 = arith.constant 0 : index
    %12 = vector.load %arg8[%c0_16, %c0_17, %c0_18, %c0_19] : memref<2x18x16x32xf32, #tpu.memory_space<vmem>>, vector<2x16x16x32xf32>
    %c1_i32 = arith.constant 1 : i32
    %13 = tpu.dynamic_rotate %12 by %c1_i32 dim 2 : vector<2x16x16x32xf32>, i32 -> vector<2x16x16x32xf32>
    %cst_20 = arith.constant 0.000000e+00 : f32
    %14 = vector.broadcast %cst_20 : f32 to vector<2x16x16x32xf32>
    %15 = arith.select %8, %13, %14 : vector<2x16x16x32xi1>, vector<2x16x16x32xf32>
    %16 = vector.extract_strided_slice %1 {offsets = [0, 0], sizes = [1, 32], strides = [1, 1]} : vector<11x32xf32> to vector<1x32xf32>
    %17 = vector.shape_cast %16 : vector<1x32xf32> to vector<1x1x1x32xf32>
    %18 = vector.broadcast %17 : vector<1x1x1x32xf32> to vector<2x16x16x32xf32>
    %19 = arith.mulf %15, %18 : vector<2x16x16x32xf32>
    %20 = arith.addf %11, %19 : vector<2x16x16x32xf32>
    %21 = vector.extract_strided_slice %1 {offsets = [1, 0], sizes = [1, 32], strides = [1, 1]} : vector<11x32xf32> to vector<1x32xf32>
    %22 = vector.shape_cast %21 : vector<1x32xf32> to vector<1x1x1x32xf32>
    %23 = vector.broadcast %22 : vector<1x1x1x32xf32> to vector<2x16x16x32xf32>
    %24 = arith.mulf %12, %23 : vector<2x16x16x32xf32>
    %25 = arith.addf %20, %24 : vector<2x16x16x32xf32>
    %c15_i32_21 = arith.constant 15 : i32
    %26 = tpu.dynamic_rotate %12 by %c15_i32_21 dim 2 : vector<2x16x16x32xf32>, i32 -> vector<2x16x16x32xf32>
    %cst_22 = arith.constant 0.000000e+00 : f32
    %27 = vector.broadcast %cst_22 : f32 to vector<2x16x16x32xf32>
    %28 = arith.select %10, %26, %27 : vector<2x16x16x32xi1>, vector<2x16x16x32xf32>
    %29 = vector.extract_strided_slice %1 {offsets = [2, 0], sizes = [1, 32], strides = [1, 1]} : vector<11x32xf32> to vector<1x32xf32>
    %30 = vector.shape_cast %29 : vector<1x32xf32> to vector<1x1x1x32xf32>
    %31 = vector.broadcast %30 : vector<1x1x1x32xf32> to vector<2x16x16x32xf32>
    %32 = arith.mulf %28, %31 : vector<2x16x16x32xf32>
    %33 = arith.addf %25, %32 : vector<2x16x16x32xf32>
    %c0_23 = arith.constant 0 : index
    %c1_24 = arith.constant 1 : index
    %c0_25 = arith.constant 0 : index
    %c0_26 = arith.constant 0 : index
    %34 = vector.load %arg8[%c0_23, %c1_24, %c0_25, %c0_26] : memref<2x18x16x32xf32, #tpu.memory_space<vmem>>, vector<2x16x16x32xf32>
    %c1_i32_27 = arith.constant 1 : i32
    %35 = tpu.dynamic_rotate %34 by %c1_i32_27 dim 2 : vector<2x16x16x32xf32>, i32 -> vector<2x16x16x32xf32>
    %cst_28 = arith.constant 0.000000e+00 : f32
    %36 = vector.broadcast %cst_28 : f32 to vector<2x16x16x32xf32>
    %37 = arith.select %8, %35, %36 : vector<2x16x16x32xi1>, vector<2x16x16x32xf32>
    %38 = vector.extract_strided_slice %1 {offsets = [3, 0], sizes = [1, 32], strides = [1, 1]} : vector<11x32xf32> to vector<1x32xf32>
    %39 = vector.shape_cast %38 : vector<1x32xf32> to vector<1x1x1x32xf32>
    %40 = vector.broadcast %39 : vector<1x1x1x32xf32> to vector<2x16x16x32xf32>
    %41 = arith.mulf %37, %40 : vector<2x16x16x32xf32>
    %42 = arith.addf %33, %41 : vector<2x16x16x32xf32>
    %43 = vector.extract_strided_slice %1 {offsets = [4, 0], sizes = [1, 32], strides = [1, 1]} : vector<11x32xf32> to vector<1x32xf32>
    %44 = vector.shape_cast %43 : vector<1x32xf32> to vector<1x1x1x32xf32>
    %45 = vector.broadcast %44 : vector<1x1x1x32xf32> to vector<2x16x16x32xf32>
    %46 = arith.mulf %34, %45 : vector<2x16x16x32xf32>
    %47 = arith.addf %42, %46 : vector<2x16x16x32xf32>
    %c15_i32_29 = arith.constant 15 : i32
    %48 = tpu.dynamic_rotate %34 by %c15_i32_29 dim 2 : vector<2x16x16x32xf32>, i32 -> vector<2x16x16x32xf32>
    %cst_30 = arith.constant 0.000000e+00 : f32
    %49 = vector.broadcast %cst_30 : f32 to vector<2x16x16x32xf32>
    %50 = arith.select %10, %48, %49 : vector<2x16x16x32xi1>, vector<2x16x16x32xf32>
    %51 = vector.extract_strided_slice %1 {offsets = [5, 0], sizes = [1, 32], strides = [1, 1]} : vector<11x32xf32> to vector<1x32xf32>
    %52 = vector.shape_cast %51 : vector<1x32xf32> to vector<1x1x1x32xf32>
    %53 = vector.broadcast %52 : vector<1x1x1x32xf32> to vector<2x16x16x32xf32>
    %54 = arith.mulf %50, %53 : vector<2x16x16x32xf32>
    %55 = arith.addf %47, %54 : vector<2x16x16x32xf32>
    %c0_31 = arith.constant 0 : index
    %c2 = arith.constant 2 : index
    %c0_32 = arith.constant 0 : index
    %c0_33 = arith.constant 0 : index
    %56 = vector.load %arg8[%c0_31, %c2, %c0_32, %c0_33] : memref<2x18x16x32xf32, #tpu.memory_space<vmem>>, vector<2x16x16x32xf32>
    %c1_i32_34 = arith.constant 1 : i32
    %57 = tpu.dynamic_rotate %56 by %c1_i32_34 dim 2 : vector<2x16x16x32xf32>, i32 -> vector<2x16x16x32xf32>
    %cst_35 = arith.constant 0.000000e+00 : f32
    %58 = vector.broadcast %cst_35 : f32 to vector<2x16x16x32xf32>
    %59 = arith.select %8, %57, %58 : vector<2x16x16x32xi1>, vector<2x16x16x32xf32>
    %60 = vector.extract_strided_slice %1 {offsets = [6, 0], sizes = [1, 32], strides = [1, 1]} : vector<11x32xf32> to vector<1x32xf32>
    %61 = vector.shape_cast %60 : vector<1x32xf32> to vector<1x1x1x32xf32>
    %62 = vector.broadcast %61 : vector<1x1x1x32xf32> to vector<2x16x16x32xf32>
    %63 = arith.mulf %59, %62 : vector<2x16x16x32xf32>
    %64 = arith.addf %55, %63 : vector<2x16x16x32xf32>
    %65 = vector.extract_strided_slice %1 {offsets = [7, 0], sizes = [1, 32], strides = [1, 1]} : vector<11x32xf32> to vector<1x32xf32>
    %66 = vector.shape_cast %65 : vector<1x32xf32> to vector<1x1x1x32xf32>
    %67 = vector.broadcast %66 : vector<1x1x1x32xf32> to vector<2x16x16x32xf32>
    %68 = arith.mulf %56, %67 : vector<2x16x16x32xf32>
    %69 = arith.addf %64, %68 : vector<2x16x16x32xf32>
    %c15_i32_36 = arith.constant 15 : i32
    %70 = tpu.dynamic_rotate %56 by %c15_i32_36 dim 2 : vector<2x16x16x32xf32>, i32 -> vector<2x16x16x32xf32>
    %cst_37 = arith.constant 0.000000e+00 : f32
    %71 = vector.broadcast %cst_37 : f32 to vector<2x16x16x32xf32>
    %72 = arith.select %10, %70, %71 : vector<2x16x16x32xi1>, vector<2x16x16x32xf32>
    %73 = vector.extract_strided_slice %1 {offsets = [8, 0], sizes = [1, 32], strides = [1, 1]} : vector<11x32xf32> to vector<1x32xf32>
    %74 = vector.shape_cast %73 : vector<1x32xf32> to vector<1x1x1x32xf32>
    %75 = vector.broadcast %74 : vector<1x1x1x32xf32> to vector<2x16x16x32xf32>
    %76 = arith.mulf %72, %75 : vector<2x16x16x32xf32>
    %77 = arith.addf %69, %76 : vector<2x16x16x32xf32>
    %78 = vector.extract_strided_slice %1 {offsets = [9, 0], sizes = [1, 32], strides = [1, 1]} : vector<11x32xf32> to vector<1x32xf32>
    %79 = vector.shape_cast %78 : vector<1x32xf32> to vector<1x1x1x32xf32>
    %80 = vector.broadcast %79 : vector<1x1x1x32xf32> to vector<2x16x16x32xf32>
    %81 = arith.mulf %77, %80 : vector<2x16x16x32xf32>
    %82 = vector.extract_strided_slice %1 {offsets = [10, 0], sizes = [1, 32], strides = [1, 1]} : vector<11x32xf32> to vector<1x32xf32>
    %83 = vector.shape_cast %82 : vector<1x32xf32> to vector<1x1x1x32xf32>
    %84 = vector.broadcast %83 : vector<1x1x1x32xf32> to vector<2x16x16x32xf32>
    %85 = arith.addf %81, %84 : vector<2x16x16x32xf32>
    %86 = arith.negf %85 : vector<2x16x16x32xf32>
    %87 = math.exp %86 : vector<2x16x16x32xf32>
    %cst_38 = arith.constant 1.000000e+00 : f32
    %88 = vector.broadcast %cst_38 : f32 to vector<2x16x16x32xf32>
    %89 = arith.addf %88, %87 : vector<2x16x16x32xf32>
    %90 = arith.divf %88, %89 : vector<2x16x16x32xf32>
    %91 = arith.mulf %85, %90 : vector<2x16x16x32xf32>
    %c0_39 = arith.constant 0 : index
    %c0_40 = arith.constant 0 : index
    %92 = vector.load %arg3[%c0_39, %c0_40] : memref<34x64xf32, #tpu.memory_space<vmem>>, vector<34x64xf32>
    %93 = vector.shape_cast %91 : vector<2x16x16x32xf32> to vector<512x32xf32>
    %94 = vector.extract_strided_slice %92 {offsets = [0, 0], sizes = [32, 64], strides = [1, 1]} : vector<34x64xf32> to vector<32x64xf32>
    %cst_41 = arith.constant dense<0.000000e+00> : vector<512x64xf32>
    %95 = tpu.matmul %93, %94, %cst_41 {dimension_numbers = #tpu.dot_dimension_numbers<[1], [0], [0], [1], [0, 0, 1, 1], [], []>} : vector<512x32xf32>, vector<32x64xf32>, vector<512x64xf32> -> vector<512x64xf32>
    %96 = vector.extract_strided_slice %92 {offsets = [32, 0], sizes = [1, 64], strides = [1, 1]} : vector<34x64xf32> to vector<1x64xf32>
    %97 = vector.broadcast %96 : vector<1x64xf32> to vector<512x64xf32>
    %98 = arith.mulf %95, %97 : vector<512x64xf32>
    %99 = vector.extract_strided_slice %92 {offsets = [33, 0], sizes = [1, 64], strides = [1, 1]} : vector<34x64xf32> to vector<1x64xf32>
    %100 = vector.broadcast %99 : vector<1x64xf32> to vector<512x64xf32>
    %101 = arith.addf %98, %100 : vector<512x64xf32>
    %102 = arith.negf %101 : vector<512x64xf32>
    %103 = math.exp %102 : vector<512x64xf32>
    %cst_42 = arith.constant 1.000000e+00 : f32
    %104 = vector.broadcast %cst_42 : f32 to vector<512x64xf32>
    %105 = arith.addf %104, %103 : vector<512x64xf32>
    %106 = arith.divf %104, %105 : vector<512x64xf32>
    %107 = arith.mulf %101, %106 : vector<512x64xf32>
    %108 = vector.shape_cast %107 : vector<512x64xf32> to vector<2x16x16x64xf32>
    %c0_43 = arith.constant 0 : index
    %c0_44 = arith.constant 0 : index
    %109 = vector.load %arg4[%c0_43, %c0_44] : memref<11x64xf32, #tpu.memory_space<vmem>>, vector<11x64xf32>
    %cst_45 = arith.constant 0.000000e+00 : f32
    %110 = vector.broadcast %cst_45 : f32 to vector<2x1x16x64xf32>
    %c0_46 = arith.constant 0 : index
    %c0_47 = arith.constant 0 : index
    %c0_48 = arith.constant 0 : index
    %c0_49 = arith.constant 0 : index
    %111 = vector.load %arg9[%c0_46, %c0_47, %c0_48, %c0_49] : memref<2x18x16x64xf32, #tpu.memory_space<vmem>>, vector<2x1x16x64xf32>
    tpu.vector_store %arg9[%c0_46, %c0_47, %c0_48, %c0_49], %110 {strides = array<i32>} : memref<2x18x16x64xf32, #tpu.memory_space<vmem>>, vector<2x1x16x64xf32>,
    %c0_50 = arith.constant 0 : index
    %c17_51 = arith.constant 17 : index
    %c0_52 = arith.constant 0 : index
    %c0_53 = arith.constant 0 : index
    %112 = vector.load %arg9[%c0_50, %c17_51, %c0_52, %c0_53] : memref<2x18x16x64xf32, #tpu.memory_space<vmem>>, vector<2x1x16x64xf32>
    tpu.vector_store %arg9[%c0_50, %c17_51, %c0_52, %c0_53], %110 {strides = array<i32>} : memref<2x18x16x64xf32, #tpu.memory_space<vmem>>, vector<2x1x16x64xf32>,
    %c0_54 = arith.constant 0 : index
    %c1_55 = arith.constant 1 : index
    %c0_56 = arith.constant 0 : index
    %c0_57 = arith.constant 0 : index
    %113 = vector.load %arg9[%c0_54, %c1_55, %c0_56, %c0_57] : memref<2x18x16x64xf32, #tpu.memory_space<vmem>>, vector<2x16x16x64xf32>
    tpu.vector_store %arg9[%c0_54, %c1_55, %c0_56, %c0_57], %108 {strides = array<i32>} : memref<2x18x16x64xf32, #tpu.memory_space<vmem>>, vector<2x16x16x64xf32>,
    %114 = tpu.iota {dimensions = array<i32: 2>} : vector<2x16x16x64xi32>
    %c0_i32_58 = arith.constant 0 : i32
    %115 = vector.broadcast %c0_i32_58 : i32 to vector<2x16x16x64xi32>
    %116 = arith.cmpi sgt, %114, %115 : vector<2x16x16x64xi32>
    %c15_i32_59 = arith.constant 15 : i32
    %117 = vector.broadcast %c15_i32_59 : i32 to vector<2x16x16x64xi32>
    %118 = arith.cmpi slt, %114, %117 : vector<2x16x16x64xi32>
    %cst_60 = arith.constant 0.000000e+00 : f32
    %119 = vector.broadcast %cst_60 : f32 to vector<2x16x16x64xf32>
    %c0_61 = arith.constant 0 : index
    %c0_62 = arith.constant 0 : index
    %c0_63 = arith.constant 0 : index
    %c0_64 = arith.constant 0 : index
    %120 = vector.load %arg9[%c0_61, %c0_62, %c0_63, %c0_64] : memref<2x18x16x64xf32, #tpu.memory_space<vmem>>, vector<2x16x16x64xf32>
    %c1_i32_65 = arith.constant 1 : i32
    %121 = tpu.dynamic_rotate %120 by %c1_i32_65 dim 2 : vector<2x16x16x64xf32>, i32 -> vector<2x16x16x64xf32>
    %cst_66 = arith.constant 0.000000e+00 : f32
    %122 = vector.broadcast %cst_66 : f32 to vector<2x16x16x64xf32>
    %123 = arith.select %116, %121, %122 : vector<2x16x16x64xi1>, vector<2x16x16x64xf32>
    %124 = vector.extract_strided_slice %109 {offsets = [0, 0], sizes = [1, 64], strides = [1, 1]} : vector<11x64xf32> to vector<1x64xf32>
    %125 = vector.shape_cast %124 : vector<1x64xf32> to vector<1x1x1x64xf32>
    %126 = vector.broadcast %125 : vector<1x1x1x64xf32> to vector<2x16x16x64xf32>
    %127 = arith.mulf %123, %126 : vector<2x16x16x64xf32>
    %128 = arith.addf %119, %127 : vector<2x16x16x64xf32>
    %129 = vector.extract_strided_slice %109 {offsets = [1, 0], sizes = [1, 64], strides = [1, 1]} : vector<11x64xf32> to vector<1x64xf32>
    %130 = vector.shape_cast %129 : vector<1x64xf32> to vector<1x1x1x64xf32>
    %131 = vector.broadcast %130 : vector<1x1x1x64xf32> to vector<2x16x16x64xf32>
    %132 = arith.mulf %120, %131 : vector<2x16x16x64xf32>
    %133 = arith.addf %128, %132 : vector<2x16x16x64xf32>
    %c15_i32_67 = arith.constant 15 : i32
    %134 = tpu.dynamic_rotate %120 by %c15_i32_67 dim 2 : vector<2x16x16x64xf32>, i32 -> vector<2x16x16x64xf32>
    %cst_68 = arith.constant 0.000000e+00 : f32
    %135 = vector.broadcast %cst_68 : f32 to vector<2x16x16x64xf32>
    %136 = arith.select %118, %134, %135 : vector<2x16x16x64xi1>, vector<2x16x16x64xf32>
    %137 = vector.extract_strided_slice %109 {offsets = [2, 0], sizes = [1, 64], strides = [1, 1]} : vector<11x64xf32> to vector<1x64xf32>
    %138 = vector.shape_cast %137 : vector<1x64xf32> to vector<1x1x1x64xf32>
    %139 = vector.broadcast %138 : vector<1x1x1x64xf32> to vector<2x16x16x64xf32>
    %140 = arith.mulf %136, %139 : vector<2x16x16x64xf32>
    %141 = arith.addf %133, %140 : vector<2x16x16x64xf32>
    %c0_69 = arith.constant 0 : index
    %c1_70 = arith.constant 1 : index
    %c0_71 = arith.constant 0 : index
    %c0_72 = arith.constant 0 : index
    %142 = vector.load %arg9[%c0_69, %c1_70, %c0_71, %c0_72] : memref<2x18x16x64xf32, #tpu.memory_space<vmem>>, vector<2x16x16x64xf32>
    %c1_i32_73 = arith.constant 1 : i32
    %143 = tpu.dynamic_rotate %142 by %c1_i32_73 dim 2 : vector<2x16x16x64xf32>, i32 -> vector<2x16x16x64xf32>
    %cst_74 = arith.constant 0.000000e+00 : f32
    %144 = vector.broadcast %cst_74 : f32 to vector<2x16x16x64xf32>
    %145 = arith.select %116, %143, %144 : vector<2x16x16x64xi1>, vector<2x16x16x64xf32>
    %146 = vector.extract_strided_slice %109 {offsets = [3, 0], sizes = [1, 64], strides = [1, 1]} : vector<11x64xf32> to vector<1x64xf32>
    %147 = vector.shape_cast %146 : vector<1x64xf32> to vector<1x1x1x64xf32>
    %148 = vector.broadcast %147 : vector<1x1x1x64xf32> to vector<2x16x16x64xf32>
    %149 = arith.mulf %145, %148 : vector<2x16x16x64xf32>
    %150 = arith.addf %141, %149 : vector<2x16x16x64xf32>
    %151 = vector.extract_strided_slice %109 {offsets = [4, 0], sizes = [1, 64], strides = [1, 1]} : vector<11x64xf32> to vector<1x64xf32>
    %152 = vector.shape_cast %151 : vector<1x64xf32> to vector<1x1x1x64xf32>
    %153 = vector.broadcast %152 : vector<1x1x1x64xf32> to vector<2x16x16x64xf32>
    %154 = arith.mulf %142, %153 : vector<2x16x16x64xf32>
    %155 = arith.addf %150, %154 : vector<2x16x16x64xf32>
    %c15_i32_75 = arith.constant 15 : i32
    %156 = tpu.dynamic_rotate %142 by %c15_i32_75 dim 2 : vector<2x16x16x64xf32>, i32 -> vector<2x16x16x64xf32>
    %cst_76 = arith.constant 0.000000e+00 : f32
    %157 = vector.broadcast %cst_76 : f32 to vector<2x16x16x64xf32>
    %158 = arith.select %118, %156, %157 : vector<2x16x16x64xi1>, vector<2x16x16x64xf32>
    %159 = vector.extract_strided_slice %109 {offsets = [5, 0], sizes = [1, 64], strides = [1, 1]} : vector<11x64xf32> to vector<1x64xf32>
    %160 = vector.shape_cast %159 : vector<1x64xf32> to vector<1x1x1x64xf32>
    %161 = vector.broadcast %160 : vector<1x1x1x64xf32> to vector<2x16x16x64xf32>
    %162 = arith.mulf %158, %161 : vector<2x16x16x64xf32>
    %163 = arith.addf %155, %162 : vector<2x16x16x64xf32>
    %c0_77 = arith.constant 0 : index
    %c2_78 = arith.constant 2 : index
    %c0_79 = arith.constant 0 : index
    %c0_80 = arith.constant 0 : index
    %164 = vector.load %arg9[%c0_77, %c2_78, %c0_79, %c0_80] : memref<2x18x16x64xf32, #tpu.memory_space<vmem>>, vector<2x16x16x64xf32>
    %c1_i32_81 = arith.constant 1 : i32
    %165 = tpu.dynamic_rotate %164 by %c1_i32_81 dim 2 : vector<2x16x16x64xf32>, i32 -> vector<2x16x16x64xf32>
    %cst_82 = arith.constant 0.000000e+00 : f32
    %166 = vector.broadcast %cst_82 : f32 to vector<2x16x16x64xf32>
    %167 = arith.select %116, %165, %166 : vector<2x16x16x64xi1>, vector<2x16x16x64xf32>
    %168 = vector.extract_strided_slice %109 {offsets = [6, 0], sizes = [1, 64], strides = [1, 1]} : vector<11x64xf32> to vector<1x64xf32>
    %169 = vector.shape_cast %168 : vector<1x64xf32> to vector<1x1x1x64xf32>
    %170 = vector.broadcast %169 : vector<1x1x1x64xf32> to vector<2x16x16x64xf32>
    %171 = arith.mulf %167, %170 : vector<2x16x16x64xf32>
    %172 = arith.addf %163, %171 : vector<2x16x16x64xf32>
    %173 = vector.extract_strided_slice %109 {offsets = [7, 0], sizes = [1, 64], strides = [1, 1]} : vector<11x64xf32> to vector<1x64xf32>
    %174 = vector.shape_cast %173 : vector<1x64xf32> to vector<1x1x1x64xf32>
    %175 = vector.broadcast %174 : vector<1x1x1x64xf32> to vector<2x16x16x64xf32>
    %176 = arith.mulf %164, %175 : vector<2x16x16x64xf32>
    %177 = arith.addf %172, %176 : vector<2x16x16x64xf32>
    %c15_i32_83 = arith.constant 15 : i32
    %178 = tpu.dynamic_rotate %164 by %c15_i32_83 dim 2 : vector<2x16x16x64xf32>, i32 -> vector<2x16x16x64xf32>
    %cst_84 = arith.constant 0.000000e+00 : f32
    %179 = vector.broadcast %cst_84 : f32 to vector<2x16x16x64xf32>
    %180 = arith.select %118, %178, %179 : vector<2x16x16x64xi1>, vector<2x16x16x64xf32>
    %181 = vector.extract_strided_slice %109 {offsets = [8, 0], sizes = [1, 64], strides = [1, 1]} : vector<11x64xf32> to vector<1x64xf32>
    %182 = vector.shape_cast %181 : vector<1x64xf32> to vector<1x1x1x64xf32>
    %183 = vector.broadcast %182 : vector<1x1x1x64xf32> to vector<2x16x16x64xf32>
    %184 = arith.mulf %180, %183 : vector<2x16x16x64xf32>
    %185 = arith.addf %177, %184 : vector<2x16x16x64xf32>
    %186 = vector.extract_strided_slice %109 {offsets = [9, 0], sizes = [1, 64], strides = [1, 1]} : vector<11x64xf32> to vector<1x64xf32>
    %187 = vector.shape_cast %186 : vector<1x64xf32> to vector<1x1x1x64xf32>
    %188 = vector.broadcast %187 : vector<1x1x1x64xf32> to vector<2x16x16x64xf32>
    %189 = arith.mulf %185, %188 : vector<2x16x16x64xf32>
    %190 = vector.extract_strided_slice %109 {offsets = [10, 0], sizes = [1, 64], strides = [1, 1]} : vector<11x64xf32> to vector<1x64xf32>
    %191 = vector.shape_cast %190 : vector<1x64xf32> to vector<1x1x1x64xf32>
    %192 = vector.broadcast %191 : vector<1x1x1x64xf32> to vector<2x16x16x64xf32>
    %193 = arith.addf %189, %192 : vector<2x16x16x64xf32>
    %194 = arith.negf %193 : vector<2x16x16x64xf32>
    %195 = math.exp %194 : vector<2x16x16x64xf32>
    %cst_85 = arith.constant 1.000000e+00 : f32
    %196 = vector.broadcast %cst_85 : f32 to vector<2x16x16x64xf32>
    %197 = arith.addf %196, %195 : vector<2x16x16x64xf32>
    %198 = arith.divf %196, %197 : vector<2x16x16x64xf32>
    %199 = arith.mulf %193, %198 : vector<2x16x16x64xf32>
    %c0_86 = arith.constant 0 : index
    %c0_87 = arith.constant 0 : index
    %200 = vector.load %arg5[%c0_86, %c0_87] : memref<66x64xf32, #tpu.memory_space<vmem>>, vector<66x64xf32>
    %201 = vector.shape_cast %199 : vector<2x16x16x64xf32> to vector<512x64xf32>
    %202 = vector.extract_strided_slice %200 {offsets = [0, 0], sizes = [64, 64], strides = [1, 1]} : vector<66x64xf32> to vector<64x64xf32>
    %cst_88 = arith.constant dense<0.000000e+00> : vector<512x64xf32>
    %203 = tpu.matmul %201, %202, %cst_88 {dimension_numbers = #tpu.dot_dimension_numbers<[1], [0], [0], [1], [0, 0, 1, 1], [], []>} : vector<512x64xf32>, vector<64x64xf32>, vector<512x64xf32> -> vector<512x64xf32>
    %204 = vector.extract_strided_slice %200 {offsets = [64, 0], sizes = [1, 64], strides = [1, 1]} : vector<66x64xf32> to vector<1x64xf32>
    %205 = vector.broadcast %204 : vector<1x64xf32> to vector<512x64xf32>
    %206 = arith.mulf %203, %205 : vector<512x64xf32>
    %207 = vector.extract_strided_slice %200 {offsets = [65, 0], sizes = [1, 64], strides = [1, 1]} : vector<66x64xf32> to vector<1x64xf32>
    %208 = vector.broadcast %207 : vector<1x64xf32> to vector<512x64xf32>
    %209 = arith.addf %206, %208 : vector<512x64xf32>
    %210 = arith.negf %209 : vector<512x64xf32>
    %211 = math.exp %210 : vector<512x64xf32>
    %cst_89 = arith.constant 1.000000e+00 : f32
    %212 = vector.broadcast %cst_89 : f32 to vector<512x64xf32>
    %213 = arith.addf %212, %211 : vector<512x64xf32>
    %214 = arith.divf %212, %213 : vector<512x64xf32>
    %215 = arith.mulf %209, %214 : vector<512x64xf32>
    %216 = vector.shape_cast %215 : vector<512x64xf32> to vector<2x16x16x64xf32>
    %c0_90 = arith.constant 0 : index
    %c0_91 = arith.constant 0 : index
    %217 = vector.load %arg6[%c0_90, %c0_91] : memref<65x128xf32, #tpu.memory_space<vmem>>, vector<65x128xf32>
    %218 = vector.shape_cast %216 : vector<2x16x16x64xf32> to vector<512x64xf32>
    %219 = vector.extract_strided_slice %217 {offsets = [0, 0], sizes = [64, 128], strides = [1, 1]} : vector<65x128xf32> to vector<64x128xf32>
    %cst_92 = arith.constant dense<0.000000e+00> : vector<512x128xf32>
    %220 = tpu.matmul %218, %219, %cst_92 {dimension_numbers = #tpu.dot_dimension_numbers<[1], [0], [0], [1], [0, 0, 1, 1], [], []>} : vector<512x64xf32>, vector<64x128xf32>, vector<512x128xf32> -> vector<512x128xf32>
    %221 = vector.extract_strided_slice %217 {offsets = [64, 0], sizes = [1, 128], strides = [1, 1]} : vector<65x128xf32> to vector<1x128xf32>
    %222 = vector.broadcast %221 : vector<1x128xf32> to vector<512x128xf32>
    %223 = arith.addf %220, %222 : vector<512x128xf32>
    %224 = vector.shape_cast %223 : vector<512x128xf32> to vector<2x16x16x128xf32>
    %c0_93 = arith.constant 0 : index
    %c0_94 = arith.constant 0 : index
    %c0_95 = arith.constant 0 : index
    %c0_96 = arith.constant 0 : index
    %225 = vector.load %arg7[%c0_93, %c0_94, %c0_95, %c0_96] : memref<2x16x16x128xf32, #tpu.memory_space<vmem>>, vector<2x16x16x128xf32>
    tpu.vector_store %arg7[%c0_93, %c0_94, %c0_95, %c0_96], %224 {strides = array<i32>} : memref<2x16x16x128xf32, #tpu.memory_space<vmem>>, vector<2x16x16x128xf32>,
    return
  }
  func.func @transform_0(%arg0: i32) -> (i32, i32, i32, i32) {
    %c0_i32 = arith.constant 0 : i32
    %c0_i32_0 = arith.constant 0 : i32
    %c0_i32_1 = arith.constant 0 : i32
    %c0_i32_2 = arith.constant 0 : i32
    %c0_i32_3 = arith.constant 0 : i32
    return %c0_i32, %c0_i32_0, %c0_i32_1, %c0_i32_2 : i32, i32, i32, i32
  }
  func.func @transform_1(%arg0: i32) -> (i32, i32) {
    %c0_i32 = arith.constant 0 : i32
    %c0_i32_0 = arith.constant 0 : i32
    %c0_i32_1 = arith.constant 0 : i32
    return %c0_i32, %c0_i32_0 : i32, i32
  }
  func.func @transform_2(%arg0: i32) -> (i32, i32) {
    %c0_i32 = arith.constant 0 : i32
    %c0_i32_0 = arith.constant 0 : i32
    %c0_i32_1 = arith.constant 0 : i32
    return %c0_i32, %c0_i32_0 : i32, i32
  }
  func.func @transform_3(%arg0: i32) -> (i32, i32) {
    %c0_i32 = arith.constant 0 : i32
    %c0_i32_0 = arith.constant 0 : i32
    %c0_i32_1 = arith.constant 0 : i32
    return %c0_i32, %c0_i32_0 : i32, i32
  }
  func.func @transform_4(%arg0: i32) -> (i32, i32) {
    %c0_i32 = arith.constant 0 : i32
    %c0_i32_0 = arith.constant 0 : i32
    %c0_i32_1 = arith.constant 0 : i32
    return %c0_i32, %c0_i32_0 : i32, i32
  }
  func.func @transform_5(%arg0: i32) -> (i32, i32) {
    %c0_i32 = arith.constant 0 : i32
    %c0_i32_0 = arith.constant 0 : i32
    %c0_i32_1 = arith.constant 0 : i32
    return %c0_i32, %c0_i32_0 : i32, i32
  }
  func.func @transform_6(%arg0: i32) -> (i32, i32, i32, i32) {
    %c0_i32 = arith.constant 0 : i32
    %c0_i32_0 = arith.constant 0 : i32
    %c0_i32_1 = arith.constant 0 : i32
    %c0_i32_2 = arith.constant 0 : i32
    %c0_i32_3 = arith.constant 0 : i32
    return %c0_i32, %c0_i32_0, %c0_i32_1, %c0_i32_2 : i32, i32, i32, i32
  }
}

</mosaic_0001>

<llo_original>
// kernel: tpu_custom_call.1
$region0: #{tpu_custom_call.1}
  #allocation0 [shape = 'u32[]', space=smem, size = 0x4, offset = 0x4, fixed_abs, tag = 'smem constant byte address 0x4 - core index']
  #allocation1 [shape = 'u32[144,128]{1,0:T(1,128)}', space=vmem, size = 0x12000, scoped, tag = 'internal scratch']
  #allocation2 [shape = 'f32[2,18,16,32]{3,2,1,0:T(8,128)}', space=vmem, size = 0x48000, scoped, tag = 'scratch operand']
  #allocation3 [shape = 'f32[2,18,16,64]{3,2,1,0:T(8,128)}', space=vmem, size = 0x48000, scoped, tag = 'scratch operand']
  %s0 = inlined_call_operand.hbm [shape: f32[2,16,16,32], index: 0, kind: input, shape index: {}]
  %s1 = inlined_call_operand.vmem [shape: f32[11,32], index: 1, kind: input, shape index: {}]
  %s2 = inlined_call_operand.vmem [shape: f32[34,64], index: 2, kind: input, shape index: {}]
  %s3 = inlined_call_operand.vmem [shape: f32[11,64], index: 3, kind: input, shape index: {}]
  %s4 = inlined_call_operand.vmem [shape: f32[66,64], index: 4, kind: input, shape index: {}]
  %s5 = inlined_call_operand.vmem [shape: f32[65,128], index: 5, kind: input, shape index: {}]
  %s6 = inlined_call_operand.hbm [shape: f32[2,16,16,128], index: 6, kind: output, shape index: {}]
  %s7 = sld [smem:[#allocation0]]
  $region38: #{tpu_custom_call.1} parent=0
    _
  %s9 = ssub.s32 1, %s7
  %s10 = scalar_select 0, %s9, %s7
  $region1: #{tpu_custom_call.1} parent=0
    #allocation4 [shape = 'u8[262144]{0}', space=vmem, size = 0x40000, scoped, tag = 'input window, operand 0, single buffered']
    #allocation5 [shape = 's32[1]{0}', space=sflag, size = 0x4, scoped, tag = 'scoped memory for tpu_custom_call.1']
    #allocation6 [shape = 's32[1]{0}', space=sflag, size = 0x4, scoped, tag = 'scoped memory for tpu_custom_call.1']
    #allocation7 [shape = 'u8[262144]{0}', space=vmem, size = 0x40000, scoped, tag = 'output window, operand 0, single buffered']
    %11 = vsyncpa [#allocation5], 0
    %12 = vsyncpa [#allocation6], 0
    // Predicated region
    $region2: #{tpu_custom_call.1} parent=1 // pred_check
      _
    $region3: #{tpu_custom_call.1} parent=1 // pred_check_branch
      %14 = sbr.rel (0) target = $region5
    $region4: #{tpu_custom_call.1} parent=1 // pred_region
      %s16 = ssub.s32 8192, 8192
      %17 = vsyncadd [#allocation5], %s16
      %s18 = sshll.u32 [#allocation4], 4
      %s19 = int_to_ptr.vmem [resolvable:$true] %s18
      %24 = dma.hbm_to_vmem [thread:$0]  %s0, 8192, %s19, [#allocation5], 128, 128, 8
    $region5: #{tpu_custom_call.1} parent=1 // pred_fallthru
      _
    // Predicated region
    $region6: #{tpu_custom_call.1} parent=1 // pred_check
      _
    $region7: #{tpu_custom_call.1} parent=1 // pred_check_branch
      %26 = sbr.rel (0) target = $region9
    $region8: #{tpu_custom_call.1} parent=1 // pred_region
      _
    $region9: #{tpu_custom_call.1} parent=1 // pred_fallthru
      _
    // Predicated region
    $region10: #{tpu_custom_call.1} parent=1 // pred_check
      _
    $region11: #{tpu_custom_call.1} parent=1 // pred_check_branch
      %28 = sbr.rel (0) target = $region13
    $region12: #{tpu_custom_call.1} parent=1 // pred_region
      _
    $region13: #{tpu_custom_call.1} parent=1 // pred_fallthru
      _
    // Predicated region
    $region14: #{tpu_custom_call.1} parent=1 // pred_check
      _
    $region15: #{tpu_custom_call.1} parent=1 // pred_check_branch
      %30 = sbr.rel (0) target = $region17
    $region16: #{tpu_custom_call.1} parent=1 // pred_region
      _
    $region17: #{tpu_custom_call.1} parent=1 // pred_fallthru
      _
    // Predicated region
    $region18: #{tpu_custom_call.1} parent=1 // pred_check
      _
    $region19: #{tpu_custom_call.1} parent=1 // pred_check_branch
      %32 = sbr.rel (0) target = $region21
    $region20: #{tpu_custom_call.1} parent=1 // pred_region
      _
    $region21: #{tpu_custom_call.1} parent=1 // pred_fallthru
      _
    // Predicated region
    $region22: #{tpu_custom_call.1} parent=1 // pred_check
      _
    $region23: #{tpu_custom_call.1} parent=1 // pred_check_branch
      %34 = sbr.rel (0) target = $region25
    $region24: #{tpu_custom_call.1} parent=1 // pred_region
      _
    $region25: #{tpu_custom_call.1} parent=1 // pred_fallthru
      _
    // Predicated region
    $region26: #{tpu_custom_call.1} parent=1 // pred_check
      _
    $region27: #{tpu_custom_call.1} parent=1 // pred_check_branch
      %36 = sbr.rel (0) target = $region29
    $region28: #{tpu_custom_call.1} parent=1 // pred_region
      %37 = dma.done [#allocation5], 8192
    $region29: #{tpu_custom_call.1} parent=1 // pred_fallthru
      _
    %v38 = vld [vmem:[#allocation4] sm:$0xff]
    %v39 = vld [vmem:[#allocation4 + $0x8] sm:$0xff]
    %v40 = vld [vmem:[#allocation4 + $0x10] sm:$0xff]
    %v41 = vld [vmem:[#allocation4 + $0x18] sm:$0xff]
    %v42 = vld [vmem:[#allocation4 + $0x20] sm:$0xff]
    %v43 = vld [vmem:[#allocation4 + $0x28] sm:$0xff]
    %v44 = vld [vmem:[#allocation4 + $0x30] sm:$0xff]
    %v45 = vld [vmem:[#allocation4 + $0x38] sm:$0xff]
    %v46 = vld [vmem:[#allocation4 + $0x40] sm:$0xff]
    %v47 = vld [vmem:[#allocation4 + $0x48] sm:$0xff]
    %v48 = vld [vmem:[#allocation4 + $0x50] sm:$0xff]
    %v49 = vld [vmem:[#allocation4 + $0x58] sm:$0xff]
    %v50 = vld [vmem:[#allocation4 + $0x60] sm:$0xff]
    %v51 = vld [vmem:[#allocation4 + $0x68] sm:$0xff]
    %v52 = vld [vmem:[#allocation4 + $0x70] sm:$0xff]
    %v53 = vld [vmem:[#allocation4 + $0x78] sm:$0xff]
    %v54 = vld [vmem:[#allocation4 + $0x80] sm:$0xff]
    %v55 = vld [vmem:[#allocation4 + $0x88] sm:$0xff]
    %v56 = vld [vmem:[#allocation4 + $0x90] sm:$0xff]
    %v57 = vld [vmem:[#allocation4 + $0x98] sm:$0xff]
    %v58 = vld [vmem:[#allocation4 + $0xa0] sm:$0xff]
    %v59 = vld [vmem:[#allocation4 + $0xa8] sm:$0xff]
    %v60 = vld [vmem:[#allocation4 + $0xb0] sm:$0xff]
    %v61 = vld [vmem:[#allocation4 + $0xb8] sm:$0xff]
    %v62 = vld [vmem:[#allocation4 + $0xc0] sm:$0xff]
    %v63 = vld [vmem:[#allocation4 + $0xc8] sm:$0xff]
    %v64 = vld [vmem:[#allocation4 + $0xd0] sm:$0xff]
    %v65 = vld [vmem:[#allocation4 + $0xd8] sm:$0xff]
    %v66 = vld [vmem:[#allocation4 + $0xe0] sm:$0xff]
    %v67 = vld [vmem:[#allocation4 + $0xe8] sm:$0xff]
    %v68 = vld [vmem:[#allocation4 + $0xf0] sm:$0xff]
    %v69 = vld [vmem:[#allocation4 + $0xf8] sm:$0xff]
    %v70 = vld [vmem:[#allocation4 + $0x100] sm:$0xff]
    %v71 = vld [vmem:[#allocation4 + $0x108] sm:$0xff]
    %v72 = vld [vmem:[#allocation4 + $0x110] sm:$0xff]
    %v73 = vld [vmem:[#allocation4 + $0x118] sm:$0xff]
    %v74 = vld [vmem:[#allocation4 + $0x120] sm:$0xff]
    %v75 = vld [vmem:[#allocation4 + $0x128] sm:$0xff]
    %v76 = vld [vmem:[#allocation4 + $0x130] sm:$0xff]
    %v77 = vld [vmem:[#allocation4 + $0x138] sm:$0xff]
    %v78 = vld [vmem:[#allocation4 + $0x140] sm:$0xff]
    %v79 = vld [vmem:[#allocation4 + $0x148] sm:$0xff]
    %v80 = vld [vmem:[#allocation4 + $0x150] sm:$0xff]
    %v81 = vld [vmem:[#allocation4 + $0x158] sm:$0xff]
    %v82 = vld [vmem:[#allocation4 + $0x160] sm:$0xff]
    %v83 = vld [vmem:[#allocation4 + $0x168] sm:$0xff]
    %v84 = vld [vmem:[#allocation4 + $0x170] sm:$0xff]
    %v85 = vld [vmem:[#allocation4 + $0x178] sm:$0xff]
    %v86 = vld [vmem:[#allocation4 + $0x180] sm:$0xff]
    %v87 = vld [vmem:[#allocation4 + $0x188] sm:$0xff]
    %v88 = vld [vmem:[#allocation4 + $0x190] sm:$0xff]
    %v89 = vld [vmem:[#allocation4 + $0x198] sm:$0xff]
    %v90 = vld [vmem:[#allocation4 + $0x1a0] sm:$0xff]
    %v91 = vld [vmem:[#allocation4 + $0x1a8] sm:$0xff]
    %v92 = vld [vmem:[#allocation4 + $0x1b0] sm:$0xff]
    %v93 = vld [vmem:[#allocation4 + $0x1b8] sm:$0xff]
    %v94 = vld [vmem:[#allocation4 + $0x1c0] sm:$0xff]
    %v95 = vld [vmem:[#allocation4 + $0x1c8] sm:$0xff]
    %v96 = vld [vmem:[#allocation4 + $0x1d0] sm:$0xff]
    %v97 = vld [vmem:[#allocation4 + $0x1d8] sm:$0xff]
    %v98 = vld [vmem:[#allocation4 + $0x1e0] sm:$0xff]
    %v99 = vld [vmem:[#allocation4 + $0x1e8] sm:$0xff]
    %v100 = vld [vmem:[#allocation4 + $0x1f0] sm:$0xff]
    %v101 = vld [vmem:[#allocation4 + $0x1f8] sm:$0xff]
    %v102 = vld [vmem:[%s1] sm:$0xff]
    %v103 = vld [vmem:[%s1 + $0x8] sm:$0x7]
    %vm104 = vcmask 261120
    %105 = vst.msk [vmem:[#allocation2] sm:$0xff] %vm104, 0.0
    %106 = vst.msk [vmem:[#allocation2 + $0x8] sm:$0xff] %vm104, 0.0
    %107 = vst.msk [vmem:[#allocation2 + $0x120] sm:$0xff] %vm104, 0.0
    %108 = vst.msk [vmem:[#allocation2 + $0x128] sm:$0xff] %vm104, 0.0
    %s109 = scalar_lea.vmem [#allocation2], 272
    %110 = vst.msk [vmem:[%s109] sm:$0xff] %vm104, 0.0
    %111 = vst.msk [vmem:[%s109 + $0x8] sm:$0xff] %vm104, 0.0
    %112 = vst.msk [vmem:[%s109 + $0x120] sm:$0xff] %vm104, 0.0
    %113 = vst.msk [vmem:[%s109 + $0x128] sm:$0xff] %vm104, 0.0
    %s114 = scalar_lea.vmem [#allocation2], 16
    %115 = vst.msk [vmem:[%s114] sm:$0xff] %vm104, %v38
    %116 = vst.msk [vmem:[%s114 + $0x8] sm:$0xff] %vm104, %v39
    %117 = vst.msk [vmem:[%s114 + $0x10] sm:$0xff] %vm104, %v40
    %118 = vst.msk [vmem:[%s114 + $0x18] sm:$0xff] %vm104, %v41
    %119 = vst.msk [vmem:[%s114 + $0x20] sm:$0xff] %vm104, %v42
    %120 = vst.msk [vmem:[%s114 + $0x28] sm:$0xff] %vm104, %v43
    %121 = vst.msk [vmem:[%s114 + $0x30] sm:$0xff] %vm104, %v44
    %122 = vst.msk [vmem:[%s114 + $0x38] sm:$0xff] %vm104, %v45
    %123 = vst.msk [vmem:[%s114 + $0x40] sm:$0xff] %vm104, %v46
    %124 = vst.msk [vmem:[%s114 + $0x48] sm:$0xff] %vm104, %v47
    %125 = vst.msk [vmem:[%s114 + $0x50] sm:$0xff] %vm104, %v48
    %126 = vst.msk [vmem:[%s114 + $0x58] sm:$0xff] %vm104, %v49
    %127 = vst.msk [vmem:[%s114 + $0x60] sm:$0xff] %vm104, %v50
    %128 = vst.msk [vmem:[%s114 + $0x68] sm:$0xff] %vm104, %v51
    %129 = vst.msk [vmem:[%s114 + $0x70] sm:$0xff] %vm104, %v52
    %130 = vst.msk [vmem:[%s114 + $0x78] sm:$0xff] %vm104, %v53
    %131 = vst.msk [vmem:[%s114 + $0x80] sm:$0xff] %vm104, %v54
    %132 = vst.msk [vmem:[%s114 + $0x88] sm:$0xff] %vm104, %v55
    %133 = vst.msk [vmem:[%s114 + $0x90] sm:$0xff] %vm104, %v56
    %134 = vst.msk [vmem:[%s114 + $0x98] sm:$0xff] %vm104, %v57
    %135 = vst.msk [vmem:[%s114 + $0xa0] sm:$0xff] %vm104, %v58
    %136 = vst.msk [vmem:[%s114 + $0xa8] sm:$0xff] %vm104, %v59
    %137 = vst.msk [vmem:[%s114 + $0xb0] sm:$0xff] %vm104, %v60
    %138 = vst.msk [vmem:[%s114 + $0xb8] sm:$0xff] %vm104, %v61
    %139 = vst.msk [vmem:[%s114 + $0xc0] sm:$0xff] %vm104, %v62
    %140 = vst.msk [vmem:[%s114 + $0xc8] sm:$0xff] %vm104, %v63
    %141 = vst.msk [vmem:[%s114 + $0xd0] sm:$0xff] %vm104, %v64
    %142 = vst.msk [vmem:[%s114 + $0xd8] sm:$0xff] %vm104, %v65
    %143 = vst.msk [vmem:[%s114 + $0xe0] sm:$0xff] %vm104, %v66
    %144 = vst.msk [vmem:[%s114 + $0xe8] sm:$0xff] %vm104, %v67
    %145 = vst.msk [vmem:[%s114 + $0xf0] sm:$0xff] %vm104, %v68
    %146 = vst.msk [vmem:[%s114 + $0xf8] sm:$0xff] %vm104, %v69
    %147 = vst.msk [vmem:[%s114 + $0x120] sm:$0xff] %vm104, %v70
    %148 = vst.msk [vmem:[%s114 + $0x128] sm:$0xff] %vm104, %v71
    %149 = vst.msk [vmem:[%s114 + $0x130] sm:$0xff] %vm104, %v72
    %150 = vst.msk [vmem:[%s114 + $0x138] sm:$0xff] %vm104, %v73
    %151 = vst.msk [vmem:[%s114 + $0x140] sm:$0xff] %vm104, %v74
    %152 = vst.msk [vmem:[%s114 + $0x148] sm:$0xff] %vm104, %v75
    %153 = vst.msk [vmem:[%s114 + $0x150] sm:$0xff] %vm104, %v76
    %154 = vst.msk [vmem:[%s114 + $0x158] sm:$0xff] %vm104, %v77
    %155 = vst.msk [vmem:[%s114 + $0x160] sm:$0xff] %vm104, %v78
    %156 = vst.msk [vmem:[%s114 + $0x168] sm:$0xff] %vm104, %v79
    %157 = vst.msk [vmem:[%s114 + $0x170] sm:$0xff] %vm104, %v80
    %158 = vst.msk [vmem:[%s114 + $0x178] sm:$0xff] %vm104, %v81
    %159 = vst.msk [vmem:[%s114 + $0x180] sm:$0xff] %vm104, %v82
    %160 = vst.msk [vmem:[%s114 + $0x188] sm:$0xff] %vm104, %v83
    %161 = vst.msk [vmem:[%s114 + $0x190] sm:$0xff] %vm104, %v84
    %162 = vst.msk [vmem:[%s114 + $0x198] sm:$0xff] %vm104, %v85
    %163 = vst.msk [vmem:[%s114 + $0x1a0] sm:$0xff] %vm104, %v86
    %164 = vst.msk [vmem:[%s114 + $0x1a8] sm:$0xff] %vm104, %v87
    %165 = vst.msk [vmem:[%s114 + $0x1b0] sm:$0xff] %vm104, %v88
    %166 = vst.msk [vmem:[%s114 + $0x1b8] sm:$0xff] %vm104, %v89
    %167 = vst.msk [vmem:[%s114 + $0x1c0] sm:$0xff] %vm104, %v90
    %168 = vst.msk [vmem:[%s114 + $0x1c8] sm:$0xff] %vm104, %v91
    %169 = vst.msk [vmem:[%s114 + $0x1d0] sm:$0xff] %vm104, %v92
    %170 = vst.msk [vmem:[%s114 + $0x1d8] sm:$0xff] %vm104, %v93
    %171 = vst.msk [vmem:[%s114 + $0x1e0] sm:$0xff] %vm104, %v94
    %172 = vst.msk [vmem:[%s114 + $0x1e8] sm:$0xff] %vm104, %v95
    %173 = vst.msk [vmem:[%s114 + $0x1f0] sm:$0xff] %vm104, %v96
    %174 = vst.msk [vmem:[%s114 + $0x1f8] sm:$0xff] %vm104, %v97
    %175 = vst.msk [vmem:[%s114 + $0x200] sm:$0xff] %vm104, %v98
    %176 = vst.msk [vmem:[%s114 + $0x208] sm:$0xff] %vm104, %v99
    %177 = vst.msk [vmem:[%s114 + $0x210] sm:$0xff] %vm104, %v100
    %178 = vst.msk [vmem:[%s114 + $0x218] sm:$0xff] %vm104, %v101
    %v179 = vlaneseq
    %v180 = vshrl.u32 %v179, 7
    %v181 = vadd.s32 %v180, 8
    %vm182 = vcmp.gt.s32.totalorder %v180, 0
    %vm183 = vcmp.gt.s32.totalorder %v181, 0
    %vm184 = vcmp.lt.s32.totalorder %v180, 15
    %vm185 = vcmp.lt.s32.totalorder %v181, 15
    %v186 = vld [vmem:[#allocation2] sm:$0xff]
    %v187 = vld [vmem:[#allocation2 + $0x8] sm:$0xff]
    %v188 = vld [vmem:[#allocation2 + $0x10] sm:$0xff]
    %v189 = vld [vmem:[#allocation2 + $0x18] sm:$0xff]
    %v190 = vld [vmem:[#allocation2 + $0x20] sm:$0xff]
    %v191 = vld [vmem:[#allocation2 + $0x28] sm:$0xff]
    %v192 = vld [vmem:[#allocation2 + $0x30] sm:$0xff]
    %v193 = vld [vmem:[#allocation2 + $0x38] sm:$0xff]
    %v194 = vld [vmem:[#allocation2 + $0x40] sm:$0xff]
    %v195 = vld [vmem:[#allocation2 + $0x48] sm:$0xff]
    %v196 = vld [vmem:[#allocation2 + $0x50] sm:$0xff]
    %v197 = vld [vmem:[#allocation2 + $0x58] sm:$0xff]
    %v198 = vld [vmem:[#allocation2 + $0x60] sm:$0xff]
    %v199 = vld [vmem:[#allocation2 + $0x68] sm:$0xff]
    %v200 = vld [vmem:[#allocation2 + $0x70] sm:$0xff]
    %v201 = vld [vmem:[#allocation2 + $0x78] sm:$0xff]
    %v202 = vld [vmem:[#allocation2 + $0x80] sm:$0xff]
    %v203 = vld [vmem:[#allocation2 + $0x88] sm:$0xff]
    %v204 = vld [vmem:[#allocation2 + $0x90] sm:$0xff]
    %v205 = vld [vmem:[#allocation2 + $0x98] sm:$0xff]
    %v206 = vld [vmem:[#allocation2 + $0xa0] sm:$0xff]
    %v207 = vld [vmem:[#allocation2 + $0xa8] sm:$0xff]
    %v208 = vld [vmem:[#allocation2 + $0xb0] sm:$0xff]
    %v209 = vld [vmem:[#allocation2 + $0xb8] sm:$0xff]
    %v210 = vld [vmem:[#allocation2 + $0xc0] sm:$0xff]
    %v211 = vld [vmem:[#allocation2 + $0xc8] sm:$0xff]
    %v212 = vld [vmem:[#allocation2 + $0xd0] sm:$0xff]
    %v213 = vld [vmem:[#allocation2 + $0xd8] sm:$0xff]
    %v214 = vld [vmem:[#allocation2 + $0xe0] sm:$0xff]
    %v215 = vld [vmem:[#allocation2 + $0xe8] sm:$0xff]
    %v216 = vld [vmem:[#allocation2 + $0xf0] sm:$0xff]
    %v217 = vld [vmem:[#allocation2 + $0xf8] sm:$0xff]
    %v218 = vld [vmem:[#allocation2 + $0x120] sm:$0xff]
    %v219 = vld [vmem:[#allocation2 + $0x128] sm:$0xff]
    %v220 = vld [vmem:[#allocation2 + $0x130] sm:$0xff]
    %v221 = vld [vmem:[#allocation2 + $0x138] sm:$0xff]
    %v222 = vld [vmem:[#allocation2 + $0x140] sm:$0xff]
    %v223 = vld [vmem:[#allocation2 + $0x148] sm:$0xff]
    %v224 = vld [vmem:[#allocation2 + $0x150] sm:$0xff]
    %v225 = vld [vmem:[#allocation2 + $0x158] sm:$0xff]
    %v226 = vld [vmem:[#allocation2 + $0x160] sm:$0xff]
    %v227 = vld [vmem:[#allocation2 + $0x168] sm:$0xff]
    %v228 = vld [vmem:[#allocation2 + $0x170] sm:$0xff]
    %v229 = vld [vmem:[#allocation2 + $0x178] sm:$0xff]
    %v230 = vld [vmem:[#allocation2 + $0x180] sm:$0xff]
    %v231 = vld [vmem:[#allocation2 + $0x188] sm:$0xff]
    %v232 = vld [vmem:[#allocation2 + $0x190] sm:$0xff]
    %v233 = vld [vmem:[#allocation2 + $0x198] sm:$0xff]
    %v234 = vld [vmem:[#allocation2 + $0x1a0] sm:$0xff]
    %v235 = vld [vmem:[#allocation2 + $0x1a8] sm:$0xff]
    %v236 = vld [vmem:[#allocation2 + $0x1b0] sm:$0xff]
    %v237 = vld [vmem:[#allocation2 + $0x1b8] sm:$0xff]
    %v238 = vld [vmem:[#allocation2 + $0x1c0] sm:$0xff]
    %v239 = vld [vmem:[#allocation2 + $0x1c8] sm:$0xff]
    %v240 = vld [vmem:[#allocation2 + $0x1d0] sm:$0xff]
    %v241 = vld [vmem:[#allocation2 + $0x1d8] sm:$0xff]
    %v242 = vld [vmem:[#allocation2 + $0x1e0] sm:$0xff]
    %v243 = vld [vmem:[#allocation2 + $0x1e8] sm:$0xff]
    %v244 = vld [vmem:[#allocation2 + $0x1f0] sm:$0xff]
    %v245 = vld [vmem:[#allocation2 + $0x1f8] sm:$0xff]
    %v246 = vld [vmem:[#allocation2 + $0x200] sm:$0xff]
    %v247 = vld [vmem:[#allocation2 + $0x208] sm:$0xff]
    %v248 = vld [vmem:[#allocation2 + $0x210] sm:$0xff]
    %v249 = vld [vmem:[#allocation2 + $0x218] sm:$0xff]
    %v250 = vrot.slane %v186, 7
    %v251 = vrot.slane %v188, 7
    %v252 = vrot.slane %v190, 7
    %v253 = vrot.slane %v192, 7
    %v254 = vrot.slane %v194, 7
    %v255 = vrot.slane %v196, 7
    %v256 = vrot.slane %v198, 7
    %v257 = vrot.slane %v200, 7
    %v258 = vrot.slane %v202, 7
    %v259 = vrot.slane %v204, 7
    %v260 = vrot.slane %v206, 7
    %v261 = vrot.slane %v208, 7
    %v262 = vrot.slane %v210, 7
    %v263 = vrot.slane %v212, 7
    %v264 = vrot.slane %v214, 7
    %v265 = vrot.slane %v216, 7
    %v266 = vrot.slane %v218, 7
    %v267 = vrot.slane %v220, 7
    %v268 = vrot.slane %v222, 7
    %v269 = vrot.slane %v224, 7
    %v270 = vrot.slane %v226, 7
    %v271 = vrot.slane %v228, 7
    %v272 = vrot.slane %v230, 7
    %v273 = vrot.slane %v232, 7
    %v274 = vrot.slane %v234, 7
    %v275 = vrot.slane %v236, 7
    %v276 = vrot.slane %v238, 7
    %v277 = vrot.slane %v240, 7
    %v278 = vrot.slane %v242, 7
    %v279 = vrot.slane %v244, 7
    %v280 = vrot.slane %v246, 7
    %v281 = vrot.slane %v248, 7
    %v282 = vrot.slane %v187, 7
    %v283 = vrot.slane %v189, 7
    %v284 = vrot.slane %v191, 7
    %v285 = vrot.slane %v193, 7
    %v286 = vrot.slane %v195, 7
    %v287 = vrot.slane %v197, 7
    %v288 = vrot.slane %v199, 7
    %v289 = vrot.slane %v201, 7
    %v290 = vrot.slane %v203, 7
    %v291 = vrot.slane %v205, 7
    %v292 = vrot.slane %v207, 7
    %v293 = vrot.slane %v209, 7
    %v294 = vrot.slane %v211, 7
    %v295 = vrot.slane %v213, 7
    %v296 = vrot.slane %v215, 7
    %v297 = vrot.slane %v217, 7
    %v298 = vrot.slane %v219, 7
    %v299 = vrot.slane %v221, 7
    %v300 = vrot.slane %v223, 7
    %v301 = vrot.slane %v225, 7
    %v302 = vrot.slane %v227, 7
    %v303 = vrot.slane %v229, 7
    %v304 = vrot.slane %v231, 7
    %v305 = vrot.slane %v233, 7
    %v306 = vrot.slane %v235, 7
    %v307 = vrot.slane %v237, 7
    %v308 = vrot.slane %v239, 7
    %v309 = vrot.slane %v241, 7
    %v310 = vrot.slane %v243, 7
    %v311 = vrot.slane %v245, 7
    %v312 = vrot.slane %v247, 7
    %v313 = vrot.slane %v249, 7
    %vm314 = vcmp.lt.s32.totalorder %v180, 1
    %v315 = vsel %vm314, %v250, %v282
    %v316 = vsel %vm314, %v251, %v283
    %v317 = vsel %vm314, %v252, %v284
    %v318 = vsel %vm314, %v253, %v285
    %v319 = vsel %vm314, %v254, %v286
    %v320 = vsel %vm314, %v255, %v287
    %v321 = vsel %vm314, %v256, %v288
    %v322 = vsel %vm314, %v257, %v289
    %v323 = vsel %vm314, %v258, %v290
    %v324 = vsel %vm314, %v259, %v291
    %v325 = vsel %vm314, %v260, %v292
    %v326 = vsel %vm314, %v261, %v293
    %v327 = vsel %vm314, %v262, %v294
    %v328 = vsel %vm314, %v263, %v295
    %v329 = vsel %vm314, %v264, %v296
    %v330 = vsel %vm314, %v265, %v297
    %v331 = vsel %vm314, %v266, %v298
    %v332 = vsel %vm314, %v267, %v299
    %v333 = vsel %vm314, %v268, %v300
    %v334 = vsel %vm314, %v269, %v301
    %v335 = vsel %vm314, %v270, %v302
    %v336 = vsel %vm314, %v271, %v303
    %v337 = vsel %vm314, %v272, %v304
    %v338 = vsel %vm314, %v273, %v305
    %v339 = vsel %vm314, %v274, %v306
    %v340 = vsel %vm314, %v275, %v307
    %v341 = vsel %vm314, %v276, %v308
    %v342 = vsel %vm314, %v277, %v309
    %v343 = vsel %vm314, %v278, %v310
    %v344 = vsel %vm314, %v279, %v311
    %v345 = vsel %vm314, %v280, %v312
    %v346 = vsel %vm314, %v281, %v313
    %v347 = vsel %vm314, %v282, %v250
    %v348 = vsel %vm314, %v283, %v251
    %v349 = vsel %vm314, %v284, %v252
    %v350 = vsel %vm314, %v285, %v253
    %v351 = vsel %vm314, %v286, %v254
    %v352 = vsel %vm314, %v287, %v255
    %v353 = vsel %vm314, %v288, %v256
    %v354 = vsel %vm314, %v289, %v257
    %v355 = vsel %vm314, %v290, %v258
    %v356 = vsel %vm314, %v291, %v259
    %v357 = vsel %vm314, %v292, %v260
    %v358 = vsel %vm314, %v293, %v261
    %v359 = vsel %vm314, %v294, %v262
    %v360 = vsel %vm314, %v295, %v263
    %v361 = vsel %vm314, %v296, %v264
    %v362 = vsel %vm314, %v297, %v265
    %v363 = vsel %vm314, %v298, %v266
    %v364 = vsel %vm314, %v299, %v267
    %v365 = vsel %vm314, %v300, %v268
    %v366 = vsel %vm314, %v301, %v269
    %v367 = vsel %vm314, %v302, %v270
    %v368 = vsel %vm314, %v303, %v271
    %v369 = vsel %vm314, %v304, %v272
    %v370 = vsel %vm314, %v305, %v273
    %v371 = vsel %vm314, %v306, %v274
    %v372 = vsel %vm314, %v307, %v275
    %v373 = vsel %vm314, %v308, %v276
    %v374 = vsel %vm314, %v309, %v277
    %v375 = vsel %vm314, %v310, %v278
    %v376 = vsel %vm314, %v311, %v279
    %v377 = vsel %vm314, %v312, %v280
    %v378 = vsel %vm314, %v313, %v281
    %v379 = vsel %vm182, %v347, 0.0
    %v380 = vsel %vm183, %v315, 0.0
    %v381 = vsel %vm182, %v348, 0.0
    %v382 = vsel %vm183, %v316, 0.0
    %v383 = vsel %vm182, %v349, 0.0
    %v384 = vsel %vm183, %v317, 0.0
    %v385 = vsel %vm182, %v350, 0.0
    %v386 = vsel %vm183, %v318, 0.0
    %v387 = vsel %vm182, %v351, 0.0
    %v388 = vsel %vm183, %v319, 0.0
    %v389 = vsel %vm182, %v352, 0.0
    %v390 = vsel %vm183, %v320, 0.0
    %v391 = vsel %vm182, %v353, 0.0
    %v392 = vsel %vm183, %v321, 0.0
    %v393 = vsel %vm182, %v354, 0.0
    %v394 = vsel %vm183, %v322, 0.0
    %v395 = vsel %vm182, %v355, 0.0
    %v396 = vsel %vm183, %v323, 0.0
    %v397 = vsel %vm182, %v356, 0.0
    %v398 = vsel %vm183, %v324, 0.0
    %v399 = vsel %vm182, %v357, 0.0
    %v400 = vsel %vm183, %v325, 0.0
    %v401 = vsel %vm182, %v358, 0.0
    %v402 = vsel %vm183, %v326, 0.0
    %v403 = vsel %vm182, %v359, 0.0
    %v404 = vsel %vm183, %v327, 0.0
    %v405 = vsel %vm182, %v360, 0.0
    %v406 = vsel %vm183, %v328, 0.0
    %v407 = vsel %vm182, %v361, 0.0
    %v408 = vsel %vm183, %v329, 0.0
    %v409 = vsel %vm182, %v362, 0.0
    %v410 = vsel %vm183, %v330, 0.0
    %v411 = vsel %vm182, %v363, 0.0
    %v412 = vsel %vm183, %v331, 0.0
    %v413 = vsel %vm182, %v364, 0.0
    %v414 = vsel %vm183, %v332, 0.0
    %v415 = vsel %vm182, %v365, 0.0
    %v416 = vsel %vm183, %v333, 0.0
    %v417 = vsel %vm182, %v366, 0.0
    %v418 = vsel %vm183, %v334, 0.0
    %v419 = vsel %vm182, %v367, 0.0
    %v420 = vsel %vm183, %v335, 0.0
    %v421 = vsel %vm182, %v368, 0.0
    %v422 = vsel %vm183, %v336, 0.0
    %v423 = vsel %vm182, %v369, 0.0
    %v424 = vsel %vm183, %v337, 0.0
    %v425 = vsel %vm182, %v370, 0.0
    %v426 = vsel %vm183, %v338, 0.0
    %v427 = vsel %vm182, %v371, 0.0
    %v428 = vsel %vm183, %v339, 0.0
    %v429 = vsel %vm182, %v372, 0.0
    %v430 = vsel %vm183, %v340, 0.0
    %v431 = vsel %vm182, %v373, 0.0
    %v432 = vsel %vm183, %v341, 0.0
    %v433 = vsel %vm182, %v374, 0.0
    %v434 = vsel %vm183, %v342, 0.0
    %v435 = vsel %vm182, %v375, 0.0
    %v436 = vsel %vm183, %v343, 0.0
    %v437 = vsel %vm182, %v376, 0.0
    %v438 = vsel %vm183, %v344, 0.0
    %v439 = vsel %vm182, %v377, 0.0
    %v440 = vsel %vm183, %v345, 0.0
    %v441 = vsel %vm182, %v378, 0.0
    %v442 = vsel %vm183, %v346, 0.0
    %v443 = vlaneseq
    %v444 = vshrl.u32 %v443, 7
    %v445 = vsub.s32 0, %v444
    %v446 = vrot.slane %v102, %v445
    %v447 = vmul.f32 %v379, %v446
    %v448 = vmul.f32 %v380, %v446
    %v449 = vmul.f32 %v381, %v446
    %v450 = vmul.f32 %v382, %v446
    %v451 = vmul.f32 %v383, %v446
    %v452 = vmul.f32 %v384, %v446
    %v453 = vmul.f32 %v385, %v446
    %v454 = vmul.f32 %v386, %v446
    %v455 = vmul.f32 %v387, %v446
    %v456 = vmul.f32 %v388, %v446
    %v457 = vmul.f32 %v389, %v446
    %v458 = vmul.f32 %v390, %v446
    %v459 = vmul.f32 %v391, %v446
    %v460 = vmul.f32 %v392, %v446
    %v461 = vmul.f32 %v393, %v446
    %v462 = vmul.f32 %v394, %v446
    %v463 = vmul.f32 %v395, %v446
    %v464 = vmul.f32 %v396, %v446
    %v465 = vmul.f32 %v397, %v446
    %v466 = vmul.f32 %v398, %v446
    %v467 = vmul.f32 %v399, %v446
    %v468 = vmul.f32 %v400, %v446
    %v469 = vmul.f32 %v401, %v446
    %v470 = vmul.f32 %v402, %v446
    %v471 = vmul.f32 %v403, %v446
    %v472 = vmul.f32 %v404, %v446
    %v473 = vmul.f32 %v405, %v446
    %v474 = vmul.f32 %v406, %v446
    %v475 = vmul.f32 %v407, %v446
    %v476 = vmul.f32 %v408, %v446
    %v477 = vmul.f32 %v409, %v446
    %v478 = vmul.f32 %v410, %v446
    %v479 = vmul.f32 %v411, %v446
    %v480 = vmul.f32 %v412, %v446
    %v481 = vmul.f32 %v413, %v446
    %v482 = vmul.f32 %v414, %v446
    %v483 = vmul.f32 %v415, %v446
    %v484 = vmul.f32 %v416, %v446
    %v485 = vmul.f32 %v417, %v446
    %v486 = vmul.f32 %v418, %v446
    %v487 = vmul.f32 %v419, %v446
    %v488 = vmul.f32 %v420, %v446
    %v489 = vmul.f32 %v421, %v446
    %v490 = vmul.f32 %v422, %v446
    %v491 = vmul.f32 %v423, %v446
    %v492 = vmul.f32 %v424, %v446
    %v493 = vmul.f32 %v425, %v446
    %v494 = vmul.f32 %v426, %v446
    %v495 = vmul.f32 %v427, %v446
    %v496 = vmul.f32 %v428, %v446
    %v497 = vmul.f32 %v429, %v446
    %v498 = vmul.f32 %v430, %v446
    %v499 = vmul.f32 %v431, %v446
    %v500 = vmul.f32 %v432, %v446
    %v501 = vmul.f32 %v433, %v446
    %v502 = vmul.f32 %v434, %v446
    %v503 = vmul.f32 %v435, %v446
    %v504 = vmul.f32 %v436, %v446
    %v505 = vmul.f32 %v437, %v446
    %v506 = vmul.f32 %v438, %v446
    %v507 = vmul.f32 %v439, %v446
    %v508 = vmul.f32 %v440, %v446
    %v509 = vmul.f32 %v441, %v446
    %v510 = vmul.f32 %v442, %v446
    %v511 = vadd.f32 %v447, 0.0
    %v512 = vadd.f32 %v448, 0.0
    %v513 = vadd.f32 %v449, 0.0
    %v514 = vadd.f32 %v450, 0.0
    %v515 = vadd.f32 %v451, 0.0
    %v516 = vadd.f32 %v452, 0.0
    %v517 = vadd.f32 %v453, 0.0
    %v518 = vadd.f32 %v454, 0.0
    %v519 = vadd.f32 %v455, 0.0
    %v520 = vadd.f32 %v456, 0.0
    %v521 = vadd.f32 %v457, 0.0
    %v522 = vadd.f32 %v458, 0.0
    %v523 = vadd.f32 %v459, 0.0
    %v524 = vadd.f32 %v460, 0.0
    %v525 = vadd.f32 %v461, 0.0
    %v526 = vadd.f32 %v462, 0.0
    %v527 = vadd.f32 %v463, 0.0
    %v528 = vadd.f32 %v464, 0.0
    %v529 = vadd.f32 %v465, 0.0
    %v530 = vadd.f32 %v466, 0.0
    %v531 = vadd.f32 %v467, 0.0
    %v532 = vadd.f32 %v468, 0.0
    %v533 = vadd.f32 %v469, 0.0
    %v534 = vadd.f32 %v470, 0.0
    %v535 = vadd.f32 %v471, 0.0
    %v536 = vadd.f32 %v472, 0.0
    %v537 = vadd.f32 %v473, 0.0
    %v538 = vadd.f32 %v474, 0.0
    %v539 = vadd.f32 %v475, 0.0
    %v540 = vadd.f32 %v476, 0.0
    %v541 = vadd.f32 %v477, 0.0
    %v542 = vadd.f32 %v478, 0.0
    %v543 = vadd.f32 %v479, 0.0
    %v544 = vadd.f32 %v480, 0.0
    %v545 = vadd.f32 %v481, 0.0
    %v546 = vadd.f32 %v482, 0.0
    %v547 = vadd.f32 %v483, 0.0
    %v548 = vadd.f32 %v484, 0.0
    %v549 = vadd.f32 %v485, 0.0
    %v550 = vadd.f32 %v486, 0.0
    %v551 = vadd.f32 %v487, 0.0
    %v552 = vadd.f32 %v488, 0.0
    %v553 = vadd.f32 %v489, 0.0
    %v554 = vadd.f32 %v490, 0.0
    %v555 = vadd.f32 %v491, 0.0
    %v556 = vadd.f32 %v492, 0.0
    %v557 = vadd.f32 %v493, 0.0
    %v558 = vadd.f32 %v494, 0.0
    %v559 = vadd.f32 %v495, 0.0
    %v560 = vadd.f32 %v496, 0.0
    %v561 = vadd.f32 %v497, 0.0
    %v562 = vadd.f32 %v498, 0.0
    %v563 = vadd.f32 %v499, 0.0
    %v564 = vadd.f32 %v500, 0.0
    %v565 = vadd.f32 %v501, 0.0
    %v566 = vadd.f32 %v502, 0.0
    %v567 = vadd.f32 %v503, 0.0
    %v568 = vadd.f32 %v504, 0.0
    %v569 = vadd.f32 %v505, 0.0
    %v570 = vadd.f32 %v506, 0.0
    %v571 = vadd.f32 %v507, 0.0
    %v572 = vadd.f32 %v508, 0.0
    %v573 = vadd.f32 %v509, 0.0
    %v574 = vadd.f32 %v510, 0.0
    %v575 = vlaneseq
    %v576 = vshrl.u32 %v575, 7
    %v577 = vsub.s32 1, %v576
    %v578 = vrot.slane %v102, %v577
    %v579 = vmul.f32 %v186, %v578
    %v580 = vmul.f32 %v187, %v578
    %v581 = vmul.f32 %v188, %v578
    %v582 = vmul.f32 %v189, %v578
    %v583 = vmul.f32 %v190, %v578
    %v584 = vmul.f32 %v191, %v578
    %v585 = vmul.f32 %v192, %v578
    %v586 = vmul.f32 %v193, %v578
    %v587 = vmul.f32 %v194, %v578
    %v588 = vmul.f32 %v195, %v578
    %v589 = vmul.f32 %v196, %v578
    %v590 = vmul.f32 %v197, %v578
    %v591 = vmul.f32 %v198, %v578
    %v592 = vmul.f32 %v199, %v578
    %v593 = vmul.f32 %v200, %v578
    %v594 = vmul.f32 %v201, %v578
    %v595 = vmul.f32 %v202, %v578
    %v596 = vmul.f32 %v203, %v578
    %v597 = vmul.f32 %v204, %v578
    %v598 = vmul.f32 %v205, %v578
    %v599 = vmul.f32 %v206, %v578
    %v600 = vmul.f32 %v207, %v578
    %v601 = vmul.f32 %v208, %v578
    %v602 = vmul.f32 %v209, %v578
    %v603 = vmul.f32 %v210, %v578
    %v604 = vmul.f32 %v211, %v578
    %v605 = vmul.f32 %v212, %v578
    %v606 = vmul.f32 %v213, %v578
    %v607 = vmul.f32 %v214, %v578
    %v608 = vmul.f32 %v215, %v578
    %v609 = vmul.f32 %v216, %v578
    %v610 = vmul.f32 %v217, %v578
    %v611 = vmul.f32 %v218, %v578
    %v612 = vmul.f32 %v219, %v578
    %v613 = vmul.f32 %v220, %v578
    %v614 = vmul.f32 %v221, %v578
    %v615 = vmul.f32 %v222, %v578
    %v616 = vmul.f32 %v223, %v578
    %v617 = vmul.f32 %v224, %v578
    %v618 = vmul.f32 %v225, %v578
    %v619 = vmul.f32 %v226, %v578
    %v620 = vmul.f32 %v227, %v578
    %v621 = vmul.f32 %v228, %v578
    %v622 = vmul.f32 %v229, %v578
    %v623 = vmul.f32 %v230, %v578
    %v624 = vmul.f32 %v231, %v578
    %v625 = vmul.f32 %v232, %v578
    %v626 = vmul.f32 %v233, %v578
    %v627 = vmul.f32 %v234, %v578
    %v628 = vmul.f32 %v235, %v578
    %v629 = vmul.f32 %v236, %v578
    %v630 = vmul.f32 %v237, %v578
    %v631 = vmul.f32 %v238, %v578
    %v632 = vmul.f32 %v239, %v578
    %v633 = vmul.f32 %v240, %v578
    %v634 = vmul.f32 %v241, %v578
    %v635 = vmul.f32 %v242, %v578
    %v636 = vmul.f32 %v243, %v578
    %v637 = vmul.f32 %v244, %v578
    %v638 = vmul.f32 %v245, %v578
    %v639 = vmul.f32 %v246, %v578
    %v640 = vmul.f32 %v247, %v578
    %v641 = vmul.f32 %v248, %v578
    %v642 = vmul.f32 %v249, %v578
    %v643 = vadd.f32 %v511, %v579
    %v644 = vadd.f32 %v512, %v580
    %v645 = vadd.f32 %v513, %v581
    %v646 = vadd.f32 %v514, %v582
    %v647 = vadd.f32 %v515, %v583
    %v648 = vadd.f32 %v516, %v584
    %v649 = vadd.f32 %v517, %v585
    %v650 = vadd.f32 %v518, %v586
    %v651 = vadd.f32 %v519, %v587
    %v652 = vadd.f32 %v520, %v588
    %v653 = vadd.f32 %v521, %v589
    %v654 = vadd.f32 %v522, %v590
    %v655 = vadd.f32 %v523, %v591
    %v656 = vadd.f32 %v524, %v592
    %v657 = vadd.f32 %v525, %v593
    %v658 = vadd.f32 %v526, %v594
    %v659 = vadd.f32 %v527, %v595
    %v660 = vadd.f32 %v528, %v596
    %v661 = vadd.f32 %v529, %v597
    %v662 = vadd.f32 %v530, %v598
    %v663 = vadd.f32 %v531, %v599
    %v664 = vadd.f32 %v532, %v600
    %v665 = vadd.f32 %v533, %v601
    %v666 = vadd.f32 %v534, %v602
    %v667 = vadd.f32 %v535, %v603
    %v668 = vadd.f32 %v536, %v604
    %v669 = vadd.f32 %v537, %v605
    %v670 = vadd.f32 %v538, %v606
    %v671 = vadd.f32 %v539, %v607
    %v672 = vadd.f32 %v540, %v608
    %v673 = vadd.f32 %v541, %v609
    %v674 = vadd.f32 %v542, %v610
    %v675 = vadd.f32 %v543, %v611
    %v676 = vadd.f32 %v544, %v612
    %v677 = vadd.f32 %v545, %v613
    %v678 = vadd.f32 %v546, %v614
    %v679 = vadd.f32 %v547, %v615
    %v680 = vadd.f32 %v548, %v616
    %v681 = vadd.f32 %v549, %v617
    %v682 = vadd.f32 %v550, %v618
    %v683 = vadd.f32 %v551, %v619
    %v684 = vadd.f32 %v552, %v620
    %v685 = vadd.f32 %v553, %v621
    %v686 = vadd.f32 %v554, %v622
    %v687 = vadd.f32 %v555, %v623
    %v688 = vadd.f32 %v556, %v624
    %v689 = vadd.f32 %v557, %v625
    %v690 = vadd.f32 %v558, %v626
    %v691 = vadd.f32 %v559, %v627
    %v692 = vadd.f32 %v560, %v628
    %v693 = vadd.f32 %v561, %v629
    %v694 = vadd.f32 %v562, %v630
    %v695 = vadd.f32 %v563, %v631
    %v696 = vadd.f32 %v564, %v632
    %v697 = vadd.f32 %v565, %v633
    %v698 = vadd.f32 %v566, %v634
    %v699 = vadd.f32 %v567, %v635
    %v700 = vadd.f32 %v568, %v636
    %v701 = vadd.f32 %v569, %v637
    %v702 = vadd.f32 %v570, %v638
    %v703 = vadd.f32 %v571, %v639
    %v704 = vadd.f32 %v572, %v640
    %v705 = vadd.f32 %v573, %v641
    %v706 = vadd.f32 %v574, %v642
    %v707 = vrot.slane %v186, 1
    %v708 = vrot.slane %v188, 1
    %v709 = vrot.slane %v190, 1
    %v710 = vrot.slane %v192, 1
    %v711 = vrot.slane %v194, 1
    %v712 = vrot.slane %v196, 1
    %v713 = vrot.slane %v198, 1
    %v714 = vrot.slane %v200, 1
    %v715 = vrot.slane %v202, 1
    %v716 = vrot.slane %v204, 1
    %v717 = vrot.slane %v206, 1
    %v718 = vrot.slane %v208, 1
    %v719 = vrot.slane %v210, 1
    %v720 = vrot.slane %v212, 1
    %v721 = vrot.slane %v214, 1
    %v722 = vrot.slane %v216, 1
    %v723 = vrot.slane %v218, 1
    %v724 = vrot.slane %v220, 1
    %v725 = vrot.slane %v222, 1
    %v726 = vrot.slane %v224, 1
    %v727 = vrot.slane %v226, 1
    %v728 = vrot.slane %v228, 1
    %v729 = vrot.slane %v230, 1
    %v730 = vrot.slane %v232, 1
    %v731 = vrot.slane %v234, 1
    %v732 = vrot.slane %v236, 1
    %v733 = vrot.slane %v238, 1
    %v734 = vrot.slane %v240, 1
    %v735 = vrot.slane %v242, 1
    %v736 = vrot.slane %v244, 1
    %v737 = vrot.slane %v246, 1
    %v738 = vrot.slane %v248, 1
    %v739 = vrot.slane %v187, 1
    %v740 = vrot.slane %v189, 1
    %v741 = vrot.slane %v191, 1
    %v742 = vrot.slane %v193, 1
    %v743 = vrot.slane %v195, 1
    %v744 = vrot.slane %v197, 1
    %v745 = vrot.slane %v199, 1
    %v746 = vrot.slane %v201, 1
    %v747 = vrot.slane %v203, 1
    %v748 = vrot.slane %v205, 1
    %v749 = vrot.slane %v207, 1
    %v750 = vrot.slane %v209, 1
    %v751 = vrot.slane %v211, 1
    %v752 = vrot.slane %v213, 1
    %v753 = vrot.slane %v215, 1
    %v754 = vrot.slane %v217, 1
    %v755 = vrot.slane %v219, 1
    %v756 = vrot.slane %v221, 1
    %v757 = vrot.slane %v223, 1
    %v758 = vrot.slane %v225, 1
    %v759 = vrot.slane %v227, 1
    %v760 = vrot.slane %v229, 1
    %v761 = vrot.slane %v231, 1
    %v762 = vrot.slane %v233, 1
    %v763 = vrot.slane %v235, 1
    %v764 = vrot.slane %v237, 1
    %v765 = vrot.slane %v239, 1
    %v766 = vrot.slane %v241, 1
    %v767 = vrot.slane %v243, 1
    %v768 = vrot.slane %v245, 1
    %v769 = vrot.slane %v247, 1
    %v770 = vrot.slane %v249, 1
    %vm771 = vcmp.lt.s32.totalorder %v180, 7
    %v772 = vsel %vm771, %v707, %v739
    %v773 = vsel %vm771, %v708, %v740
    %v774 = vsel %vm771, %v709, %v741
    %v775 = vsel %vm771, %v710, %v742
    %v776 = vsel %vm771, %v711, %v743
    %v777 = vsel %vm771, %v712, %v744
    %v778 = vsel %vm771, %v713, %v745
    %v779 = vsel %vm771, %v714, %v746
    %v780 = vsel %vm771, %v715, %v747
    %v781 = vsel %vm771, %v716, %v748
    %v782 = vsel %vm771, %v717, %v749
    %v783 = vsel %vm771, %v718, %v750
    %v784 = vsel %vm771, %v719, %v751
    %v785 = vsel %vm771, %v720, %v752
    %v786 = vsel %vm771, %v721, %v753
    %v787 = vsel %vm771, %v722, %v754
    %v788 = vsel %vm771, %v723, %v755
    %v789 = vsel %vm771, %v724, %v756
    %v790 = vsel %vm771, %v725, %v757
    %v791 = vsel %vm771, %v726, %v758
    %v792 = vsel %vm771, %v727, %v759
    %v793 = vsel %vm771, %v728, %v760
    %v794 = vsel %vm771, %v729, %v761
    %v795 = vsel %vm771, %v730, %v762
    %v796 = vsel %vm771, %v731, %v763
    %v797 = vsel %vm771, %v732, %v764
    %v798 = vsel %vm771, %v733, %v765
    %v799 = vsel %vm771, %v734, %v766
    %v800 = vsel %vm771, %v735, %v767
    %v801 = vsel %vm771, %v736, %v768
    %v802 = vsel %vm771, %v737, %v769
    %v803 = vsel %vm771, %v738, %v770
    %v804 = vsel %vm771, %v739, %v707
    %v805 = vsel %vm771, %v740, %v708
    %v806 = vsel %vm771, %v741, %v709
    %v807 = vsel %vm771, %v742, %v710
    %v808 = vsel %vm771, %v743, %v711
    %v809 = vsel %vm771, %v744, %v712
    %v810 = vsel %vm771, %v745, %v713
    %v811 = vsel %vm771, %v746, %v714
    %v812 = vsel %vm771, %v747, %v715
    %v813 = vsel %vm771, %v748, %v716
    %v814 = vsel %vm771, %v749, %v717
    %v815 = vsel %vm771, %v750, %v718
    %v816 = vsel %vm771, %v751, %v719
    %v817 = vsel %vm771, %v752, %v720
    %v818 = vsel %vm771, %v753, %v721
    %v819 = vsel %vm771, %v754, %v722
    %v820 = vsel %vm771, %v755, %v723
    %v821 = vsel %vm771, %v756, %v724
    %v822 = vsel %vm771, %v757, %v725
    %v823 = vsel %vm771, %v758, %v726
    %v824 = vsel %vm771, %v759, %v727
    %v825 = vsel %vm771, %v760, %v728
    %v826 = vsel %vm771, %v761, %v729
    %v827 = vsel %vm771, %v762, %v730
    %v828 = vsel %vm771, %v763, %v731
    %v829 = vsel %vm771, %v764, %v732
    %v830 = vsel %vm771, %v765, %v733
    %v831 = vsel %vm771, %v766, %v734
    %v832 = vsel %vm771, %v767, %v735
    %v833 = vsel %vm771, %v768, %v736
    %v834 = vsel %vm771, %v769, %v737
    %v835 = vsel %vm771, %v770, %v738
    %v836 = vsel %vm184, %v772, 0.0
    %v837 = vsel %vm185, %v804, 0.0
    %v838 = vsel %vm184, %v773, 0.0
    %v839 = vsel %vm185, %v805, 0.0
    %v840 = vsel %vm184, %v774, 0.0
    %v841 = vsel %vm185, %v806, 0.0
    %v842 = vsel %vm184, %v775, 0.0
    %v843 = vsel %vm185, %v807, 0.0
    %v844 = vsel %vm184, %v776, 0.0
    %v845 = vsel %vm185, %v808, 0.0
    %v846 = vsel %vm184, %v777, 0.0
    %v847 = vsel %vm185, %v809, 0.0
    %v848 = vsel %vm184, %v778, 0.0
    %v849 = vsel %vm185, %v810, 0.0
    %v850 = vsel %vm184, %v779, 0.0
    %v851 = vsel %vm185, %v811, 0.0
    %v852 = vsel %vm184, %v780, 0.0
    %v853 = vsel %vm185, %v812, 0.0
    %v854 = vsel %vm184, %v781, 0.0
    %v855 = vsel %vm185, %v813, 0.0
    %v856 = vsel %vm184, %v782, 0.0
    %v857 = vsel %vm185, %v814, 0.0
    %v858 = vsel %vm184, %v783, 0.0
    %v859 = vsel %vm185, %v815, 0.0
    %v860 = vsel %vm184, %v784, 0.0
    %v861 = vsel %vm185, %v816, 0.0
    %v862 = vsel %vm184, %v785, 0.0
    %v863 = vsel %vm185, %v817, 0.0
    %v864 = vsel %vm184, %v786, 0.0
    %v865 = vsel %vm185, %v818, 0.0
    %v866 = vsel %vm184, %v787, 0.0
    %v867 = vsel %vm185, %v819, 0.0
    %v868 = vsel %vm184, %v788, 0.0
    %v869 = vsel %vm185, %v820, 0.0
    %v870 = vsel %vm184, %v789, 0.0
    %v871 = vsel %vm185, %v821, 0.0
    %v872 = vsel %vm184, %v790, 0.0
    %v873 = vsel %vm185, %v822, 0.0
    %v874 = vsel %vm184, %v791, 0.0
    %v875 = vsel %vm185, %v823, 0.0
    %v876 = vsel %vm184, %v792, 0.0
    %v877 = vsel %vm185, %v824, 0.0
    %v878 = vsel %vm184, %v793, 0.0
    %v879 = vsel %vm185, %v825, 0.0
    %v880 = vsel %vm184, %v794, 0.0
    %v881 = vsel %vm185, %v826, 0.0
    %v882 = vsel %vm184, %v795, 0.0
    %v883 = vsel %vm185, %v827, 0.0
    %v884 = vsel %vm184, %v796, 0.0
    %v885 = vsel %vm185, %v828, 0.0
    %v886 = vsel %vm184, %v797, 0.0
    %v887 = vsel %vm185, %v829, 0.0
    %v888 = vsel %vm184, %v798, 0.0
    %v889 = vsel %vm185, %v830, 0.0
    %v890 = vsel %vm184, %v799, 0.0
    %v891 = vsel %vm185, %v831, 0.0
    %v892 = vsel %vm184, %v800, 0.0
    %v893 = vsel %vm185, %v832, 0.0
    %v894 = vsel %vm184, %v801, 0.0
    %v895 = vsel %vm185, %v833, 0.0
    %v896 = vsel %vm184, %v802, 0.0
    %v897 = vsel %vm185, %v834, 0.0
    %v898 = vsel %vm184, %v803, 0.0
    %v899 = vsel %vm185, %v835, 0.0
    %v900 = vlaneseq
    %v901 = vshrl.u32 %v900, 7
    %v902 = vsub.s32 2, %v901
    %v903 = vrot.slane %v102, %v902
    %v904 = vmul.f32 %v836, %v903
    %v905 = vmul.f32 %v837, %v903
    %v906 = vmul.f32 %v838, %v903
    %v907 = vmul.f32 %v839, %v903
    %v908 = vmul.f32 %v840, %v903
    %v909 = vmul.f32 %v841, %v903
    %v910 = vmul.f32 %v842, %v903
    %v911 = vmul.f32 %v843, %v903
    %v912 = vmul.f32 %v844, %v903
    %v913 = vmul.f32 %v845, %v903
    %v914 = vmul.f32 %v846, %v903
    %v915 = vmul.f32 %v847, %v903
    %v916 = vmul.f32 %v848, %v903
    %v917 = vmul.f32 %v849, %v903
    %v918 = vmul.f32 %v850, %v903
    %v919 = vmul.f32 %v851, %v903
    %v920 = vmul.f32 %v852, %v903
    %v921 = vmul.f32 %v853, %v903
    %v922 = vmul.f32 %v854, %v903
    %v923 = vmul.f32 %v855, %v903
    %v924 = vmul.f32 %v856, %v903
    %v925 = vmul.f32 %v857, %v903
    %v926 = vmul.f32 %v858, %v903
    %v927 = vmul.f32 %v859, %v903
    %v928 = vmul.f32 %v860, %v903
    %v929 = vmul.f32 %v861, %v903
    %v930 = vmul.f32 %v862, %v903
    %v931 = vmul.f32 %v863, %v903
    %v932 = vmul.f32 %v864, %v903
    %v933 = vmul.f32 %v865, %v903
    %v934 = vmul.f32 %v866, %v903
    %v935 = vmul.f32 %v867, %v903
    %v936 = vmul.f32 %v868, %v903
    %v937 = vmul.f32 %v869, %v903
    %v938 = vmul.f32 %v870, %v903
    %v939 = vmul.f32 %v871, %v903
    %v940 = vmul.f32 %v872, %v903
    %v941 = vmul.f32 %v873, %v903
    %v942 = vmul.f32 %v874, %v903
    %v943 = vmul.f32 %v875, %v903
    %v944 = vmul.f32 %v876, %v903
    %v945 = vmul.f32 %v877, %v903
    %v946 = vmul.f32 %v878, %v903
    %v947 = vmul.f32 %v879, %v903
    %v948 = vmul.f32 %v880, %v903
    %v949 = vmul.f32 %v881, %v903
    %v950 = vmul.f32 %v882, %v903
    %v951 = vmul.f32 %v883, %v903
    %v952 = vmul.f32 %v884, %v903
    %v953 = vmul.f32 %v885, %v903
    %v954 = vmul.f32 %v886, %v903
    %v955 = vmul.f32 %v887, %v903
    %v956 = vmul.f32 %v888, %v903
    %v957 = vmul.f32 %v889, %v903
    %v958 = vmul.f32 %v890, %v903
    %v959 = vmul.f32 %v891, %v903
    %v960 = vmul.f32 %v892, %v903
    %v961 = vmul.f32 %v893, %v903
    %v962 = vmul.f32 %v894, %v903
    %v963 = vmul.f32 %v895, %v903
    %v964 = vmul.f32 %v896, %v903
    %v965 = vmul.f32 %v897, %v903
    %v966 = vmul.f32 %v898, %v903
    %v967 = vmul.f32 %v899, %v903
    %v968 = vadd.f32 %v643, %v904
    %v969 = vadd.f32 %v644, %v905
    %v970 = vadd.f32 %v645, %v906
    %v971 = vadd.f32 %v646, %v907
    %v972 = vadd.f32 %v647, %v908
    %v973 = vadd.f32 %v648, %v909
    %v974 = vadd.f32 %v649, %v910
    %v975 = vadd.f32 %v650, %v911
    %v976 = vadd.f32 %v651, %v912
    %v977 = vadd.f32 %v652, %v913
    %v978 = vadd.f32 %v653, %v914
    %v979 = vadd.f32 %v654, %v915
    %v980 = vadd.f32 %v655, %v916
    %v981 = vadd.f32 %v656, %v917
    %v982 = vadd.f32 %v657, %v918
    %v983 = vadd.f32 %v658, %v919
    %v984 = vadd.f32 %v659, %v920
    %v985 = vadd.f32 %v660, %v921
    %v986 = vadd.f32 %v661, %v922
    %v987 = vadd.f32 %v662, %v923
    %v988 = vadd.f32 %v663, %v924
    %v989 = vadd.f32 %v664, %v925
    %v990 = vadd.f32 %v665, %v926
    %v991 = vadd.f32 %v666, %v927
    %v992 = vadd.f32 %v667, %v928
    %v993 = vadd.f32 %v668, %v929
    %v994 = vadd.f32 %v669, %v930
    %v995 = vadd.f32 %v670, %v931
    %v996 = vadd.f32 %v671, %v932
    %v997 = vadd.f32 %v672, %v933
    %v998 = vadd.f32 %v673, %v934
    %v999 = vadd.f32 %v674, %v935
    %v1000 = vadd.f32 %v675, %v936
    %v1001 = vadd.f32 %v676, %v937
    %v1002 = vadd.f32 %v677, %v938
    %v1003 = vadd.f32 %v678, %v939
    %v1004 = vadd.f32 %v679, %v940
    %v1005 = vadd.f32 %v680, %v941
    %v1006 = vadd.f32 %v681, %v942
    %v1007 = vadd.f32 %v682, %v943
    %v1008 = vadd.f32 %v683, %v944
    %v1009 = vadd.f32 %v684, %v945
    %v1010 = vadd.f32 %v685, %v946
    %v1011 = vadd.f32 %v686, %v947
    %v1012 = vadd.f32 %v687, %v948
    %v1013 = vadd.f32 %v688, %v949
    %v1014 = vadd.f32 %v689, %v950
    %v1015 = vadd.f32 %v690, %v951
    %v1016 = vadd.f32 %v691, %v952
    %v1017 = vadd.f32 %v692, %v953
    %v1018 = vadd.f32 %v693, %v954
    %v1019 = vadd.f32 %v694, %v955
    %v1020 = vadd.f32 %v695, %v956
    %v1021 = vadd.f32 %v696, %v957
    %v1022 = vadd.f32 %v697, %v958
    %v1023 = vadd.f32 %v698, %v959
    %v1024 = vadd.f32 %v699, %v960
    %v1025 = vadd.f32 %v700, %v961
    %v1026 = vadd.f32 %v701, %v962
    %v1027 = vadd.f32 %v702, %v963
    %v1028 = vadd.f32 %v703, %v964
    %v1029 = vadd.f32 %v704, %v965
    %v1030 = vadd.f32 %v705, %v966
    %v1031 = vadd.f32 %v706, %v967
    %v1032 = vld [vmem:[%s114] sm:$0xff]
    %v1033 = vld [vmem:[%s114 + $0x8] sm:$0xff]
    %v1034 = vld [vmem:[%s114 + $0x10] sm:$0xff]
    %v1035 = vld [vmem:[%s114 + $0x18] sm:$0xff]
    %v1036 = vld [vmem:[%s114 + $0x20] sm:$0xff]
    %v1037 = vld [vmem:[%s114 + $0x28] sm:$0xff]
    %v1038 = vld [vmem:[%s114 + $0x30] sm:$0xff]
    %v1039 = vld [vmem:[%s114 + $0x38] sm:$0xff]
    %v1040 = vld [vmem:[%s114 + $0x40] sm:$0xff]
    %v1041 = vld [vmem:[%s114 + $0x48] sm:$0xff]
    %v1042 = vld [vmem:[%s114 + $0x50] sm:$0xff]
    %v1043 = vld [vmem:[%s114 + $0x58] sm:$0xff]
    %v1044 = vld [vmem:[%s114 + $0x60] sm:$0xff]
    %v1045 = vld [vmem:[%s114 + $0x68] sm:$0xff]
    %v1046 = vld [vmem:[%s114 + $0x70] sm:$0xff]
    %v1047 = vld [vmem:[%s114 + $0x78] sm:$0xff]
    %v1048 = vld [vmem:[%s114 + $0x80] sm:$0xff]
    %v1049 = vld [vmem:[%s114 + $0x88] sm:$0xff]
    %v1050 = vld [vmem:[%s114 + $0x90] sm:$0xff]
    %v1051 = vld [vmem:[%s114 + $0x98] sm:$0xff]
    %v1052 = vld [vmem:[%s114 + $0xa0] sm:$0xff]
    %v1053 = vld [vmem:[%s114 + $0xa8] sm:$0xff]
    %v1054 = vld [vmem:[%s114 + $0xb0] sm:$0xff]
    %v1055 = vld [vmem:[%s114 + $0xb8] sm:$0xff]
    %v1056 = vld [vmem:[%s114 + $0xc0] sm:$0xff]
    %v1057 = vld [vmem:[%s114 + $0xc8] sm:$0xff]
    %v1058 = vld [vmem:[%s114 + $0xd0] sm:$0xff]
    %v1059 = vld [vmem:[%s114 + $0xd8] sm:$0xff]
    %v1060 = vld [vmem:[%s114 + $0xe0] sm:$0xff]
    %v1061 = vld [vmem:[%s114 + $0xe8] sm:$0xff]
    %v1062 = vld [vmem:[%s114 + $0xf0] sm:$0xff]
    %v1063 = vld [vmem:[%s114 + $0xf8] sm:$0xff]
    %v1064 = vld [vmem:[%s114 + $0x120] sm:$0xff]
    %v1065 = vld [vmem:[%s114 + $0x128] sm:$0xff]
    %v1066 = vld [vmem:[%s114 + $0x130] sm:$0xff]
    %v1067 = vld [vmem:[%s114 + $0x138] sm:$0xff]
    %v1068 = vld [vmem:[%s114 + $0x140] sm:$0xff]
    %v1069 = vld [vmem:[%s114 + $0x148] sm:$0xff]
    %v1070 = vld [vmem:[%s114 + $0x150] sm:$0xff]
    %v1071 = vld [vmem:[%s114 + $0x158] sm:$0xff]
    %v1072 = vld [vmem:[%s114 + $0x160] sm:$0xff]
    %v1073 = vld [vmem:[%s114 + $0x168] sm:$0xff]
    %v1074 = vld [vmem:[%s114 + $0x170] sm:$0xff]
    %v1075 = vld [vmem:[%s114 + $0x178] sm:$0xff]
    %v1076 = vld [vmem:[%s114 + $0x180] sm:$0xff]
    %v1077 = vld [vmem:[%s114 + $0x188] sm:$0xff]
    %v1078 = vld [vmem:[%s114 + $0x190] sm:$0xff]
    %v1079 = vld [vmem:[%s114 + $0x198] sm:$0xff]
    %v1080 = vld [vmem:[%s114 + $0x1a0] sm:$0xff]
    %v1081 = vld [vmem:[%s114 + $0x1a8] sm:$0xff]
    %v1082 = vld [vmem:[%s114 + $0x1b0] sm:$0xff]
    %v1083 = vld [vmem:[%s114 + $0x1b8] sm:$0xff]
    %v1084 = vld [vmem:[%s114 + $0x1c0] sm:$0xff]
    %v1085 = vld [vmem:[%s114 + $0x1c8] sm:$0xff]
    %v1086 = vld [vmem:[%s114 + $0x1d0] sm:$0xff]
    %v1087 = vld [vmem:[%s114 + $0x1d8] sm:$0xff]
    %v1088 = vld [vmem:[%s114 + $0x1e0] sm:$0xff]
    %v1089 = vld [vmem:[%s114 + $0x1e8] sm:$0xff]
    %v1090 = vld [vmem:[%s114 + $0x1f0] sm:$0xff]
    %v1091 = vld [vmem:[%s114 + $0x1f8] sm:$0xff]
    %v1092 = vld [vmem:[%s114 + $0x200] sm:$0xff]
    %v1093 = vld [vmem:[%s114 + $0x208] sm:$0xff]
    %v1094 = vld [vmem:[%s114 + $0x210] sm:$0xff]
    %v1095 = vld [vmem:[%s114 + $0x218] sm:$0xff]
    %v1096 = vrot.slane %v1032, 7
    %v1097 = vrot.slane %v1034, 7
    %v1098 = vrot.slane %v1036, 7
    %v1099 = vrot.slane %v1038, 7
    %v1100 = vrot.slane %v1040, 7
    %v1101 = vrot.slane %v1042, 7
    %v1102 = vrot.slane %v1044, 7
    %v1103 = vrot.slane %v1046, 7
    %v1104 = vrot.slane %v1048, 7
    %v1105 = vrot.slane %v1050, 7
    %v1106 = vrot.slane %v1052, 7
    %v1107 = vrot.slane %v1054, 7
    %v1108 = vrot.slane %v1056, 7
    %v1109 = vrot.slane %v1058, 7
    %v1110 = vrot.slane %v1060, 7
    %v1111 = vrot.slane %v1062, 7
    %v1112 = vrot.slane %v1064, 7
    %v1113 = vrot.slane %v1066, 7
    %v1114 = vrot.slane %v1068, 7
    %v1115 = vrot.slane %v1070, 7
    %v1116 = vrot.slane %v1072, 7
    %v1117 = vrot.slane %v1074, 7
    %v1118 = vrot.slane %v1076, 7
    %v1119 = vrot.slane %v1078, 7
    %v1120 = vrot.slane %v1080, 7
    %v1121 = vrot.slane %v1082, 7
    %v1122 = vrot.slane %v1084, 7
    %v1123 = vrot.slane %v1086, 7
    %v1124 = vrot.slane %v1088, 7
    %v1125 = vrot.slane %v1090, 7
    %v1126 = vrot.slane %v1092, 7
    %v1127 = vrot.slane %v1094, 7
    %v1128 = vrot.slane %v1033, 7
    %v1129 = vrot.slane %v1035, 7
    %v1130 = vrot.slane %v1037, 7
    %v1131 = vrot.slane %v1039, 7
    %v1132 = vrot.slane %v1041, 7
    %v1133 = vrot.slane %v1043, 7
    %v1134 = vrot.slane %v1045, 7
    %v1135 = vrot.slane %v1047, 7
    %v1136 = vrot.slane %v1049, 7
    %v1137 = vrot.slane %v1051, 7
    %v1138 = vrot.slane %v1053, 7
    %v1139 = vrot.slane %v1055, 7
    %v1140 = vrot.slane %v1057, 7
    %v1141 = vrot.slane %v1059, 7
    %v1142 = vrot.slane %v1061, 7
    %v1143 = vrot.slane %v1063, 7
    %v1144 = vrot.slane %v1065, 7
    %v1145 = vrot.slane %v1067, 7
    %v1146 = vrot.slane %v1069, 7
    %v1147 = vrot.slane %v1071, 7
    %v1148 = vrot.slane %v1073, 7
    %v1149 = vrot.slane %v1075, 7
    %v1150 = vrot.slane %v1077, 7
    %v1151 = vrot.slane %v1079, 7
    %v1152 = vrot.slane %v1081, 7
    %v1153 = vrot.slane %v1083, 7
    %v1154 = vrot.slane %v1085, 7
    %v1155 = vrot.slane %v1087, 7
    %v1156 = vrot.slane %v1089, 7
    %v1157 = vrot.slane %v1091, 7
    %v1158 = vrot.slane %v1093, 7
    %v1159 = vrot.slane %v1095, 7
    %v1160 = vsel %vm314, %v1096, %v1128
    %v1161 = vsel %vm314, %v1097, %v1129
    %v1162 = vsel %vm314, %v1098, %v1130
    %v1163 = vsel %vm314, %v1099, %v1131
    %v1164 = vsel %vm314, %v1100, %v1132
    %v1165 = vsel %vm314, %v1101, %v1133
    %v1166 = vsel %vm314, %v1102, %v1134
    %v1167 = vsel %vm314, %v1103, %v1135
    %v1168 = vsel %vm314, %v1104, %v1136
    %v1169 = vsel %vm314, %v1105, %v1137
    %v1170 = vsel %vm314, %v1106, %v1138
    %v1171 = vsel %vm314, %v1107, %v1139
    %v1172 = vsel %vm314, %v1108, %v1140
    %v1173 = vsel %vm314, %v1109, %v1141
    %v1174 = vsel %vm314, %v1110, %v1142
    %v1175 = vsel %vm314, %v1111, %v1143
    %v1176 = vsel %vm314, %v1112, %v1144
    %v1177 = vsel %vm314, %v1113, %v1145
    %v1178 = vsel %vm314, %v1114, %v1146
    %v1179 = vsel %vm314, %v1115, %v1147
    %v1180 = vsel %vm314, %v1116, %v1148
    %v1181 = vsel %vm314, %v1117, %v1149
    %v1182 = vsel %vm314, %v1118, %v1150
    %v1183 = vsel %vm314, %v1119, %v1151
    %v1184 = vsel %vm314, %v1120, %v1152
    %v1185 = vsel %vm314, %v1121, %v1153
    %v1186 = vsel %vm314, %v1122, %v1154
    %v1187 = vsel %vm314, %v1123, %v1155
    %v1188 = vsel %vm314, %v1124, %v1156
    %v1189 = vsel %vm314, %v1125, %v1157
    %v1190 = vsel %vm314, %v1126, %v1158
    %v1191 = vsel %vm314, %v1127, %v1159
    %v1192 = vsel %vm314, %v1128, %v1096
    %v1193 = vsel %vm314, %v1129, %v1097
    %v1194 = vsel %vm314, %v1130, %v1098
    %v1195 = vsel %vm314, %v1131, %v1099
    %v1196 = vsel %vm314, %v1132, %v1100
    %v1197 = vsel %vm314, %v1133, %v1101
    %v1198 = vsel %vm314, %v1134, %v1102
    %v1199 = vsel %vm314, %v1135, %v1103
    %v1200 = vsel %vm314, %v1136, %v1104
    %v1201 = vsel %vm314, %v1137, %v1105
    %v1202 = vsel %vm314, %v1138, %v1106
    %v1203 = vsel %vm314, %v1139, %v1107
    %v1204 = vsel %vm314, %v1140, %v1108
    %v1205 = vsel %vm314, %v1141, %v1109
    %v1206 = vsel %vm314, %v1142, %v1110
    %v1207 = vsel %vm314, %v1143, %v1111
    %v1208 = vsel %vm314, %v1144, %v1112
    %v1209 = vsel %vm314, %v1145, %v1113
    %v1210 = vsel %vm314, %v1146, %v1114
    %v1211 = vsel %vm314, %v1147, %v1115
    %v1212 = vsel %vm314, %v1148, %v1116
    %v1213 = vsel %vm314, %v1149, %v1117
    %v1214 = vsel %vm314, %v1150, %v1118
    %v1215 = vsel %vm314, %v1151, %v1119
    %v1216 = vsel %vm314, %v1152, %v1120
    %v1217 = vsel %vm314, %v1153, %v1121
    %v1218 = vsel %vm314, %v1154, %v1122
    %v1219 = vsel %vm314, %v1155, %v1123
    %v1220 = vsel %vm314, %v1156, %v1124
    %v1221 = vsel %vm314, %v1157, %v1125
    %v1222 = vsel %vm314, %v1158, %v1126
    %v1223 = vsel %vm314, %v1159, %v1127
    %v1224 = vsel %vm182, %v1192, 0.0
    %v1225 = vsel %vm183, %v1160, 0.0
    %v1226 = vsel %vm182, %v1193, 0.0
    %v1227 = vsel %vm183, %v1161, 0.0
    %v1228 = vsel %vm182, %v1194, 0.0
    %v1229 = vsel %vm183, %v1162, 0.0
    %v1230 = vsel %vm182, %v1195, 0.0
    %v1231 = vsel %vm183, %v1163, 0.0
    %v1232 = vsel %vm182, %v1196, 0.0
    %v1233 = vsel %vm183, %v1164, 0.0
    %v1234 = vsel %vm182, %v1197, 0.0
    %v1235 = vsel %vm183, %v1165, 0.0
    %v1236 = vsel %vm182, %v1198, 0.0
    %v1237 = vsel %vm183, %v1166, 0.0
    %v1238 = vsel %vm182, %v1199, 0.0
    %v1239 = vsel %vm183, %v1167, 0.0
    %v1240 = vsel %vm182, %v1200, 0.0
    %v1241 = vsel %vm183, %v1168, 0.0
    %v1242 = vsel %vm182, %v1201, 0.0
    %v1243 = vsel %vm183, %v1169, 0.0
    %v1244 = vsel %vm182, %v1202, 0.0
    %v1245 = vsel %vm183, %v1170, 0.0
    %v1246 = vsel %vm182, %v1203, 0.0
    %v1247 = vsel %vm183, %v1171, 0.0
    %v1248 = vsel %vm182, %v1204, 0.0
    %v1249 = vsel %vm183, %v1172, 0.0
    %v1250 = vsel %vm182, %v1205, 0.0
    %v1251 = vsel %vm183, %v1173, 0.0
    %v1252 = vsel %vm182, %v1206, 0.0
    %v1253 = vsel %vm183, %v1174, 0.0
    %v1254 = vsel %vm182, %v1207, 0.0
    %v1255 = vsel %vm183, %v1175, 0.0
    %v1256 = vsel %vm182, %v1208, 0.0
    %v1257 = vsel %vm183, %v1176, 0.0
    %v1258 = vsel %vm182, %v1209, 0.0
    %v1259 = vsel %vm183, %v1177, 0.0
    %v1260 = vsel %vm182, %v1210, 0.0
    %v1261 = vsel %vm183, %v1178, 0.0
    %v1262 = vsel %vm182, %v1211, 0.0
    %v1263 = vsel %vm183, %v1179, 0.0
    %v1264 = vsel %vm182, %v1212, 0.0
    %v1265 = vsel %vm183, %v1180, 0.0
    %v1266 = vsel %vm182, %v1213, 0.0
    %v1267 = vsel %vm183, %v1181, 0.0
    %v1268 = vsel %vm182, %v1214, 0.0
    %v1269 = vsel %vm183, %v1182, 0.0
    %v1270 = vsel %vm182, %v1215, 0.0
    %v1271 = vsel %vm183, %v1183, 0.0
    %v1272 = vsel %vm182, %v1216, 0.0
    %v1273 = vsel %vm183, %v1184, 0.0
    %v1274 = vsel %vm182, %v1217, 0.0
    %v1275 = vsel %vm183, %v1185, 0.0
    %v1276 = vsel %vm182, %v1218, 0.0
    %v1277 = vsel %vm183, %v1186, 0.0
    %v1278 = vsel %vm182, %v1219, 0.0
    %v1279 = vsel %vm183, %v1187, 0.0
    %v1280 = vsel %vm182, %v1220, 0.0
    %v1281 = vsel %vm183, %v1188, 0.0
    %v1282 = vsel %vm182, %v1221, 0.0
    %v1283 = vsel %vm183, %v1189, 0.0
    %v1284 = vsel %vm182, %v1222, 0.0
    %v1285 = vsel %vm183, %v1190, 0.0
    %v1286 = vsel %vm182, %v1223, 0.0
    %v1287 = vsel %vm183, %v1191, 0.0
    %v1288 = vlaneseq
    %v1289 = vshrl.u32 %v1288, 7
    %v1290 = vsub.s32 3, %v1289
    %v1291 = vrot.slane %v102, %v1290
    %v1292 = vmul.f32 %v1224, %v1291
    %v1293 = vmul.f32 %v1225, %v1291
    %v1294 = vmul.f32 %v1226, %v1291
    %v1295 = vmul.f32 %v1227, %v1291
    %v1296 = vmul.f32 %v1228, %v1291
    %v1297 = vmul.f32 %v1229, %v1291
    %v1298 = vmul.f32 %v1230, %v1291
    %v1299 = vmul.f32 %v1231, %v1291
    %v1300 = vmul.f32 %v1232, %v1291
    %v1301 = vmul.f32 %v1233, %v1291
    %v1302 = vmul.f32 %v1234, %v1291
    %v1303 = vmul.f32 %v1235, %v1291
    %v1304 = vmul.f32 %v1236, %v1291
    %v1305 = vmul.f32 %v1237, %v1291
    %v1306 = vmul.f32 %v1238, %v1291
    %v1307 = vmul.f32 %v1239, %v1291
    %v1308 = vmul.f32 %v1240, %v1291
    %v1309 = vmul.f32 %v1241, %v1291
    %v1310 = vmul.f32 %v1242, %v1291
    %v1311 = vmul.f32 %v1243, %v1291
    %v1312 = vmul.f32 %v1244, %v1291
    %v1313 = vmul.f32 %v1245, %v1291
    %v1314 = vmul.f32 %v1246, %v1291
    %v1315 = vmul.f32 %v1247, %v1291
    %v1316 = vmul.f32 %v1248, %v1291
    %v1317 = vmul.f32 %v1249, %v1291
    %v1318 = vmul.f32 %v1250, %v1291
    %v1319 = vmul.f32 %v1251, %v1291
    %v1320 = vmul.f32 %v1252, %v1291
    %v1321 = vmul.f32 %v1253, %v1291
    %v1322 = vmul.f32 %v1254, %v1291
    %v1323 = vmul.f32 %v1255, %v1291
    %v1324 = vmul.f32 %v1256, %v1291
    %v1325 = vmul.f32 %v1257, %v1291
    %v1326 = vmul.f32 %v1258, %v1291
    %v1327 = vmul.f32 %v1259, %v1291
    %v1328 = vmul.f32 %v1260, %v1291
    %v1329 = vmul.f32 %v1261, %v1291
    %v1330 = vmul.f32 %v1262, %v1291
    %v1331 = vmul.f32 %v1263, %v1291
    %v1332 = vmul.f32 %v1264, %v1291
    %v1333 = vmul.f32 %v1265, %v1291
    %v1334 = vmul.f32 %v1266, %v1291
    %v1335 = vmul.f32 %v1267, %v1291
    %v1336 = vmul.f32 %v1268, %v1291
    %v1337 = vmul.f32 %v1269, %v1291
    %v1338 = vmul.f32 %v1270, %v1291
    %v1339 = vmul.f32 %v1271, %v1291
    %v1340 = vmul.f32 %v1272, %v1291
    %v1341 = vmul.f32 %v1273, %v1291
    %v1342 = vmul.f32 %v1274, %v1291
    %v1343 = vmul.f32 %v1275, %v1291
    %v1344 = vmul.f32 %v1276, %v1291
    %v1345 = vmul.f32 %v1277, %v1291
    %v1346 = vmul.f32 %v1278, %v1291
    %v1347 = vmul.f32 %v1279, %v1291
    %v1348 = vmul.f32 %v1280, %v1291
    %v1349 = vmul.f32 %v1281, %v1291
    %v1350 = vmul.f32 %v1282, %v1291
    %v1351 = vmul.f32 %v1283, %v1291
    %v1352 = vmul.f32 %v1284, %v1291
    %v1353 = vmul.f32 %v1285, %v1291
    %v1354 = vmul.f32 %v1286, %v1291
    %v1355 = vmul.f32 %v1287, %v1291
    %v1356 = vadd.f32 %v968, %v1292
    %v1357 = vadd.f32 %v969, %v1293
    %v1358 = vadd.f32 %v970, %v1294
    %v1359 = vadd.f32 %v971, %v1295
    %v1360 = vadd.f32 %v972, %v1296
    %v1361 = vadd.f32 %v973, %v1297
    %v1362 = vadd.f32 %v974, %v1298
    %v1363 = vadd.f32 %v975, %v1299
    %v1364 = vadd.f32 %v976, %v1300
    %v1365 = vadd.f32 %v977, %v1301
    %v1366 = vadd.f32 %v978, %v1302
    %v1367 = vadd.f32 %v979, %v1303
    %v1368 = vadd.f32 %v980, %v1304
    %v1369 = vadd.f32 %v981, %v1305
    %v1370 = vadd.f32 %v982, %v1306
    %v1371 = vadd.f32 %v983, %v1307
    %v1372 = vadd.f32 %v984, %v1308
    %v1373 = vadd.f32 %v985, %v1309
    %v1374 = vadd.f32 %v986, %v1310
    %v1375 = vadd.f32 %v987, %v1311
    %v1376 = vadd.f32 %v988, %v1312
    %v1377 = vadd.f32 %v989, %v1313
    %v1378 = vadd.f32 %v990, %v1314
    %v1379 = vadd.f32 %v991, %v1315
    %v1380 = vadd.f32 %v992, %v1316
    %v1381 = vadd.f32 %v993, %v1317
    %v1382 = vadd.f32 %v994, %v1318
    %v1383 = vadd.f32 %v995, %v1319
    %v1384 = vadd.f32 %v996, %v1320
    %v1385 = vadd.f32 %v997, %v1321
    %v1386 = vadd.f32 %v998, %v1322
    %v1387 = vadd.f32 %v999, %v1323
    %v1388 = vadd.f32 %v1000, %v1324
    %v1389 = vadd.f32 %v1001, %v1325
    %v1390 = vadd.f32 %v1002, %v1326
    %v1391 = vadd.f32 %v1003, %v1327
    %v1392 = vadd.f32 %v1004, %v1328
    %v1393 = vadd.f32 %v1005, %v1329
    %v1394 = vadd.f32 %v1006, %v1330
    %v1395 = vadd.f32 %v1007, %v1331
    %v1396 = vadd.f32 %v1008, %v1332
    %v1397 = vadd.f32 %v1009, %v1333
    %v1398 = vadd.f32 %v1010, %v1334
    %v1399 = vadd.f32 %v1011, %v1335
    %v1400 = vadd.f32 %v1012, %v1336
    %v1401 = vadd.f32 %v1013, %v1337
    %v1402 = vadd.f32 %v1014, %v1338
    %v1403 = vadd.f32 %v1015, %v1339
    %v1404 = vadd.f32 %v1016, %v1340
    %v1405 = vadd.f32 %v1017, %v1341
    %v1406 = vadd.f32 %v1018, %v1342
    %v1407 = vadd.f32 %v1019, %v1343
    %v1408 = vadd.f32 %v1020, %v1344
    %v1409 = vadd.f32 %v1021, %v1345
    %v1410 = vadd.f32 %v1022, %v1346
    %v1411 = vadd.f32 %v1023, %v1347
    %v1412 = vadd.f32 %v1024, %v1348
    %v1413 = vadd.f32 %v1025, %v1349
    %v1414 = vadd.f32 %v1026, %v1350
    %v1415 = vadd.f32 %v1027, %v1351
    %v1416 = vadd.f32 %v1028, %v1352
    %v1417 = vadd.f32 %v1029, %v1353
    %v1418 = vadd.f32 %v1030, %v1354
    %v1419 = vadd.f32 %v1031, %v1355
    %v1420 = vlaneseq
    %v1421 = vshrl.u32 %v1420, 7
    %v1422 = vsub.s32 4, %v1421
    %v1423 = vrot.slane %v102, %v1422
    %v1424 = vmul.f32 %v1032, %v1423
    %v1425 = vmul.f32 %v1033, %v1423
    %v1426 = vmul.f32 %v1034, %v1423
    %v1427 = vmul.f32 %v1035, %v1423
    %v1428 = vmul.f32 %v1036, %v1423
    %v1429 = vmul.f32 %v1037, %v1423
    %v1430 = vmul.f32 %v1038, %v1423
    %v1431 = vmul.f32 %v1039, %v1423
    %v1432 = vmul.f32 %v1040, %v1423
    %v1433 = vmul.f32 %v1041, %v1423
    %v1434 = vmul.f32 %v1042, %v1423
    %v1435 = vmul.f32 %v1043, %v1423
    %v1436 = vmul.f32 %v1044, %v1423
    %v1437 = vmul.f32 %v1045, %v1423
    %v1438 = vmul.f32 %v1046, %v1423
    %v1439 = vmul.f32 %v1047, %v1423
    %v1440 = vmul.f32 %v1048, %v1423
    %v1441 = vmul.f32 %v1049, %v1423
    %v1442 = vmul.f32 %v1050, %v1423
    %v1443 = vmul.f32 %v1051, %v1423
    %v1444 = vmul.f32 %v1052, %v1423
    %v1445 = vmul.f32 %v1053, %v1423
    %v1446 = vmul.f32 %v1054, %v1423
    %v1447 = vmul.f32 %v1055, %v1423
    %v1448 = vmul.f32 %v1056, %v1423
    %v1449 = vmul.f32 %v1057, %v1423
    %v1450 = vmul.f32 %v1058, %v1423
    %v1451 = vmul.f32 %v1059, %v1423
    %v1452 = vmul.f32 %v1060, %v1423
    %v1453 = vmul.f32 %v1061, %v1423
    %v1454 = vmul.f32 %v1062, %v1423
    %v1455 = vmul.f32 %v1063, %v1423
    %v1456 = vmul.f32 %v1064, %v1423
    %v1457 = vmul.f32 %v1065, %v1423
    %v1458 = vmul.f32 %v1066, %v1423
    %v1459 = vmul.f32 %v1067, %v1423
    %v1460 = vmul.f32 %v1068, %v1423
    %v1461 = vmul.f32 %v1069, %v1423
    %v1462 = vmul.f32 %v1070, %v1423
    %v1463 = vmul.f32 %v1071, %v1423
    %v1464 = vmul.f32 %v1072, %v1423
    %v1465 = vmul.f32 %v1073, %v1423
    %v1466 = vmul.f32 %v1074, %v1423
    %v1467 = vmul.f32 %v1075, %v1423
    %v1468 = vmul.f32 %v1076, %v1423
    %v1469 = vmul.f32 %v1077, %v1423
    %v1470 = vmul.f32 %v1078, %v1423
    %v1471 = vmul.f32 %v1079, %v1423
    %v1472 = vmul.f32 %v1080, %v1423
    %v1473 = vmul.f32 %v1081, %v1423
    %v1474 = vmul.f32 %v1082, %v1423
    %v1475 = vmul.f32 %v1083, %v1423
    %v1476 = vmul.f32 %v1084, %v1423
    %v1477 = vmul.f32 %v1085, %v1423
    %v1478 = vmul.f32 %v1086, %v1423
    %v1479 = vmul.f32 %v1087, %v1423
    %v1480 = vmul.f32 %v1088, %v1423
    %v1481 = vmul.f32 %v1089, %v1423
    %v1482 = vmul.f32 %v1090, %v1423
    %v1483 = vmul.f32 %v1091, %v1423
    %v1484 = vmul.f32 %v1092, %v1423
    %v1485 = vmul.f32 %v1093, %v1423
    %v1486 = vmul.f32 %v1094, %v1423
    %v1487 = vmul.f32 %v1095, %v1423
    %v1488 = vadd.f32 %v1356, %v1424
    %v1489 = vadd.f32 %v1357, %v1425
    %v1490 = vadd.f32 %v1358, %v1426
    %v1491 = vadd.f32 %v1359, %v1427
    %v1492 = vadd.f32 %v1360, %v1428
    %v1493 = vadd.f32 %v1361, %v1429
    %v1494 = vadd.f32 %v1362, %v1430
    %v1495 = vadd.f32 %v1363, %v1431
    %v1496 = vadd.f32 %v1364, %v1432
    %v1497 = vadd.f32 %v1365, %v1433
    %v1498 = vadd.f32 %v1366, %v1434
    %v1499 = vadd.f32 %v1367, %v1435
    %v1500 = vadd.f32 %v1368, %v1436
    %v1501 = vadd.f32 %v1369, %v1437
    %v1502 = vadd.f32 %v1370, %v1438
    %v1503 = vadd.f32 %v1371, %v1439
    %v1504 = vadd.f32 %v1372, %v1440
    %v1505 = vadd.f32 %v1373, %v1441
    %v1506 = vadd.f32 %v1374, %v1442
    %v1507 = vadd.f32 %v1375, %v1443
    %v1508 = vadd.f32 %v1376, %v1444
    %v1509 = vadd.f32 %v1377, %v1445
    %v1510 = vadd.f32 %v1378, %v1446
    %v1511 = vadd.f32 %v1379, %v1447
    %v1512 = vadd.f32 %v1380, %v1448
    %v1513 = vadd.f32 %v1381, %v1449
    %v1514 = vadd.f32 %v1382, %v1450
    %v1515 = vadd.f32 %v1383, %v1451
    %v1516 = vadd.f32 %v1384, %v1452
    %v1517 = vadd.f32 %v1385, %v1453
    %v1518 = vadd.f32 %v1386, %v1454
    %v1519 = vadd.f32 %v1387, %v1455
    %v1520 = vadd.f32 %v1388, %v1456
    %v1521 = vadd.f32 %v1389, %v1457
    %v1522 = vadd.f32 %v1390, %v1458
    %v1523 = vadd.f32 %v1391, %v1459
    %v1524 = vadd.f32 %v1392, %v1460
    %v1525 = vadd.f32 %v1393, %v1461
    %v1526 = vadd.f32 %v1394, %v1462
    %v1527 = vadd.f32 %v1395, %v1463
    %v1528 = vadd.f32 %v1396, %v1464
    %v1529 = vadd.f32 %v1397, %v1465
    %v1530 = vadd.f32 %v1398, %v1466
    %v1531 = vadd.f32 %v1399, %v1467
    %v1532 = vadd.f32 %v1400, %v1468
    %v1533 = vadd.f32 %v1401, %v1469
    %v1534 = vadd.f32 %v1402, %v1470
    %v1535 = vadd.f32 %v1403, %v1471
    %v1536 = vadd.f32 %v1404, %v1472
    %v1537 = vadd.f32 %v1405, %v1473
    %v1538 = vadd.f32 %v1406, %v1474
    %v1539 = vadd.f32 %v1407, %v1475
    %v1540 = vadd.f32 %v1408, %v1476
    %v1541 = vadd.f32 %v1409, %v1477
    %v1542 = vadd.f32 %v1410, %v1478
    %v1543 = vadd.f32 %v1411, %v1479
    %v1544 = vadd.f32 %v1412, %v1480
    %v1545 = vadd.f32 %v1413, %v1481
    %v1546 = vadd.f32 %v1414, %v1482
    %v1547 = vadd.f32 %v1415, %v1483
    %v1548 = vadd.f32 %v1416, %v1484
    %v1549 = vadd.f32 %v1417, %v1485
    %v1550 = vadd.f32 %v1418, %v1486
    %v1551 = vadd.f32 %v1419, %v1487
    %v1552 = vrot.slane %v1032, 1
    %v1553 = vrot.slane %v1034, 1
    %v1554 = vrot.slane %v1036, 1
    %v1555 = vrot.slane %v1038, 1
    %v1556 = vrot.slane %v1040, 1
    %v1557 = vrot.slane %v1042, 1
    %v1558 = vrot.slane %v1044, 1
    %v1559 = vrot.slane %v1046, 1
    %v1560 = vrot.slane %v1048, 1
    %v1561 = vrot.slane %v1050, 1
    %v1562 = vrot.slane %v1052, 1
    %v1563 = vrot.slane %v1054, 1
    %v1564 = vrot.slane %v1056, 1
    %v1565 = vrot.slane %v1058, 1
    %v1566 = vrot.slane %v1060, 1
    %v1567 = vrot.slane %v1062, 1
    %v1568 = vrot.slane %v1064, 1
    %v1569 = vrot.slane %v1066, 1
    %v1570 = vrot.slane %v1068, 1
    %v1571 = vrot.slane %v1070, 1
    %v1572 = vrot.slane %v1072, 1
    %v1573 = vrot.slane %v1074, 1
    %v1574 = vrot.slane %v1076, 1
    %v1575 = vrot.slane %v1078, 1
    %v1576 = vrot.slane %v1080, 1
    %v1577 = vrot.slane %v1082, 1
    %v1578 = vrot.slane %v1084, 1
    %v1579 = vrot.slane %v1086, 1
    %v1580 = vrot.slane %v1088, 1
    %v1581 = vrot.slane %v1090, 1
    %v1582 = vrot.slane %v1092, 1
    %v1583 = vrot.slane %v1094, 1
    %v1584 = vrot.slane %v1033, 1
    %v1585 = vrot.slane %v1035, 1
    %v1586 = vrot.slane %v1037, 1
    %v1587 = vrot.slane %v1039, 1
    %v1588 = vrot.slane %v1041, 1
    %v1589 = vrot.slane %v1043, 1
    %v1590 = vrot.slane %v1045, 1
    %v1591 = vrot.slane %v1047, 1
    %v1592 = vrot.slane %v1049, 1
    %v1593 = vrot.slane %v1051, 1
    %v1594 = vrot.slane %v1053, 1
    %v1595 = vrot.slane %v1055, 1
    %v1596 = vrot.slane %v1057, 1
    %v1597 = vrot.slane %v1059, 1
    %v1598 = vrot.slane %v1061, 1
    %v1599 = vrot.slane %v1063, 1
    %v1600 = vrot.slane %v1065, 1
    %v1601 = vrot.slane %v1067, 1
    %v1602 = vrot.slane %v1069, 1
    %v1603 = vrot.slane %v1071, 1
    %v1604 = vrot.slane %v1073, 1
    %v1605 = vrot.slane %v1075, 1
    %v1606 = vrot.slane %v1077, 1
    %v1607 = vrot.slane %v1079, 1
    %v1608 = vrot.slane %v1081, 1
    %v1609 = vrot.slane %v1083, 1
    %v1610 = vrot.slane %v1085, 1
    %v1611 = vrot.slane %v1087, 1
    %v1612 = vrot.slane %v1089, 1
    %v1613 = vrot.slane %v1091, 1
    %v1614 = vrot.slane %v1093, 1
    %v1615 = vrot.slane %v1095, 1
    %v1616 = vsel %vm771, %v1552, %v1584
    %v1617 = vsel %vm771, %v1553, %v1585
    %v1618 = vsel %vm771, %v1554, %v1586
    %v1619 = vsel %vm771, %v1555, %v1587
    %v1620 = vsel %vm771, %v1556, %v1588
    %v1621 = vsel %vm771, %v1557, %v1589
    %v1622 = vsel %vm771, %v1558, %v1590
    %v1623 = vsel %vm771, %v1559, %v1591
    %v1624 = vsel %vm771, %v1560, %v1592
    %v1625 = vsel %vm771, %v1561, %v1593
    %v1626 = vsel %vm771, %v1562, %v1594
    %v1627 = vsel %vm771, %v1563, %v1595
    %v1628 = vsel %vm771, %v1564, %v1596
    %v1629 = vsel %vm771, %v1565, %v1597
    %v1630 = vsel %vm771, %v1566, %v1598
    %v1631 = vsel %vm771, %v1567, %v1599
    %v1632 = vsel %vm771, %v1568, %v1600
    %v1633 = vsel %vm771, %v1569, %v1601
    %v1634 = vsel %vm771, %v1570, %v1602
    %v1635 = vsel %vm771, %v1571, %v1603
    %v1636 = vsel %vm771, %v1572, %v1604
    %v1637 = vsel %vm771, %v1573, %v1605
    %v1638 = vsel %vm771, %v1574, %v1606
    %v1639 = vsel %vm771, %v1575, %v1607
    %v1640 = vsel %vm771, %v1576, %v1608
    %v1641 = vsel %vm771, %v1577, %v1609
    %v1642 = vsel %vm771, %v1578, %v1610
    %v1643 = vsel %vm771, %v1579, %v1611
    %v1644 = vsel %vm771, %v1580, %v1612
    %v1645 = vsel %vm771, %v1581, %v1613
    %v1646 = vsel %vm771, %v1582, %v1614
    %v1647 = vsel %vm771, %v1583, %v1615
    %v1648 = vsel %vm771, %v1584, %v1552
    %v1649 = vsel %vm771, %v1585, %v1553
    %v1650 = vsel %vm771, %v1586, %v1554
    %v1651 = vsel %vm771, %v1587, %v1555
    %v1652 = vsel %vm771, %v1588, %v1556
    %v1653 = vsel %vm771, %v1589, %v1557
    %v1654 = vsel %vm771, %v1590, %v1558
    %v1655 = vsel %vm771, %v1591, %v1559
    %v1656 = vsel %vm771, %v1592, %v1560
    %v1657 = vsel %vm771, %v1593, %v1561
    %v1658 = vsel %vm771, %v1594, %v1562
    %v1659 = vsel %vm771, %v1595, %v1563
    %v1660 = vsel %vm771, %v1596, %v1564
    %v1661 = vsel %vm771, %v1597, %v1565
    %v1662 = vsel %vm771, %v1598, %v1566
    %v1663 = vsel %vm771, %v1599, %v1567
    %v1664 = vsel %vm771, %v1600, %v1568
    %v1665 = vsel %vm771, %v1601, %v1569
    %v1666 = vsel %vm771, %v1602, %v1570
    %v1667 = vsel %vm771, %v1603, %v1571
    %v1668 = vsel %vm771, %v1604, %v1572
    %v1669 = vsel %vm771, %v1605, %v1573
    %v1670 = vsel %vm771, %v1606, %v1574
    %v1671 = vsel %vm771, %v1607, %v1575
    %v1672 = vsel %vm771, %v1608, %v1576
    %v1673 = vsel %vm771, %v1609, %v1577
    %v1674 = vsel %vm771, %v1610, %v1578
    %v1675 = vsel %vm771, %v1611, %v1579
    %v1676 = vsel %vm771, %v1612, %v1580
    %v1677 = vsel %vm771, %v1613, %v1581
    %v1678 = vsel %vm771, %v1614, %v1582
    %v1679 = vsel %vm771, %v1615, %v1583
    %v1680 = vsel %vm184, %v1616, 0.0
    %v1681 = vsel %vm185, %v1648, 0.0
    %v1682 = vsel %vm184, %v1617, 0.0
    %v1683 = vsel %vm185, %v1649, 0.0
    %v1684 = vsel %vm184, %v1618, 0.0
    %v1685 = vsel %vm185, %v1650, 0.0
    %v1686 = vsel %vm184, %v1619, 0.0
    %v1687 = vsel %vm185, %v1651, 0.0
    %v1688 = vsel %vm184, %v1620, 0.0
    %v1689 = vsel %vm185, %v1652, 0.0
    %v1690 = vsel %vm184, %v1621, 0.0
    %v1691 = vsel %vm185, %v1653, 0.0
    %v1692 = vsel %vm184, %v1622, 0.0
    %v1693 = vsel %vm185, %v1654, 0.0
    %v1694 = vsel %vm184, %v1623, 0.0
    %v1695 = vsel %vm185, %v1655, 0.0
    %v1696 = vsel %vm184, %v1624, 0.0
    %v1697 = vsel %vm185, %v1656, 0.0
    %v1698 = vsel %vm184, %v1625, 0.0
    %v1699 = vsel %vm185, %v1657, 0.0
    %v1700 = vsel %vm184, %v1626, 0.0
    %v1701 = vsel %vm185, %v1658, 0.0
    %v1702 = vsel %vm184, %v1627, 0.0
    %v1703 = vsel %vm185, %v1659, 0.0
    %v1704 = vsel %vm184, %v1628, 0.0
    %v1705 = vsel %vm185, %v1660, 0.0
    %v1706 = vsel %vm184, %v1629, 0.0
    %v1707 = vsel %vm185, %v1661, 0.0
    %v1708 = vsel %vm184, %v1630, 0.0
    %v1709 = vsel %vm185, %v1662, 0.0
    %v1710 = vsel %vm184, %v1631, 0.0
    %v1711 = vsel %vm185, %v1663, 0.0
    %v1712 = vsel %vm184, %v1632, 0.0
    %v1713 = vsel %vm185, %v1664, 0.0
    %v1714 = vsel %vm184, %v1633, 0.0
    %v1715 = vsel %vm185, %v1665, 0.0
    %v1716 = vsel %vm184, %v1634, 0.0
    %v1717 = vsel %vm185, %v1666, 0.0
    %v1718 = vsel %vm184, %v1635, 0.0
    %v1719 = vsel %vm185, %v1667, 0.0
    %v1720 = vsel %vm184, %v1636, 0.0
    %v1721 = vsel %vm185, %v1668, 0.0
    %v1722 = vsel %vm184, %v1637, 0.0
    %v1723 = vsel %vm185, %v1669, 0.0
    %v1724 = vsel %vm184, %v1638, 0.0
    %v1725 = vsel %vm185, %v1670, 0.0
    %v1726 = vsel %vm184, %v1639, 0.0
    %v1727 = vsel %vm185, %v1671, 0.0
    %v1728 = vsel %vm184, %v1640, 0.0
    %v1729 = vsel %vm185, %v1672, 0.0
    %v1730 = vsel %vm184, %v1641, 0.0
    %v1731 = vsel %vm185, %v1673, 0.0
    %v1732 = vsel %vm184, %v1642, 0.0
    %v1733 = vsel %vm185, %v1674, 0.0
    %v1734 = vsel %vm184, %v1643, 0.0
    %v1735 = vsel %vm185, %v1675, 0.0
    %v1736 = vsel %vm184, %v1644, 0.0
    %v1737 = vsel %vm185, %v1676, 0.0
    %v1738 = vsel %vm184, %v1645, 0.0
    %v1739 = vsel %vm185, %v1677, 0.0
    %v1740 = vsel %vm184, %v1646, 0.0
    %v1741 = vsel %vm185, %v1678, 0.0
    %v1742 = vsel %vm184, %v1647, 0.0
    %v1743 = vsel %vm185, %v1679, 0.0
    %v1744 = vlaneseq
    %v1745 = vshrl.u32 %v1744, 7
    %v1746 = vsub.s32 5, %v1745
    %v1747 = vrot.slane %v102, %v1746
    %v1748 = vmul.f32 %v1680, %v1747
    %v1749 = vmul.f32 %v1681, %v1747
    %v1750 = vmul.f32 %v1682, %v1747
    %v1751 = vmul.f32 %v1683, %v1747
    %v1752 = vmul.f32 %v1684, %v1747
    %v1753 = vmul.f32 %v1685, %v1747
    %v1754 = vmul.f32 %v1686, %v1747
    %v1755 = vmul.f32 %v1687, %v1747
    %v1756 = vmul.f32 %v1688, %v1747
    %v1757 = vmul.f32 %v1689, %v1747
    %v1758 = vmul.f32 %v1690, %v1747
    %v1759 = vmul.f32 %v1691, %v1747
    %v1760 = vmul.f32 %v1692, %v1747
    %v1761 = vmul.f32 %v1693, %v1747
    %v1762 = vmul.f32 %v1694, %v1747
    %v1763 = vmul.f32 %v1695, %v1747
    %v1764 = vmul.f32 %v1696, %v1747
    %v1765 = vmul.f32 %v1697, %v1747
    %v1766 = vmul.f32 %v1698, %v1747
    %v1767 = vmul.f32 %v1699, %v1747
    %v1768 = vmul.f32 %v1700, %v1747
    %v1769 = vmul.f32 %v1701, %v1747
    %v1770 = vmul.f32 %v1702, %v1747
    %v1771 = vmul.f32 %v1703, %v1747
    %v1772 = vmul.f32 %v1704, %v1747
    %v1773 = vmul.f32 %v1705, %v1747
    %v1774 = vmul.f32 %v1706, %v1747
    %v1775 = vmul.f32 %v1707, %v1747
    %v1776 = vmul.f32 %v1708, %v1747
    %v1777 = vmul.f32 %v1709, %v1747
    %v1778 = vmul.f32 %v1710, %v1747
    %v1779 = vmul.f32 %v1711, %v1747
    %v1780 = vmul.f32 %v1712, %v1747
    %v1781 = vmul.f32 %v1713, %v1747
    %v1782 = vmul.f32 %v1714, %v1747
    %v1783 = vmul.f32 %v1715, %v1747
    %v1784 = vmul.f32 %v1716, %v1747
    %v1785 = vmul.f32 %v1717, %v1747
    %v1786 = vmul.f32 %v1718, %v1747
    %v1787 = vmul.f32 %v1719, %v1747
    %v1788 = vmul.f32 %v1720, %v1747
    %v1789 = vmul.f32 %v1721, %v1747
    %v1790 = vmul.f32 %v1722, %v1747
    %v1791 = vmul.f32 %v1723, %v1747
    %v1792 = vmul.f32 %v1724, %v1747
    %v1793 = vmul.f32 %v1725, %v1747
    %v1794 = vmul.f32 %v1726, %v1747
    %v1795 = vmul.f32 %v1727, %v1747
    %v1796 = vmul.f32 %v1728, %v1747
    %v1797 = vmul.f32 %v1729, %v1747
    %v1798 = vmul.f32 %v1730, %v1747
    %v1799 = vmul.f32 %v1731, %v1747
    %v1800 = vmul.f32 %v1732, %v1747
    %v1801 = vmul.f32 %v1733, %v1747
    %v1802 = vmul.f32 %v1734, %v1747
    %v1803 = vmul.f32 %v1735, %v1747
    %v1804 = vmul.f32 %v1736, %v1747
    %v1805 = vmul.f32 %v1737, %v1747
    %v1806 = vmul.f32 %v1738, %v1747
    %v1807 = vmul.f32 %v1739, %v1747
    %v1808 = vmul.f32 %v1740, %v1747
    %v1809 = vmul.f32 %v1741, %v1747
    %v1810 = vmul.f32 %v1742, %v1747
    %v1811 = vmul.f32 %v1743, %v1747
    %v1812 = vadd.f32 %v1488, %v1748
    %v1813 = vadd.f32 %v1489, %v1749
    %v1814 = vadd.f32 %v1490, %v1750
    %v1815 = vadd.f32 %v1491, %v1751
    %v1816 = vadd.f32 %v1492, %v1752
    %v1817 = vadd.f32 %v1493, %v1753
    %v1818 = vadd.f32 %v1494, %v1754
    %v1819 = vadd.f32 %v1495, %v1755
    %v1820 = vadd.f32 %v1496, %v1756
    %v1821 = vadd.f32 %v1497, %v1757
    %v1822 = vadd.f32 %v1498, %v1758
    %v1823 = vadd.f32 %v1499, %v1759
    %v1824 = vadd.f32 %v1500, %v1760
    %v1825 = vadd.f32 %v1501, %v1761
    %v1826 = vadd.f32 %v1502, %v1762
    %v1827 = vadd.f32 %v1503, %v1763
    %v1828 = vadd.f32 %v1504, %v1764
    %v1829 = vadd.f32 %v1505, %v1765
    %v1830 = vadd.f32 %v1506, %v1766
    %v1831 = vadd.f32 %v1507, %v1767
    %v1832 = vadd.f32 %v1508, %v1768
    %v1833 = vadd.f32 %v1509, %v1769
    %v1834 = vadd.f32 %v1510, %v1770
    %v1835 = vadd.f32 %v1511, %v1771
    %v1836 = vadd.f32 %v1512, %v1772
    %v1837 = vadd.f32 %v1513, %v1773
    %v1838 = vadd.f32 %v1514, %v1774
    %v1839 = vadd.f32 %v1515, %v1775
    %v1840 = vadd.f32 %v1516, %v1776
    %v1841 = vadd.f32 %v1517, %v1777
    %v1842 = vadd.f32 %v1518, %v1778
    %v1843 = vadd.f32 %v1519, %v1779
    %v1844 = vadd.f32 %v1520, %v1780
    %v1845 = vadd.f32 %v1521, %v1781
    %v1846 = vadd.f32 %v1522, %v1782
    %v1847 = vadd.f32 %v1523, %v1783
    %v1848 = vadd.f32 %v1524, %v1784
    %v1849 = vadd.f32 %v1525, %v1785
    %v1850 = vadd.f32 %v1526, %v1786
    %v1851 = vadd.f32 %v1527, %v1787
    %v1852 = vadd.f32 %v1528, %v1788
    %v1853 = vadd.f32 %v1529, %v1789
    %v1854 = vadd.f32 %v1530, %v1790
    %v1855 = vadd.f32 %v1531, %v1791
    %v1856 = vadd.f32 %v1532, %v1792
    %v1857 = vadd.f32 %v1533, %v1793
    %v1858 = vadd.f32 %v1534, %v1794
    %v1859 = vadd.f32 %v1535, %v1795
    %v1860 = vadd.f32 %v1536, %v1796
    %v1861 = vadd.f32 %v1537, %v1797
    %v1862 = vadd.f32 %v1538, %v1798
    %v1863 = vadd.f32 %v1539, %v1799
    %v1864 = vadd.f32 %v1540, %v1800
    %v1865 = vadd.f32 %v1541, %v1801
    %v1866 = vadd.f32 %v1542, %v1802
    %v1867 = vadd.f32 %v1543, %v1803
    %v1868 = vadd.f32 %v1544, %v1804
    %v1869 = vadd.f32 %v1545, %v1805
    %v1870 = vadd.f32 %v1546, %v1806
    %v1871 = vadd.f32 %v1547, %v1807
    %v1872 = vadd.f32 %v1548, %v1808
    %v1873 = vadd.f32 %v1549, %v1809
    %v1874 = vadd.f32 %v1550, %v1810
    %v1875 = vadd.f32 %v1551, %v1811
    %s1876 = scalar_lea.vmem [#allocation2], 32
    %v1877 = vld [vmem:[%s1876] sm:$0xff]
    %v1878 = vld [vmem:[%s1876 + $0x8] sm:$0xff]
    %v1879 = vld [vmem:[%s1876 + $0x10] sm:$0xff]
    %v1880 = vld [vmem:[%s1876 + $0x18] sm:$0xff]
    %v1881 = vld [vmem:[%s1876 + $0x20] sm:$0xff]
    %v1882 = vld [vmem:[%s1876 + $0x28] sm:$0xff]
    %v1883 = vld [vmem:[%s1876 + $0x30] sm:$0xff]
    %v1884 = vld [vmem:[%s1876 + $0x38] sm:$0xff]
    %v1885 = vld [vmem:[%s1876 + $0x40] sm:$0xff]
    %v1886 = vld [vmem:[%s1876 + $0x48] sm:$0xff]
    %v1887 = vld [vmem:[%s1876 + $0x50] sm:$0xff]
    %v1888 = vld [vmem:[%s1876 + $0x58] sm:$0xff]
    %v1889 = vld [vmem:[%s1876 + $0x60] sm:$0xff]
    %v1890 = vld [vmem:[%s1876 + $0x68] sm:$0xff]
    %v1891 = vld [vmem:[%s1876 + $0x70] sm:$0xff]
    %v1892 = vld [vmem:[%s1876 + $0x78] sm:$0xff]
    %v1893 = vld [vmem:[%s1876 + $0x80] sm:$0xff]
    %v1894 = vld [vmem:[%s1876 + $0x88] sm:$0xff]
    %v1895 = vld [vmem:[%s1876 + $0x90] sm:$0xff]
    %v1896 = vld [vmem:[%s1876 + $0x98] sm:$0xff]
    %v1897 = vld [vmem:[%s1876 + $0xa0] sm:$0xff]
    %v1898 = vld [vmem:[%s1876 + $0xa8] sm:$0xff]
    %v1899 = vld [vmem:[%s1876 + $0xb0] sm:$0xff]
    %v1900 = vld [vmem:[%s1876 + $0xb8] sm:$0xff]
    %v1901 = vld [vmem:[%s1876 + $0xc0] sm:$0xff]
    %v1902 = vld [vmem:[%s1876 + $0xc8] sm:$0xff]
    %v1903 = vld [vmem:[%s1876 + $0xd0] sm:$0xff]
    %v1904 = vld [vmem:[%s1876 + $0xd8] sm:$0xff]
    %v1905 = vld [vmem:[%s1876 + $0xe0] sm:$0xff]
    %v1906 = vld [vmem:[%s1876 + $0xe8] sm:$0xff]
    %v1907 = vld [vmem:[%s1876 + $0xf0] sm:$0xff]
    %v1908 = vld [vmem:[%s1876 + $0xf8] sm:$0xff]
    %v1909 = vld [vmem:[%s1876 + $0x120] sm:$0xff]
    %v1910 = vld [vmem:[%s1876 + $0x128] sm:$0xff]
    %v1911 = vld [vmem:[%s1876 + $0x130] sm:$0xff]
    %v1912 = vld [vmem:[%s1876 + $0x138] sm:$0xff]
    %v1913 = vld [vmem:[%s1876 + $0x140] sm:$0xff]
    %v1914 = vld [vmem:[%s1876 + $0x148] sm:$0xff]
    %v1915 = vld [vmem:[%s1876 + $0x150] sm:$0xff]
    %v1916 = vld [vmem:[%s1876 + $0x158] sm:$0xff]
    %v1917 = vld [vmem:[%s1876 + $0x160] sm:$0xff]
    %v1918 = vld [vmem:[%s1876 + $0x168] sm:$0xff]
    %v1919 = vld [vmem:[%s1876 + $0x170] sm:$0xff]
    %v1920 = vld [vmem:[%s1876 + $0x178] sm:$0xff]
    %v1921 = vld [vmem:[%s1876 + $0x180] sm:$0xff]
    %v1922 = vld [vmem:[%s1876 + $0x188] sm:$0xff]
    %v1923 = vld [vmem:[%s1876 + $0x190] sm:$0xff]
    %v1924 = vld [vmem:[%s1876 + $0x198] sm:$0xff]
    %v1925 = vld [vmem:[%s1876 + $0x1a0] sm:$0xff]
    %v1926 = vld [vmem:[%s1876 + $0x1a8] sm:$0xff]
    %v1927 = vld [vmem:[%s1876 + $0x1b0] sm:$0xff]
    %v1928 = vld [vmem:[%s1876 + $0x1b8] sm:$0xff]
    %v1929 = vld [vmem:[%s1876 + $0x1c0] sm:$0xff]
    %v1930 = vld [vmem:[%s1876 + $0x1c8] sm:$0xff]
    %v1931 = vld [vmem:[%s1876 + $0x1d0] sm:$0xff]
    %v1932 = vld [vmem:[%s1876 + $0x1d8] sm:$0xff]
    %v1933 = vld [vmem:[%s1876 + $0x1e0] sm:$0xff]
    %v1934 = vld [vmem:[%s1876 + $0x1e8] sm:$0xff]
    %v1935 = vld [vmem:[%s1876 + $0x1f0] sm:$0xff]
    %v1936 = vld [vmem:[%s1876 + $0x1f8] sm:$0xff]
    %v1937 = vld [vmem:[%s1876 + $0x200] sm:$0xff]
    %v1938 = vld [vmem:[%s1876 + $0x208] sm:$0xff]
    %v1939 = vld [vmem:[%s1876 + $0x210] sm:$0xff]
    %v1940 = vld [vmem:[%s1876 + $0x218] sm:$0xff]
    %v1941 = vrot.slane %v1877, 7
    %v1942 = vrot.slane %v1879, 7
    %v1943 = vrot.slane %v1881, 7
    %v1944 = vrot.slane %v1883, 7
    %v1945 = vrot.slane %v1885, 7
    %v1946 = vrot.slane %v1887, 7
    %v1947 = vrot.slane %v1889, 7
    %v1948 = vrot.slane %v1891, 7
    %v1949 = vrot.slane %v1893, 7
    %v1950 = vrot.slane %v1895, 7
    %v1951 = vrot.slane %v1897, 7
    %v1952 = vrot.slane %v1899, 7
    %v1953 = vrot.slane %v1901, 7
    %v1954 = vrot.slane %v1903, 7
    %v1955 = vrot.slane %v1905, 7
    %v1956 = vrot.slane %v1907, 7
    %v1957 = vrot.slane %v1909, 7
    %v1958 = vrot.slane %v1911, 7
    %v1959 = vrot.slane %v1913, 7
    %v1960 = vrot.slane %v1915, 7
    %v1961 = vrot.slane %v1917, 7
    %v1962 = vrot.slane %v1919, 7
    %v1963 = vrot.slane %v1921, 7
    %v1964 = vrot.slane %v1923, 7
    %v1965 = vrot.slane %v1925, 7
    %v1966 = vrot.slane %v1927, 7
    %v1967 = vrot.slane %v1929, 7
    %v1968 = vrot.slane %v1931, 7
    %v1969 = vrot.slane %v1933, 7
    %v1970 = vrot.slane %v1935, 7
    %v1971 = vrot.slane %v1937, 7
    %v1972 = vrot.slane %v1939, 7
    %v1973 = vrot.slane %v1878, 7
    %v1974 = vrot.slane %v1880, 7
    %v1975 = vrot.slane %v1882, 7
    %v1976 = vrot.slane %v1884, 7
    %v1977 = vrot.slane %v1886, 7
    %v1978 = vrot.slane %v1888, 7
    %v1979 = vrot.slane %v1890, 7
    %v1980 = vrot.slane %v1892, 7
    %v1981 = vrot.slane %v1894, 7
    %v1982 = vrot.slane %v1896, 7
    %v1983 = vrot.slane %v1898, 7
    %v1984 = vrot.slane %v1900, 7
    %v1985 = vrot.slane %v1902, 7
    %v1986 = vrot.slane %v1904, 7
    %v1987 = vrot.slane %v1906, 7
    %v1988 = vrot.slane %v1908, 7
    %v1989 = vrot.slane %v1910, 7
    %v1990 = vrot.slane %v1912, 7
    %v1991 = vrot.slane %v1914, 7
    %v1992 = vrot.slane %v1916, 7
    %v1993 = vrot.slane %v1918, 7
    %v1994 = vrot.slane %v1920, 7
    %v1995 = vrot.slane %v1922, 7
    %v1996 = vrot.slane %v1924, 7
    %v1997 = vrot.slane %v1926, 7
    %v1998 = vrot.slane %v1928, 7
    %v1999 = vrot.slane %v1930, 7
    %v2000 = vrot.slane %v1932, 7
    %v2001 = vrot.slane %v1934, 7
    %v2002 = vrot.slane %v1936, 7
    %v2003 = vrot.slane %v1938, 7
    %v2004 = vrot.slane %v1940, 7
    %v2005 = vsel %vm314, %v1941, %v1973
    %v2006 = vsel %vm314, %v1942, %v1974
    %v2007 = vsel %vm314, %v1943, %v1975
    %v2008 = vsel %vm314, %v1944, %v1976
    %v2009 = vsel %vm314, %v1945, %v1977
    %v2010 = vsel %vm314, %v1946, %v1978
    %v2011 = vsel %vm314, %v1947, %v1979
    %v2012 = vsel %vm314, %v1948, %v1980
    %v2013 = vsel %vm314, %v1949, %v1981
    %v2014 = vsel %vm314, %v1950, %v1982
    %v2015 = vsel %vm314, %v1951, %v1983
    %v2016 = vsel %vm314, %v1952, %v1984
    %v2017 = vsel %vm314, %v1953, %v1985
    %v2018 = vsel %vm314, %v1954, %v1986
    %v2019 = vsel %vm314, %v1955, %v1987
    %v2020 = vsel %vm314, %v1956, %v1988
    %v2021 = vsel %vm314, %v1957, %v1989
    %v2022 = vsel %vm314, %v1958, %v1990
    %v2023 = vsel %vm314, %v1959, %v1991
    %v2024 = vsel %vm314, %v1960, %v1992
    %v2025 = vsel %vm314, %v1961, %v1993
    %v2026 = vsel %vm314, %v1962, %v1994
    %v2027 = vsel %vm314, %v1963, %v1995
    %v2028 = vsel %vm314, %v1964, %v1996
    %v2029 = vsel %vm314, %v1965, %v1997
    %v2030 = vsel %vm314, %v1966, %v1998
    %v2031 = vsel %vm314, %v1967, %v1999
    %v2032 = vsel %vm314, %v1968, %v2000
    %v2033 = vsel %vm314, %v1969, %v2001
    %v2034 = vsel %vm314, %v1970, %v2002
    %v2035 = vsel %vm314, %v1971, %v2003
    %v2036 = vsel %vm314, %v1972, %v2004
    %v2037 = vsel %vm314, %v1973, %v1941
    %v2038 = vsel %vm314, %v1974, %v1942
    %v2039 = vsel %vm314, %v1975, %v1943
    %v2040 = vsel %vm314, %v1976, %v1944
    %v2041 = vsel %vm314, %v1977, %v1945
    %v2042 = vsel %vm314, %v1978, %v1946
    %v2043 = vsel %vm314, %v1979, %v1947
    %v2044 = vsel %vm314, %v1980, %v1948
    %v2045 = vsel %vm314, %v1981, %v1949
    %v2046 = vsel %vm314, %v1982, %v1950
    %v2047 = vsel %vm314, %v1983, %v1951
    %v2048 = vsel %vm314, %v1984, %v1952
    %v2049 = vsel %vm314, %v1985, %v1953
    %v2050 = vsel %vm314, %v1986, %v1954
    %v2051 = vsel %vm314, %v1987, %v1955
    %v2052 = vsel %vm314, %v1988, %v1956
    %v2053 = vsel %vm314, %v1989, %v1957
    %v2054 = vsel %vm314, %v1990, %v1958
    %v2055 = vsel %vm314, %v1991, %v1959
    %v2056 = vsel %vm314, %v1992, %v1960
    %v2057 = vsel %vm314, %v1993, %v1961
    %v2058 = vsel %vm314, %v1994, %v1962
    %v2059 = vsel %vm314, %v1995, %v1963
    %v2060 = vsel %vm314, %v1996, %v1964
    %v2061 = vsel %vm314, %v1997, %v1965
    %v2062 = vsel %vm314, %v1998, %v1966
    %v2063 = vsel %vm314, %v1999, %v1967
    %v2064 = vsel %vm314, %v2000, %v1968
    %v2065 = vsel %vm314, %v2001, %v1969
    %v2066 = vsel %vm314, %v2002, %v1970
    %v2067 = vsel %vm314, %v2003, %v1971
    %v2068 = vsel %vm314, %v2004, %v1972
    %v2069 = vsel %vm182, %v2037, 0.0
    %v2070 = vsel %vm183, %v2005, 0.0
    %v2071 = vsel %vm182, %v2038, 0.0
    %v2072 = vsel %vm183, %v2006, 0.0
    %v2073 = vsel %vm182, %v2039, 0.0
    %v2074 = vsel %vm183, %v2007, 0.0
    %v2075 = vsel %vm182, %v2040, 0.0
    %v2076 = vsel %vm183, %v2008, 0.0
    %v2077 = vsel %vm182, %v2041, 0.0
    %v2078 = vsel %vm183, %v2009, 0.0
    %v2079 = vsel %vm182, %v2042, 0.0
    %v2080 = vsel %vm183, %v2010, 0.0
    %v2081 = vsel %vm182, %v2043, 0.0
    %v2082 = vsel %vm183, %v2011, 0.0
    %v2083 = vsel %vm182, %v2044, 0.0
    %v2084 = vsel %vm183, %v2012, 0.0
    %v2085 = vsel %vm182, %v2045, 0.0
    %v2086 = vsel %vm183, %v2013, 0.0
    %v2087 = vsel %vm182, %v2046, 0.0
    %v2088 = vsel %vm183, %v2014, 0.0
    %v2089 = vsel %vm182, %v2047, 0.0
    %v2090 = vsel %vm183, %v2015, 0.0
    %v2091 = vsel %vm182, %v2048, 0.0
    %v2092 = vsel %vm183, %v2016, 0.0
    %v2093 = vsel %vm182, %v2049, 0.0
    %v2094 = vsel %vm183, %v2017, 0.0
    %v2095 = vsel %vm182, %v2050, 0.0
    %v2096 = vsel %vm183, %v2018, 0.0
    %v2097 = vsel %vm182, %v2051, 0.0
    %v2098 = vsel %vm183, %v2019, 0.0
    %v2099 = vsel %vm182, %v2052, 0.0
    %v2100 = vsel %vm183, %v2020, 0.0
    %v2101 = vsel %vm182, %v2053, 0.0
    %v2102 = vsel %vm183, %v2021, 0.0
    %v2103 = vsel %vm182, %v2054, 0.0
    %v2104 = vsel %vm183, %v2022, 0.0
    %v2105 = vsel %vm182, %v2055, 0.0
    %v2106 = vsel %vm183, %v2023, 0.0
    %v2107 = vsel %vm182, %v2056, 0.0
    %v2108 = vsel %vm183, %v2024, 0.0
    %v2109 = vsel %vm182, %v2057, 0.0
    %v2110 = vsel %vm183, %v2025, 0.0
    %v2111 = vsel %vm182, %v2058, 0.0
    %v2112 = vsel %vm183, %v2026, 0.0
    %v2113 = vsel %vm182, %v2059, 0.0
    %v2114 = vsel %vm183, %v2027, 0.0
    %v2115 = vsel %vm182, %v2060, 0.0
    %v2116 = vsel %vm183, %v2028, 0.0
    %v2117 = vsel %vm182, %v2061, 0.0
    %v2118 = vsel %vm183, %v2029, 0.0
    %v2119 = vsel %vm182, %v2062, 0.0
    %v2120 = vsel %vm183, %v2030, 0.0
    %v2121 = vsel %vm182, %v2063, 0.0
    %v2122 = vsel %vm183, %v2031, 0.0
    %v2123 = vsel %vm182, %v2064, 0.0
    %v2124 = vsel %vm183, %v2032, 0.0
    %v2125 = vsel %vm182, %v2065, 0.0
    %v2126 = vsel %vm183, %v2033, 0.0
    %v2127 = vsel %vm182, %v2066, 0.0
    %v2128 = vsel %vm183, %v2034, 0.0
    %v2129 = vsel %vm182, %v2067, 0.0
    %v2130 = vsel %vm183, %v2035, 0.0
    %v2131 = vsel %vm182, %v2068, 0.0
    %v2132 = vsel %vm183, %v2036, 0.0
    %v2133 = vlaneseq
    %v2134 = vshrl.u32 %v2133, 7
    %v2135 = vsub.s32 6, %v2134
    %v2136 = vrot.slane %v102, %v2135
    %v2137 = vmul.f32 %v2069, %v2136
    %v2138 = vmul.f32 %v2070, %v2136
    %v2139 = vmul.f32 %v2071, %v2136
    %v2140 = vmul.f32 %v2072, %v2136
    %v2141 = vmul.f32 %v2073, %v2136
    %v2142 = vmul.f32 %v2074, %v2136
    %v2143 = vmul.f32 %v2075, %v2136
    %v2144 = vmul.f32 %v2076, %v2136
    %v2145 = vmul.f32 %v2077, %v2136
    %v2146 = vmul.f32 %v2078, %v2136
    %v2147 = vmul.f32 %v2079, %v2136
    %v2148 = vmul.f32 %v2080, %v2136
    %v2149 = vmul.f32 %v2081, %v2136
    %v2150 = vmul.f32 %v2082, %v2136
    %v2151 = vmul.f32 %v2083, %v2136
    %v2152 = vmul.f32 %v2084, %v2136
    %v2153 = vmul.f32 %v2085, %v2136
    %v2154 = vmul.f32 %v2086, %v2136
    %v2155 = vmul.f32 %v2087, %v2136
    %v2156 = vmul.f32 %v2088, %v2136
    %v2157 = vmul.f32 %v2089, %v2136
    %v2158 = vmul.f32 %v2090, %v2136
    %v2159 = vmul.f32 %v2091, %v2136
    %v2160 = vmul.f32 %v2092, %v2136
    %v2161 = vmul.f32 %v2093, %v2136
    %v2162 = vmul.f32 %v2094, %v2136
    %v2163 = vmul.f32 %v2095, %v2136
    %v2164 = vmul.f32 %v2096, %v2136
    %v2165 = vmul.f32 %v2097, %v2136
    %v2166 = vmul.f32 %v2098, %v2136
    %v2167 = vmul.f32 %v2099, %v2136
    %v2168 = vmul.f32 %v2100, %v2136
    %v2169 = vmul.f32 %v2101, %v2136
    %v2170 = vmul.f32 %v2102, %v2136
    %v2171 = vmul.f32 %v2103, %v2136
    %v2172 = vmul.f32 %v2104, %v2136
    %v2173 = vmul.f32 %v2105, %v2136
    %v2174 = vmul.f32 %v2106, %v2136
    %v2175 = vmul.f32 %v2107, %v2136
    %v2176 = vmul.f32 %v2108, %v2136
    %v2177 = vmul.f32 %v2109, %v2136
    %v2178 = vmul.f32 %v2110, %v2136
    %v2179 = vmul.f32 %v2111, %v2136
    %v2180 = vmul.f32 %v2112, %v2136
    %v2181 = vmul.f32 %v2113, %v2136
    %v2182 = vmul.f32 %v2114, %v2136
    %v2183 = vmul.f32 %v2115, %v2136
    %v2184 = vmul.f32 %v2116, %v2136
    %v2185 = vmul.f32 %v2117, %v2136
    %v2186 = vmul.f32 %v2118, %v2136
    %v2187 = vmul.f32 %v2119, %v2136
    %v2188 = vmul.f32 %v2120, %v2136
    %v2189 = vmul.f32 %v2121, %v2136
    %v2190 = vmul.f32 %v2122, %v2136
    %v2191 = vmul.f32 %v2123, %v2136
    %v2192 = vmul.f32 %v2124, %v2136
    %v2193 = vmul.f32 %v2125, %v2136
    %v2194 = vmul.f32 %v2126, %v2136
    %v2195 = vmul.f32 %v2127, %v2136
    %v2196 = vmul.f32 %v2128, %v2136
    %v2197 = vmul.f32 %v2129, %v2136
    %v2198 = vmul.f32 %v2130, %v2136
    %v2199 = vmul.f32 %v2131, %v2136
    %v2200 = vmul.f32 %v2132, %v2136
    %v2201 = vadd.f32 %v1812, %v2137
    %v2202 = vadd.f32 %v1813, %v2138
    %v2203 = vadd.f32 %v1814, %v2139
    %v2204 = vadd.f32 %v1815, %v2140
    %v2205 = vadd.f32 %v1816, %v2141
    %v2206 = vadd.f32 %v1817, %v2142
    %v2207 = vadd.f32 %v1818, %v2143
    %v2208 = vadd.f32 %v1819, %v2144
    %v2209 = vadd.f32 %v1820, %v2145
    %v2210 = vadd.f32 %v1821, %v2146
    %v2211 = vadd.f32 %v1822, %v2147
    %v2212 = vadd.f32 %v1823, %v2148
    %v2213 = vadd.f32 %v1824, %v2149
    %v2214 = vadd.f32 %v1825, %v2150
    %v2215 = vadd.f32 %v1826, %v2151
    %v2216 = vadd.f32 %v1827, %v2152
    %v2217 = vadd.f32 %v1828, %v2153
    %v2218 = vadd.f32 %v1829, %v2154
    %v2219 = vadd.f32 %v1830, %v2155
    %v2220 = vadd.f32 %v1831, %v2156
    %v2221 = vadd.f32 %v1832, %v2157
    %v2222 = vadd.f32 %v1833, %v2158
    %v2223 = vadd.f32 %v1834, %v2159
    %v2224 = vadd.f32 %v1835, %v2160
    %v2225 = vadd.f32 %v1836, %v2161
    %v2226 = vadd.f32 %v1837, %v2162
    %v2227 = vadd.f32 %v1838, %v2163
    %v2228 = vadd.f32 %v1839, %v2164
    %v2229 = vadd.f32 %v1840, %v2165
    %v2230 = vadd.f32 %v1841, %v2166
    %v2231 = vadd.f32 %v1842, %v2167
    %v2232 = vadd.f32 %v1843, %v2168
    %v2233 = vadd.f32 %v1844, %v2169
    %v2234 = vadd.f32 %v1845, %v2170
    %v2235 = vadd.f32 %v1846, %v2171
    %v2236 = vadd.f32 %v1847, %v2172
    %v2237 = vadd.f32 %v1848, %v2173
    %v2238 = vadd.f32 %v1849, %v2174
    %v2239 = vadd.f32 %v1850, %v2175
    %v2240 = vadd.f32 %v1851, %v2176
    %v2241 = vadd.f32 %v1852, %v2177
    %v2242 = vadd.f32 %v1853, %v2178
    %v2243 = vadd.f32 %v1854, %v2179
    %v2244 = vadd.f32 %v1855, %v2180
    %v2245 = vadd.f32 %v1856, %v2181
    %v2246 = vadd.f32 %v1857, %v2182
    %v2247 = vadd.f32 %v1858, %v2183
    %v2248 = vadd.f32 %v1859, %v2184
    %v2249 = vadd.f32 %v1860, %v2185
    %v2250 = vadd.f32 %v1861, %v2186
    %v2251 = vadd.f32 %v1862, %v2187
    %v2252 = vadd.f32 %v1863, %v2188
    %v2253 = vadd.f32 %v1864, %v2189
    %v2254 = vadd.f32 %v1865, %v2190
    %v2255 = vadd.f32 %v1866, %v2191
    %v2256 = vadd.f32 %v1867, %v2192
    %v2257 = vadd.f32 %v1868, %v2193
    %v2258 = vadd.f32 %v1869, %v2194
    %v2259 = vadd.f32 %v1870, %v2195
    %v2260 = vadd.f32 %v1871, %v2196
    %v2261 = vadd.f32 %v1872, %v2197
    %v2262 = vadd.f32 %v1873, %v2198
    %v2263 = vadd.f32 %v1874, %v2199
    %v2264 = vadd.f32 %v1875, %v2200
    %v2265 = vlaneseq
    %v2266 = vshrl.u32 %v2265, 7
    %v2267 = vsub.s32 7, %v2266
    %v2268 = vrot.slane %v102, %v2267
    %v2269 = vmul.f32 %v1877, %v2268
    %v2270 = vmul.f32 %v1878, %v2268
    %v2271 = vmul.f32 %v1879, %v2268
    %v2272 = vmul.f32 %v1880, %v2268
    %v2273 = vmul.f32 %v1881, %v2268
    %v2274 = vmul.f32 %v1882, %v2268
    %v2275 = vmul.f32 %v1883, %v2268
    %v2276 = vmul.f32 %v1884, %v2268
    %v2277 = vmul.f32 %v1885, %v2268
    %v2278 = vmul.f32 %v1886, %v2268
    %v2279 = vmul.f32 %v1887, %v2268
    %v2280 = vmul.f32 %v1888, %v2268
    %v2281 = vmul.f32 %v1889, %v2268
    %v2282 = vmul.f32 %v1890, %v2268
    %v2283 = vmul.f32 %v1891, %v2268
    %v2284 = vmul.f32 %v1892, %v2268
    %v2285 = vmul.f32 %v1893, %v2268
    %v2286 = vmul.f32 %v1894, %v2268
    %v2287 = vmul.f32 %v1895, %v2268
    %v2288 = vmul.f32 %v1896, %v2268
    %v2289 = vmul.f32 %v1897, %v2268
    %v2290 = vmul.f32 %v1898, %v2268
    %v2291 = vmul.f32 %v1899, %v2268
    %v2292 = vmul.f32 %v1900, %v2268
    %v2293 = vmul.f32 %v1901, %v2268
    %v2294 = vmul.f32 %v1902, %v2268
    %v2295 = vmul.f32 %v1903, %v2268
    %v2296 = vmul.f32 %v1904, %v2268
    %v2297 = vmul.f32 %v1905, %v2268
    %v2298 = vmul.f32 %v1906, %v2268
    %v2299 = vmul.f32 %v1907, %v2268
    %v2300 = vmul.f32 %v1908, %v2268
    %v2301 = vmul.f32 %v1909, %v2268
    %v2302 = vmul.f32 %v1910, %v2268
    %v2303 = vmul.f32 %v1911, %v2268
    %v2304 = vmul.f32 %v1912, %v2268
    %v2305 = vmul.f32 %v1913, %v2268
    %v2306 = vmul.f32 %v1914, %v2268
    %v2307 = vmul.f32 %v1915, %v2268
    %v2308 = vmul.f32 %v1916, %v2268
    %v2309 = vmul.f32 %v1917, %v2268
    %v2310 = vmul.f32 %v1918, %v2268
    %v2311 = vmul.f32 %v1919, %v2268
    %v2312 = vmul.f32 %v1920, %v2268
    %v2313 = vmul.f32 %v1921, %v2268
    %v2314 = vmul.f32 %v1922, %v2268
    %v2315 = vmul.f32 %v1923, %v2268
    %v2316 = vmul.f32 %v1924, %v2268
    %v2317 = vmul.f32 %v1925, %v2268
    %v2318 = vmul.f32 %v1926, %v2268
    %v2319 = vmul.f32 %v1927, %v2268
    %v2320 = vmul.f32 %v1928, %v2268
    %v2321 = vmul.f32 %v1929, %v2268
    %v2322 = vmul.f32 %v1930, %v2268
    %v2323 = vmul.f32 %v1931, %v2268
    %v2324 = vmul.f32 %v1932, %v2268
    %v2325 = vmul.f32 %v1933, %v2268
    %v2326 = vmul.f32 %v1934, %v2268
    %v2327 = vmul.f32 %v1935, %v2268
    %v2328 = vmul.f32 %v1936, %v2268
    %v2329 = vmul.f32 %v1937, %v2268
    %v2330 = vmul.f32 %v1938, %v2268
    %v2331 = vmul.f32 %v1939, %v2268
    %v2332 = vmul.f32 %v1940, %v2268
    %v2333 = vadd.f32 %v2201, %v2269
    %v2334 = vadd.f32 %v2202, %v2270
    %v2335 = vadd.f32 %v2203, %v2271
    %v2336 = vadd.f32 %v2204, %v2272
    %v2337 = vadd.f32 %v2205, %v2273
    %v2338 = vadd.f32 %v2206, %v2274
    %v2339 = vadd.f32 %v2207, %v2275
    %v2340 = vadd.f32 %v2208, %v2276
    %v2341 = vadd.f32 %v2209, %v2277
    %v2342 = vadd.f32 %v2210, %v2278
    %v2343 = vadd.f32 %v2211, %v2279
    %v2344 = vadd.f32 %v2212, %v2280
    %v2345 = vadd.f32 %v2213, %v2281
    %v2346 = vadd.f32 %v2214, %v2282
    %v2347 = vadd.f32 %v2215, %v2283
    %v2348 = vadd.f32 %v2216, %v2284
    %v2349 = vadd.f32 %v2217, %v2285
    %v2350 = vadd.f32 %v2218, %v2286
    %v2351 = vadd.f32 %v2219, %v2287
    %v2352 = vadd.f32 %v2220, %v2288
    %v2353 = vadd.f32 %v2221, %v2289
    %v2354 = vadd.f32 %v2222, %v2290
    %v2355 = vadd.f32 %v2223, %v2291
    %v2356 = vadd.f32 %v2224, %v2292
    %v2357 = vadd.f32 %v2225, %v2293
    %v2358 = vadd.f32 %v2226, %v2294
    %v2359 = vadd.f32 %v2227, %v2295
    %v2360 = vadd.f32 %v2228, %v2296
    %v2361 = vadd.f32 %v2229, %v2297
    %v2362 = vadd.f32 %v2230, %v2298
    %v2363 = vadd.f32 %v2231, %v2299
    %v2364 = vadd.f32 %v2232, %v2300
    %v2365 = vadd.f32 %v2233, %v2301
    %v2366 = vadd.f32 %v2234, %v2302
    %v2367 = vadd.f32 %v2235, %v2303
    %v2368 = vadd.f32 %v2236, %v2304
    %v2369 = vadd.f32 %v2237, %v2305
    %v2370 = vadd.f32 %v2238, %v2306
    %v2371 = vadd.f32 %v2239, %v2307
    %v2372 = vadd.f32 %v2240, %v2308
    %v2373 = vadd.f32 %v2241, %v2309
    %v2374 = vadd.f32 %v2242, %v2310
    %v2375 = vadd.f32 %v2243, %v2311
    %v2376 = vadd.f32 %v2244, %v2312
    %v2377 = vadd.f32 %v2245, %v2313
    %v2378 = vadd.f32 %v2246, %v2314
    %v2379 = vadd.f32 %v2247, %v2315
    %v2380 = vadd.f32 %v2248, %v2316
    %v2381 = vadd.f32 %v2249, %v2317
    %v2382 = vadd.f32 %v2250, %v2318
    %v2383 = vadd.f32 %v2251, %v2319
    %v2384 = vadd.f32 %v2252, %v2320
    %v2385 = vadd.f32 %v2253, %v2321
    %v2386 = vadd.f32 %v2254, %v2322
    %v2387 = vadd.f32 %v2255, %v2323
    %v2388 = vadd.f32 %v2256, %v2324
    %v2389 = vadd.f32 %v2257, %v2325
    %v2390 = vadd.f32 %v2258, %v2326
    %v2391 = vadd.f32 %v2259, %v2327
    %v2392 = vadd.f32 %v2260, %v2328
    %v2393 = vadd.f32 %v2261, %v2329
    %v2394 = vadd.f32 %v2262, %v2330
    %v2395 = vadd.f32 %v2263, %v2331
    %v2396 = vadd.f32 %v2264, %v2332
    %v2397 = vrot.slane %v1877, 1
    %v2398 = vrot.slane %v1879, 1
    %v2399 = vrot.slane %v1881, 1
    %v2400 = vrot.slane %v1883, 1
    %v2401 = vrot.slane %v1885, 1
    %v2402 = vrot.slane %v1887, 1
    %v2403 = vrot.slane %v1889, 1
    %v2404 = vrot.slane %v1891, 1
    %v2405 = vrot.slane %v1893, 1
    %v2406 = vrot.slane %v1895, 1
    %v2407 = vrot.slane %v1897, 1
    %v2408 = vrot.slane %v1899, 1
    %v2409 = vrot.slane %v1901, 1
    %v2410 = vrot.slane %v1903, 1
    %v2411 = vrot.slane %v1905, 1
    %v2412 = vrot.slane %v1907, 1
    %v2413 = vrot.slane %v1909, 1
    %v2414 = vrot.slane %v1911, 1
    %v2415 = vrot.slane %v1913, 1
    %v2416 = vrot.slane %v1915, 1
    %v2417 = vrot.slane %v1917, 1
    %v2418 = vrot.slane %v1919, 1
    %v2419 = vrot.slane %v1921, 1
    %v2420 = vrot.slane %v1923, 1
    %v2421 = vrot.slane %v1925, 1
    %v2422 = vrot.slane %v1927, 1
    %v2423 = vrot.slane %v1929, 1
    %v2424 = vrot.slane %v1931, 1
    %v2425 = vrot.slane %v1933, 1
    %v2426 = vrot.slane %v1935, 1
    %v2427 = vrot.slane %v1937, 1
    %v2428 = vrot.slane %v1939, 1
    %v2429 = vrot.slane %v1878, 1
    %v2430 = vrot.slane %v1880, 1
    %v2431 = vrot.slane %v1882, 1
    %v2432 = vrot.slane %v1884, 1
    %v2433 = vrot.slane %v1886, 1
    %v2434 = vrot.slane %v1888, 1
    %v2435 = vrot.slane %v1890, 1
    %v2436 = vrot.slane %v1892, 1
    %v2437 = vrot.slane %v1894, 1
    %v2438 = vrot.slane %v1896, 1
    %v2439 = vrot.slane %v1898, 1
    %v2440 = vrot.slane %v1900, 1
    %v2441 = vrot.slane %v1902, 1
    %v2442 = vrot.slane %v1904, 1
    %v2443 = vrot.slane %v1906, 1
    %v2444 = vrot.slane %v1908, 1
    %v2445 = vrot.slane %v1910, 1
    %v2446 = vrot.slane %v1912, 1
    %v2447 = vrot.slane %v1914, 1
    %v2448 = vrot.slane %v1916, 1
    %v2449 = vrot.slane %v1918, 1
    %v2450 = vrot.slane %v1920, 1
    %v2451 = vrot.slane %v1922, 1
    %v2452 = vrot.slane %v1924, 1
    %v2453 = vrot.slane %v1926, 1
    %v2454 = vrot.slane %v1928, 1
    %v2455 = vrot.slane %v1930, 1
    %v2456 = vrot.slane %v1932, 1
    %v2457 = vrot.slane %v1934, 1
    %v2458 = vrot.slane %v1936, 1
    %v2459 = vrot.slane %v1938, 1
    %v2460 = vrot.slane %v1940, 1
    %v2461 = vsel %vm771, %v2397, %v2429
    %v2462 = vsel %vm771, %v2398, %v2430
    %v2463 = vsel %vm771, %v2399, %v2431
    %v2464 = vsel %vm771, %v2400, %v2432
    %v2465 = vsel %vm771, %v2401, %v2433
    %v2466 = vsel %vm771, %v2402, %v2434
    %v2467 = vsel %vm771, %v2403, %v2435
    %v2468 = vsel %vm771, %v2404, %v2436
    %v2469 = vsel %vm771, %v2405, %v2437
    %v2470 = vsel %vm771, %v2406, %v2438
    %v2471 = vsel %vm771, %v2407, %v2439
    %v2472 = vsel %vm771, %v2408, %v2440
    %v2473 = vsel %vm771, %v2409, %v2441
    %v2474 = vsel %vm771, %v2410, %v2442
    %v2475 = vsel %vm771, %v2411, %v2443
    %v2476 = vsel %vm771, %v2412, %v2444
    %v2477 = vsel %vm771, %v2413, %v2445
    %v2478 = vsel %vm771, %v2414, %v2446
    %v2479 = vsel %vm771, %v2415, %v2447
    %v2480 = vsel %vm771, %v2416, %v2448
    %v2481 = vsel %vm771, %v2417, %v2449
    %v2482 = vsel %vm771, %v2418, %v2450
    %v2483 = vsel %vm771, %v2419, %v2451
    %v2484 = vsel %vm771, %v2420, %v2452
    %v2485 = vsel %vm771, %v2421, %v2453
    %v2486 = vsel %vm771, %v2422, %v2454
    %v2487 = vsel %vm771, %v2423, %v2455
    %v2488 = vsel %vm771, %v2424, %v2456
    %v2489 = vsel %vm771, %v2425, %v2457
    %v2490 = vsel %vm771, %v2426, %v2458
    %v2491 = vsel %vm771, %v2427, %v2459
    %v2492 = vsel %vm771, %v2428, %v2460
    %v2493 = vsel %vm771, %v2429, %v2397
    %v2494 = vsel %vm771, %v2430, %v2398
    %v2495 = vsel %vm771, %v2431, %v2399
    %v2496 = vsel %vm771, %v2432, %v2400
    %v2497 = vsel %vm771, %v2433, %v2401
    %v2498 = vsel %vm771, %v2434, %v2402
    %v2499 = vsel %vm771, %v2435, %v2403
    %v2500 = vsel %vm771, %v2436, %v2404
    %v2501 = vsel %vm771, %v2437, %v2405
    %v2502 = vsel %vm771, %v2438, %v2406
    %v2503 = vsel %vm771, %v2439, %v2407
    %v2504 = vsel %vm771, %v2440, %v2408
    %v2505 = vsel %vm771, %v2441, %v2409
    %v2506 = vsel %vm771, %v2442, %v2410
    %v2507 = vsel %vm771, %v2443, %v2411
    %v2508 = vsel %vm771, %v2444, %v2412
    %v2509 = vsel %vm771, %v2445, %v2413
    %v2510 = vsel %vm771, %v2446, %v2414
    %v2511 = vsel %vm771, %v2447, %v2415
    %v2512 = vsel %vm771, %v2448, %v2416
    %v2513 = vsel %vm771, %v2449, %v2417
    %v2514 = vsel %vm771, %v2450, %v2418
    %v2515 = vsel %vm771, %v2451, %v2419
    %v2516 = vsel %vm771, %v2452, %v2420
    %v2517 = vsel %vm771, %v2453, %v2421
    %v2518 = vsel %vm771, %v2454, %v2422
    %v2519 = vsel %vm771, %v2455, %v2423
    %v2520 = vsel %vm771, %v2456, %v2424
    %v2521 = vsel %vm771, %v2457, %v2425
    %v2522 = vsel %vm771, %v2458, %v2426
    %v2523 = vsel %vm771, %v2459, %v2427
    %v2524 = vsel %vm771, %v2460, %v2428
    %v2525 = vsel %vm184, %v2461, 0.0
    %v2526 = vsel %vm185, %v2493, 0.0
    %v2527 = vsel %vm184, %v2462, 0.0
    %v2528 = vsel %vm185, %v2494, 0.0
    %v2529 = vsel %vm184, %v2463, 0.0
    %v2530 = vsel %vm185, %v2495, 0.0
    %v2531 = vsel %vm184, %v2464, 0.0
    %v2532 = vsel %vm185, %v2496, 0.0
    %v2533 = vsel %vm184, %v2465, 0.0
    %v2534 = vsel %vm185, %v2497, 0.0
    %v2535 = vsel %vm184, %v2466, 0.0
    %v2536 = vsel %vm185, %v2498, 0.0
    %v2537 = vsel %vm184, %v2467, 0.0
    %v2538 = vsel %vm185, %v2499, 0.0
    %v2539 = vsel %vm184, %v2468, 0.0
    %v2540 = vsel %vm185, %v2500, 0.0
    %v2541 = vsel %vm184, %v2469, 0.0
    %v2542 = vsel %vm185, %v2501, 0.0
    %v2543 = vsel %vm184, %v2470, 0.0
    %v2544 = vsel %vm185, %v2502, 0.0
    %v2545 = vsel %vm184, %v2471, 0.0
    %v2546 = vsel %vm185, %v2503, 0.0
    %v2547 = vsel %vm184, %v2472, 0.0
    %v2548 = vsel %vm185, %v2504, 0.0
    %v2549 = vsel %vm184, %v2473, 0.0
    %v2550 = vsel %vm185, %v2505, 0.0
    %v2551 = vsel %vm184, %v2474, 0.0
    %v2552 = vsel %vm185, %v2506, 0.0
    %v2553 = vsel %vm184, %v2475, 0.0
    %v2554 = vsel %vm185, %v2507, 0.0
    %v2555 = vsel %vm184, %v2476, 0.0
    %v2556 = vsel %vm185, %v2508, 0.0
    %v2557 = vsel %vm184, %v2477, 0.0
    %v2558 = vsel %vm185, %v2509, 0.0
    %v2559 = vsel %vm184, %v2478, 0.0
    %v2560 = vsel %vm185, %v2510, 0.0
    %v2561 = vsel %vm184, %v2479, 0.0
    %v2562 = vsel %vm185, %v2511, 0.0
    %v2563 = vsel %vm184, %v2480, 0.0
    %v2564 = vsel %vm185, %v2512, 0.0
    %v2565 = vsel %vm184, %v2481, 0.0
    %v2566 = vsel %vm185, %v2513, 0.0
    %v2567 = vsel %vm184, %v2482, 0.0
    %v2568 = vsel %vm185, %v2514, 0.0
    %v2569 = vsel %vm184, %v2483, 0.0
    %v2570 = vsel %vm185, %v2515, 0.0
    %v2571 = vsel %vm184, %v2484, 0.0
    %v2572 = vsel %vm185, %v2516, 0.0
    %v2573 = vsel %vm184, %v2485, 0.0
    %v2574 = vsel %vm185, %v2517, 0.0
    %v2575 = vsel %vm184, %v2486, 0.0
    %v2576 = vsel %vm185, %v2518, 0.0
    %v2577 = vsel %vm184, %v2487, 0.0
    %v2578 = vsel %vm185, %v2519, 0.0
    %v2579 = vsel %vm184, %v2488, 0.0
    %v2580 = vsel %vm185, %v2520, 0.0
    %v2581 = vsel %vm184, %v2489, 0.0
    %v2582 = vsel %vm185, %v2521, 0.0
    %v2583 = vsel %vm184, %v2490, 0.0
    %v2584 = vsel %vm185, %v2522, 0.0
    %v2585 = vsel %vm184, %v2491, 0.0
    %v2586 = vsel %vm185, %v2523, 0.0
    %v2587 = vsel %vm184, %v2492, 0.0
    %v2588 = vsel %vm185, %v2524, 0.0
    %v2589 = vlaneseq
    %v2590 = vshrl.u32 %v2589, 7
    %v2591 = vsub.s32 0, %v2590
    %v2592 = vrot.slane %v103, %v2591
    %v2593 = vmul.f32 %v2525, %v2592
    %v2594 = vmul.f32 %v2526, %v2592
    %v2595 = vmul.f32 %v2527, %v2592
    %v2596 = vmul.f32 %v2528, %v2592
    %v2597 = vmul.f32 %v2529, %v2592
    %v2598 = vmul.f32 %v2530, %v2592
    %v2599 = vmul.f32 %v2531, %v2592
    %v2600 = vmul.f32 %v2532, %v2592
    %v2601 = vmul.f32 %v2533, %v2592
    %v2602 = vmul.f32 %v2534, %v2592
    %v2603 = vmul.f32 %v2535, %v2592
    %v2604 = vmul.f32 %v2536, %v2592
    %v2605 = vmul.f32 %v2537, %v2592
    %v2606 = vmul.f32 %v2538, %v2592
    %v2607 = vmul.f32 %v2539, %v2592
    %v2608 = vmul.f32 %v2540, %v2592
    %v2609 = vmul.f32 %v2541, %v2592
    %v2610 = vmul.f32 %v2542, %v2592
    %v2611 = vmul.f32 %v2543, %v2592
    %v2612 = vmul.f32 %v2544, %v2592
    %v2613 = vmul.f32 %v2545, %v2592
    %v2614 = vmul.f32 %v2546, %v2592
    %v2615 = vmul.f32 %v2547, %v2592
    %v2616 = vmul.f32 %v2548, %v2592
    %v2617 = vmul.f32 %v2549, %v2592
    %v2618 = vmul.f32 %v2550, %v2592
    %v2619 = vmul.f32 %v2551, %v2592
    %v2620 = vmul.f32 %v2552, %v2592
    %v2621 = vmul.f32 %v2553, %v2592
    %v2622 = vmul.f32 %v2554, %v2592
    %v2623 = vmul.f32 %v2555, %v2592
    %v2624 = vmul.f32 %v2556, %v2592
    %v2625 = vmul.f32 %v2557, %v2592
    %v2626 = vmul.f32 %v2558, %v2592
    %v2627 = vmul.f32 %v2559, %v2592
    %v2628 = vmul.f32 %v2560, %v2592
    %v2629 = vmul.f32 %v2561, %v2592
    %v2630 = vmul.f32 %v2562, %v2592
    %v2631 = vmul.f32 %v2563, %v2592
    %v2632 = vmul.f32 %v2564, %v2592
    %v2633 = vmul.f32 %v2565, %v2592
    %v2634 = vmul.f32 %v2566, %v2592
    %v2635 = vmul.f32 %v2567, %v2592
    %v2636 = vmul.f32 %v2568, %v2592
    %v2637 = vmul.f32 %v2569, %v2592
    %v2638 = vmul.f32 %v2570, %v2592
    %v2639 = vmul.f32 %v2571, %v2592
    %v2640 = vmul.f32 %v2572, %v2592
    %v2641 = vmul.f32 %v2573, %v2592
    %v2642 = vmul.f32 %v2574, %v2592
    %v2643 = vmul.f32 %v2575, %v2592
    %v2644 = vmul.f32 %v2576, %v2592
    %v2645 = vmul.f32 %v2577, %v2592
    %v2646 = vmul.f32 %v2578, %v2592
    %v2647 = vmul.f32 %v2579, %v2592
    %v2648 = vmul.f32 %v2580, %v2592
    %v2649 = vmul.f32 %v2581, %v2592
    %v2650 = vmul.f32 %v2582, %v2592
    %v2651 = vmul.f32 %v2583, %v2592
    %v2652 = vmul.f32 %v2584, %v2592
    %v2653 = vmul.f32 %v2585, %v2592
    %v2654 = vmul.f32 %v2586, %v2592
    %v2655 = vmul.f32 %v2587, %v2592
    %v2656 = vmul.f32 %v2588, %v2592
    %v2657 = vadd.f32 %v2333, %v2593
    %v2658 = vadd.f32 %v2334, %v2594
    %v2659 = vadd.f32 %v2335, %v2595
    %v2660 = vadd.f32 %v2336, %v2596
    %v2661 = vadd.f32 %v2337, %v2597
    %v2662 = vadd.f32 %v2338, %v2598
    %v2663 = vadd.f32 %v2339, %v2599
    %v2664 = vadd.f32 %v2340, %v2600
    %v2665 = vadd.f32 %v2341, %v2601
    %v2666 = vadd.f32 %v2342, %v2602
    %v2667 = vadd.f32 %v2343, %v2603
    %v2668 = vadd.f32 %v2344, %v2604
    %v2669 = vadd.f32 %v2345, %v2605
    %v2670 = vadd.f32 %v2346, %v2606
    %v2671 = vadd.f32 %v2347, %v2607
    %v2672 = vadd.f32 %v2348, %v2608
    %v2673 = vadd.f32 %v2349, %v2609
    %v2674 = vadd.f32 %v2350, %v2610
    %v2675 = vadd.f32 %v2351, %v2611
    %v2676 = vadd.f32 %v2352, %v2612
    %v2677 = vadd.f32 %v2353, %v2613
    %v2678 = vadd.f32 %v2354, %v2614
    %v2679 = vadd.f32 %v2355, %v2615
    %v2680 = vadd.f32 %v2356, %v2616
    %v2681 = vadd.f32 %v2357, %v2617
    %v2682 = vadd.f32 %v2358, %v2618
    %v2683 = vadd.f32 %v2359, %v2619
    %v2684 = vadd.f32 %v2360, %v2620
    %v2685 = vadd.f32 %v2361, %v2621
    %v2686 = vadd.f32 %v2362, %v2622
    %v2687 = vadd.f32 %v2363, %v2623
    %v2688 = vadd.f32 %v2364, %v2624
    %v2689 = vadd.f32 %v2365, %v2625
    %v2690 = vadd.f32 %v2366, %v2626
    %v2691 = vadd.f32 %v2367, %v2627
    %v2692 = vadd.f32 %v2368, %v2628
    %v2693 = vadd.f32 %v2369, %v2629
    %v2694 = vadd.f32 %v2370, %v2630
    %v2695 = vadd.f32 %v2371, %v2631
    %v2696 = vadd.f32 %v2372, %v2632
    %v2697 = vadd.f32 %v2373, %v2633
    %v2698 = vadd.f32 %v2374, %v2634
    %v2699 = vadd.f32 %v2375, %v2635
    %v2700 = vadd.f32 %v2376, %v2636
    %v2701 = vadd.f32 %v2377, %v2637
    %v2702 = vadd.f32 %v2378, %v2638
    %v2703 = vadd.f32 %v2379, %v2639
    %v2704 = vadd.f32 %v2380, %v2640
    %v2705 = vadd.f32 %v2381, %v2641
    %v2706 = vadd.f32 %v2382, %v2642
    %v2707 = vadd.f32 %v2383, %v2643
    %v2708 = vadd.f32 %v2384, %v2644
    %v2709 = vadd.f32 %v2385, %v2645
    %v2710 = vadd.f32 %v2386, %v2646
    %v2711 = vadd.f32 %v2387, %v2647
    %v2712 = vadd.f32 %v2388, %v2648
    %v2713 = vadd.f32 %v2389, %v2649
    %v2714 = vadd.f32 %v2390, %v2650
    %v2715 = vadd.f32 %v2391, %v2651
    %v2716 = vadd.f32 %v2392, %v2652
    %v2717 = vadd.f32 %v2393, %v2653
    %v2718 = vadd.f32 %v2394, %v2654
    %v2719 = vadd.f32 %v2395, %v2655
    %v2720 = vadd.f32 %v2396, %v2656
    %v2721 = vlaneseq
    %v2722 = vshrl.u32 %v2721, 7
    %v2723 = vsub.s32 1, %v2722
    %v2724 = vrot.slane %v103, %v2723
    %v2725 = vmul.f32 %v2657, %v2724
    %v2726 = vmul.f32 %v2658, %v2724
    %v2727 = vmul.f32 %v2659, %v2724
    %v2728 = vmul.f32 %v2660, %v2724
    %v2729 = vmul.f32 %v2661, %v2724
    %v2730 = vmul.f32 %v2662, %v2724
    %v2731 = vmul.f32 %v2663, %v2724
    %v2732 = vmul.f32 %v2664, %v2724
    %v2733 = vmul.f32 %v2665, %v2724
    %v2734 = vmul.f32 %v2666, %v2724
    %v2735 = vmul.f32 %v2667, %v2724
    %v2736 = vmul.f32 %v2668, %v2724
    %v2737 = vmul.f32 %v2669, %v2724
    %v2738 = vmul.f32 %v2670, %v2724
    %v2739 = vmul.f32 %v2671, %v2724
    %v2740 = vmul.f32 %v2672, %v2724
    %v2741 = vmul.f32 %v2673, %v2724
    %v2742 = vmul.f32 %v2674, %v2724
    %v2743 = vmul.f32 %v2675, %v2724
    %v2744 = vmul.f32 %v2676, %v2724
    %v2745 = vmul.f32 %v2677, %v2724
    %v2746 = vmul.f32 %v2678, %v2724
    %v2747 = vmul.f32 %v2679, %v2724
    %v2748 = vmul.f32 %v2680, %v2724
    %v2749 = vmul.f32 %v2681, %v2724
    %v2750 = vmul.f32 %v2682, %v2724
    %v2751 = vmul.f32 %v2683, %v2724
    %v2752 = vmul.f32 %v2684, %v2724
    %v2753 = vmul.f32 %v2685, %v2724
    %v2754 = vmul.f32 %v2686, %v2724
    %v2755 = vmul.f32 %v2687, %v2724
    %v2756 = vmul.f32 %v2688, %v2724
    %v2757 = vmul.f32 %v2689, %v2724
    %v2758 = vmul.f32 %v2690, %v2724
    %v2759 = vmul.f32 %v2691, %v2724
    %v2760 = vmul.f32 %v2692, %v2724
    %v2761 = vmul.f32 %v2693, %v2724
    %v2762 = vmul.f32 %v2694, %v2724
    %v2763 = vmul.f32 %v2695, %v2724
    %v2764 = vmul.f32 %v2696, %v2724
    %v2765 = vmul.f32 %v2697, %v2724
    %v2766 = vmul.f32 %v2698, %v2724
    %v2767 = vmul.f32 %v2699, %v2724
    %v2768 = vmul.f32 %v2700, %v2724
    %v2769 = vmul.f32 %v2701, %v2724
    %v2770 = vmul.f32 %v2702, %v2724
    %v2771 = vmul.f32 %v2703, %v2724
    %v2772 = vmul.f32 %v2704, %v2724
    %v2773 = vmul.f32 %v2705, %v2724
    %v2774 = vmul.f32 %v2706, %v2724
    %v2775 = vmul.f32 %v2707, %v2724
    %v2776 = vmul.f32 %v2708, %v2724
    %v2777 = vmul.f32 %v2709, %v2724
    %v2778 = vmul.f32 %v2710, %v2724
    %v2779 = vmul.f32 %v2711, %v2724
    %v2780 = vmul.f32 %v2712, %v2724
    %v2781 = vmul.f32 %v2713, %v2724
    %v2782 = vmul.f32 %v2714, %v2724
    %v2783 = vmul.f32 %v2715, %v2724
    %v2784 = vmul.f32 %v2716, %v2724
    %v2785 = vmul.f32 %v2717, %v2724
    %v2786 = vmul.f32 %v2718, %v2724
    %v2787 = vmul.f32 %v2719, %v2724
    %v2788 = vmul.f32 %v2720, %v2724
    %v2789 = vlaneseq
    %v2790 = vshrl.u32 %v2789, 7
    %v2791 = vsub.s32 2, %v2790
    %v2792 = vrot.slane %v103, %v2791
    %v2793 = vadd.f32 %v2725, %v2792
    %v2794 = vadd.f32 %v2726, %v2792
    %v2795 = vadd.f32 %v2727, %v2792
    %v2796 = vadd.f32 %v2728, %v2792
    %v2797 = vadd.f32 %v2729, %v2792
    %v2798 = vadd.f32 %v2730, %v2792
    %v2799 = vadd.f32 %v2731, %v2792
    %v2800 = vadd.f32 %v2732, %v2792
    %v2801 = vadd.f32 %v2733, %v2792
    %v2802 = vadd.f32 %v2734, %v2792
    %v2803 = vadd.f32 %v2735, %v2792
    %v2804 = vadd.f32 %v2736, %v2792
    %v2805 = vadd.f32 %v2737, %v2792
    %v2806 = vadd.f32 %v2738, %v2792
    %v2807 = vadd.f32 %v2739, %v2792
    %v2808 = vadd.f32 %v2740, %v2792
    %v2809 = vadd.f32 %v2741, %v2792
    %v2810 = vadd.f32 %v2742, %v2792
    %v2811 = vadd.f32 %v2743, %v2792
    %v2812 = vadd.f32 %v2744, %v2792
    %v2813 = vadd.f32 %v2745, %v2792
    %v2814 = vadd.f32 %v2746, %v2792
    %v2815 = vadd.f32 %v2747, %v2792
    %v2816 = vadd.f32 %v2748, %v2792
    %v2817 = vadd.f32 %v2749, %v2792
    %v2818 = vadd.f32 %v2750, %v2792
    %v2819 = vadd.f32 %v2751, %v2792
    %v2820 = vadd.f32 %v2752, %v2792
    %v2821 = vadd.f32 %v2753, %v2792
    %v2822 = vadd.f32 %v2754, %v2792
    %v2823 = vadd.f32 %v2755, %v2792
    %v2824 = vadd.f32 %v2756, %v2792
    %v2825 = vadd.f32 %v2757, %v2792
    %v2826 = vadd.f32 %v2758, %v2792
    %v2827 = vadd.f32 %v2759, %v2792
    %v2828 = vadd.f32 %v2760, %v2792
    %v2829 = vadd.f32 %v2761, %v2792
    %v2830 = vadd.f32 %v2762, %v2792
    %v2831 = vadd.f32 %v2763, %v2792
    %v2832 = vadd.f32 %v2764, %v2792
    %v2833 = vadd.f32 %v2765, %v2792
    %v2834 = vadd.f32 %v2766, %v2792
    %v2835 = vadd.f32 %v2767, %v2792
    %v2836 = vadd.f32 %v2768, %v2792
    %v2837 = vadd.f32 %v2769, %v2792
    %v2838 = vadd.f32 %v2770, %v2792
    %v2839 = vadd.f32 %v2771, %v2792
    %v2840 = vadd.f32 %v2772, %v2792
    %v2841 = vadd.f32 %v2773, %v2792
    %v2842 = vadd.f32 %v2774, %v2792
    %v2843 = vadd.f32 %v2775, %v2792
    %v2844 = vadd.f32 %v2776, %v2792
    %v2845 = vadd.f32 %v2777, %v2792
    %v2846 = vadd.f32 %v2778, %v2792
    %v2847 = vadd.f32 %v2779, %v2792
    %v2848 = vadd.f32 %v2780, %v2792
    %v2849 = vadd.f32 %v2781, %v2792
    %v2850 = vadd.f32 %v2782, %v2792
    %v2851 = vadd.f32 %v2783, %v2792
    %v2852 = vadd.f32 %v2784, %v2792
    %v2853 = vadd.f32 %v2785, %v2792
    %v2854 = vadd.f32 %v2786, %v2792
    %v2855 = vadd.f32 %v2787, %v2792
    %v2856 = vadd.f32 %v2788, %v2792
    %v2857 = vxor.u32 %v2793, 2147483648
    %v2858 = vxor.u32 %v2794, 2147483648
    %v2859 = vxor.u32 %v2795, 2147483648
    %v2860 = vxor.u32 %v2796, 2147483648
    %v2861 = vxor.u32 %v2797, 2147483648
    %v2862 = vxor.u32 %v2798, 2147483648
    %v2863 = vxor.u32 %v2799, 2147483648
    %v2864 = vxor.u32 %v2800, 2147483648
    %v2865 = vxor.u32 %v2801, 2147483648
    %v2866 = vxor.u32 %v2802, 2147483648
    %v2867 = vxor.u32 %v2803, 2147483648
    %v2868 = vxor.u32 %v2804, 2147483648
    %v2869 = vxor.u32 %v2805, 2147483648
    %v2870 = vxor.u32 %v2806, 2147483648
    %v2871 = vxor.u32 %v2807, 2147483648
    %v2872 = vxor.u32 %v2808, 2147483648
    %v2873 = vxor.u32 %v2809, 2147483648
    %v2874 = vxor.u32 %v2810, 2147483648
    %v2875 = vxor.u32 %v2811, 2147483648
    %v2876 = vxor.u32 %v2812, 2147483648
    %v2877 = vxor.u32 %v2813, 2147483648
    %v2878 = vxor.u32 %v2814, 2147483648
    %v2879 = vxor.u32 %v2815, 2147483648
    %v2880 = vxor.u32 %v2816, 2147483648
    %v2881 = vxor.u32 %v2817, 2147483648
    %v2882 = vxor.u32 %v2818, 2147483648
    %v2883 = vxor.u32 %v2819, 2147483648
    %v2884 = vxor.u32 %v2820, 2147483648
    %v2885 = vxor.u32 %v2821, 2147483648
    %v2886 = vxor.u32 %v2822, 2147483648
    %v2887 = vxor.u32 %v2823, 2147483648
    %v2888 = vxor.u32 %v2824, 2147483648
    %v2889 = vxor.u32 %v2825, 2147483648
    %v2890 = vxor.u32 %v2826, 2147483648
    %v2891 = vxor.u32 %v2827, 2147483648
    %v2892 = vxor.u32 %v2828, 2147483648
    %v2893 = vxor.u32 %v2829, 2147483648
    %v2894 = vxor.u32 %v2830, 2147483648
    %v2895 = vxor.u32 %v2831, 2147483648
    %v2896 = vxor.u32 %v2832, 2147483648
    %v2897 = vxor.u32 %v2833, 2147483648
    %v2898 = vxor.u32 %v2834, 2147483648
    %v2899 = vxor.u32 %v2835, 2147483648
    %v2900 = vxor.u32 %v2836, 2147483648
    %v2901 = vxor.u32 %v2837, 2147483648
    %v2902 = vxor.u32 %v2838, 2147483648
    %v2903 = vxor.u32 %v2839, 2147483648
    %v2904 = vxor.u32 %v2840, 2147483648
    %v2905 = vxor.u32 %v2841, 2147483648
    %v2906 = vxor.u32 %v2842, 2147483648
    %v2907 = vxor.u32 %v2843, 2147483648
    %v2908 = vxor.u32 %v2844, 2147483648
    %v2909 = vxor.u32 %v2845, 2147483648
    %v2910 = vxor.u32 %v2846, 2147483648
    %v2911 = vxor.u32 %v2847, 2147483648
    %v2912 = vxor.u32 %v2848, 2147483648
    %v2913 = vxor.u32 %v2849, 2147483648
    %v2914 = vxor.u32 %v2850, 2147483648
    %v2915 = vxor.u32 %v2851, 2147483648
    %v2916 = vxor.u32 %v2852, 2147483648
    %v2917 = vxor.u32 %v2853, 2147483648
    %v2918 = vxor.u32 %v2854, 2147483648
    %v2919 = vxor.u32 %v2855, 2147483648
    %v2920 = vxor.u32 %v2856, 2147483648
    %v2921 = vmul.f32 %v2857, 1.442695
    %v2922 = vpow.pop %v2921
    %v2923 = vmul.f32 %v2858, 1.442695
    %v2924 = vpow.pop %v2923
    %v2925 = vmul.f32 %v2859, 1.442695
    %v2926 = vpow.pop %v2925
    %v2927 = vmul.f32 %v2860, 1.442695
    %v2928 = vpow.pop %v2927
    %v2929 = vmul.f32 %v2861, 1.442695
    %v2930 = vpow.pop %v2929
    %v2931 = vmul.f32 %v2862, 1.442695
    %v2932 = vpow.pop %v2931
    %v2933 = vmul.f32 %v2863, 1.442695
    %v2934 = vpow.pop %v2933
    %v2935 = vmul.f32 %v2864, 1.442695
    %v2936 = vpow.pop %v2935
    %v2937 = vmul.f32 %v2865, 1.442695
    %v2938 = vpow.pop %v2937
    %v2939 = vmul.f32 %v2866, 1.442695
    %v2940 = vpow.pop %v2939
    %v2941 = vmul.f32 %v2867, 1.442695
    %v2942 = vpow.pop %v2941
    %v2943 = vmul.f32 %v2868, 1.442695
    %v2944 = vpow.pop %v2943
    %v2945 = vmul.f32 %v2869, 1.442695
    %v2946 = vpow.pop %v2945
    %v2947 = vmul.f32 %v2870, 1.442695
    %v2948 = vpow.pop %v2947
    %v2949 = vmul.f32 %v2871, 1.442695
    %v2950 = vpow.pop %v2949
    %v2951 = vmul.f32 %v2872, 1.442695
    %v2952 = vpow.pop %v2951
    %v2953 = vmul.f32 %v2873, 1.442695
    %v2954 = vpow.pop %v2953
    %v2955 = vmul.f32 %v2874, 1.442695
    %v2956 = vpow.pop %v2955
    %v2957 = vmul.f32 %v2875, 1.442695
    %v2958 = vpow.pop %v2957
    %v2959 = vmul.f32 %v2876, 1.442695
    %v2960 = vpow.pop %v2959
    %v2961 = vmul.f32 %v2877, 1.442695
    %v2962 = vpow.pop %v2961
    %v2963 = vmul.f32 %v2878, 1.442695
    %v2964 = vpow.pop %v2963
    %v2965 = vmul.f32 %v2879, 1.442695
    %v2966 = vpow.pop %v2965
    %v2967 = vmul.f32 %v2880, 1.442695
    %v2968 = vpow.pop %v2967
    %v2969 = vmul.f32 %v2881, 1.442695
    %v2970 = vpow.pop %v2969
    %v2971 = vmul.f32 %v2882, 1.442695
    %v2972 = vpow.pop %v2971
    %v2973 = vmul.f32 %v2883, 1.442695
    %v2974 = vpow.pop %v2973
    %v2975 = vmul.f32 %v2884, 1.442695
    %v2976 = vpow.pop %v2975
    %v2977 = vmul.f32 %v2885, 1.442695
    %v2978 = vpow.pop %v2977
    %v2979 = vmul.f32 %v2886, 1.442695
    %v2980 = vpow.pop %v2979
    %v2981 = vmul.f32 %v2887, 1.442695
    %v2982 = vpow.pop %v2981
    %v2983 = vmul.f32 %v2888, 1.442695
    %v2984 = vpow.pop %v2983
    %v2985 = vmul.f32 %v2889, 1.442695
    %v2986 = vpow.pop %v2985
    %v2987 = vmul.f32 %v2890, 1.442695
    %v2988 = vpow.pop %v2987
    %v2989 = vmul.f32 %v2891, 1.442695
    %v2990 = vpow.pop %v2989
    %v2991 = vmul.f32 %v2892, 1.442695
    %v2992 = vpow.pop %v2991
    %v2993 = vmul.f32 %v2893, 1.442695
    %v2994 = vpow.pop %v2993
    %v2995 = vmul.f32 %v2894, 1.442695
    %v2996 = vpow.pop %v2995
    %v2997 = vmul.f32 %v2895, 1.442695
    %v2998 = vpow.pop %v2997
    %v2999 = vmul.f32 %v2896, 1.442695
    %v3000 = vpow.pop %v2999
    %v3001 = vmul.f32 %v2897, 1.442695
    %v3002 = vpow.pop %v3001
    %v3003 = vmul.f32 %v2898, 1.442695
    %v3004 = vpow.pop %v3003
    %v3005 = vmul.f32 %v2899, 1.442695
    %v3006 = vpow.pop %v3005
    %v3007 = vmul.f32 %v2900, 1.442695
    %v3008 = vpow.pop %v3007
    %v3009 = vmul.f32 %v2901, 1.442695
    %v3010 = vpow.pop %v3009
    %v3011 = vmul.f32 %v2902, 1.442695
    %v3012 = vpow.pop %v3011
    %v3013 = vmul.f32 %v2903, 1.442695
    %v3014 = vpow.pop %v3013
    %v3015 = vmul.f32 %v2904, 1.442695
    %v3016 = vpow.pop %v3015
    %v3017 = vmul.f32 %v2905, 1.442695
    %v3018 = vpow.pop %v3017
    %v3019 = vmul.f32 %v2906, 1.442695
    %v3020 = vpow.pop %v3019
    %v3021 = vmul.f32 %v2907, 1.442695
    %v3022 = vpow.pop %v3021
    %v3023 = vmul.f32 %v2908, 1.442695
    %v3024 = vpow.pop %v3023
    %v3025 = vmul.f32 %v2909, 1.442695
    %v3026 = vpow.pop %v3025
    %v3027 = vmul.f32 %v2910, 1.442695
    %v3028 = vpow.pop %v3027
    %v3029 = vmul.f32 %v2911, 1.442695
    %v3030 = vpow.pop %v3029
    %v3031 = vmul.f32 %v2912, 1.442695
    %v3032 = vpow.pop %v3031
    %v3033 = vmul.f32 %v2913, 1.442695
    %v3034 = vpow.pop %v3033
    %v3035 = vmul.f32 %v2914, 1.442695
    %v3036 = vpow.pop %v3035
    %v3037 = vmul.f32 %v2915, 1.442695
    %v3038 = vpow.pop %v3037
    %v3039 = vmul.f32 %v2916, 1.442695
    %v3040 = vpow.pop %v3039
    %v3041 = vmul.f32 %v2917, 1.442695
    %v3042 = vpow.pop %v3041
    %v3043 = vmul.f32 %v2918, 1.442695
    %v3044 = vpow.pop %v3043
    %v3045 = vmul.f32 %v2919, 1.442695
    %v3046 = vpow.pop %v3045
    %v3047 = vmul.f32 %v2920, 1.442695
    %v3048 = vpow.pop %v3047
    %v3049 = vadd.f32 %v2922, 1.0
    %v3050 = vadd.f32 %v2924, 1.0
    %v3051 = vadd.f32 %v2926, 1.0
    %v3052 = vadd.f32 %v2928, 1.0
    %v3053 = vadd.f32 %v2930, 1.0
    %v3054 = vadd.f32 %v2932, 1.0
    %v3055 = vadd.f32 %v2934, 1.0
    %v3056 = vadd.f32 %v2936, 1.0
    %v3057 = vadd.f32 %v2938, 1.0
    %v3058 = vadd.f32 %v2940, 1.0
    %v3059 = vadd.f32 %v2942, 1.0
    %v3060 = vadd.f32 %v2944, 1.0
    %v3061 = vadd.f32 %v2946, 1.0
    %v3062 = vadd.f32 %v2948, 1.0
    %v3063 = vadd.f32 %v2950, 1.0
    %v3064 = vadd.f32 %v2952, 1.0
    %v3065 = vadd.f32 %v2954, 1.0
    %v3066 = vadd.f32 %v2956, 1.0
    %v3067 = vadd.f32 %v2958, 1.0
    %v3068 = vadd.f32 %v2960, 1.0
    %v3069 = vadd.f32 %v2962, 1.0
    %v3070 = vadd.f32 %v2964, 1.0
    %v3071 = vadd.f32 %v2966, 1.0
    %v3072 = vadd.f32 %v2968, 1.0
    %v3073 = vadd.f32 %v2970, 1.0
    %v3074 = vadd.f32 %v2972, 1.0
    %v3075 = vadd.f32 %v2974, 1.0
    %v3076 = vadd.f32 %v2976, 1.0
    %v3077 = vadd.f32 %v2978, 1.0
    %v3078 = vadd.f32 %v2980, 1.0
    %v3079 = vadd.f32 %v2982, 1.0
    %v3080 = vadd.f32 %v2984, 1.0
    %v3081 = vadd.f32 %v2986, 1.0
    %v3082 = vadd.f32 %v2988, 1.0
    %v3083 = vadd.f32 %v2990, 1.0
    %v3084 = vadd.f32 %v2992, 1.0
    %v3085 = vadd.f32 %v2994, 1.0
    %v3086 = vadd.f32 %v2996, 1.0
    %v3087 = vadd.f32 %v2998, 1.0
    %v3088 = vadd.f32 %v3000, 1.0
    %v3089 = vadd.f32 %v3002, 1.0
    %v3090 = vadd.f32 %v3004, 1.0
    %v3091 = vadd.f32 %v3006, 1.0
    %v3092 = vadd.f32 %v3008, 1.0
    %v3093 = vadd.f32 %v3010, 1.0
    %v3094 = vadd.f32 %v3012, 1.0
    %v3095 = vadd.f32 %v3014, 1.0
    %v3096 = vadd.f32 %v3016, 1.0
    %v3097 = vadd.f32 %v3018, 1.0
    %v3098 = vadd.f32 %v3020, 1.0
    %v3099 = vadd.f32 %v3022, 1.0
    %v3100 = vadd.f32 %v3024, 1.0
    %v3101 = vadd.f32 %v3026, 1.0
    %v3102 = vadd.f32 %v3028, 1.0
    %v3103 = vadd.f32 %v3030, 1.0
    %v3104 = vadd.f32 %v3032, 1.0
    %v3105 = vadd.f32 %v3034, 1.0
    %v3106 = vadd.f32 %v3036, 1.0
    %v3107 = vadd.f32 %v3038, 1.0
    %v3108 = vadd.f32 %v3040, 1.0
    %v3109 = vadd.f32 %v3042, 1.0
    %v3110 = vadd.f32 %v3044, 1.0
    %v3111 = vadd.f32 %v3046, 1.0
    %v3112 = vadd.f32 %v3048, 1.0
    %v3113 = vrcp.pop %v3049
    %v3114 = vmul.f32 1.0, %v3113
    %v3115 = vrcp.pop %v3050
    %v3116 = vmul.f32 1.0, %v3115
    %v3117 = vrcp.pop %v3051
    %v3118 = vmul.f32 1.0, %v3117
    %v3119 = vrcp.pop %v3052
    %v3120 = vmul.f32 1.0, %v3119
    %v3121 = vrcp.pop %v3053
    %v3122 = vmul.f32 1.0, %v3121
    %v3123 = vrcp.pop %v3054
    %v3124 = vmul.f32 1.0, %v3123
    %v3125 = vrcp.pop %v3055
    %v3126 = vmul.f32 1.0, %v3125
    %v3127 = vrcp.pop %v3056
    %v3128 = vmul.f32 1.0, %v3127
    %v3129 = vrcp.pop %v3057
    %v3130 = vmul.f32 1.0, %v3129
    %v3131 = vrcp.pop %v3058
    %v3132 = vmul.f32 1.0, %v3131
    %v3133 = vrcp.pop %v3059
    %v3134 = vmul.f32 1.0, %v3133
    %v3135 = vrcp.pop %v3060
    %v3136 = vmul.f32 1.0, %v3135
    %v3137 = vrcp.pop %v3061
    %v3138 = vmul.f32 1.0, %v3137
    %v3139 = vrcp.pop %v3062
    %v3140 = vmul.f32 1.0, %v3139
    %v3141 = vrcp.pop %v3063
    %v3142 = vmul.f32 1.0, %v3141
    %v3143 = vrcp.pop %v3064
    %v3144 = vmul.f32 1.0, %v3143
    %v3145 = vrcp.pop %v3065
    %v3146 = vmul.f32 1.0, %v3145
    %v3147 = vrcp.pop %v3066
    %v3148 = vmul.f32 1.0, %v3147
    %v3149 = vrcp.pop %v3067
    %v3150 = vmul.f32 1.0, %v3149
    %v3151 = vrcp.pop %v3068
    %v3152 = vmul.f32 1.0, %v3151
    %v3153 = vrcp.pop %v3069
    %v3154 = vmul.f32 1.0, %v3153
    %v3155 = vrcp.pop %v3070
    %v3156 = vmul.f32 1.0, %v3155
    %v3157 = vrcp.pop %v3071
    %v3158 = vmul.f32 1.0, %v3157
    %v3159 = vrcp.pop %v3072
    %v3160 = vmul.f32 1.0, %v3159
    %v3161 = vrcp.pop %v3073
    %v3162 = vmul.f32 1.0, %v3161
    %v3163 = vrcp.pop %v3074
    %v3164 = vmul.f32 1.0, %v3163
    %v3165 = vrcp.pop %v3075
    %v3166 = vmul.f32 1.0, %v3165
    %v3167 = vrcp.pop %v3076
    %v3168 = vmul.f32 1.0, %v3167
    %v3169 = vrcp.pop %v3077
    %v3170 = vmul.f32 1.0, %v3169
    %v3171 = vrcp.pop %v3078
    %v3172 = vmul.f32 1.0, %v3171
    %v3173 = vrcp.pop %v3079
    %v3174 = vmul.f32 1.0, %v3173
    %v3175 = vrcp.pop %v3080
    %v3176 = vmul.f32 1.0, %v3175
    %v3177 = vrcp.pop %v3081
    %v3178 = vmul.f32 1.0, %v3177
    %v3179 = vrcp.pop %v3082
    %v3180 = vmul.f32 1.0, %v3179
    %v3181 = vrcp.pop %v3083
    %v3182 = vmul.f32 1.0, %v3181
    %v3183 = vrcp.pop %v3084
    %v3184 = vmul.f32 1.0, %v3183
    %v3185 = vrcp.pop %v3085
    %v3186 = vmul.f32 1.0, %v3185
    %v3187 = vrcp.pop %v3086
    %v3188 = vmul.f32 1.0, %v3187
    %v3189 = vrcp.pop %v3087
    %v3190 = vmul.f32 1.0, %v3189
    %v3191 = vrcp.pop %v3088
    %v3192 = vmul.f32 1.0, %v3191
    %v3193 = vrcp.pop %v3089
    %v3194 = vmul.f32 1.0, %v3193
    %v3195 = vrcp.pop %v3090
    %v3196 = vmul.f32 1.0, %v3195
    %v3197 = vrcp.pop %v3091
    %v3198 = vmul.f32 1.0, %v3197
    %v3199 = vrcp.pop %v3092
    %v3200 = vmul.f32 1.0, %v3199
    %v3201 = vrcp.pop %v3093
    %v3202 = vmul.f32 1.0, %v3201
    %v3203 = vrcp.pop %v3094
    %v3204 = vmul.f32 1.0, %v3203
    %v3205 = vrcp.pop %v3095
    %v3206 = vmul.f32 1.0, %v3205
    %v3207 = vrcp.pop %v3096
    %v3208 = vmul.f32 1.0, %v3207
    %v3209 = vrcp.pop %v3097
    %v3210 = vmul.f32 1.0, %v3209
    %v3211 = vrcp.pop %v3098
    %v3212 = vmul.f32 1.0, %v3211
    %v3213 = vrcp.pop %v3099
    %v3214 = vmul.f32 1.0, %v3213
    %v3215 = vrcp.pop %v3100
    %v3216 = vmul.f32 1.0, %v3215
    %v3217 = vrcp.pop %v3101
    %v3218 = vmul.f32 1.0, %v3217
    %v3219 = vrcp.pop %v3102
    %v3220 = vmul.f32 1.0, %v3219
    %v3221 = vrcp.pop %v3103
    %v3222 = vmul.f32 1.0, %v3221
    %v3223 = vrcp.pop %v3104
    %v3224 = vmul.f32 1.0, %v3223
    %v3225 = vrcp.pop %v3105
    %v3226 = vmul.f32 1.0, %v3225
    %v3227 = vrcp.pop %v3106
    %v3228 = vmul.f32 1.0, %v3227
    %v3229 = vrcp.pop %v3107
    %v3230 = vmul.f32 1.0, %v3229
    %v3231 = vrcp.pop %v3108
    %v3232 = vmul.f32 1.0, %v3231
    %v3233 = vrcp.pop %v3109
    %v3234 = vmul.f32 1.0, %v3233
    %v3235 = vrcp.pop %v3110
    %v3236 = vmul.f32 1.0, %v3235
    %v3237 = vrcp.pop %v3111
    %v3238 = vmul.f32 1.0, %v3237
    %v3239 = vrcp.pop %v3112
    %v3240 = vmul.f32 1.0, %v3239
    %v3241 = vmul.f32 %v2793, %v3114
    %v3242 = vmul.f32 %v2794, %v3116
    %v3243 = vmul.f32 %v2795, %v3118
    %v3244 = vmul.f32 %v2796, %v3120
    %v3245 = vmul.f32 %v2797, %v3122
    %v3246 = vmul.f32 %v2798, %v3124
    %v3247 = vmul.f32 %v2799, %v3126
    %v3248 = vmul.f32 %v2800, %v3128
    %v3249 = vmul.f32 %v2801, %v3130
    %v3250 = vmul.f32 %v2802, %v3132
    %v3251 = vmul.f32 %v2803, %v3134
    %v3252 = vmul.f32 %v2804, %v3136
    %v3253 = vmul.f32 %v2805, %v3138
    %v3254 = vmul.f32 %v2806, %v3140
    %v3255 = vmul.f32 %v2807, %v3142
    %v3256 = vmul.f32 %v2808, %v3144
    %v3257 = vmul.f32 %v2809, %v3146
    %v3258 = vmul.f32 %v2810, %v3148
    %v3259 = vmul.f32 %v2811, %v3150
    %v3260 = vmul.f32 %v2812, %v3152
    %v3261 = vmul.f32 %v2813, %v3154
    %v3262 = vmul.f32 %v2814, %v3156
    %v3263 = vmul.f32 %v2815, %v3158
    %v3264 = vmul.f32 %v2816, %v3160
    %v3265 = vmul.f32 %v2817, %v3162
    %v3266 = vmul.f32 %v2818, %v3164
    %v3267 = vmul.f32 %v2819, %v3166
    %v3268 = vmul.f32 %v2820, %v3168
    %v3269 = vmul.f32 %v2821, %v3170
    %v3270 = vmul.f32 %v2822, %v3172
    %v3271 = vmul.f32 %v2823, %v3174
    %v3272 = vmul.f32 %v2824, %v3176
    %v3273 = vmul.f32 %v2825, %v3178
    %v3274 = vmul.f32 %v2826, %v3180
    %v3275 = vmul.f32 %v2827, %v3182
    %v3276 = vmul.f32 %v2828, %v3184
    %v3277 = vmul.f32 %v2829, %v3186
    %v3278 = vmul.f32 %v2830, %v3188
    %v3279 = vmul.f32 %v2831, %v3190
    %v3280 = vmul.f32 %v2832, %v3192
    %v3281 = vmul.f32 %v2833, %v3194
    %v3282 = vmul.f32 %v2834, %v3196
    %v3283 = vmul.f32 %v2835, %v3198
    %v3284 = vmul.f32 %v2836, %v3200
    %v3285 = vmul.f32 %v2837, %v3202
    %v3286 = vmul.f32 %v2838, %v3204
    %v3287 = vmul.f32 %v2839, %v3206
    %v3288 = vmul.f32 %v2840, %v3208
    %v3289 = vmul.f32 %v2841, %v3210
    %v3290 = vmul.f32 %v2842, %v3212
    %v3291 = vmul.f32 %v2843, %v3214
    %v3292 = vmul.f32 %v2844, %v3216
    %v3293 = vmul.f32 %v2845, %v3218
    %v3294 = vmul.f32 %v2846, %v3220
    %v3295 = vmul.f32 %v2847, %v3222
    %v3296 = vmul.f32 %v2848, %v3224
    %v3297 = vmul.f32 %v2849, %v3226
    %v3298 = vmul.f32 %v2850, %v3228
    %v3299 = vmul.f32 %v2851, %v3230
    %v3300 = vmul.f32 %v2852, %v3232
    %v3301 = vmul.f32 %v2853, %v3234
    %v3302 = vmul.f32 %v2854, %v3236
    %v3303 = vmul.f32 %v2855, %v3238
    %v3304 = vmul.f32 %v2856, %v3240
    %v3305 = vld [vmem:[%s2] sm:$0xff]
    %v3306 = vld [vmem:[%s2 + $0x8] sm:$0xff]
    %v3307 = vld [vmem:[%s2 + $0x10] sm:$0xff]
    %v3308 = vld [vmem:[%s2 + $0x18] sm:$0xff]
    %v3309 = vld [vmem:[%s2 + $0x20] sm:$0x3]
    %v3311 = vsel %vm104, %v3241, 0
    %v3314 = vsel %vm104, %v3242, 0
    %v3317 = vsel %vm104, %v3243, 0
    %v3320 = vsel %vm104, %v3244, 0
    %v3323 = vsel %vm104, %v3245, 0
    %v3326 = vsel %vm104, %v3246, 0
    %v3329 = vsel %vm104, %v3247, 0
    %v3332 = vsel %vm104, %v3248, 0
    %v3335 = vsel %vm104, %v3249, 0
    %v3338 = vsel %vm104, %v3250, 0
    %v3341 = vsel %vm104, %v3251, 0
    %v3344 = vsel %vm104, %v3252, 0
    %v3347 = vsel %vm104, %v3253, 0
    %v3350 = vsel %vm104, %v3254, 0
    %v3353 = vsel %vm104, %v3255, 0
    %v3356 = vsel %vm104, %v3256, 0
    %v3359 = vsel %vm104, %v3257, 0
    %v3362 = vsel %vm104, %v3258, 0
    %v3365 = vsel %vm104, %v3259, 0
    %v3368 = vsel %vm104, %v3260, 0
    %v3371 = vsel %vm104, %v3261, 0
    %v3374 = vsel %vm104, %v3262, 0
    %v3377 = vsel %vm104, %v3263, 0
    %v3380 = vsel %vm104, %v3264, 0
    %v3383 = vsel %vm104, %v3265, 0
    %v3386 = vsel %vm104, %v3266, 0
    %v3389 = vsel %vm104, %v3267, 0
    %v3392 = vsel %vm104, %v3268, 0
    %v3395 = vsel %vm104, %v3269, 0
    %v3398 = vsel %vm104, %v3270, 0
    %v3401 = vsel %vm104, %v3271, 0
    %v3404 = vsel %vm104, %v3272, 0
    %v3407 = vsel %vm104, %v3273, 0
    %v3410 = vsel %vm104, %v3274, 0
    %v3413 = vsel %vm104, %v3275, 0
    %v3416 = vsel %vm104, %v3276, 0
    %v3419 = vsel %vm104, %v3277, 0
    %v3422 = vsel %vm104, %v3278, 0
    %v3425 = vsel %vm104, %v3279, 0
    %v3428 = vsel %vm104, %v3280, 0
    %v3431 = vsel %vm104, %v3281, 0
    %v3434 = vsel %vm104, %v3282, 0
    %v3437 = vsel %vm104, %v3283, 0
    %v3440 = vsel %vm104, %v3284, 0
    %v3443 = vsel %vm104, %v3285, 0
    %v3446 = vsel %vm104, %v3286, 0
    %v3449 = vsel %vm104, %v3287, 0
    %v3452 = vsel %vm104, %v3288, 0
    %v3455 = vsel %vm104, %v3289, 0
    %v3458 = vsel %vm104, %v3290, 0
    %v3461 = vsel %vm104, %v3291, 0
    %v3464 = vsel %vm104, %v3292, 0
    %v3467 = vsel %vm104, %v3293, 0
    %v3470 = vsel %vm104, %v3294, 0
    %v3473 = vsel %vm104, %v3295, 0
    %v3476 = vsel %vm104, %v3296, 0
    %v3479 = vsel %vm104, %v3297, 0
    %v3482 = vsel %vm104, %v3298, 0
    %v3485 = vsel %vm104, %v3299, 0
    %v3488 = vsel %vm104, %v3300, 0
    %v3491 = vsel %vm104, %v3301, 0
    %v3494 = vsel %vm104, %v3302, 0
    %v3497 = vsel %vm104, %v3303, 0
    %v3500 = vsel %vm104, %v3304, 0
    %3502 = vmatprep.subr.mxu0 0.0
    %3503 = vmatpush1.msra.mxu0 %v3305
    %3504 = vmatprep.subr.mxu0 0.0
    %3505 = vmatpush1.msra.mxu0 %v3306
    %3506 = vmatprep.subr.mxu0 0.0
    %3507 = vmatpush1.msra.mxu0 %v3307
    %3508 = vmatprep.subr.mxu0 0.0
    %3509 = vmatpush1.msra.mxu0 %v3308
    %3510 = vmatprep.subr.mxu0 0.0
    %3511 = vmatpush1.msra.mxu0 0.0
    %3512 = vmatprep.subr.mxu0 0.0
    %3513 = vmatpush1.msra.mxu0 0.0
    %3514 = vmatprep.subr.mxu0 0.0
    %3515 = vmatpush1.msra.mxu0 0.0
    %3516 = vmatprep.subr.mxu0 0.0
    %3517 = vmatpush1.msra.mxu0 0.0
    %3518 = vmatprep.subr.mxu0 0.0
    %3519 = vmatpush1.msra.mxu0 0.0
    %3520 = vmatprep.subr.mxu0 0.0
    %3521 = vmatpush1.msra.mxu0 0.0
    %3522 = vmatprep.subr.mxu0 0.0
    %3523 = vmatpush1.msra.mxu0 0.0
    %3524 = vmatprep.subr.mxu0 0.0
    %3525 = vmatpush1.msra.mxu0 0.0
    %3526 = vmatprep.subr.mxu0 0.0
    %3527 = vmatpush1.msra.mxu0 0.0
    %3528 = vmatprep.subr.mxu0 0.0
    %3529 = vmatpush1.msra.mxu0 0.0
    %3530 = vmatprep.subr.mxu0 0.0
    %3531 = vmatpush1.msra.mxu0 0.0
    %3532 = vmatprep.subr.mxu0 0.0
    %3533 = vmatpush1.msra.mxu0 0.0
    %3534 = vmatprep.subr.mxu0 0.0
    %3535 = vmatpush1.msra.mxu0 0.0
    %3536 = vmatprep.subr.mxu0 0.0
    %3537 = vmatpush1.msra.mxu0 0.0
    %3538 = vmatprep.subr.mxu0 0.0
    %3539 = vmatpush1.msra.mxu0 0.0
    %3540 = vmatprep.subr.mxu0 0.0
    %3541 = vmatpush1.msra.mxu0 0.0
    %3542 = vmatprep.subr.mxu0 0.0
    %3543 = vmatpush1.msra.mxu0 0.0
    %3544 = vmatprep.subr.mxu0 0.0
    %3545 = vmatpush1.msra.mxu0 0.0
    %3546 = vmatprep.subr.mxu0 0.0
    %3547 = vmatpush1.msra.mxu0 0.0
    %3548 = vmatprep.subr.mxu0 0.0
    %3549 = vmatpush1.msra.mxu0 0.0
    %3550 = vmatprep.subr.mxu0 0.0
    %3551 = vmatpush1.msra.mxu0 0.0
    %3552 = vmatprep.subr.mxu0 0.0
    %3553 = vmatpush1.msra.mxu0 0.0
    %3554 = vmatprep.subr.mxu0 0.0
    %3555 = vmatpush1.msra.mxu0 0.0
    %3556 = vmatprep.subr.mxu0 0.0
    %3557 = vmatpush1.msra.mxu0 0.0
    %3558 = vmatprep.subr.mxu0 0.0
    %3559 = vmatpush1.msra.mxu0 0.0
    %3560 = vmatprep.subr.mxu0 0.0
    %3561 = vmatpush1.msra.mxu0 0.0
    %3562 = vmatprep.subr.mxu0 0.0
    %3563 = vmatpush1.msra.mxu0 0.0
    %3564 = vmatprep.subr.mxu0 0.0
    %3565 = vmatpush1.msra.mxu0 0.0
    %3566 = vmatprep.mubr.f32.mxu0 0.0
    %3567 = vmatmul.mubr.f32.gmra.mrb[0].mxu0 %v3311
    %v3568 = vpop.f32.mrb[0].mxu0
    %v3569 = vadd.f32 0.0, %v3568
    %v3570 = vpop.f32.mrb[0].mxu0
    %3571 = vmatprep.mubr.f32.mxu0 0.0
    %3572 = vmatmul.mubr.f32.gmra.mrb[0].mxu0 %v3314
    %v3573 = vpop.f32.mrb[0].mxu0
    %v3574 = vadd.f32 0.0, %v3573
    %v3575 = vpop.f32.mrb[0].mxu0
    %3576 = vmatprep.mubr.f32.mxu0 0.0
    %3577 = vmatmul.mubr.f32.gmra.mrb[0].mxu0 %v3317
    %v3578 = vpop.f32.mrb[0].mxu0
    %v3579 = vadd.f32 0.0, %v3578
    %v3580 = vpop.f32.mrb[0].mxu0
    %3581 = vmatprep.mubr.f32.mxu0 0.0
    %3582 = vmatmul.mubr.f32.gmra.mrb[0].mxu0 %v3320
    %v3583 = vpop.f32.mrb[0].mxu0
    %v3584 = vadd.f32 0.0, %v3583
    %v3585 = vpop.f32.mrb[0].mxu0
    %3586 = vmatprep.mubr.f32.mxu0 0.0
    %3587 = vmatmul.mubr.f32.gmra.mrb[0].mxu0 %v3323
    %v3588 = vpop.f32.mrb[0].mxu0
    %v3589 = vadd.f32 0.0, %v3588
    %v3590 = vpop.f32.mrb[0].mxu0
    %3591 = vmatprep.mubr.f32.mxu0 0.0
    %3592 = vmatmul.mubr.f32.gmra.mrb[0].mxu0 %v3326
    %v3593 = vpop.f32.mrb[0].mxu0
    %v3594 = vadd.f32 0.0, %v3593
    %v3595 = vpop.f32.mrb[0].mxu0
    %3596 = vmatprep.mubr.f32.mxu0 0.0
    %3597 = vmatmul.mubr.f32.gmra.mrb[0].mxu0 %v3329
    %v3598 = vpop.f32.mrb[0].mxu0
    %v3599 = vadd.f32 0.0, %v3598
    %v3600 = vpop.f32.mrb[0].mxu0
    %3601 = vmatprep.mubr.f32.mxu0 0.0
    %3602 = vmatmul.mubr.f32.gmra.mrb[0].mxu0 %v3332
    %v3603 = vpop.f32.mrb[0].mxu0
    %v3604 = vadd.f32 0.0, %v3603
    %v3605 = vpop.f32.mrb[0].mxu0
    %3606 = vmatprep.mubr.f32.mxu0 0.0
    %3607 = vmatmul.mubr.f32.gmra.mrb[0].mxu0 %v3335
    %v3608 = vpop.f32.mrb[0].mxu0
    %v3609 = vadd.f32 0.0, %v3608
    %v3610 = vpop.f32.mrb[0].mxu0
    %3611 = vmatprep.mubr.f32.mxu0 0.0
    %3612 = vmatmul.mubr.f32.gmra.mrb[0].mxu0 %v3338
    %v3613 = vpop.f32.mrb[0].mxu0
    %v3614 = vadd.f32 0.0, %v3613
    %v3615 = vpop.f32.mrb[0].mxu0
    %3616 = vmatprep.mubr.f32.mxu0 0.0
    %3617 = vmatmul.mubr.f32.gmra.mrb[0].mxu0 %v3341
    %v3618 = vpop.f32.mrb[0].mxu0
    %v3619 = vadd.f32 0.0, %v3618
    %v3620 = vpop.f32.mrb[0].mxu0
    %3621 = vmatprep.mubr.f32.mxu0 0.0
    %3622 = vmatmul.mubr.f32.gmra.mrb[0].mxu0 %v3344
    %v3623 = vpop.f32.mrb[0].mxu0
    %v3624 = vadd.f32 0.0, %v3623
    %v3625 = vpop.f32.mrb[0].mxu0
    %3626 = vmatprep.mubr.f32.mxu0 0.0
    %3627 = vmatmul.mubr.f32.gmra.mrb[0].mxu0 %v3347
    %v3628 = vpop.f32.mrb[0].mxu0
    %v3629 = vadd.f32 0.0, %v3628
    %v3630 = vpop.f32.mrb[0].mxu0
    %3631 = vmatprep.mubr.f32.mxu0 0.0
    %3632 = vmatmul.mubr.f32.gmra.mrb[0].mxu0 %v3350
    %v3633 = vpop.f32.mrb[0].mxu0
    %v3634 = vadd.f32 0.0, %v3633
    %v3635 = vpop.f32.mrb[0].mxu0
    %3636 = vmatprep.mubr.f32.mxu0 0.0
    %3637 = vmatmul.mubr.f32.gmra.mrb[0].mxu0 %v3353
    %v3638 = vpop.f32.mrb[0].mxu0
    %v3639 = vadd.f32 0.0, %v3638
    %v3640 = vpop.f32.mrb[0].mxu0
    %3641 = vmatprep.mubr.f32.mxu0 0.0
    %3642 = vmatmul.mubr.f32.gmra.mrb[0].mxu0 %v3356
    %v3643 = vpop.f32.mrb[0].mxu0
    %v3644 = vadd.f32 0.0, %v3643
    %v3645 = vpop.f32.mrb[0].mxu0
    %3646 = vmatprep.mubr.f32.mxu0 0.0
    %3647 = vmatmul.mubr.f32.gmra.mrb[0].mxu0 %v3359
    %v3648 = vpop.f32.mrb[0].mxu0
    %v3649 = vadd.f32 0.0, %v3648
    %v3650 = vpop.f32.mrb[0].mxu0
    %3651 = vmatprep.mubr.f32.mxu0 0.0
    %3652 = vmatmul.mubr.f32.gmra.mrb[0].mxu0 %v3362
    %v3653 = vpop.f32.mrb[0].mxu0
    %v3654 = vadd.f32 0.0, %v3653
    %v3655 = vpop.f32.mrb[0].mxu0
    %3656 = vmatprep.mubr.f32.mxu0 0.0
    %3657 = vmatmul.mubr.f32.gmra.mrb[0].mxu0 %v3365
    %v3658 = vpop.f32.mrb[0].mxu0
    %v3659 = vadd.f32 0.0, %v3658
    %v3660 = vpop.f32.mrb[0].mxu0
    %3661 = vmatprep.mubr.f32.mxu0 0.0
    %3662 = vmatmul.mubr.f32.gmra.mrb[0].mxu0 %v3368
    %v3663 = vpop.f32.mrb[0].mxu0
    %v3664 = vadd.f32 0.0, %v3663
    %v3665 = vpop.f32.mrb[0].mxu0
    %3666 = vmatprep.mubr.f32.mxu0 0.0
    %3667 = vmatmul.mubr.f32.gmra.mrb[0].mxu0 %v3371
    %v3668 = vpop.f32.mrb[0].mxu0
    %v3669 = vadd.f32 0.0, %v3668
    %v3670 = vpop.f32.mrb[0].mxu0
    %3671 = vmatprep.mubr.f32.mxu0 0.0
    %3672 = vmatmul.mubr.f32.gmra.mrb[0].mxu0 %v3374
    %v3673 = vpop.f32.mrb[0].mxu0
    %v3674 = vadd.f32 0.0, %v3673
    %v3675 = vpop.f32.mrb[0].mxu0
    %3676 = vmatprep.mubr.f32.mxu0 0.0
    %3677 = vmatmul.mubr.f32.gmra.mrb[0].mxu0 %v3377
    %v3678 = vpop.f32.mrb[0].mxu0
    %v3679 = vadd.f32 0.0, %v3678
    %v3680 = vpop.f32.mrb[0].mxu0
    %3681 = vmatprep.mubr.f32.mxu0 0.0
    %3682 = vmatmul.mubr.f32.gmra.mrb[0].mxu0 %v3380
    %v3683 = vpop.f32.mrb[0].mxu0
    %v3684 = vadd.f32 0.0, %v3683
    %v3685 = vpop.f32.mrb[0].mxu0
    %3686 = vmatprep.mubr.f32.mxu0 0.0
    %3687 = vmatmul.mubr.f32.gmra.mrb[0].mxu0 %v3383
    %v3688 = vpop.f32.mrb[0].mxu0
    %v3689 = vadd.f32 0.0, %v3688
    %v3690 = vpop.f32.mrb[0].mxu0
    %3691 = vmatprep.mubr.f32.mxu0 0.0
    %3692 = vmatmul.mubr.f32.gmra.mrb[0].mxu0 %v3386
    %v3693 = vpop.f32.mrb[0].mxu0
    %v3694 = vadd.f32 0.0, %v3693
    %v3695 = vpop.f32.mrb[0].mxu0
    %3696 = vmatprep.mubr.f32.mxu0 0.0
    %3697 = vmatmul.mubr.f32.gmra.mrb[0].mxu0 %v3389
    %v3698 = vpop.f32.mrb[0].mxu0
    %v3699 = vadd.f32 0.0, %v3698
    %v3700 = vpop.f32.mrb[0].mxu0
    %3701 = vmatprep.mubr.f32.mxu0 0.0
    %3702 = vmatmul.mubr.f32.gmra.mrb[0].mxu0 %v3392
    %v3703 = vpop.f32.mrb[0].mxu0
    %v3704 = vadd.f32 0.0, %v3703
    %v3705 = vpop.f32.mrb[0].mxu0
    %3706 = vmatprep.mubr.f32.mxu0 0.0
    %3707 = vmatmul.mubr.f32.gmra.mrb[0].mxu0 %v3395
    %v3708 = vpop.f32.mrb[0].mxu0
    %v3709 = vadd.f32 0.0, %v3708
    %v3710 = vpop.f32.mrb[0].mxu0
    %3711 = vmatprep.mubr.f32.mxu0 0.0
    %3712 = vmatmul.mubr.f32.gmra.mrb[0].mxu0 %v3398
    %v3713 = vpop.f32.mrb[0].mxu0
    %v3714 = vadd.f32 0.0, %v3713
    %v3715 = vpop.f32.mrb[0].mxu0
    %3716 = vmatprep.mubr.f32.mxu0 0.0
    %3717 = vmatmul.mubr.f32.gmra.mrb[0].mxu0 %v3401
    %v3718 = vpop.f32.mrb[0].mxu0
    %v3719 = vadd.f32 0.0, %v3718
    %v3720 = vpop.f32.mrb[0].mxu0
    %3721 = vmatprep.mubr.f32.mxu0 0.0
    %3722 = vmatmul.mubr.f32.gmra.mrb[0].mxu0 %v3404
    %v3723 = vpop.f32.mrb[0].mxu0
    %v3724 = vadd.f32 0.0, %v3723
    %v3725 = vpop.f32.mrb[0].mxu0
    %3726 = vmatprep.mubr.f32.mxu0 0.0
    %3727 = vmatmul.mubr.f32.gmra.mrb[0].mxu0 %v3407
    %v3728 = vpop.f32.mrb[0].mxu0
    %v3729 = vadd.f32 0.0, %v3728
    %v3730 = vpop.f32.mrb[0].mxu0
    %3731 = vmatprep.mubr.f32.mxu0 0.0
    %3732 = vmatmul.mubr.f32.gmra.mrb[0].mxu0 %v3410
    %v3733 = vpop.f32.mrb[0].mxu0
    %v3734 = vadd.f32 0.0, %v3733
    %v3735 = vpop.f32.mrb[0].mxu0
    %3736 = vmatprep.mubr.f32.mxu0 0.0
    %3737 = vmatmul.mubr.f32.gmra.mrb[0].mxu0 %v3413
    %v3738 = vpop.f32.mrb[0].mxu0
    %v3739 = vadd.f32 0.0, %v3738
    %v3740 = vpop.f32.mrb[0].mxu0
    %3741 = vmatprep.mubr.f32.mxu0 0.0
    %3742 = vmatmul.mubr.f32.gmra.mrb[0].mxu0 %v3416
    %v3743 = vpop.f32.mrb[0].mxu0
    %v3744 = vadd.f32 0.0, %v3743
    %v3745 = vpop.f32.mrb[0].mxu0
    %3746 = vmatprep.mubr.f32.mxu0 0.0
    %3747 = vmatmul.mubr.f32.gmra.mrb[0].mxu0 %v3419
    %v3748 = vpop.f32.mrb[0].mxu0
    %v3749 = vadd.f32 0.0, %v3748
    %v3750 = vpop.f32.mrb[0].mxu0
    %3751 = vmatprep.mubr.f32.mxu0 0.0
    %3752 = vmatmul.mubr.f32.gmra.mrb[0].mxu0 %v3422
    %v3753 = vpop.f32.mrb[0].mxu0
    %v3754 = vadd.f32 0.0, %v3753
    %v3755 = vpop.f32.mrb[0].mxu0
    %3756 = vmatprep.mubr.f32.mxu0 0.0
    %3757 = vmatmul.mubr.f32.gmra.mrb[0].mxu0 %v3425
    %v3758 = vpop.f32.mrb[0].mxu0
    %v3759 = vadd.f32 0.0, %v3758
    %v3760 = vpop.f32.mrb[0].mxu0
    %3761 = vmatprep.mubr.f32.mxu0 0.0
    %3762 = vmatmul.mubr.f32.gmra.mrb[0].mxu0 %v3428
    %v3763 = vpop.f32.mrb[0].mxu0
    %v3764 = vadd.f32 0.0, %v3763
    %v3765 = vpop.f32.mrb[0].mxu0
    %3766 = vmatprep.mubr.f32.mxu0 0.0
    %3767 = vmatmul.mubr.f32.gmra.mrb[0].mxu0 %v3431
    %v3768 = vpop.f32.mrb[0].mxu0
    %v3769 = vadd.f32 0.0, %v3768
    %v3770 = vpop.f32.mrb[0].mxu0
    %3771 = vmatprep.mubr.f32.mxu0 0.0
    %3772 = vmatmul.mubr.f32.gmra.mrb[0].mxu0 %v3434
    %v3773 = vpop.f32.mrb[0].mxu0
    %v3774 = vadd.f32 0.0, %v3773
    %v3775 = vpop.f32.mrb[0].mxu0
    %3776 = vmatprep.mubr.f32.mxu0 0.0
    %3777 = vmatmul.mubr.f32.gmra.mrb[0].mxu0 %v3437
    %v3778 = vpop.f32.mrb[0].mxu0
    %v3779 = vadd.f32 0.0, %v3778
    %v3780 = vpop.f32.mrb[0].mxu0
    %3781 = vmatprep.mubr.f32.mxu0 0.0
    %3782 = vmatmul.mubr.f32.gmra.mrb[0].mxu0 %v3440
    %v3783 = vpop.f32.mrb[0].mxu0
    %v3784 = vadd.f32 0.0, %v3783
    %v3785 = vpop.f32.mrb[0].mxu0
    %3786 = vmatprep.mubr.f32.mxu0 0.0
    %3787 = vmatmul.mubr.f32.gmra.mrb[0].mxu0 %v3443
    %v3788 = vpop.f32.mrb[0].mxu0
    %v3789 = vadd.f32 0.0, %v3788
    %v3790 = vpop.f32.mrb[0].mxu0
    %3791 = vmatprep.mubr.f32.mxu0 0.0
    %3792 = vmatmul.mubr.f32.gmra.mrb[0].mxu0 %v3446
    %v3793 = vpop.f32.mrb[0].mxu0
    %v3794 = vadd.f32 0.0, %v3793
    %v3795 = vpop.f32.mrb[0].mxu0
    %3796 = vmatprep.mubr.f32.mxu0 0.0
    %3797 = vmatmul.mubr.f32.gmra.mrb[0].mxu0 %v3449
    %v3798 = vpop.f32.mrb[0].mxu0
    %v3799 = vadd.f32 0.0, %v3798
    %v3800 = vpop.f32.mrb[0].mxu0
    %3801 = vmatprep.mubr.f32.mxu0 0.0
    %3802 = vmatmul.mubr.f32.gmra.mrb[0].mxu0 %v3452
    %v3803 = vpop.f32.mrb[0].mxu0
    %v3804 = vadd.f32 0.0, %v3803
    %v3805 = vpop.f32.mrb[0].mxu0
    %3806 = vmatprep.mubr.f32.mxu0 0.0
    %3807 = vmatmul.mubr.f32.gmra.mrb[0].mxu0 %v3455
    %v3808 = vpop.f32.mrb[0].mxu0
    %v3809 = vadd.f32 0.0, %v3808
    %v3810 = vpop.f32.mrb[0].mxu0
    %3811 = vmatprep.mubr.f32.mxu0 0.0
    %3812 = vmatmul.mubr.f32.gmra.mrb[0].mxu0 %v3458
    %v3813 = vpop.f32.mrb[0].mxu0
    %v3814 = vadd.f32 0.0, %v3813
    %v3815 = vpop.f32.mrb[0].mxu0
    %3816 = vmatprep.mubr.f32.mxu0 0.0
    %3817 = vmatmul.mubr.f32.gmra.mrb[0].mxu0 %v3461
    %v3818 = vpop.f32.mrb[0].mxu0
    %v3819 = vadd.f32 0.0, %v3818
    %v3820 = vpop.f32.mrb[0].mxu0
    %3821 = vmatprep.mubr.f32.mxu0 0.0
    %3822 = vmatmul.mubr.f32.gmra.mrb[0].mxu0 %v3464
    %v3823 = vpop.f32.mrb[0].mxu0
    %v3824 = vadd.f32 0.0, %v3823
    %v3825 = vpop.f32.mrb[0].mxu0
    %3826 = vmatprep.mubr.f32.mxu0 0.0
    %3827 = vmatmul.mubr.f32.gmra.mrb[0].mxu0 %v3467
    %v3828 = vpop.f32.mrb[0].mxu0
    %v3829 = vadd.f32 0.0, %v3828
    %v3830 = vpop.f32.mrb[0].mxu0
    %3831 = vmatprep.mubr.f32.mxu0 0.0
    %3832 = vmatmul.mubr.f32.gmra.mrb[0].mxu0 %v3470
    %v3833 = vpop.f32.mrb[0].mxu0
    %v3834 = vadd.f32 0.0, %v3833
    %v3835 = vpop.f32.mrb[0].mxu0
    %3836 = vmatprep.mubr.f32.mxu0 0.0
    %3837 = vmatmul.mubr.f32.gmra.mrb[0].mxu0 %v3473
    %v3838 = vpop.f32.mrb[0].mxu0
    %v3839 = vadd.f32 0.0, %v3838
    %v3840 = vpop.f32.mrb[0].mxu0
    %3841 = vmatprep.mubr.f32.mxu0 0.0
    %3842 = vmatmul.mubr.f32.gmra.mrb[0].mxu0 %v3476
    %v3843 = vpop.f32.mrb[0].mxu0
    %v3844 = vadd.f32 0.0, %v3843
    %v3845 = vpop.f32.mrb[0].mxu0
    %3846 = vmatprep.mubr.f32.mxu0 0.0
    %3847 = vmatmul.mubr.f32.gmra.mrb[0].mxu0 %v3479
    %v3848 = vpop.f32.mrb[0].mxu0
    %v3849 = vadd.f32 0.0, %v3848
    %v3850 = vpop.f32.mrb[0].mxu0
    %3851 = vmatprep.mubr.f32.mxu0 0.0
    %3852 = vmatmul.mubr.f32.gmra.mrb[0].mxu0 %v3482
    %v3853 = vpop.f32.mrb[0].mxu0
    %v3854 = vadd.f32 0.0, %v3853
    %v3855 = vpop.f32.mrb[0].mxu0
    %3856 = vmatprep.mubr.f32.mxu0 0.0
    %3857 = vmatmul.mubr.f32.gmra.mrb[0].mxu0 %v3485
    %v3858 = vpop.f32.mrb[0].mxu0
    %v3859 = vadd.f32 0.0, %v3858
    %v3860 = vpop.f32.mrb[0].mxu0
    %3861 = vmatprep.mubr.f32.mxu0 0.0
    %3862 = vmatmul.mubr.f32.gmra.mrb[0].mxu0 %v3488
    %v3863 = vpop.f32.mrb[0].mxu0
    %v3864 = vadd.f32 0.0, %v3863
    %v3865 = vpop.f32.mrb[0].mxu0
    %3866 = vmatprep.mubr.f32.mxu0 0.0
    %3867 = vmatmul.mubr.f32.gmra.mrb[0].mxu0 %v3491
    %v3868 = vpop.f32.mrb[0].mxu0
    %v3869 = vadd.f32 0.0, %v3868
    %v3870 = vpop.f32.mrb[0].mxu0
    %3871 = vmatprep.mubr.f32.mxu0 0.0
    %3872 = vmatmul.mubr.f32.gmra.mrb[0].mxu0 %v3494
    %v3873 = vpop.f32.mrb[0].mxu0
    %v3874 = vadd.f32 0.0, %v3873
    %v3875 = vpop.f32.mrb[0].mxu0
    %3876 = vmatprep.mubr.f32.mxu0 0.0
    %3877 = vmatmul.mubr.f32.gmra.mrb[0].mxu0 %v3497
    %v3878 = vpop.f32.mrb[0].mxu0
    %v3879 = vadd.f32 0.0, %v3878
    %v3880 = vpop.f32.mrb[0].mxu0
    %3881 = vmatprep.mubr.f32.mxu0 0.0
    %3882 = vmatmul.mubr.f32.gmra.mrb[0].mxu0 %v3500
    %v3883 = vpop.f32.mrb[0].mxu0
    %v3884 = vadd.f32 0.0, %v3883
    %v3885 = vpop.f32.mrb[0].mxu0
    %3886 = vdwg.mxu0
    %v3887 = vlaneseq
    %v3888 = vshrl.u32 %v3887, 7
    %v3889 = vsub.s32 0, %v3888
    %v3890 = vrot.slane %v3309, %v3889
    %v3891 = vmul.f32 %v3569, %v3890
    %v3892 = vmul.f32 %v3574, %v3890
    %v3893 = vmul.f32 %v3579, %v3890
    %v3894 = vmul.f32 %v3584, %v3890
    %v3895 = vmul.f32 %v3589, %v3890
    %v3896 = vmul.f32 %v3594, %v3890
    %v3897 = vmul.f32 %v3599, %v3890
    %v3898 = vmul.f32 %v3604, %v3890
    %v3899 = vmul.f32 %v3609, %v3890
    %v3900 = vmul.f32 %v3614, %v3890
    %v3901 = vmul.f32 %v3619, %v3890
    %v3902 = vmul.f32 %v3624, %v3890
    %v3903 = vmul.f32 %v3629, %v3890
    %v3904 = vmul.f32 %v3634, %v3890
    %v3905 = vmul.f32 %v3639, %v3890
    %v3906 = vmul.f32 %v3644, %v3890
    %v3907 = vmul.f32 %v3649, %v3890
    %v3908 = vmul.f32 %v3654, %v3890
    %v3909 = vmul.f32 %v3659, %v3890
    %v3910 = vmul.f32 %v3664, %v3890
    %v3911 = vmul.f32 %v3669, %v3890
    %v3912 = vmul.f32 %v3674, %v3890
    %v3913 = vmul.f32 %v3679, %v3890
    %v3914 = vmul.f32 %v3684, %v3890
    %v3915 = vmul.f32 %v3689, %v3890
    %v3916 = vmul.f32 %v3694, %v3890
    %v3917 = vmul.f32 %v3699, %v3890
    %v3918 = vmul.f32 %v3704, %v3890
    %v3919 = vmul.f32 %v3709, %v3890
    %v3920 = vmul.f32 %v3714, %v3890
    %v3921 = vmul.f32 %v3719, %v3890
    %v3922 = vmul.f32 %v3724, %v3890
    %v3923 = vmul.f32 %v3729, %v3890
    %v3924 = vmul.f32 %v3734, %v3890
    %v3925 = vmul.f32 %v3739, %v3890
    %v3926 = vmul.f32 %v3744, %v3890
    %v3927 = vmul.f32 %v3749, %v3890
    %v3928 = vmul.f32 %v3754, %v3890
    %v3929 = vmul.f32 %v3759, %v3890
    %v3930 = vmul.f32 %v3764, %v3890
    %v3931 = vmul.f32 %v3769, %v3890
    %v3932 = vmul.f32 %v3774, %v3890
    %v3933 = vmul.f32 %v3779, %v3890
    %v3934 = vmul.f32 %v3784, %v3890
    %v3935 = vmul.f32 %v3789, %v3890
    %v3936 = vmul.f32 %v3794, %v3890
    %v3937 = vmul.f32 %v3799, %v3890
    %v3938 = vmul.f32 %v3804, %v3890
    %v3939 = vmul.f32 %v3809, %v3890
    %v3940 = vmul.f32 %v3814, %v3890
    %v3941 = vmul.f32 %v3819, %v3890
    %v3942 = vmul.f32 %v3824, %v3890
    %v3943 = vmul.f32 %v3829, %v3890
    %v3944 = vmul.f32 %v3834, %v3890
    %v3945 = vmul.f32 %v3839, %v3890
    %v3946 = vmul.f32 %v3844, %v3890
    %v3947 = vmul.f32 %v3849, %v3890
    %v3948 = vmul.f32 %v3854, %v3890
    %v3949 = vmul.f32 %v3859, %v3890
    %v3950 = vmul.f32 %v3864, %v3890
    %v3951 = vmul.f32 %v3869, %v3890
    %v3952 = vmul.f32 %v3874, %v3890
    %v3953 = vmul.f32 %v3879, %v3890
    %v3954 = vmul.f32 %v3884, %v3890
    %v3955 = vlaneseq
    %v3956 = vshrl.u32 %v3955, 7
    %v3957 = vsub.s32 1, %v3956
    %v3958 = vrot.slane %v3309, %v3957
    %v3959 = vadd.f32 %v3891, %v3958
    %v3960 = vadd.f32 %v3892, %v3958
    %v3961 = vadd.f32 %v3893, %v3958
    %v3962 = vadd.f32 %v3894, %v3958
    %v3963 = vadd.f32 %v3895, %v3958
    %v3964 = vadd.f32 %v3896, %v3958
    %v3965 = vadd.f32 %v3897, %v3958
    %v3966 = vadd.f32 %v3898, %v3958
    %v3967 = vadd.f32 %v3899, %v3958
    %v3968 = vadd.f32 %v3900, %v3958
    %v3969 = vadd.f32 %v3901, %v3958
    %v3970 = vadd.f32 %v3902, %v3958
    %v3971 = vadd.f32 %v3903, %v3958
    %v3972 = vadd.f32 %v3904, %v3958
    %v3973 = vadd.f32 %v3905, %v3958
    %v3974 = vadd.f32 %v3906, %v3958
    %v3975 = vadd.f32 %v3907, %v3958
    %v3976 = vadd.f32 %v3908, %v3958
    %v3977 = vadd.f32 %v3909, %v3958
    %v3978 = vadd.f32 %v3910, %v3958
    %v3979 = vadd.f32 %v3911, %v3958
    %v3980 = vadd.f32 %v3912, %v3958
    %v3981 = vadd.f32 %v3913, %v3958
    %v3982 = vadd.f32 %v3914, %v3958
    %v3983 = vadd.f32 %v3915, %v3958
    %v3984 = vadd.f32 %v3916, %v3958
    %v3985 = vadd.f32 %v3917, %v3958
    %v3986 = vadd.f32 %v3918, %v3958
    %v3987 = vadd.f32 %v3919, %v3958
    %v3988 = vadd.f32 %v3920, %v3958
    %v3989 = vadd.f32 %v3921, %v3958
    %v3990 = vadd.f32 %v3922, %v3958
    %v3991 = vadd.f32 %v3923, %v3958
    %v3992 = vadd.f32 %v3924, %v3958
    %v3993 = vadd.f32 %v3925, %v3958
    %v3994 = vadd.f32 %v3926, %v3958
    %v3995 = vadd.f32 %v3927, %v3958
    %v3996 = vadd.f32 %v3928, %v3958
    %v3997 = vadd.f32 %v3929, %v3958
    %v3998 = vadd.f32 %v3930, %v3958
    %v3999 = vadd.f32 %v3931, %v3958
    %v4000 = vadd.f32 %v3932, %v3958
    %v4001 = vadd.f32 %v3933, %v3958
    %v4002 = vadd.f32 %v3934, %v3958
    %v4003 = vadd.f32 %v3935, %v3958
    %v4004 = vadd.f32 %v3936, %v3958
    %v4005 = vadd.f32 %v3937, %v3958
    %v4006 = vadd.f32 %v3938, %v3958
    %v4007 = vadd.f32 %v3939, %v3958
    %v4008 = vadd.f32 %v3940, %v3958
    %v4009 = vadd.f32 %v3941, %v3958
    %v4010 = vadd.f32 %v3942, %v3958
    %v4011 = vadd.f32 %v3943, %v3958
    %v4012 = vadd.f32 %v3944, %v3958
    %v4013 = vadd.f32 %v3945, %v3958
    %v4014 = vadd.f32 %v3946, %v3958
    %v4015 = vadd.f32 %v3947, %v3958
    %v4016 = vadd.f32 %v3948, %v3958
    %v4017 = vadd.f32 %v3949, %v3958
    %v4018 = vadd.f32 %v3950, %v3958
    %v4019 = vadd.f32 %v3951, %v3958
    %v4020 = vadd.f32 %v3952, %v3958
    %v4021 = vadd.f32 %v3953, %v3958
    %v4022 = vadd.f32 %v3954, %v3958
    %v4023 = vxor.u32 %v3959, 2147483648
    %v4024 = vxor.u32 %v3960, 2147483648
    %v4025 = vxor.u32 %v3961, 2147483648
    %v4026 = vxor.u32 %v3962, 2147483648
    %v4027 = vxor.u32 %v3963, 2147483648
    %v4028 = vxor.u32 %v3964, 2147483648
    %v4029 = vxor.u32 %v3965, 2147483648
    %v4030 = vxor.u32 %v3966, 2147483648
    %v4031 = vxor.u32 %v3967, 2147483648
    %v4032 = vxor.u32 %v3968, 2147483648
    %v4033 = vxor.u32 %v3969, 2147483648
    %v4034 = vxor.u32 %v3970, 2147483648
    %v4035 = vxor.u32 %v3971, 2147483648
    %v4036 = vxor.u32 %v3972, 2147483648
    %v4037 = vxor.u32 %v3973, 2147483648
    %v4038 = vxor.u32 %v3974, 2147483648
    %v4039 = vxor.u32 %v3975, 2147483648
    %v4040 = vxor.u32 %v3976, 2147483648
    %v4041 = vxor.u32 %v3977, 2147483648
    %v4042 = vxor.u32 %v3978, 2147483648
    %v4043 = vxor.u32 %v3979, 2147483648
    %v4044 = vxor.u32 %v3980, 2147483648
    %v4045 = vxor.u32 %v3981, 2147483648
    %v4046 = vxor.u32 %v3982, 2147483648
    %v4047 = vxor.u32 %v3983, 2147483648
    %v4048 = vxor.u32 %v3984, 2147483648
    %v4049 = vxor.u32 %v3985, 2147483648
    %v4050 = vxor.u32 %v3986, 2147483648
    %v4051 = vxor.u32 %v3987, 2147483648
    %v4052 = vxor.u32 %v3988, 2147483648
    %v4053 = vxor.u32 %v3989, 2147483648
    %v4054 = vxor.u32 %v3990, 2147483648
    %v4055 = vxor.u32 %v3991, 2147483648
    %v4056 = vxor.u32 %v3992, 2147483648
    %v4057 = vxor.u32 %v3993, 2147483648
    %v4058 = vxor.u32 %v3994, 2147483648
    %v4059 = vxor.u32 %v3995, 2147483648
    %v4060 = vxor.u32 %v3996, 2147483648
    %v4061 = vxor.u32 %v3997, 2147483648
    %v4062 = vxor.u32 %v3998, 2147483648
    %v4063 = vxor.u32 %v3999, 2147483648
    %v4064 = vxor.u32 %v4000, 2147483648
    %v4065 = vxor.u32 %v4001, 2147483648
    %v4066 = vxor.u32 %v4002, 2147483648
    %v4067 = vxor.u32 %v4003, 2147483648
    %v4068 = vxor.u32 %v4004, 2147483648
    %v4069 = vxor.u32 %v4005, 2147483648
    %v4070 = vxor.u32 %v4006, 2147483648
    %v4071 = vxor.u32 %v4007, 2147483648
    %v4072 = vxor.u32 %v4008, 2147483648
    %v4073 = vxor.u32 %v4009, 2147483648
    %v4074 = vxor.u32 %v4010, 2147483648
    %v4075 = vxor.u32 %v4011, 2147483648
    %v4076 = vxor.u32 %v4012, 2147483648
    %v4077 = vxor.u32 %v4013, 2147483648
    %v4078 = vxor.u32 %v4014, 2147483648
    %v4079 = vxor.u32 %v4015, 2147483648
    %v4080 = vxor.u32 %v4016, 2147483648
    %v4081 = vxor.u32 %v4017, 2147483648
    %v4082 = vxor.u32 %v4018, 2147483648
    %v4083 = vxor.u32 %v4019, 2147483648
    %v4084 = vxor.u32 %v4020, 2147483648
    %v4085 = vxor.u32 %v4021, 2147483648
    %v4086 = vxor.u32 %v4022, 2147483648
    %v4087 = vmul.f32 %v4023, 1.442695
    %v4088 = vpow.pop %v4087
    %v4089 = vmul.f32 %v4024, 1.442695
    %v4090 = vpow.pop %v4089
    %v4091 = vmul.f32 %v4025, 1.442695
    %v4092 = vpow.pop %v4091
    %v4093 = vmul.f32 %v4026, 1.442695
    %v4094 = vpow.pop %v4093
    %v4095 = vmul.f32 %v4027, 1.442695
    %v4096 = vpow.pop %v4095
    %v4097 = vmul.f32 %v4028, 1.442695
    %v4098 = vpow.pop %v4097
    %v4099 = vmul.f32 %v4029, 1.442695
    %v4100 = vpow.pop %v4099
    %v4101 = vmul.f32 %v4030, 1.442695
    %v4102 = vpow.pop %v4101
    %v4103 = vmul.f32 %v4031, 1.442695
    %v4104 = vpow.pop %v4103
    %v4105 = vmul.f32 %v4032, 1.442695
    %v4106 = vpow.pop %v4105
    %v4107 = vmul.f32 %v4033, 1.442695
    %v4108 = vpow.pop %v4107
    %v4109 = vmul.f32 %v4034, 1.442695
    %v4110 = vpow.pop %v4109
    %v4111 = vmul.f32 %v4035, 1.442695
    %v4112 = vpow.pop %v4111
    %v4113 = vmul.f32 %v4036, 1.442695
    %v4114 = vpow.pop %v4113
    %v4115 = vmul.f32 %v4037, 1.442695
    %v4116 = vpow.pop %v4115
    %v4117 = vmul.f32 %v4038, 1.442695
    %v4118 = vpow.pop %v4117
    %v4119 = vmul.f32 %v4039, 1.442695
    %v4120 = vpow.pop %v4119
    %v4121 = vmul.f32 %v4040, 1.442695
    %v4122 = vpow.pop %v4121
    %v4123 = vmul.f32 %v4041, 1.442695
    %v4124 = vpow.pop %v4123
    %v4125 = vmul.f32 %v4042, 1.442695
    %v4126 = vpow.pop %v4125
    %v4127 = vmul.f32 %v4043, 1.442695
    %v4128 = vpow.pop %v4127
    %v4129 = vmul.f32 %v4044, 1.442695
    %v4130 = vpow.pop %v4129
    %v4131 = vmul.f32 %v4045, 1.442695
    %v4132 = vpow.pop %v4131
    %v4133 = vmul.f32 %v4046, 1.442695
    %v4134 = vpow.pop %v4133
    %v4135 = vmul.f32 %v4047, 1.442695
    %v4136 = vpow.pop %v4135
    %v4137 = vmul.f32 %v4048, 1.442695
    %v4138 = vpow.pop %v4137
    %v4139 = vmul.f32 %v4049, 1.442695
    %v4140 = vpow.pop %v4139
    %v4141 = vmul.f32 %v4050, 1.442695
    %v4142 = vpow.pop %v4141
    %v4143 = vmul.f32 %v4051, 1.442695
    %v4144 = vpow.pop %v4143
    %v4145 = vmul.f32 %v4052, 1.442695
    %v4146 = vpow.pop %v4145
    %v4147 = vmul.f32 %v4053, 1.442695
    %v4148 = vpow.pop %v4147
    %v4149 = vmul.f32 %v4054, 1.442695
    %v4150 = vpow.pop %v4149
    %v4151 = vmul.f32 %v4055, 1.442695
    %v4152 = vpow.pop %v4151
    %v4153 = vmul.f32 %v4056, 1.442695
    %v4154 = vpow.pop %v4153
    %v4155 = vmul.f32 %v4057, 1.442695
    %v4156 = vpow.pop %v4155
    %v4157 = vmul.f32 %v4058, 1.442695
    %v4158 = vpow.pop %v4157
    %v4159 = vmul.f32 %v4059, 1.442695
    %v4160 = vpow.pop %v4159
    %v4161 = vmul.f32 %v4060, 1.442695
    %v4162 = vpow.pop %v4161
    %v4163 = vmul.f32 %v4061, 1.442695
    %v4164 = vpow.pop %v4163
    %v4165 = vmul.f32 %v4062, 1.442695
    %v4166 = vpow.pop %v4165
    %v4167 = vmul.f32 %v4063, 1.442695
    %v4168 = vpow.pop %v4167
    %v4169 = vmul.f32 %v4064, 1.442695
    %v4170 = vpow.pop %v4169
    %v4171 = vmul.f32 %v4065, 1.442695
    %v4172 = vpow.pop %v4171
    %v4173 = vmul.f32 %v4066, 1.442695
    %v4174 = vpow.pop %v4173
    %v4175 = vmul.f32 %v4067, 1.442695
    %v4176 = vpow.pop %v4175
    %v4177 = vmul.f32 %v4068, 1.442695
    %v4178 = vpow.pop %v4177
    %v4179 = vmul.f32 %v4069, 1.442695
    %v4180 = vpow.pop %v4179
    %v4181 = vmul.f32 %v4070, 1.442695
    %v4182 = vpow.pop %v4181
    %v4183 = vmul.f32 %v4071, 1.442695
    %v4184 = vpow.pop %v4183
    %v4185 = vmul.f32 %v4072, 1.442695
    %v4186 = vpow.pop %v4185
    %v4187 = vmul.f32 %v4073, 1.442695
    %v4188 = vpow.pop %v4187
    %v4189 = vmul.f32 %v4074, 1.442695
    %v4190 = vpow.pop %v4189
    %v4191 = vmul.f32 %v4075, 1.442695
    %v4192 = vpow.pop %v4191
    %v4193 = vmul.f32 %v4076, 1.442695
    %v4194 = vpow.pop %v4193
    %v4195 = vmul.f32 %v4077, 1.442695
    %v4196 = vpow.pop %v4195
    %v4197 = vmul.f32 %v4078, 1.442695
    %v4198 = vpow.pop %v4197
    %v4199 = vmul.f32 %v4079, 1.442695
    %v4200 = vpow.pop %v4199
    %v4201 = vmul.f32 %v4080, 1.442695
    %v4202 = vpow.pop %v4201
    %v4203 = vmul.f32 %v4081, 1.442695
    %v4204 = vpow.pop %v4203
    %v4205 = vmul.f32 %v4082, 1.442695
    %v4206 = vpow.pop %v4205
    %v4207 = vmul.f32 %v4083, 1.442695
    %v4208 = vpow.pop %v4207
    %v4209 = vmul.f32 %v4084, 1.442695
    %v4210 = vpow.pop %v4209
    %v4211 = vmul.f32 %v4085, 1.442695
    %v4212 = vpow.pop %v4211
    %v4213 = vmul.f32 %v4086, 1.442695
    %v4214 = vpow.pop %v4213
    %v4215 = vadd.f32 %v4088, 1.0
    %v4216 = vadd.f32 %v4090, 1.0
    %v4217 = vadd.f32 %v4092, 1.0
    %v4218 = vadd.f32 %v4094, 1.0
    %v4219 = vadd.f32 %v4096, 1.0
    %v4220 = vadd.f32 %v4098, 1.0
    %v4221 = vadd.f32 %v4100, 1.0
    %v4222 = vadd.f32 %v4102, 1.0
    %v4223 = vadd.f32 %v4104, 1.0
    %v4224 = vadd.f32 %v4106, 1.0
    %v4225 = vadd.f32 %v4108, 1.0
    %v4226 = vadd.f32 %v4110, 1.0
    %v4227 = vadd.f32 %v4112, 1.0
    %v4228 = vadd.f32 %v4114, 1.0
    %v4229 = vadd.f32 %v4116, 1.0
    %v4230 = vadd.f32 %v4118, 1.0
    %v4231 = vadd.f32 %v4120, 1.0
    %v4232 = vadd.f32 %v4122, 1.0
    %v4233 = vadd.f32 %v4124, 1.0
    %v4234 = vadd.f32 %v4126, 1.0
    %v4235 = vadd.f32 %v4128, 1.0
    %v4236 = vadd.f32 %v4130, 1.0
    %v4237 = vadd.f32 %v4132, 1.0
    %v4238 = vadd.f32 %v4134, 1.0
    %v4239 = vadd.f32 %v4136, 1.0
    %v4240 = vadd.f32 %v4138, 1.0
    %v4241 = vadd.f32 %v4140, 1.0
    %v4242 = vadd.f32 %v4142, 1.0
    %v4243 = vadd.f32 %v4144, 1.0
    %v4244 = vadd.f32 %v4146, 1.0
    %v4245 = vadd.f32 %v4148, 1.0
    %v4246 = vadd.f32 %v4150, 1.0
    %v4247 = vadd.f32 %v4152, 1.0
    %v4248 = vadd.f32 %v4154, 1.0
    %v4249 = vadd.f32 %v4156, 1.0
    %v4250 = vadd.f32 %v4158, 1.0
    %v4251 = vadd.f32 %v4160, 1.0
    %v4252 = vadd.f32 %v4162, 1.0
    %v4253 = vadd.f32 %v4164, 1.0
    %v4254 = vadd.f32 %v4166, 1.0
    %v4255 = vadd.f32 %v4168, 1.0
    %v4256 = vadd.f32 %v4170, 1.0
    %v4257 = vadd.f32 %v4172, 1.0
    %v4258 = vadd.f32 %v4174, 1.0
    %v4259 = vadd.f32 %v4176, 1.0
    %v4260 = vadd.f32 %v4178, 1.0
    %v4261 = vadd.f32 %v4180, 1.0
    %v4262 = vadd.f32 %v4182, 1.0
    %v4263 = vadd.f32 %v4184, 1.0
    %v4264 = vadd.f32 %v4186, 1.0
    %v4265 = vadd.f32 %v4188, 1.0
    %v4266 = vadd.f32 %v4190, 1.0
    %v4267 = vadd.f32 %v4192, 1.0
    %v4268 = vadd.f32 %v4194, 1.0
    %v4269 = vadd.f32 %v4196, 1.0
    %v4270 = vadd.f32 %v4198, 1.0
    %v4271 = vadd.f32 %v4200, 1.0
    %v4272 = vadd.f32 %v4202, 1.0
    %v4273 = vadd.f32 %v4204, 1.0
    %v4274 = vadd.f32 %v4206, 1.0
    %v4275 = vadd.f32 %v4208, 1.0
    %v4276 = vadd.f32 %v4210, 1.0
    %v4277 = vadd.f32 %v4212, 1.0
    %v4278 = vadd.f32 %v4214, 1.0
    %v4279 = vrcp.pop %v4215
    %v4280 = vmul.f32 1.0, %v4279
    %v4281 = vrcp.pop %v4216
    %v4282 = vmul.f32 1.0, %v4281
    %v4283 = vrcp.pop %v4217
    %v4284 = vmul.f32 1.0, %v4283
    %v4285 = vrcp.pop %v4218
    %v4286 = vmul.f32 1.0, %v4285
    %v4287 = vrcp.pop %v4219
    %v4288 = vmul.f32 1.0, %v4287
    %v4289 = vrcp.pop %v4220
    %v4290 = vmul.f32 1.0, %v4289
    %v4291 = vrcp.pop %v4221
    %v4292 = vmul.f32 1.0, %v4291
    %v4293 = vrcp.pop %v4222
    %v4294 = vmul.f32 1.0, %v4293
    %v4295 = vrcp.pop %v4223
    %v4296 = vmul.f32 1.0, %v4295
    %v4297 = vrcp.pop %v4224
    %v4298 = vmul.f32 1.0, %v4297
    %v4299 = vrcp.pop %v4225
    %v4300 = vmul.f32 1.0, %v4299
    %v4301 = vrcp.pop %v4226
    %v4302 = vmul.f32 1.0, %v4301
    %v4303 = vrcp.pop %v4227
    %v4304 = vmul.f32 1.0, %v4303
    %v4305 = vrcp.pop %v4228
    %v4306 = vmul.f32 1.0, %v4305
    %v4307 = vrcp.pop %v4229
    %v4308 = vmul.f32 1.0, %v4307
    %v4309 = vrcp.pop %v4230
    %v4310 = vmul.f32 1.0, %v4309
    %v4311 = vrcp.pop %v4231
    %v4312 = vmul.f32 1.0, %v4311
    %v4313 = vrcp.pop %v4232
    %v4314 = vmul.f32 1.0, %v4313
    %v4315 = vrcp.pop %v4233
    %v4316 = vmul.f32 1.0, %v4315
    %v4317 = vrcp.pop %v4234
    %v4318 = vmul.f32 1.0, %v4317
    %v4319 = vrcp.pop %v4235
    %v4320 = vmul.f32 1.0, %v4319
    %v4321 = vrcp.pop %v4236
    %v4322 = vmul.f32 1.0, %v4321
    %v4323 = vrcp.pop %v4237
    %v4324 = vmul.f32 1.0, %v4323
    %v4325 = vrcp.pop %v4238
    %v4326 = vmul.f32 1.0, %v4325
    %v4327 = vrcp.pop %v4239
    %v4328 = vmul.f32 1.0, %v4327
    %v4329 = vrcp.pop %v4240
    %v4330 = vmul.f32 1.0, %v4329
    %v4331 = vrcp.pop %v4241
    %v4332 = vmul.f32 1.0, %v4331
    %v4333 = vrcp.pop %v4242
    %v4334 = vmul.f32 1.0, %v4333
    %v4335 = vrcp.pop %v4243
    %v4336 = vmul.f32 1.0, %v4335
    %v4337 = vrcp.pop %v4244
    %v4338 = vmul.f32 1.0, %v4337
    %v4339 = vrcp.pop %v4245
    %v4340 = vmul.f32 1.0, %v4339
    %v4341 = vrcp.pop %v4246
    %v4342 = vmul.f32 1.0, %v4341
    %v4343 = vrcp.pop %v4247
    %v4344 = vmul.f32 1.0, %v4343
    %v4345 = vrcp.pop %v4248
    %v4346 = vmul.f32 1.0, %v4345
    %v4347 = vrcp.pop %v4249
    %v4348 = vmul.f32 1.0, %v4347
    %v4349 = vrcp.pop %v4250
    %v4350 = vmul.f32 1.0, %v4349
    %v4351 = vrcp.pop %v4251
    %v4352 = vmul.f32 1.0, %v4351
    %v4353 = vrcp.pop %v4252
    %v4354 = vmul.f32 1.0, %v4353
    %v4355 = vrcp.pop %v4253
    %v4356 = vmul.f32 1.0, %v4355
    %v4357 = vrcp.pop %v4254
    %v4358 = vmul.f32 1.0, %v4357
    %v4359 = vrcp.pop %v4255
    %v4360 = vmul.f32 1.0, %v4359
    %v4361 = vrcp.pop %v4256
    %v4362 = vmul.f32 1.0, %v4361
    %v4363 = vrcp.pop %v4257
    %v4364 = vmul.f32 1.0, %v4363
    %v4365 = vrcp.pop %v4258
    %v4366 = vmul.f32 1.0, %v4365
    %v4367 = vrcp.pop %v4259
    %v4368 = vmul.f32 1.0, %v4367
    %v4369 = vrcp.pop %v4260
    %v4370 = vmul.f32 1.0, %v4369
    %v4371 = vrcp.pop %v4261
    %v4372 = vmul.f32 1.0, %v4371
    %v4373 = vrcp.pop %v4262
    %v4374 = vmul.f32 1.0, %v4373
    %v4375 = vrcp.pop %v4263
    %v4376 = vmul.f32 1.0, %v4375
    %v4377 = vrcp.pop %v4264
    %v4378 = vmul.f32 1.0, %v4377
    %v4379 = vrcp.pop %v4265
    %v4380 = vmul.f32 1.0, %v4379
    %v4381 = vrcp.pop %v4266
    %v4382 = vmul.f32 1.0, %v4381
    %v4383 = vrcp.pop %v4267
    %v4384 = vmul.f32 1.0, %v4383
    %v4385 = vrcp.pop %v4268
    %v4386 = vmul.f32 1.0, %v4385
    %v4387 = vrcp.pop %v4269
    %v4388 = vmul.f32 1.0, %v4387
    %v4389 = vrcp.pop %v4270
    %v4390 = vmul.f32 1.0, %v4389
    %v4391 = vrcp.pop %v4271
    %v4392 = vmul.f32 1.0, %v4391
    %v4393 = vrcp.pop %v4272
    %v4394 = vmul.f32 1.0, %v4393
    %v4395 = vrcp.pop %v4273
    %v4396 = vmul.f32 1.0, %v4395
    %v4397 = vrcp.pop %v4274
    %v4398 = vmul.f32 1.0, %v4397
    %v4399 = vrcp.pop %v4275
    %v4400 = vmul.f32 1.0, %v4399
    %v4401 = vrcp.pop %v4276
    %v4402 = vmul.f32 1.0, %v4401
    %v4403 = vrcp.pop %v4277
    %v4404 = vmul.f32 1.0, %v4403
    %v4405 = vrcp.pop %v4278
    %v4406 = vmul.f32 1.0, %v4405
    %v4407 = vmul.f32 %v3959, %v4280
    %v4408 = vmul.f32 %v3960, %v4282
    %v4409 = vmul.f32 %v3961, %v4284
    %v4410 = vmul.f32 %v3962, %v4286
    %v4411 = vmul.f32 %v3963, %v4288
    %v4412 = vmul.f32 %v3964, %v4290
    %v4413 = vmul.f32 %v3965, %v4292
    %v4414 = vmul.f32 %v3966, %v4294
    %v4415 = vmul.f32 %v3967, %v4296
    %v4416 = vmul.f32 %v3968, %v4298
    %v4417 = vmul.f32 %v3969, %v4300
    %v4418 = vmul.f32 %v3970, %v4302
    %v4419 = vmul.f32 %v3971, %v4304
    %v4420 = vmul.f32 %v3972, %v4306
    %v4421 = vmul.f32 %v3973, %v4308
    %v4422 = vmul.f32 %v3974, %v4310
    %v4423 = vmul.f32 %v3975, %v4312
    %v4424 = vmul.f32 %v3976, %v4314
    %v4425 = vmul.f32 %v3977, %v4316
    %v4426 = vmul.f32 %v3978, %v4318
    %v4427 = vmul.f32 %v3979, %v4320
    %v4428 = vmul.f32 %v3980, %v4322
    %v4429 = vmul.f32 %v3981, %v4324
    %v4430 = vmul.f32 %v3982, %v4326
    %v4431 = vmul.f32 %v3983, %v4328
    %v4432 = vmul.f32 %v3984, %v4330
    %v4433 = vmul.f32 %v3985, %v4332
    %v4434 = vmul.f32 %v3986, %v4334
    %v4435 = vmul.f32 %v3987, %v4336
    %v4436 = vmul.f32 %v3988, %v4338
    %v4437 = vmul.f32 %v3989, %v4340
    %v4438 = vmul.f32 %v3990, %v4342
    %v4439 = vmul.f32 %v3991, %v4344
    %v4440 = vmul.f32 %v3992, %v4346
    %v4441 = vmul.f32 %v3993, %v4348
    %v4442 = vmul.f32 %v3994, %v4350
    %v4443 = vmul.f32 %v3995, %v4352
    %v4444 = vmul.f32 %v3996, %v4354
    %v4445 = vmul.f32 %v3997, %v4356
    %v4446 = vmul.f32 %v3998, %v4358
    %v4447 = vmul.f32 %v3999, %v4360
    %v4448 = vmul.f32 %v4000, %v4362
    %v4449 = vmul.f32 %v4001, %v4364
    %v4450 = vmul.f32 %v4002, %v4366
    %v4451 = vmul.f32 %v4003, %v4368
    %v4452 = vmul.f32 %v4004, %v4370
    %v4453 = vmul.f32 %v4005, %v4372
    %v4454 = vmul.f32 %v4006, %v4374
    %v4455 = vmul.f32 %v4007, %v4376
    %v4456 = vmul.f32 %v4008, %v4378
    %v4457 = vmul.f32 %v4009, %v4380
    %v4458 = vmul.f32 %v4010, %v4382
    %v4459 = vmul.f32 %v4011, %v4384
    %v4460 = vmul.f32 %v4012, %v4386
    %v4461 = vmul.f32 %v4013, %v4388
    %v4462 = vmul.f32 %v4014, %v4390
    %v4463 = vmul.f32 %v4015, %v4392
    %v4464 = vmul.f32 %v4016, %v4394
    %v4465 = vmul.f32 %v4017, %v4396
    %v4466 = vmul.f32 %v4018, %v4398
    %v4467 = vmul.f32 %v4019, %v4400
    %v4468 = vmul.f32 %v4020, %v4402
    %v4469 = vmul.f32 %v4021, %v4404
    %v4470 = vmul.f32 %v4022, %v4406
    %v4471 = vld [vmem:[%s3] sm:$0xff]
    %v4472 = vld [vmem:[%s3 + $0x8] sm:$0x7]
    %vm4473 = vcmask 523264
    %4474 = vst.msk [vmem:[#allocation3] sm:$0xff] %vm4473, 0.0
    %4475 = vst.msk [vmem:[#allocation3 + $0x8] sm:$0xff] %vm4473, 0.0
    %4476 = vst.msk [vmem:[#allocation3 + $0x120] sm:$0xff] %vm4473, 0.0
    %4477 = vst.msk [vmem:[#allocation3 + $0x128] sm:$0xff] %vm4473, 0.0
    %s4478 = scalar_lea.vmem [#allocation3], 272
    %4479 = vst.msk [vmem:[%s4478] sm:$0xff] %vm4473, 0.0
    %4480 = vst.msk [vmem:[%s4478 + $0x8] sm:$0xff] %vm4473, 0.0
    %4481 = vst.msk [vmem:[%s4478 + $0x120] sm:$0xff] %vm4473, 0.0
    %4482 = vst.msk [vmem:[%s4478 + $0x128] sm:$0xff] %vm4473, 0.0
    %s4483 = scalar_lea.vmem [#allocation3], 16
    %4484 = vst.msk [vmem:[%s4483] sm:$0xff] %vm4473, %v4407
    %4485 = vst.msk [vmem:[%s4483 + $0x8] sm:$0xff] %vm4473, %v4408
    %4486 = vst.msk [vmem:[%s4483 + $0x10] sm:$0xff] %vm4473, %v4409
    %4487 = vst.msk [vmem:[%s4483 + $0x18] sm:$0xff] %vm4473, %v4410
    %4488 = vst.msk [vmem:[%s4483 + $0x20] sm:$0xff] %vm4473, %v4411
    %4489 = vst.msk [vmem:[%s4483 + $0x28] sm:$0xff] %vm4473, %v4412
    %4490 = vst.msk [vmem:[%s4483 + $0x30] sm:$0xff] %vm4473, %v4413
    %4491 = vst.msk [vmem:[%s4483 + $0x38] sm:$0xff] %vm4473, %v4414
    %4492 = vst.msk [vmem:[%s4483 + $0x40] sm:$0xff] %vm4473, %v4415
    %4493 = vst.msk [vmem:[%s4483 + $0x48] sm:$0xff] %vm4473, %v4416
    %4494 = vst.msk [vmem:[%s4483 + $0x50] sm:$0xff] %vm4473, %v4417
    %4495 = vst.msk [vmem:[%s4483 + $0x58] sm:$0xff] %vm4473, %v4418
    %4496 = vst.msk [vmem:[%s4483 + $0x60] sm:$0xff] %vm4473, %v4419
    %4497 = vst.msk [vmem:[%s4483 + $0x68] sm:$0xff] %vm4473, %v4420
    %4498 = vst.msk [vmem:[%s4483 + $0x70] sm:$0xff] %vm4473, %v4421
    %4499 = vst.msk [vmem:[%s4483 + $0x78] sm:$0xff] %vm4473, %v4422
    %4500 = vst.msk [vmem:[%s4483 + $0x80] sm:$0xff] %vm4473, %v4423
    %4501 = vst.msk [vmem:[%s4483 + $0x88] sm:$0xff] %vm4473, %v4424
    %4502 = vst.msk [vmem:[%s4483 + $0x90] sm:$0xff] %vm4473, %v4425
    %4503 = vst.msk [vmem:[%s4483 + $0x98] sm:$0xff] %vm4473, %v4426
    %4504 = vst.msk [vmem:[%s4483 + $0xa0] sm:$0xff] %vm4473, %v4427
    %4505 = vst.msk [vmem:[%s4483 + $0xa8] sm:$0xff] %vm4473, %v4428
    %4506 = vst.msk [vmem:[%s4483 + $0xb0] sm:$0xff] %vm4473, %v4429
    %4507 = vst.msk [vmem:[%s4483 + $0xb8] sm:$0xff] %vm4473, %v4430
    %4508 = vst.msk [vmem:[%s4483 + $0xc0] sm:$0xff] %vm4473, %v4431
    %4509 = vst.msk [vmem:[%s4483 + $0xc8] sm:$0xff] %vm4473, %v4432
    %4510 = vst.msk [vmem:[%s4483 + $0xd0] sm:$0xff] %vm4473, %v4433
    %4511 = vst.msk [vmem:[%s4483 + $0xd8] sm:$0xff] %vm4473, %v4434
    %4512 = vst.msk [vmem:[%s4483 + $0xe0] sm:$0xff] %vm4473, %v4435
    %4513 = vst.msk [vmem:[%s4483 + $0xe8] sm:$0xff] %vm4473, %v4436
    %4514 = vst.msk [vmem:[%s4483 + $0xf0] sm:$0xff] %vm4473, %v4437
    %4515 = vst.msk [vmem:[%s4483 + $0xf8] sm:$0xff] %vm4473, %v4438
    %4516 = vst.msk [vmem:[%s4483 + $0x120] sm:$0xff] %vm4473, %v4439
    %4517 = vst.msk [vmem:[%s4483 + $0x128] sm:$0xff] %vm4473, %v4440
    %4518 = vst.msk [vmem:[%s4483 + $0x130] sm:$0xff] %vm4473, %v4441
    %4519 = vst.msk [vmem:[%s4483 + $0x138] sm:$0xff] %vm4473, %v4442
    %4520 = vst.msk [vmem:[%s4483 + $0x140] sm:$0xff] %vm4473, %v4443
    %4521 = vst.msk [vmem:[%s4483 + $0x148] sm:$0xff] %vm4473, %v4444
    %4522 = vst.msk [vmem:[%s4483 + $0x150] sm:$0xff] %vm4473, %v4445
    %4523 = vst.msk [vmem:[%s4483 + $0x158] sm:$0xff] %vm4473, %v4446
    %4524 = vst.msk [vmem:[%s4483 + $0x160] sm:$0xff] %vm4473, %v4447
    %4525 = vst.msk [vmem:[%s4483 + $0x168] sm:$0xff] %vm4473, %v4448
    %4526 = vst.msk [vmem:[%s4483 + $0x170] sm:$0xff] %vm4473, %v4449
    %4527 = vst.msk [vmem:[%s4483 + $0x178] sm:$0xff] %vm4473, %v4450
    %4528 = vst.msk [vmem:[%s4483 + $0x180] sm:$0xff] %vm4473, %v4451
    %4529 = vst.msk [vmem:[%s4483 + $0x188] sm:$0xff] %vm4473, %v4452
    %4530 = vst.msk [vmem:[%s4483 + $0x190] sm:$0xff] %vm4473, %v4453
    %4531 = vst.msk [vmem:[%s4483 + $0x198] sm:$0xff] %vm4473, %v4454
    %4532 = vst.msk [vmem:[%s4483 + $0x1a0] sm:$0xff] %vm4473, %v4455
    %4533 = vst.msk [vmem:[%s4483 + $0x1a8] sm:$0xff] %vm4473, %v4456
    %4534 = vst.msk [vmem:[%s4483 + $0x1b0] sm:$0xff] %vm4473, %v4457
    %4535 = vst.msk [vmem:[%s4483 + $0x1b8] sm:$0xff] %vm4473, %v4458
    %4536 = vst.msk [vmem:[%s4483 + $0x1c0] sm:$0xff] %vm4473, %v4459
    %4537 = vst.msk [vmem:[%s4483 + $0x1c8] sm:$0xff] %vm4473, %v4460
    %4538 = vst.msk [vmem:[%s4483 + $0x1d0] sm:$0xff] %vm4473, %v4461
    %4539 = vst.msk [vmem:[%s4483 + $0x1d8] sm:$0xff] %vm4473, %v4462
    %4540 = vst.msk [vmem:[%s4483 + $0x1e0] sm:$0xff] %vm4473, %v4463
    %4541 = vst.msk [vmem:[%s4483 + $0x1e8] sm:$0xff] %vm4473, %v4464
    %4542 = vst.msk [vmem:[%s4483 + $0x1f0] sm:$0xff] %vm4473, %v4465
    %4543 = vst.msk [vmem:[%s4483 + $0x1f8] sm:$0xff] %vm4473, %v4466
    %4544 = vst.msk [vmem:[%s4483 + $0x200] sm:$0xff] %vm4473, %v4467
    %4545 = vst.msk [vmem:[%s4483 + $0x208] sm:$0xff] %vm4473, %v4468
    %4546 = vst.msk [vmem:[%s4483 + $0x210] sm:$0xff] %vm4473, %v4469
    %4547 = vst.msk [vmem:[%s4483 + $0x218] sm:$0xff] %vm4473, %v4470
    %v4548 = vld [vmem:[#allocation3] sm:$0xff]
    %v4549 = vld [vmem:[#allocation3 + $0x8] sm:$0xff]
    %v4550 = vld [vmem:[#allocation3 + $0x10] sm:$0xff]
    %v4551 = vld [vmem:[#allocation3 + $0x18] sm:$0xff]
    %v4552 = vld [vmem:[#allocation3 + $0x20] sm:$0xff]
    %v4553 = vld [vmem:[#allocation3 + $0x28] sm:$0xff]
    %v4554 = vld [vmem:[#allocation3 + $0x30] sm:$0xff]
    %v4555 = vld [vmem:[#allocation3 + $0x38] sm:$0xff]
    %v4556 = vld [vmem:[#allocation3 + $0x40] sm:$0xff]
    %v4557 = vld [vmem:[#allocation3 + $0x48] sm:$0xff]
    %v4558 = vld [vmem:[#allocation3 + $0x50] sm:$0xff]
    %v4559 = vld [vmem:[#allocation3 + $0x58] sm:$0xff]
    %v4560 = vld [vmem:[#allocation3 + $0x60] sm:$0xff]
    %v4561 = vld [vmem:[#allocation3 + $0x68] sm:$0xff]
    %v4562 = vld [vmem:[#allocation3 + $0x70] sm:$0xff]
    %v4563 = vld [vmem:[#allocation3 + $0x78] sm:$0xff]
    %v4564 = vld [vmem:[#allocation3 + $0x80] sm:$0xff]
    %v4565 = vld [vmem:[#allocation3 + $0x88] sm:$0xff]
    %v4566 = vld [vmem:[#allocation3 + $0x90] sm:$0xff]
    %v4567 = vld [vmem:[#allocation3 + $0x98] sm:$0xff]
    %v4568 = vld [vmem:[#allocation3 + $0xa0] sm:$0xff]
    %v4569 = vld [vmem:[#allocation3 + $0xa8] sm:$0xff]
    %v4570 = vld [vmem:[#allocation3 + $0xb0] sm:$0xff]
    %v4571 = vld [vmem:[#allocation3 + $0xb8] sm:$0xff]
    %v4572 = vld [vmem:[#allocation3 + $0xc0] sm:$0xff]
    %v4573 = vld [vmem:[#allocation3 + $0xc8] sm:$0xff]
    %v4574 = vld [vmem:[#allocation3 + $0xd0] sm:$0xff]
    %v4575 = vld [vmem:[#allocation3 + $0xd8] sm:$0xff]
    %v4576 = vld [vmem:[#allocation3 + $0xe0] sm:$0xff]
    %v4577 = vld [vmem:[#allocation3 + $0xe8] sm:$0xff]
    %v4578 = vld [vmem:[#allocation3 + $0xf0] sm:$0xff]
    %v4579 = vld [vmem:[#allocation3 + $0xf8] sm:$0xff]
    %v4580 = vld [vmem:[#allocation3 + $0x120] sm:$0xff]
    %v4581 = vld [vmem:[#allocation3 + $0x128] sm:$0xff]
    %v4582 = vld [vmem:[#allocation3 + $0x130] sm:$0xff]
    %v4583 = vld [vmem:[#allocation3 + $0x138] sm:$0xff]
    %v4584 = vld [vmem:[#allocation3 + $0x140] sm:$0xff]
    %v4585 = vld [vmem:[#allocation3 + $0x148] sm:$0xff]
    %v4586 = vld [vmem:[#allocation3 + $0x150] sm:$0xff]
    %v4587 = vld [vmem:[#allocation3 + $0x158] sm:$0xff]
    %v4588 = vld [vmem:[#allocation3 + $0x160] sm:$0xff]
    %v4589 = vld [vmem:[#allocation3 + $0x168] sm:$0xff]
    %v4590 = vld [vmem:[#allocation3 + $0x170] sm:$0xff]
    %v4591 = vld [vmem:[#allocation3 + $0x178] sm:$0xff]
    %v4592 = vld [vmem:[#allocation3 + $0x180] sm:$0xff]
    %v4593 = vld [vmem:[#allocation3 + $0x188] sm:$0xff]
    %v4594 = vld [vmem:[#allocation3 + $0x190] sm:$0xff]
    %v4595 = vld [vmem:[#allocation3 + $0x198] sm:$0xff]
    %v4596 = vld [vmem:[#allocation3 + $0x1a0] sm:$0xff]
    %v4597 = vld [vmem:[#allocation3 + $0x1a8] sm:$0xff]
    %v4598 = vld [vmem:[#allocation3 + $0x1b0] sm:$0xff]
    %v4599 = vld [vmem:[#allocation3 + $0x1b8] sm:$0xff]
    %v4600 = vld [vmem:[#allocation3 + $0x1c0] sm:$0xff]
    %v4601 = vld [vmem:[#allocation3 + $0x1c8] sm:$0xff]
    %v4602 = vld [vmem:[#allocation3 + $0x1d0] sm:$0xff]
    %v4603 = vld [vmem:[#allocation3 + $0x1d8] sm:$0xff]
    %v4604 = vld [vmem:[#allocation3 + $0x1e0] sm:$0xff]
    %v4605 = vld [vmem:[#allocation3 + $0x1e8] sm:$0xff]
    %v4606 = vld [vmem:[#allocation3 + $0x1f0] sm:$0xff]
    %v4607 = vld [vmem:[#allocation3 + $0x1f8] sm:$0xff]
    %v4608 = vld [vmem:[#allocation3 + $0x200] sm:$0xff]
    %v4609 = vld [vmem:[#allocation3 + $0x208] sm:$0xff]
    %v4610 = vld [vmem:[#allocation3 + $0x210] sm:$0xff]
    %v4611 = vld [vmem:[#allocation3 + $0x218] sm:$0xff]
    %v4612 = vrot.slane %v4548, 7
    %v4613 = vrot.slane %v4550, 7
    %v4614 = vrot.slane %v4552, 7
    %v4615 = vrot.slane %v4554, 7
    %v4616 = vrot.slane %v4556, 7
    %v4617 = vrot.slane %v4558, 7
    %v4618 = vrot.slane %v4560, 7
    %v4619 = vrot.slane %v4562, 7
    %v4620 = vrot.slane %v4564, 7
    %v4621 = vrot.slane %v4566, 7
    %v4622 = vrot.slane %v4568, 7
    %v4623 = vrot.slane %v4570, 7
    %v4624 = vrot.slane %v4572, 7
    %v4625 = vrot.slane %v4574, 7
    %v4626 = vrot.slane %v4576, 7
    %v4627 = vrot.slane %v4578, 7
    %v4628 = vrot.slane %v4580, 7
    %v4629 = vrot.slane %v4582, 7
    %v4630 = vrot.slane %v4584, 7
    %v4631 = vrot.slane %v4586, 7
    %v4632 = vrot.slane %v4588, 7
    %v4633 = vrot.slane %v4590, 7
    %v4634 = vrot.slane %v4592, 7
    %v4635 = vrot.slane %v4594, 7
    %v4636 = vrot.slane %v4596, 7
    %v4637 = vrot.slane %v4598, 7
    %v4638 = vrot.slane %v4600, 7
    %v4639 = vrot.slane %v4602, 7
    %v4640 = vrot.slane %v4604, 7
    %v4641 = vrot.slane %v4606, 7
    %v4642 = vrot.slane %v4608, 7
    %v4643 = vrot.slane %v4610, 7
    %v4644 = vrot.slane %v4549, 7
    %v4645 = vrot.slane %v4551, 7
    %v4646 = vrot.slane %v4553, 7
    %v4647 = vrot.slane %v4555, 7
    %v4648 = vrot.slane %v4557, 7
    %v4649 = vrot.slane %v4559, 7
    %v4650 = vrot.slane %v4561, 7
    %v4651 = vrot.slane %v4563, 7
    %v4652 = vrot.slane %v4565, 7
    %v4653 = vrot.slane %v4567, 7
    %v4654 = vrot.slane %v4569, 7
    %v4655 = vrot.slane %v4571, 7
    %v4656 = vrot.slane %v4573, 7
    %v4657 = vrot.slane %v4575, 7
    %v4658 = vrot.slane %v4577, 7
    %v4659 = vrot.slane %v4579, 7
    %v4660 = vrot.slane %v4581, 7
    %v4661 = vrot.slane %v4583, 7
    %v4662 = vrot.slane %v4585, 7
    %v4663 = vrot.slane %v4587, 7
    %v4664 = vrot.slane %v4589, 7
    %v4665 = vrot.slane %v4591, 7
    %v4666 = vrot.slane %v4593, 7
    %v4667 = vrot.slane %v4595, 7
    %v4668 = vrot.slane %v4597, 7
    %v4669 = vrot.slane %v4599, 7
    %v4670 = vrot.slane %v4601, 7
    %v4671 = vrot.slane %v4603, 7
    %v4672 = vrot.slane %v4605, 7
    %v4673 = vrot.slane %v4607, 7
    %v4674 = vrot.slane %v4609, 7
    %v4675 = vrot.slane %v4611, 7
    %v4676 = vsel %vm314, %v4612, %v4644
    %v4677 = vsel %vm314, %v4613, %v4645
    %v4678 = vsel %vm314, %v4614, %v4646
    %v4679 = vsel %vm314, %v4615, %v4647
    %v4680 = vsel %vm314, %v4616, %v4648
    %v4681 = vsel %vm314, %v4617, %v4649
    %v4682 = vsel %vm314, %v4618, %v4650
    %v4683 = vsel %vm314, %v4619, %v4651
    %v4684 = vsel %vm314, %v4620, %v4652
    %v4685 = vsel %vm314, %v4621, %v4653
    %v4686 = vsel %vm314, %v4622, %v4654
    %v4687 = vsel %vm314, %v4623, %v4655
    %v4688 = vsel %vm314, %v4624, %v4656
    %v4689 = vsel %vm314, %v4625, %v4657
    %v4690 = vsel %vm314, %v4626, %v4658
    %v4691 = vsel %vm314, %v4627, %v4659
    %v4692 = vsel %vm314, %v4628, %v4660
    %v4693 = vsel %vm314, %v4629, %v4661
    %v4694 = vsel %vm314, %v4630, %v4662
    %v4695 = vsel %vm314, %v4631, %v4663
    %v4696 = vsel %vm314, %v4632, %v4664
    %v4697 = vsel %vm314, %v4633, %v4665
    %v4698 = vsel %vm314, %v4634, %v4666
    %v4699 = vsel %vm314, %v4635, %v4667
    %v4700 = vsel %vm314, %v4636, %v4668
    %v4701 = vsel %vm314, %v4637, %v4669
    %v4702 = vsel %vm314, %v4638, %v4670
    %v4703 = vsel %vm314, %v4639, %v4671
    %v4704 = vsel %vm314, %v4640, %v4672
    %v4705 = vsel %vm314, %v4641, %v4673
    %v4706 = vsel %vm314, %v4642, %v4674
    %v4707 = vsel %vm314, %v4643, %v4675
    %v4708 = vsel %vm314, %v4644, %v4612
    %v4709 = vsel %vm314, %v4645, %v4613
    %v4710 = vsel %vm314, %v4646, %v4614
    %v4711 = vsel %vm314, %v4647, %v4615
    %v4712 = vsel %vm314, %v4648, %v4616
    %v4713 = vsel %vm314, %v4649, %v4617
    %v4714 = vsel %vm314, %v4650, %v4618
    %v4715 = vsel %vm314, %v4651, %v4619
    %v4716 = vsel %vm314, %v4652, %v4620
    %v4717 = vsel %vm314, %v4653, %v4621
    %v4718 = vsel %vm314, %v4654, %v4622
    %v4719 = vsel %vm314, %v4655, %v4623
    %v4720 = vsel %vm314, %v4656, %v4624
    %v4721 = vsel %vm314, %v4657, %v4625
    %v4722 = vsel %vm314, %v4658, %v4626
    %v4723 = vsel %vm314, %v4659, %v4627
    %v4724 = vsel %vm314, %v4660, %v4628
    %v4725 = vsel %vm314, %v4661, %v4629
    %v4726 = vsel %vm314, %v4662, %v4630
    %v4727 = vsel %vm314, %v4663, %v4631
    %v4728 = vsel %vm314, %v4664, %v4632
    %v4729 = vsel %vm314, %v4665, %v4633
    %v4730 = vsel %vm314, %v4666, %v4634
    %v4731 = vsel %vm314, %v4667, %v4635
    %v4732 = vsel %vm314, %v4668, %v4636
    %v4733 = vsel %vm314, %v4669, %v4637
    %v4734 = vsel %vm314, %v4670, %v4638
    %v4735 = vsel %vm314, %v4671, %v4639
    %v4736 = vsel %vm314, %v4672, %v4640
    %v4737 = vsel %vm314, %v4673, %v4641
    %v4738 = vsel %vm314, %v4674, %v4642
    %v4739 = vsel %vm314, %v4675, %v4643
    %v4740 = vsel %vm182, %v4708, 0.0
    %v4741 = vsel %vm183, %v4676, 0.0
    %v4742 = vsel %vm182, %v4709, 0.0
    %v4743 = vsel %vm183, %v4677, 0.0
    %v4744 = vsel %vm182, %v4710, 0.0
    %v4745 = vsel %vm183, %v4678, 0.0
    %v4746 = vsel %vm182, %v4711, 0.0
    %v4747 = vsel %vm183, %v4679, 0.0
    %v4748 = vsel %vm182, %v4712, 0.0
    %v4749 = vsel %vm183, %v4680, 0.0
    %v4750 = vsel %vm182, %v4713, 0.0
    %v4751 = vsel %vm183, %v4681, 0.0
    %v4752 = vsel %vm182, %v4714, 0.0
    %v4753 = vsel %vm183, %v4682, 0.0
    %v4754 = vsel %vm182, %v4715, 0.0
    %v4755 = vsel %vm183, %v4683, 0.0
    %v4756 = vsel %vm182, %v4716, 0.0
    %v4757 = vsel %vm183, %v4684, 0.0
    %v4758 = vsel %vm182, %v4717, 0.0
    %v4759 = vsel %vm183, %v4685, 0.0
    %v4760 = vsel %vm182, %v4718, 0.0
    %v4761 = vsel %vm183, %v4686, 0.0
    %v4762 = vsel %vm182, %v4719, 0.0
    %v4763 = vsel %vm183, %v4687, 0.0
    %v4764 = vsel %vm182, %v4720, 0.0
    %v4765 = vsel %vm183, %v4688, 0.0
    %v4766 = vsel %vm182, %v4721, 0.0
    %v4767 = vsel %vm183, %v4689, 0.0
    %v4768 = vsel %vm182, %v4722, 0.0
    %v4769 = vsel %vm183, %v4690, 0.0
    %v4770 = vsel %vm182, %v4723, 0.0
    %v4771 = vsel %vm183, %v4691, 0.0
    %v4772 = vsel %vm182, %v4724, 0.0
    %v4773 = vsel %vm183, %v4692, 0.0
    %v4774 = vsel %vm182, %v4725, 0.0
    %v4775 = vsel %vm183, %v4693, 0.0
    %v4776 = vsel %vm182, %v4726, 0.0
    %v4777 = vsel %vm183, %v4694, 0.0
    %v4778 = vsel %vm182, %v4727, 0.0
    %v4779 = vsel %vm183, %v4695, 0.0
    %v4780 = vsel %vm182, %v4728, 0.0
    %v4781 = vsel %vm183, %v4696, 0.0
    %v4782 = vsel %vm182, %v4729, 0.0
    %v4783 = vsel %vm183, %v4697, 0.0
    %v4784 = vsel %vm182, %v4730, 0.0
    %v4785 = vsel %vm183, %v4698, 0.0
    %v4786 = vsel %vm182, %v4731, 0.0
    %v4787 = vsel %vm183, %v4699, 0.0
    %v4788 = vsel %vm182, %v4732, 0.0
    %v4789 = vsel %vm183, %v4700, 0.0
    %v4790 = vsel %vm182, %v4733, 0.0
    %v4791 = vsel %vm183, %v4701, 0.0
    %v4792 = vsel %vm182, %v4734, 0.0
    %v4793 = vsel %vm183, %v4702, 0.0
    %v4794 = vsel %vm182, %v4735, 0.0
    %v4795 = vsel %vm183, %v4703, 0.0
    %v4796 = vsel %vm182, %v4736, 0.0
    %v4797 = vsel %vm183, %v4704, 0.0
    %v4798 = vsel %vm182, %v4737, 0.0
    %v4799 = vsel %vm183, %v4705, 0.0
    %v4800 = vsel %vm182, %v4738, 0.0
    %v4801 = vsel %vm183, %v4706, 0.0
    %v4802 = vsel %vm182, %v4739, 0.0
    %v4803 = vsel %vm183, %v4707, 0.0
    %v4804 = vlaneseq
    %v4805 = vshrl.u32 %v4804, 7
    %v4806 = vsub.s32 0, %v4805
    %v4807 = vrot.slane %v4471, %v4806
    %v4808 = vmul.f32 %v4740, %v4807
    %v4809 = vmul.f32 %v4741, %v4807
    %v4810 = vmul.f32 %v4742, %v4807
    %v4811 = vmul.f32 %v4743, %v4807
    %v4812 = vmul.f32 %v4744, %v4807
    %v4813 = vmul.f32 %v4745, %v4807
    %v4814 = vmul.f32 %v4746, %v4807
    %v4815 = vmul.f32 %v4747, %v4807
    %v4816 = vmul.f32 %v4748, %v4807
    %v4817 = vmul.f32 %v4749, %v4807
    %v4818 = vmul.f32 %v4750, %v4807
    %v4819 = vmul.f32 %v4751, %v4807
    %v4820 = vmul.f32 %v4752, %v4807
    %v4821 = vmul.f32 %v4753, %v4807
    %v4822 = vmul.f32 %v4754, %v4807
    %v4823 = vmul.f32 %v4755, %v4807
    %v4824 = vmul.f32 %v4756, %v4807
    %v4825 = vmul.f32 %v4757, %v4807
    %v4826 = vmul.f32 %v4758, %v4807
    %v4827 = vmul.f32 %v4759, %v4807
    %v4828 = vmul.f32 %v4760, %v4807
    %v4829 = vmul.f32 %v4761, %v4807
    %v4830 = vmul.f32 %v4762, %v4807
    %v4831 = vmul.f32 %v4763, %v4807
    %v4832 = vmul.f32 %v4764, %v4807
    %v4833 = vmul.f32 %v4765, %v4807
    %v4834 = vmul.f32 %v4766, %v4807
    %v4835 = vmul.f32 %v4767, %v4807
    %v4836 = vmul.f32 %v4768, %v4807
    %v4837 = vmul.f32 %v4769, %v4807
    %v4838 = vmul.f32 %v4770, %v4807
    %v4839 = vmul.f32 %v4771, %v4807
    %v4840 = vmul.f32 %v4772, %v4807
    %v4841 = vmul.f32 %v4773, %v4807
    %v4842 = vmul.f32 %v4774, %v4807
    %v4843 = vmul.f32 %v4775, %v4807
    %v4844 = vmul.f32 %v4776, %v4807
    %v4845 = vmul.f32 %v4777, %v4807
    %v4846 = vmul.f32 %v4778, %v4807
    %v4847 = vmul.f32 %v4779, %v4807
    %v4848 = vmul.f32 %v4780, %v4807
    %v4849 = vmul.f32 %v4781, %v4807
    %v4850 = vmul.f32 %v4782, %v4807
    %v4851 = vmul.f32 %v4783, %v4807
    %v4852 = vmul.f32 %v4784, %v4807
    %v4853 = vmul.f32 %v4785, %v4807
    %v4854 = vmul.f32 %v4786, %v4807
    %v4855 = vmul.f32 %v4787, %v4807
    %v4856 = vmul.f32 %v4788, %v4807
    %v4857 = vmul.f32 %v4789, %v4807
    %v4858 = vmul.f32 %v4790, %v4807
    %v4859 = vmul.f32 %v4791, %v4807
    %v4860 = vmul.f32 %v4792, %v4807
    %v4861 = vmul.f32 %v4793, %v4807
    %v4862 = vmul.f32 %v4794, %v4807
    %v4863 = vmul.f32 %v4795, %v4807
    %v4864 = vmul.f32 %v4796, %v4807
    %v4865 = vmul.f32 %v4797, %v4807
    %v4866 = vmul.f32 %v4798, %v4807
    %v4867 = vmul.f32 %v4799, %v4807
    %v4868 = vmul.f32 %v4800, %v4807
    %v4869 = vmul.f32 %v4801, %v4807
    %v4870 = vmul.f32 %v4802, %v4807
    %v4871 = vmul.f32 %v4803, %v4807
    %v4872 = vadd.f32 %v4808, 0.0
    %v4873 = vadd.f32 %v4809, 0.0
    %v4874 = vadd.f32 %v4810, 0.0
    %v4875 = vadd.f32 %v4811, 0.0
    %v4876 = vadd.f32 %v4812, 0.0
    %v4877 = vadd.f32 %v4813, 0.0
    %v4878 = vadd.f32 %v4814, 0.0
    %v4879 = vadd.f32 %v4815, 0.0
    %v4880 = vadd.f32 %v4816, 0.0
    %v4881 = vadd.f32 %v4817, 0.0
    %v4882 = vadd.f32 %v4818, 0.0
    %v4883 = vadd.f32 %v4819, 0.0
    %v4884 = vadd.f32 %v4820, 0.0
    %v4885 = vadd.f32 %v4821, 0.0
    %v4886 = vadd.f32 %v4822, 0.0
    %v4887 = vadd.f32 %v4823, 0.0
    %v4888 = vadd.f32 %v4824, 0.0
    %v4889 = vadd.f32 %v4825, 0.0
    %v4890 = vadd.f32 %v4826, 0.0
    %v4891 = vadd.f32 %v4827, 0.0
    %v4892 = vadd.f32 %v4828, 0.0
    %v4893 = vadd.f32 %v4829, 0.0
    %v4894 = vadd.f32 %v4830, 0.0
    %v4895 = vadd.f32 %v4831, 0.0
    %v4896 = vadd.f32 %v4832, 0.0
    %v4897 = vadd.f32 %v4833, 0.0
    %v4898 = vadd.f32 %v4834, 0.0
    %v4899 = vadd.f32 %v4835, 0.0
    %v4900 = vadd.f32 %v4836, 0.0
    %v4901 = vadd.f32 %v4837, 0.0
    %v4902 = vadd.f32 %v4838, 0.0
    %v4903 = vadd.f32 %v4839, 0.0
    %v4904 = vadd.f32 %v4840, 0.0
    %v4905 = vadd.f32 %v4841, 0.0
    %v4906 = vadd.f32 %v4842, 0.0
    %v4907 = vadd.f32 %v4843, 0.0
    %v4908 = vadd.f32 %v4844, 0.0
    %v4909 = vadd.f32 %v4845, 0.0
    %v4910 = vadd.f32 %v4846, 0.0
    %v4911 = vadd.f32 %v4847, 0.0
    %v4912 = vadd.f32 %v4848, 0.0
    %v4913 = vadd.f32 %v4849, 0.0
    %v4914 = vadd.f32 %v4850, 0.0
    %v4915 = vadd.f32 %v4851, 0.0
    %v4916 = vadd.f32 %v4852, 0.0
    %v4917 = vadd.f32 %v4853, 0.0
    %v4918 = vadd.f32 %v4854, 0.0
    %v4919 = vadd.f32 %v4855, 0.0
    %v4920 = vadd.f32 %v4856, 0.0
    %v4921 = vadd.f32 %v4857, 0.0
    %v4922 = vadd.f32 %v4858, 0.0
    %v4923 = vadd.f32 %v4859, 0.0
    %v4924 = vadd.f32 %v4860, 0.0
    %v4925 = vadd.f32 %v4861, 0.0
    %v4926 = vadd.f32 %v4862, 0.0
    %v4927 = vadd.f32 %v4863, 0.0
    %v4928 = vadd.f32 %v4864, 0.0
    %v4929 = vadd.f32 %v4865, 0.0
    %v4930 = vadd.f32 %v4866, 0.0
    %v4931 = vadd.f32 %v4867, 0.0
    %v4932 = vadd.f32 %v4868, 0.0
    %v4933 = vadd.f32 %v4869, 0.0
    %v4934 = vadd.f32 %v4870, 0.0
    %v4935 = vadd.f32 %v4871, 0.0
    %v4936 = vlaneseq
    %v4937 = vshrl.u32 %v4936, 7
    %v4938 = vsub.s32 1, %v4937
    %v4939 = vrot.slane %v4471, %v4938
    %v4940 = vmul.f32 %v4548, %v4939
    %v4941 = vmul.f32 %v4549, %v4939
    %v4942 = vmul.f32 %v4550, %v4939
    %v4943 = vmul.f32 %v4551, %v4939
    %v4944 = vmul.f32 %v4552, %v4939
    %v4945 = vmul.f32 %v4553, %v4939
    %v4946 = vmul.f32 %v4554, %v4939
    %v4947 = vmul.f32 %v4555, %v4939
    %v4948 = vmul.f32 %v4556, %v4939
    %v4949 = vmul.f32 %v4557, %v4939
    %v4950 = vmul.f32 %v4558, %v4939
    %v4951 = vmul.f32 %v4559, %v4939
    %v4952 = vmul.f32 %v4560, %v4939
    %v4953 = vmul.f32 %v4561, %v4939
    %v4954 = vmul.f32 %v4562, %v4939
    %v4955 = vmul.f32 %v4563, %v4939
    %v4956 = vmul.f32 %v4564, %v4939
    %v4957 = vmul.f32 %v4565, %v4939
    %v4958 = vmul.f32 %v4566, %v4939
    %v4959 = vmul.f32 %v4567, %v4939
    %v4960 = vmul.f32 %v4568, %v4939
    %v4961 = vmul.f32 %v4569, %v4939
    %v4962 = vmul.f32 %v4570, %v4939
    %v4963 = vmul.f32 %v4571, %v4939
    %v4964 = vmul.f32 %v4572, %v4939
    %v4965 = vmul.f32 %v4573, %v4939
    %v4966 = vmul.f32 %v4574, %v4939
    %v4967 = vmul.f32 %v4575, %v4939
    %v4968 = vmul.f32 %v4576, %v4939
    %v4969 = vmul.f32 %v4577, %v4939
    %v4970 = vmul.f32 %v4578, %v4939
    %v4971 = vmul.f32 %v4579, %v4939
    %v4972 = vmul.f32 %v4580, %v4939
    %v4973 = vmul.f32 %v4581, %v4939
    %v4974 = vmul.f32 %v4582, %v4939
    %v4975 = vmul.f32 %v4583, %v4939
    %v4976 = vmul.f32 %v4584, %v4939
    %v4977 = vmul.f32 %v4585, %v4939
    %v4978 = vmul.f32 %v4586, %v4939
    %v4979 = vmul.f32 %v4587, %v4939
    %v4980 = vmul.f32 %v4588, %v4939
    %v4981 = vmul.f32 %v4589, %v4939
    %v4982 = vmul.f32 %v4590, %v4939
    %v4983 = vmul.f32 %v4591, %v4939
    %v4984 = vmul.f32 %v4592, %v4939
    %v4985 = vmul.f32 %v4593, %v4939
    %v4986 = vmul.f32 %v4594, %v4939
    %v4987 = vmul.f32 %v4595, %v4939
    %v4988 = vmul.f32 %v4596, %v4939
    %v4989 = vmul.f32 %v4597, %v4939
    %v4990 = vmul.f32 %v4598, %v4939
    %v4991 = vmul.f32 %v4599, %v4939
    %v4992 = vmul.f32 %v4600, %v4939
    %v4993 = vmul.f32 %v4601, %v4939
    %v4994 = vmul.f32 %v4602, %v4939
    %v4995 = vmul.f32 %v4603, %v4939
    %v4996 = vmul.f32 %v4604, %v4939
    %v4997 = vmul.f32 %v4605, %v4939
    %v4998 = vmul.f32 %v4606, %v4939
    %v4999 = vmul.f32 %v4607, %v4939
    %v5000 = vmul.f32 %v4608, %v4939
    %v5001 = vmul.f32 %v4609, %v4939
    %v5002 = vmul.f32 %v4610, %v4939
    %v5003 = vmul.f32 %v4611, %v4939
    %v5004 = vadd.f32 %v4872, %v4940
    %v5005 = vadd.f32 %v4873, %v4941
    %v5006 = vadd.f32 %v4874, %v4942
    %v5007 = vadd.f32 %v4875, %v4943
    %v5008 = vadd.f32 %v4876, %v4944
    %v5009 = vadd.f32 %v4877, %v4945
    %v5010 = vadd.f32 %v4878, %v4946
    %v5011 = vadd.f32 %v4879, %v4947
    %v5012 = vadd.f32 %v4880, %v4948
    %v5013 = vadd.f32 %v4881, %v4949
    %v5014 = vadd.f32 %v4882, %v4950
    %v5015 = vadd.f32 %v4883, %v4951
    %v5016 = vadd.f32 %v4884, %v4952
    %v5017 = vadd.f32 %v4885, %v4953
    %v5018 = vadd.f32 %v4886, %v4954
    %v5019 = vadd.f32 %v4887, %v4955
    %v5020 = vadd.f32 %v4888, %v4956
    %v5021 = vadd.f32 %v4889, %v4957
    %v5022 = vadd.f32 %v4890, %v4958
    %v5023 = vadd.f32 %v4891, %v4959
    %v5024 = vadd.f32 %v4892, %v4960
    %v5025 = vadd.f32 %v4893, %v4961
    %v5026 = vadd.f32 %v4894, %v4962
    %v5027 = vadd.f32 %v4895, %v4963
    %v5028 = vadd.f32 %v4896, %v4964
    %v5029 = vadd.f32 %v4897, %v4965
    %v5030 = vadd.f32 %v4898, %v4966
    %v5031 = vadd.f32 %v4899, %v4967
    %v5032 = vadd.f32 %v4900, %v4968
    %v5033 = vadd.f32 %v4901, %v4969
    %v5034 = vadd.f32 %v4902, %v4970
    %v5035 = vadd.f32 %v4903, %v4971
    %v5036 = vadd.f32 %v4904, %v4972
    %v5037 = vadd.f32 %v4905, %v4973
    %v5038 = vadd.f32 %v4906, %v4974
    %v5039 = vadd.f32 %v4907, %v4975
    %v5040 = vadd.f32 %v4908, %v4976
    %v5041 = vadd.f32 %v4909, %v4977
    %v5042 = vadd.f32 %v4910, %v4978
    %v5043 = vadd.f32 %v4911, %v4979
    %v5044 = vadd.f32 %v4912, %v4980
    %v5045 = vadd.f32 %v4913, %v4981
    %v5046 = vadd.f32 %v4914, %v4982
    %v5047 = vadd.f32 %v4915, %v4983
    %v5048 = vadd.f32 %v4916, %v4984
    %v5049 = vadd.f32 %v4917, %v4985
    %v5050 = vadd.f32 %v4918, %v4986
    %v5051 = vadd.f32 %v4919, %v4987
    %v5052 = vadd.f32 %v4920, %v4988
    %v5053 = vadd.f32 %v4921, %v4989
    %v5054 = vadd.f32 %v4922, %v4990
    %v5055 = vadd.f32 %v4923, %v4991
    %v5056 = vadd.f32 %v4924, %v4992
    %v5057 = vadd.f32 %v4925, %v4993
    %v5058 = vadd.f32 %v4926, %v4994
    %v5059 = vadd.f32 %v4927, %v4995
    %v5060 = vadd.f32 %v4928, %v4996
    %v5061 = vadd.f32 %v4929, %v4997
    %v5062 = vadd.f32 %v4930, %v4998
    %v5063 = vadd.f32 %v4931, %v4999
    %v5064 = vadd.f32 %v4932, %v5000
    %v5065 = vadd.f32 %v4933, %v5001
    %v5066 = vadd.f32 %v4934, %v5002
    %v5067 = vadd.f32 %v4935, %v5003
    %v5068 = vrot.slane %v4548, 1
    %v5069 = vrot.slane %v4550, 1
    %v5070 = vrot.slane %v4552, 1
    %v5071 = vrot.slane %v4554, 1
    %v5072 = vrot.slane %v4556, 1
    %v5073 = vrot.slane %v4558, 1
    %v5074 = vrot.slane %v4560, 1
    %v5075 = vrot.slane %v4562, 1
    %v5076 = vrot.slane %v4564, 1
    %v5077 = vrot.slane %v4566, 1
    %v5078 = vrot.slane %v4568, 1
    %v5079 = vrot.slane %v4570, 1
    %v5080 = vrot.slane %v4572, 1
    %v5081 = vrot.slane %v4574, 1
    %v5082 = vrot.slane %v4576, 1
    %v5083 = vrot.slane %v4578, 1
    %v5084 = vrot.slane %v4580, 1
    %v5085 = vrot.slane %v4582, 1
    %v5086 = vrot.slane %v4584, 1
    %v5087 = vrot.slane %v4586, 1
    %v5088 = vrot.slane %v4588, 1
    %v5089 = vrot.slane %v4590, 1
    %v5090 = vrot.slane %v4592, 1
    %v5091 = vrot.slane %v4594, 1
    %v5092 = vrot.slane %v4596, 1
    %v5093 = vrot.slane %v4598, 1
    %v5094 = vrot.slane %v4600, 1
    %v5095 = vrot.slane %v4602, 1
    %v5096 = vrot.slane %v4604, 1
    %v5097 = vrot.slane %v4606, 1
    %v5098 = vrot.slane %v4608, 1
    %v5099 = vrot.slane %v4610, 1
    %v5100 = vrot.slane %v4549, 1
    %v5101 = vrot.slane %v4551, 1
    %v5102 = vrot.slane %v4553, 1
    %v5103 = vrot.slane %v4555, 1
    %v5104 = vrot.slane %v4557, 1
    %v5105 = vrot.slane %v4559, 1
    %v5106 = vrot.slane %v4561, 1
    %v5107 = vrot.slane %v4563, 1
    %v5108 = vrot.slane %v4565, 1
    %v5109 = vrot.slane %v4567, 1
    %v5110 = vrot.slane %v4569, 1
    %v5111 = vrot.slane %v4571, 1
    %v5112 = vrot.slane %v4573, 1
    %v5113 = vrot.slane %v4575, 1
    %v5114 = vrot.slane %v4577, 1
    %v5115 = vrot.slane %v4579, 1
    %v5116 = vrot.slane %v4581, 1
    %v5117 = vrot.slane %v4583, 1
    %v5118 = vrot.slane %v4585, 1
    %v5119 = vrot.slane %v4587, 1
    %v5120 = vrot.slane %v4589, 1
    %v5121 = vrot.slane %v4591, 1
    %v5122 = vrot.slane %v4593, 1
    %v5123 = vrot.slane %v4595, 1
    %v5124 = vrot.slane %v4597, 1
    %v5125 = vrot.slane %v4599, 1
    %v5126 = vrot.slane %v4601, 1
    %v5127 = vrot.slane %v4603, 1
    %v5128 = vrot.slane %v4605, 1
    %v5129 = vrot.slane %v4607, 1
    %v5130 = vrot.slane %v4609, 1
    %v5131 = vrot.slane %v4611, 1
    %v5132 = vsel %vm771, %v5068, %v5100
    %v5133 = vsel %vm771, %v5069, %v5101
    %v5134 = vsel %vm771, %v5070, %v5102
    %v5135 = vsel %vm771, %v5071, %v5103
    %v5136 = vsel %vm771, %v5072, %v5104
    %v5137 = vsel %vm771, %v5073, %v5105
    %v5138 = vsel %vm771, %v5074, %v5106
    %v5139 = vsel %vm771, %v5075, %v5107
    %v5140 = vsel %vm771, %v5076, %v5108
    %v5141 = vsel %vm771, %v5077, %v5109
    %v5142 = vsel %vm771, %v5078, %v5110
    %v5143 = vsel %vm771, %v5079, %v5111
    %v5144 = vsel %vm771, %v5080, %v5112
    %v5145 = vsel %vm771, %v5081, %v5113
    %v5146 = vsel %vm771, %v5082, %v5114
    %v5147 = vsel %vm771, %v5083, %v5115
    %v5148 = vsel %vm771, %v5084, %v5116
    %v5149 = vsel %vm771, %v5085, %v5117
    %v5150 = vsel %vm771, %v5086, %v5118
    %v5151 = vsel %vm771, %v5087, %v5119
    %v5152 = vsel %vm771, %v5088, %v5120
    %v5153 = vsel %vm771, %v5089, %v5121
    %v5154 = vsel %vm771, %v5090, %v5122
    %v5155 = vsel %vm771, %v5091, %v5123
    %v5156 = vsel %vm771, %v5092, %v5124
    %v5157 = vsel %vm771, %v5093, %v5125
    %v5158 = vsel %vm771, %v5094, %v5126
    %v5159 = vsel %vm771, %v5095, %v5127
    %v5160 = vsel %vm771, %v5096, %v5128
    %v5161 = vsel %vm771, %v5097, %v5129
    %v5162 = vsel %vm771, %v5098, %v5130
    %v5163 = vsel %vm771, %v5099, %v5131
    %v5164 = vsel %vm771, %v5100, %v5068
    %v5165 = vsel %vm771, %v5101, %v5069
    %v5166 = vsel %vm771, %v5102, %v5070
    %v5167 = vsel %vm771, %v5103, %v5071
    %v5168 = vsel %vm771, %v5104, %v5072
    %v5169 = vsel %vm771, %v5105, %v5073
    %v5170 = vsel %vm771, %v5106, %v5074
    %v5171 = vsel %vm771, %v5107, %v5075
    %v5172 = vsel %vm771, %v5108, %v5076
    %v5173 = vsel %vm771, %v5109, %v5077
    %v5174 = vsel %vm771, %v5110, %v5078
    %v5175 = vsel %vm771, %v5111, %v5079
    %v5176 = vsel %vm771, %v5112, %v5080
    %v5177 = vsel %vm771, %v5113, %v5081
    %v5178 = vsel %vm771, %v5114, %v5082
    %v5179 = vsel %vm771, %v5115, %v5083
    %v5180 = vsel %vm771, %v5116, %v5084
    %v5181 = vsel %vm771, %v5117, %v5085
    %v5182 = vsel %vm771, %v5118, %v5086
    %v5183 = vsel %vm771, %v5119, %v5087
    %v5184 = vsel %vm771, %v5120, %v5088
    %v5185 = vsel %vm771, %v5121, %v5089
    %v5186 = vsel %vm771, %v5122, %v5090
    %v5187 = vsel %vm771, %v5123, %v5091
    %v5188 = vsel %vm771, %v5124, %v5092
    %v5189 = vsel %vm771, %v5125, %v5093
    %v5190 = vsel %vm771, %v5126, %v5094
    %v5191 = vsel %vm771, %v5127, %v5095
    %v5192 = vsel %vm771, %v5128, %v5096
    %v5193 = vsel %vm771, %v5129, %v5097
    %v5194 = vsel %vm771, %v5130, %v5098
    %v5195 = vsel %vm771, %v5131, %v5099
    %v5196 = vsel %vm184, %v5132, 0.0
    %v5197 = vsel %vm185, %v5164, 0.0
    %v5198 = vsel %vm184, %v5133, 0.0
    %v5199 = vsel %vm185, %v5165, 0.0
    %v5200 = vsel %vm184, %v5134, 0.0
    %v5201 = vsel %vm185, %v5166, 0.0
    %v5202 = vsel %vm184, %v5135, 0.0
    %v5203 = vsel %vm185, %v5167, 0.0
    %v5204 = vsel %vm184, %v5136, 0.0
    %v5205 = vsel %vm185, %v5168, 0.0
    %v5206 = vsel %vm184, %v5137, 0.0
    %v5207 = vsel %vm185, %v5169, 0.0
    %v5208 = vsel %vm184, %v5138, 0.0
    %v5209 = vsel %vm185, %v5170, 0.0
    %v5210 = vsel %vm184, %v5139, 0.0
    %v5211 = vsel %vm185, %v5171, 0.0
    %v5212 = vsel %vm184, %v5140, 0.0
    %v5213 = vsel %vm185, %v5172, 0.0
    %v5214 = vsel %vm184, %v5141, 0.0
    %v5215 = vsel %vm185, %v5173, 0.0
    %v5216 = vsel %vm184, %v5142, 0.0
    %v5217 = vsel %vm185, %v5174, 0.0
    %v5218 = vsel %vm184, %v5143, 0.0
    %v5219 = vsel %vm185, %v5175, 0.0
    %v5220 = vsel %vm184, %v5144, 0.0
    %v5221 = vsel %vm185, %v5176, 0.0
    %v5222 = vsel %vm184, %v5145, 0.0
    %v5223 = vsel %vm185, %v5177, 0.0
    %v5224 = vsel %vm184, %v5146, 0.0
    %v5225 = vsel %vm185, %v5178, 0.0
    %v5226 = vsel %vm184, %v5147, 0.0
    %v5227 = vsel %vm185, %v5179, 0.0
    %v5228 = vsel %vm184, %v5148, 0.0
    %v5229 = vsel %vm185, %v5180, 0.0
    %v5230 = vsel %vm184, %v5149, 0.0
    %v5231 = vsel %vm185, %v5181, 0.0
    %v5232 = vsel %vm184, %v5150, 0.0
    %v5233 = vsel %vm185, %v5182, 0.0
    %v5234 = vsel %vm184, %v5151, 0.0
    %v5235 = vsel %vm185, %v5183, 0.0
    %v5236 = vsel %vm184, %v5152, 0.0
    %v5237 = vsel %vm185, %v5184, 0.0
    %v5238 = vsel %vm184, %v5153, 0.0
    %v5239 = vsel %vm185, %v5185, 0.0
    %v5240 = vsel %vm184, %v5154, 0.0
    %v5241 = vsel %vm185, %v5186, 0.0
    %v5242 = vsel %vm184, %v5155, 0.0
    %v5243 = vsel %vm185, %v5187, 0.0
    %v5244 = vsel %vm184, %v5156, 0.0
    %v5245 = vsel %vm185, %v5188, 0.0
    %v5246 = vsel %vm184, %v5157, 0.0
    %v5247 = vsel %vm185, %v5189, 0.0
    %v5248 = vsel %vm184, %v5158, 0.0
    %v5249 = vsel %vm185, %v5190, 0.0
    %v5250 = vsel %vm184, %v5159, 0.0
    %v5251 = vsel %vm185, %v5191, 0.0
    %v5252 = vsel %vm184, %v5160, 0.0
    %v5253 = vsel %vm185, %v5192, 0.0
    %v5254 = vsel %vm184, %v5161, 0.0
    %v5255 = vsel %vm185, %v5193, 0.0
    %v5256 = vsel %vm184, %v5162, 0.0
    %v5257 = vsel %vm185, %v5194, 0.0
    %v5258 = vsel %vm184, %v5163, 0.0
    %v5259 = vsel %vm185, %v5195, 0.0
    %v5260 = vlaneseq
    %v5261 = vshrl.u32 %v5260, 7
    %v5262 = vsub.s32 2, %v5261
    %v5263 = vrot.slane %v4471, %v5262
    %v5264 = vmul.f32 %v5196, %v5263
    %v5265 = vmul.f32 %v5197, %v5263
    %v5266 = vmul.f32 %v5198, %v5263
    %v5267 = vmul.f32 %v5199, %v5263
    %v5268 = vmul.f32 %v5200, %v5263
    %v5269 = vmul.f32 %v5201, %v5263
    %v5270 = vmul.f32 %v5202, %v5263
    %v5271 = vmul.f32 %v5203, %v5263
    %v5272 = vmul.f32 %v5204, %v5263
    %v5273 = vmul.f32 %v5205, %v5263
    %v5274 = vmul.f32 %v5206, %v5263
    %v5275 = vmul.f32 %v5207, %v5263
    %v5276 = vmul.f32 %v5208, %v5263
    %v5277 = vmul.f32 %v5209, %v5263
    %v5278 = vmul.f32 %v5210, %v5263
    %v5279 = vmul.f32 %v5211, %v5263
    %v5280 = vmul.f32 %v5212, %v5263
    %v5281 = vmul.f32 %v5213, %v5263
    %v5282 = vmul.f32 %v5214, %v5263
    %v5283 = vmul.f32 %v5215, %v5263
    %v5284 = vmul.f32 %v5216, %v5263
    %v5285 = vmul.f32 %v5217, %v5263
    %v5286 = vmul.f32 %v5218, %v5263
    %v5287 = vmul.f32 %v5219, %v5263
    %v5288 = vmul.f32 %v5220, %v5263
    %v5289 = vmul.f32 %v5221, %v5263
    %v5290 = vmul.f32 %v5222, %v5263
    %v5291 = vmul.f32 %v5223, %v5263
    %v5292 = vmul.f32 %v5224, %v5263
    %v5293 = vmul.f32 %v5225, %v5263
    %v5294 = vmul.f32 %v5226, %v5263
    %v5295 = vmul.f32 %v5227, %v5263
    %v5296 = vmul.f32 %v5228, %v5263
    %v5297 = vmul.f32 %v5229, %v5263
    %v5298 = vmul.f32 %v5230, %v5263
    %v5299 = vmul.f32 %v5231, %v5263
    %v5300 = vmul.f32 %v5232, %v5263
    %v5301 = vmul.f32 %v5233, %v5263
    %v5302 = vmul.f32 %v5234, %v5263
    %v5303 = vmul.f32 %v5235, %v5263
    %v5304 = vmul.f32 %v5236, %v5263
    %v5305 = vmul.f32 %v5237, %v5263
    %v5306 = vmul.f32 %v5238, %v5263
    %v5307 = vmul.f32 %v5239, %v5263
    %v5308 = vmul.f32 %v5240, %v5263
    %v5309 = vmul.f32 %v5241, %v5263
    %v5310 = vmul.f32 %v5242, %v5263
    %v5311 = vmul.f32 %v5243, %v5263
    %v5312 = vmul.f32 %v5244, %v5263
    %v5313 = vmul.f32 %v5245, %v5263
    %v5314 = vmul.f32 %v5246, %v5263
    %v5315 = vmul.f32 %v5247, %v5263
    %v5316 = vmul.f32 %v5248, %v5263
    %v5317 = vmul.f32 %v5249, %v5263
    %v5318 = vmul.f32 %v5250, %v5263
    %v5319 = vmul.f32 %v5251, %v5263
    %v5320 = vmul.f32 %v5252, %v5263
    %v5321 = vmul.f32 %v5253, %v5263
    %v5322 = vmul.f32 %v5254, %v5263
    %v5323 = vmul.f32 %v5255, %v5263
    %v5324 = vmul.f32 %v5256, %v5263
    %v5325 = vmul.f32 %v5257, %v5263
    %v5326 = vmul.f32 %v5258, %v5263
    %v5327 = vmul.f32 %v5259, %v5263
    %v5328 = vadd.f32 %v5004, %v5264
    %v5329 = vadd.f32 %v5005, %v5265
    %v5330 = vadd.f32 %v5006, %v5266
    %v5331 = vadd.f32 %v5007, %v5267
    %v5332 = vadd.f32 %v5008, %v5268
    %v5333 = vadd.f32 %v5009, %v5269
    %v5334 = vadd.f32 %v5010, %v5270
    %v5335 = vadd.f32 %v5011, %v5271
    %v5336 = vadd.f32 %v5012, %v5272
    %v5337 = vadd.f32 %v5013, %v5273
    %v5338 = vadd.f32 %v5014, %v5274
    %v5339 = vadd.f32 %v5015, %v5275
    %v5340 = vadd.f32 %v5016, %v5276
    %v5341 = vadd.f32 %v5017, %v5277
    %v5342 = vadd.f32 %v5018, %v5278
    %v5343 = vadd.f32 %v5019, %v5279
    %v5344 = vadd.f32 %v5020, %v5280
    %v5345 = vadd.f32 %v5021, %v5281
    %v5346 = vadd.f32 %v5022, %v5282
    %v5347 = vadd.f32 %v5023, %v5283
    %v5348 = vadd.f32 %v5024, %v5284
    %v5349 = vadd.f32 %v5025, %v5285
    %v5350 = vadd.f32 %v5026, %v5286
    %v5351 = vadd.f32 %v5027, %v5287
    %v5352 = vadd.f32 %v5028, %v5288
    %v5353 = vadd.f32 %v5029, %v5289
    %v5354 = vadd.f32 %v5030, %v5290
    %v5355 = vadd.f32 %v5031, %v5291
    %v5356 = vadd.f32 %v5032, %v5292
    %v5357 = vadd.f32 %v5033, %v5293
    %v5358 = vadd.f32 %v5034, %v5294
    %v5359 = vadd.f32 %v5035, %v5295
    %v5360 = vadd.f32 %v5036, %v5296
    %v5361 = vadd.f32 %v5037, %v5297
    %v5362 = vadd.f32 %v5038, %v5298
    %v5363 = vadd.f32 %v5039, %v5299
    %v5364 = vadd.f32 %v5040, %v5300
    %v5365 = vadd.f32 %v5041, %v5301
    %v5366 = vadd.f32 %v5042, %v5302
    %v5367 = vadd.f32 %v5043, %v5303
    %v5368 = vadd.f32 %v5044, %v5304
    %v5369 = vadd.f32 %v5045, %v5305
    %v5370 = vadd.f32 %v5046, %v5306
    %v5371 = vadd.f32 %v5047, %v5307
    %v5372 = vadd.f32 %v5048, %v5308
    %v5373 = vadd.f32 %v5049, %v5309
    %v5374 = vadd.f32 %v5050, %v5310
    %v5375 = vadd.f32 %v5051, %v5311
    %v5376 = vadd.f32 %v5052, %v5312
    %v5377 = vadd.f32 %v5053, %v5313
    %v5378 = vadd.f32 %v5054, %v5314
    %v5379 = vadd.f32 %v5055, %v5315
    %v5380 = vadd.f32 %v5056, %v5316
    %v5381 = vadd.f32 %v5057, %v5317
    %v5382 = vadd.f32 %v5058, %v5318
    %v5383 = vadd.f32 %v5059, %v5319
    %v5384 = vadd.f32 %v5060, %v5320
    %v5385 = vadd.f32 %v5061, %v5321
    %v5386 = vadd.f32 %v5062, %v5322
    %v5387 = vadd.f32 %v5063, %v5323
    %v5388 = vadd.f32 %v5064, %v5324
    %v5389 = vadd.f32 %v5065, %v5325
    %v5390 = vadd.f32 %v5066, %v5326
    %v5391 = vadd.f32 %v5067, %v5327
    %v5392 = vld [vmem:[%s4483] sm:$0xff]
    %v5393 = vld [vmem:[%s4483 + $0x8] sm:$0xff]
    %v5394 = vld [vmem:[%s4483 + $0x10] sm:$0xff]
    %v5395 = vld [vmem:[%s4483 + $0x18] sm:$0xff]
    %v5396 = vld [vmem:[%s4483 + $0x20] sm:$0xff]
    %v5397 = vld [vmem:[%s4483 + $0x28] sm:$0xff]
    %v5398 = vld [vmem:[%s4483 + $0x30] sm:$0xff]
    %v5399 = vld [vmem:[%s4483 + $0x38] sm:$0xff]
    %v5400 = vld [vmem:[%s4483 + $0x40] sm:$0xff]
    %v5401 = vld [vmem:[%s4483 + $0x48] sm:$0xff]
    %v5402 = vld [vmem:[%s4483 + $0x50] sm:$0xff]
    %v5403 = vld [vmem:[%s4483 + $0x58] sm:$0xff]
    %v5404 = vld [vmem:[%s4483 + $0x60] sm:$0xff]
    %v5405 = vld [vmem:[%s4483 + $0x68] sm:$0xff]
    %v5406 = vld [vmem:[%s4483 + $0x70] sm:$0xff]
    %v5407 = vld [vmem:[%s4483 + $0x78] sm:$0xff]
    %v5408 = vld [vmem:[%s4483 + $0x80] sm:$0xff]
    %v5409 = vld [vmem:[%s4483 + $0x88] sm:$0xff]
    %v5410 = vld [vmem:[%s4483 + $0x90] sm:$0xff]
    %v5411 = vld [vmem:[%s4483 + $0x98] sm:$0xff]
    %v5412 = vld [vmem:[%s4483 + $0xa0] sm:$0xff]
    %v5413 = vld [vmem:[%s4483 + $0xa8] sm:$0xff]
    %v5414 = vld [vmem:[%s4483 + $0xb0] sm:$0xff]
    %v5415 = vld [vmem:[%s4483 + $0xb8] sm:$0xff]
    %v5416 = vld [vmem:[%s4483 + $0xc0] sm:$0xff]
    %v5417 = vld [vmem:[%s4483 + $0xc8] sm:$0xff]
    %v5418 = vld [vmem:[%s4483 + $0xd0] sm:$0xff]
    %v5419 = vld [vmem:[%s4483 + $0xd8] sm:$0xff]
    %v5420 = vld [vmem:[%s4483 + $0xe0] sm:$0xff]
    %v5421 = vld [vmem:[%s4483 + $0xe8] sm:$0xff]
    %v5422 = vld [vmem:[%s4483 + $0xf0] sm:$0xff]
    %v5423 = vld [vmem:[%s4483 + $0xf8] sm:$0xff]
    %v5424 = vld [vmem:[%s4483 + $0x120] sm:$0xff]
    %v5425 = vld [vmem:[%s4483 + $0x128] sm:$0xff]
    %v5426 = vld [vmem:[%s4483 + $0x130] sm:$0xff]
    %v5427 = vld [vmem:[%s4483 + $0x138] sm:$0xff]
    %v5428 = vld [vmem:[%s4483 + $0x140] sm:$0xff]
    %v5429 = vld [vmem:[%s4483 + $0x148] sm:$0xff]
    %v5430 = vld [vmem:[%s4483 + $0x150] sm:$0xff]
    %v5431 = vld [vmem:[%s4483 + $0x158] sm:$0xff]
    %v5432 = vld [vmem:[%s4483 + $0x160] sm:$0xff]
    %v5433 = vld [vmem:[%s4483 + $0x168] sm:$0xff]
    %v5434 = vld [vmem:[%s4483 + $0x170] sm:$0xff]
    %v5435 = vld [vmem:[%s4483 + $0x178] sm:$0xff]
    %v5436 = vld [vmem:[%s4483 + $0x180] sm:$0xff]
    %v5437 = vld [vmem:[%s4483 + $0x188] sm:$0xff]
    %v5438 = vld [vmem:[%s4483 + $0x190] sm:$0xff]
    %v5439 = vld [vmem:[%s4483 + $0x198] sm:$0xff]
    %v5440 = vld [vmem:[%s4483 + $0x1a0] sm:$0xff]
    %v5441 = vld [vmem:[%s4483 + $0x1a8] sm:$0xff]
    %v5442 = vld [vmem:[%s4483 + $0x1b0] sm:$0xff]
    %v5443 = vld [vmem:[%s4483 + $0x1b8] sm:$0xff]
    %v5444 = vld [vmem:[%s4483 + $0x1c0] sm:$0xff]
    %v5445 = vld [vmem:[%s4483 + $0x1c8] sm:$0xff]
    %v5446 = vld [vmem:[%s4483 + $0x1d0] sm:$0xff]
    %v5447 = vld [vmem:[%s4483 + $0x1d8] sm:$0xff]
    %v5448 = vld [vmem:[%s4483 + $0x1e0] sm:$0xff]
    %v5449 = vld [vmem:[%s4483 + $0x1e8] sm:$0xff]
    %v5450 = vld [vmem:[%s4483 + $0x1f0] sm:$0xff]
    %v5451 = vld [vmem:[%s4483 + $0x1f8] sm:$0xff]
    %v5452 = vld [vmem:[%s4483 + $0x200] sm:$0xff]
    %v5453 = vld [vmem:[%s4483 + $0x208] sm:$0xff]
    %v5454 = vld [vmem:[%s4483 + $0x210] sm:$0xff]
    %v5455 = vld [vmem:[%s4483 + $0x218] sm:$0xff]
    %v5456 = vrot.slane %v5392, 7
    %v5457 = vrot.slane %v5394, 7
    %v5458 = vrot.slane %v5396, 7
    %v5459 = vrot.slane %v5398, 7
    %v5460 = vrot.slane %v5400, 7
    %v5461 = vrot.slane %v5402, 7
    %v5462 = vrot.slane %v5404, 7
    %v5463 = vrot.slane %v5406, 7
    %v5464 = vrot.slane %v5408, 7
    %v5465 = vrot.slane %v5410, 7
    %v5466 = vrot.slane %v5412, 7
    %v5467 = vrot.slane %v5414, 7
    %v5468 = vrot.slane %v5416, 7
    %v5469 = vrot.slane %v5418, 7
    %v5470 = vrot.slane %v5420, 7
    %v5471 = vrot.slane %v5422, 7
    %v5472 = vrot.slane %v5424, 7
    %v5473 = vrot.slane %v5426, 7
    %v5474 = vrot.slane %v5428, 7
    %v5475 = vrot.slane %v5430, 7
    %v5476 = vrot.slane %v5432, 7
    %v5477 = vrot.slane %v5434, 7
    %v5478 = vrot.slane %v5436, 7
    %v5479 = vrot.slane %v5438, 7
    %v5480 = vrot.slane %v5440, 7
    %v5481 = vrot.slane %v5442, 7
    %v5482 = vrot.slane %v5444, 7
    %v5483 = vrot.slane %v5446, 7
    %v5484 = vrot.slane %v5448, 7
    %v5485 = vrot.slane %v5450, 7
    %v5486 = vrot.slane %v5452, 7
    %v5487 = vrot.slane %v5454, 7
    %v5488 = vrot.slane %v5393, 7
    %v5489 = vrot.slane %v5395, 7
    %v5490 = vrot.slane %v5397, 7
    %v5491 = vrot.slane %v5399, 7
    %v5492 = vrot.slane %v5401, 7
    %v5493 = vrot.slane %v5403, 7
    %v5494 = vrot.slane %v5405, 7
    %v5495 = vrot.slane %v5407, 7
    %v5496 = vrot.slane %v5409, 7
    %v5497 = vrot.slane %v5411, 7
    %v5498 = vrot.slane %v5413, 7
    %v5499 = vrot.slane %v5415, 7
    %v5500 = vrot.slane %v5417, 7
    %v5501 = vrot.slane %v5419, 7
    %v5502 = vrot.slane %v5421, 7
    %v5503 = vrot.slane %v5423, 7
    %v5504 = vrot.slane %v5425, 7
    %v5505 = vrot.slane %v5427, 7
    %v5506 = vrot.slane %v5429, 7
    %v5507 = vrot.slane %v5431, 7
    %v5508 = vrot.slane %v5433, 7
    %v5509 = vrot.slane %v5435, 7
    %v5510 = vrot.slane %v5437, 7
    %v5511 = vrot.slane %v5439, 7
    %v5512 = vrot.slane %v5441, 7
    %v5513 = vrot.slane %v5443, 7
    %v5514 = vrot.slane %v5445, 7
    %v5515 = vrot.slane %v5447, 7
    %v5516 = vrot.slane %v5449, 7
    %v5517 = vrot.slane %v5451, 7
    %v5518 = vrot.slane %v5453, 7
    %v5519 = vrot.slane %v5455, 7
    %v5520 = vsel %vm314, %v5456, %v5488
    %v5521 = vsel %vm314, %v5457, %v5489
    %v5522 = vsel %vm314, %v5458, %v5490
    %v5523 = vsel %vm314, %v5459, %v5491
    %v5524 = vsel %vm314, %v5460, %v5492
    %v5525 = vsel %vm314, %v5461, %v5493
    %v5526 = vsel %vm314, %v5462, %v5494
    %v5527 = vsel %vm314, %v5463, %v5495
    %v5528 = vsel %vm314, %v5464, %v5496
    %v5529 = vsel %vm314, %v5465, %v5497
    %v5530 = vsel %vm314, %v5466, %v5498
    %v5531 = vsel %vm314, %v5467, %v5499
    %v5532 = vsel %vm314, %v5468, %v5500
    %v5533 = vsel %vm314, %v5469, %v5501
    %v5534 = vsel %vm314, %v5470, %v5502
    %v5535 = vsel %vm314, %v5471, %v5503
    %v5536 = vsel %vm314, %v5472, %v5504
    %v5537 = vsel %vm314, %v5473, %v5505
    %v5538 = vsel %vm314, %v5474, %v5506
    %v5539 = vsel %vm314, %v5475, %v5507
    %v5540 = vsel %vm314, %v5476, %v5508
    %v5541 = vsel %vm314, %v5477, %v5509
    %v5542 = vsel %vm314, %v5478, %v5510
    %v5543 = vsel %vm314, %v5479, %v5511
    %v5544 = vsel %vm314, %v5480, %v5512
    %v5545 = vsel %vm314, %v5481, %v5513
    %v5546 = vsel %vm314, %v5482, %v5514
    %v5547 = vsel %vm314, %v5483, %v5515
    %v5548 = vsel %vm314, %v5484, %v5516
    %v5549 = vsel %vm314, %v5485, %v5517
    %v5550 = vsel %vm314, %v5486, %v5518
    %v5551 = vsel %vm314, %v5487, %v5519
    %v5552 = vsel %vm314, %v5488, %v5456
    %v5553 = vsel %vm314, %v5489, %v5457
    %v5554 = vsel %vm314, %v5490, %v5458
    %v5555 = vsel %vm314, %v5491, %v5459
    %v5556 = vsel %vm314, %v5492, %v5460
    %v5557 = vsel %vm314, %v5493, %v5461
    %v5558 = vsel %vm314, %v5494, %v5462
    %v5559 = vsel %vm314, %v5495, %v5463
    %v5560 = vsel %vm314, %v5496, %v5464
    %v5561 = vsel %vm314, %v5497, %v5465
    %v5562 = vsel %vm314, %v5498, %v5466
    %v5563 = vsel %vm314, %v5499, %v5467
    %v5564 = vsel %vm314, %v5500, %v5468
    %v5565 = vsel %vm314, %v5501, %v5469
    %v5566 = vsel %vm314, %v5502, %v5470
    %v5567 = vsel %vm314, %v5503, %v5471
    %v5568 = vsel %vm314, %v5504, %v5472
    %v5569 = vsel %vm314, %v5505, %v5473
    %v5570 = vsel %vm314, %v5506, %v5474
    %v5571 = vsel %vm314, %v5507, %v5475
    %v5572 = vsel %vm314, %v5508, %v5476
    %v5573 = vsel %vm314, %v5509, %v5477
    %v5574 = vsel %vm314, %v5510, %v5478
    %v5575 = vsel %vm314, %v5511, %v5479
    %v5576 = vsel %vm314, %v5512, %v5480
    %v5577 = vsel %vm314, %v5513, %v5481
    %v5578 = vsel %vm314, %v5514, %v5482
    %v5579 = vsel %vm314, %v5515, %v5483
    %v5580 = vsel %vm314, %v5516, %v5484
    %v5581 = vsel %vm314, %v5517, %v5485
    %v5582 = vsel %vm314, %v5518, %v5486
    %v5583 = vsel %vm314, %v5519, %v5487
    %v5584 = vsel %vm182, %v5552, 0.0
    %v5585 = vsel %vm183, %v5520, 0.0
    %v5586 = vsel %vm182, %v5553, 0.0
    %v5587 = vsel %vm183, %v5521, 0.0
    %v5588 = vsel %vm182, %v5554, 0.0
    %v5589 = vsel %vm183, %v5522, 0.0
    %v5590 = vsel %vm182, %v5555, 0.0
    %v5591 = vsel %vm183, %v5523, 0.0
    %v5592 = vsel %vm182, %v5556, 0.0
    %v5593 = vsel %vm183, %v5524, 0.0
    %v5594 = vsel %vm182, %v5557, 0.0
    %v5595 = vsel %vm183, %v5525, 0.0
    %v5596 = vsel %vm182, %v5558, 0.0
    %v5597 = vsel %vm183, %v5526, 0.0
    %v5598 = vsel %vm182, %v5559, 0.0
    %v5599 = vsel %vm183, %v5527, 0.0
    %v5600 = vsel %vm182, %v5560, 0.0
    %v5601 = vsel %vm183, %v5528, 0.0
    %v5602 = vsel %vm182, %v5561, 0.0
    %v5603 = vsel %vm183, %v5529, 0.0
    %v5604 = vsel %vm182, %v5562, 0.0
    %v5605 = vsel %vm183, %v5530, 0.0
    %v5606 = vsel %vm182, %v5563, 0.0
    %v5607 = vsel %vm183, %v5531, 0.0
    %v5608 = vsel %vm182, %v5564, 0.0
    %v5609 = vsel %vm183, %v5532, 0.0
    %v5610 = vsel %vm182, %v5565, 0.0
    %v5611 = vsel %vm183, %v5533, 0.0
    %v5612 = vsel %vm182, %v5566, 0.0
    %v5613 = vsel %vm183, %v5534, 0.0
    %v5614 = vsel %vm182, %v5567, 0.0
    %v5615 = vsel %vm183, %v5535, 0.0
    %v5616 = vsel %vm182, %v5568, 0.0
    %v5617 = vsel %vm183, %v5536, 0.0
    %v5618 = vsel %vm182, %v5569, 0.0
    %v5619 = vsel %vm183, %v5537, 0.0
    %v5620 = vsel %vm182, %v5570, 0.0
    %v5621 = vsel %vm183, %v5538, 0.0
    %v5622 = vsel %vm182, %v5571, 0.0
    %v5623 = vsel %vm183, %v5539, 0.0
    %v5624 = vsel %vm182, %v5572, 0.0
    %v5625 = vsel %vm183, %v5540, 0.0
    %v5626 = vsel %vm182, %v5573, 0.0
    %v5627 = vsel %vm183, %v5541, 0.0
    %v5628 = vsel %vm182, %v5574, 0.0
    %v5629 = vsel %vm183, %v5542, 0.0
    %v5630 = vsel %vm182, %v5575, 0.0
    %v5631 = vsel %vm183, %v5543, 0.0
    %v5632 = vsel %vm182, %v5576, 0.0
    %v5633 = vsel %vm183, %v5544, 0.0
    %v5634 = vsel %vm182, %v5577, 0.0
    %v5635 = vsel %vm183, %v5545, 0.0
    %v5636 = vsel %vm182, %v5578, 0.0
    %v5637 = vsel %vm183, %v5546, 0.0
    %v5638 = vsel %vm182, %v5579, 0.0
    %v5639 = vsel %vm183, %v5547, 0.0
    %v5640 = vsel %vm182, %v5580, 0.0
    %v5641 = vsel %vm183, %v5548, 0.0
    %v5642 = vsel %vm182, %v5581, 0.0
    %v5643 = vsel %vm183, %v5549, 0.0
    %v5644 = vsel %vm182, %v5582, 0.0
    %v5645 = vsel %vm183, %v5550, 0.0
    %v5646 = vsel %vm182, %v5583, 0.0
    %v5647 = vsel %vm183, %v5551, 0.0
    %v5648 = vlaneseq
    %v5649 = vshrl.u32 %v5648, 7
    %v5650 = vsub.s32 3, %v5649
    %v5651 = vrot.slane %v4471, %v5650
    %v5652 = vmul.f32 %v5584, %v5651
    %v5653 = vmul.f32 %v5585, %v5651
    %v5654 = vmul.f32 %v5586, %v5651
    %v5655 = vmul.f32 %v5587, %v5651
    %v5656 = vmul.f32 %v5588, %v5651
    %v5657 = vmul.f32 %v5589, %v5651
    %v5658 = vmul.f32 %v5590, %v5651
    %v5659 = vmul.f32 %v5591, %v5651
    %v5660 = vmul.f32 %v5592, %v5651
    %v5661 = vmul.f32 %v5593, %v5651
    %v5662 = vmul.f32 %v5594, %v5651
    %v5663 = vmul.f32 %v5595, %v5651
    %v5664 = vmul.f32 %v5596, %v5651
    %v5665 = vmul.f32 %v5597, %v5651
    %v5666 = vmul.f32 %v5598, %v5651
    %v5667 = vmul.f32 %v5599, %v5651
    %v5668 = vmul.f32 %v5600, %v5651
    %v5669 = vmul.f32 %v5601, %v5651
    %v5670 = vmul.f32 %v5602, %v5651
    %v5671 = vmul.f32 %v5603, %v5651
    %v5672 = vmul.f32 %v5604, %v5651
    %v5673 = vmul.f32 %v5605, %v5651
    %v5674 = vmul.f32 %v5606, %v5651
    %v5675 = vmul.f32 %v5607, %v5651
    %v5676 = vmul.f32 %v5608, %v5651
    %v5677 = vmul.f32 %v5609, %v5651
    %v5678 = vmul.f32 %v5610, %v5651
    %v5679 = vmul.f32 %v5611, %v5651
    %v5680 = vmul.f32 %v5612, %v5651
    %v5681 = vmul.f32 %v5613, %v5651
    %v5682 = vmul.f32 %v5614, %v5651
    %v5683 = vmul.f32 %v5615, %v5651
    %v5684 = vmul.f32 %v5616, %v5651
    %v5685 = vmul.f32 %v5617, %v5651
    %v5686 = vmul.f32 %v5618, %v5651
    %v5687 = vmul.f32 %v5619, %v5651
    %v5688 = vmul.f32 %v5620, %v5651
    %v5689 = vmul.f32 %v5621, %v5651
    %v5690 = vmul.f32 %v5622, %v5651
    %v5691 = vmul.f32 %v5623, %v5651
    %v5692 = vmul.f32 %v5624, %v5651
    %v5693 = vmul.f32 %v5625, %v5651
    %v5694 = vmul.f32 %v5626, %v5651
    %v5695 = vmul.f32 %v5627, %v5651
    %v5696 = vmul.f32 %v5628, %v5651
    %v5697 = vmul.f32 %v5629, %v5651
    %v5698 = vmul.f32 %v5630, %v5651
    %v5699 = vmul.f32 %v5631, %v5651
    %v5700 = vmul.f32 %v5632, %v5651
    %v5701 = vmul.f32 %v5633, %v5651
    %v5702 = vmul.f32 %v5634, %v5651
    %v5703 = vmul.f32 %v5635, %v5651
    %v5704 = vmul.f32 %v5636, %v5651
    %v5705 = vmul.f32 %v5637, %v5651
    %v5706 = vmul.f32 %v5638, %v5651
    %v5707 = vmul.f32 %v5639, %v5651
    %v5708 = vmul.f32 %v5640, %v5651
    %v5709 = vmul.f32 %v5641, %v5651
    %v5710 = vmul.f32 %v5642, %v5651
    %v5711 = vmul.f32 %v5643, %v5651
    %v5712 = vmul.f32 %v5644, %v5651
    %v5713 = vmul.f32 %v5645, %v5651
    %v5714 = vmul.f32 %v5646, %v5651
    %v5715 = vmul.f32 %v5647, %v5651
    %v5716 = vadd.f32 %v5328, %v5652
    %v5717 = vadd.f32 %v5329, %v5653
    %v5718 = vadd.f32 %v5330, %v5654
    %v5719 = vadd.f32 %v5331, %v5655
    %v5720 = vadd.f32 %v5332, %v5656
    %v5721 = vadd.f32 %v5333, %v5657
    %v5722 = vadd.f32 %v5334, %v5658
    %v5723 = vadd.f32 %v5335, %v5659
    %v5724 = vadd.f32 %v5336, %v5660
    %v5725 = vadd.f32 %v5337, %v5661
    %v5726 = vadd.f32 %v5338, %v5662
    %v5727 = vadd.f32 %v5339, %v5663
    %v5728 = vadd.f32 %v5340, %v5664
    %v5729 = vadd.f32 %v5341, %v5665
    %v5730 = vadd.f32 %v5342, %v5666
    %v5731 = vadd.f32 %v5343, %v5667
    %v5732 = vadd.f32 %v5344, %v5668
    %v5733 = vadd.f32 %v5345, %v5669
    %v5734 = vadd.f32 %v5346, %v5670
    %v5735 = vadd.f32 %v5347, %v5671
    %v5736 = vadd.f32 %v5348, %v5672
    %v5737 = vadd.f32 %v5349, %v5673
    %v5738 = vadd.f32 %v5350, %v5674
    %v5739 = vadd.f32 %v5351, %v5675
    %v5740 = vadd.f32 %v5352, %v5676
    %v5741 = vadd.f32 %v5353, %v5677
    %v5742 = vadd.f32 %v5354, %v5678
    %v5743 = vadd.f32 %v5355, %v5679
    %v5744 = vadd.f32 %v5356, %v5680
    %v5745 = vadd.f32 %v5357, %v5681
    %v5746 = vadd.f32 %v5358, %v5682
    %v5747 = vadd.f32 %v5359, %v5683
    %v5748 = vadd.f32 %v5360, %v5684
    %v5749 = vadd.f32 %v5361, %v5685
    %v5750 = vadd.f32 %v5362, %v5686
    %v5751 = vadd.f32 %v5363, %v5687
    %v5752 = vadd.f32 %v5364, %v5688
    %v5753 = vadd.f32 %v5365, %v5689
    %v5754 = vadd.f32 %v5366, %v5690
    %v5755 = vadd.f32 %v5367, %v5691
    %v5756 = vadd.f32 %v5368, %v5692
    %v5757 = vadd.f32 %v5369, %v5693
    %v5758 = vadd.f32 %v5370, %v5694
    %v5759 = vadd.f32 %v5371, %v5695
    %v5760 = vadd.f32 %v5372, %v5696
    %v5761 = vadd.f32 %v5373, %v5697
    %v5762 = vadd.f32 %v5374, %v5698
    %v5763 = vadd.f32 %v5375, %v5699
    %v5764 = vadd.f32 %v5376, %v5700
    %v5765 = vadd.f32 %v5377, %v5701
    %v5766 = vadd.f32 %v5378, %v5702
    %v5767 = vadd.f32 %v5379, %v5703
    %v5768 = vadd.f32 %v5380, %v5704
    %v5769 = vadd.f32 %v5381, %v5705
    %v5770 = vadd.f32 %v5382, %v5706
    %v5771 = vadd.f32 %v5383, %v5707
    %v5772 = vadd.f32 %v5384, %v5708
    %v5773 = vadd.f32 %v5385, %v5709
    %v5774 = vadd.f32 %v5386, %v5710
    %v5775 = vadd.f32 %v5387, %v5711
    %v5776 = vadd.f32 %v5388, %v5712
    %v5777 = vadd.f32 %v5389, %v5713
    %v5778 = vadd.f32 %v5390, %v5714
    %v5779 = vadd.f32 %v5391, %v5715
    %v5780 = vlaneseq
    %v5781 = vshrl.u32 %v5780, 7
    %v5782 = vsub.s32 4, %v5781
    %v5783 = vrot.slane %v4471, %v5782
    %v5784 = vmul.f32 %v5392, %v5783
    %v5785 = vmul.f32 %v5393, %v5783
    %v5786 = vmul.f32 %v5394, %v5783
    %v5787 = vmul.f32 %v5395, %v5783
    %v5788 = vmul.f32 %v5396, %v5783
    %v5789 = vmul.f32 %v5397, %v5783
    %v5790 = vmul.f32 %v5398, %v5783
    %v5791 = vmul.f32 %v5399, %v5783
    %v5792 = vmul.f32 %v5400, %v5783
    %v5793 = vmul.f32 %v5401, %v5783
    %v5794 = vmul.f32 %v5402, %v5783
    %v5795 = vmul.f32 %v5403, %v5783
    %v5796 = vmul.f32 %v5404, %v5783
    %v5797 = vmul.f32 %v5405, %v5783
    %v5798 = vmul.f32 %v5406, %v5783
    %v5799 = vmul.f32 %v5407, %v5783
    %v5800 = vmul.f32 %v5408, %v5783
    %v5801 = vmul.f32 %v5409, %v5783
    %v5802 = vmul.f32 %v5410, %v5783
    %v5803 = vmul.f32 %v5411, %v5783
    %v5804 = vmul.f32 %v5412, %v5783
    %v5805 = vmul.f32 %v5413, %v5783
    %v5806 = vmul.f32 %v5414, %v5783
    %v5807 = vmul.f32 %v5415, %v5783
    %v5808 = vmul.f32 %v5416, %v5783
    %v5809 = vmul.f32 %v5417, %v5783
    %v5810 = vmul.f32 %v5418, %v5783
    %v5811 = vmul.f32 %v5419, %v5783
    %v5812 = vmul.f32 %v5420, %v5783
    %v5813 = vmul.f32 %v5421, %v5783
    %v5814 = vmul.f32 %v5422, %v5783
    %v5815 = vmul.f32 %v5423, %v5783
    %v5816 = vmul.f32 %v5424, %v5783
    %v5817 = vmul.f32 %v5425, %v5783
    %v5818 = vmul.f32 %v5426, %v5783
    %v5819 = vmul.f32 %v5427, %v5783
    %v5820 = vmul.f32 %v5428, %v5783
    %v5821 = vmul.f32 %v5429, %v5783
    %v5822 = vmul.f32 %v5430, %v5783
    %v5823 = vmul.f32 %v5431, %v5783
    %v5824 = vmul.f32 %v5432, %v5783
    %v5825 = vmul.f32 %v5433, %v5783
    %v5826 = vmul.f32 %v5434, %v5783
    %v5827 = vmul.f32 %v5435, %v5783
    %v5828 = vmul.f32 %v5436, %v5783
    %v5829 = vmul.f32 %v5437, %v5783
    %v5830 = vmul.f32 %v5438, %v5783
    %v5831 = vmul.f32 %v5439, %v5783
    %v5832 = vmul.f32 %v5440, %v5783
    %v5833 = vmul.f32 %v5441, %v5783
    %v5834 = vmul.f32 %v5442, %v5783
    %v5835 = vmul.f32 %v5443, %v5783
    %v5836 = vmul.f32 %v5444, %v5783
    %v5837 = vmul.f32 %v5445, %v5783
    %v5838 = vmul.f32 %v5446, %v5783
    %v5839 = vmul.f32 %v5447, %v5783
    %v5840 = vmul.f32 %v5448, %v5783
    %v5841 = vmul.f32 %v5449, %v5783
    %v5842 = vmul.f32 %v5450, %v5783
    %v5843 = vmul.f32 %v5451, %v5783
    %v5844 = vmul.f32 %v5452, %v5783
    %v5845 = vmul.f32 %v5453, %v5783
    %v5846 = vmul.f32 %v5454, %v5783
    %v5847 = vmul.f32 %v5455, %v5783
    %v5848 = vadd.f32 %v5716, %v5784
    %v5849 = vadd.f32 %v5717, %v5785
    %v5850 = vadd.f32 %v5718, %v5786
    %v5851 = vadd.f32 %v5719, %v5787
    %v5852 = vadd.f32 %v5720, %v5788
    %v5853 = vadd.f32 %v5721, %v5789
    %v5854 = vadd.f32 %v5722, %v5790
    %v5855 = vadd.f32 %v5723, %v5791
    %v5856 = vadd.f32 %v5724, %v5792
    %v5857 = vadd.f32 %v5725, %v5793
    %v5858 = vadd.f32 %v5726, %v5794
    %v5859 = vadd.f32 %v5727, %v5795
    %v5860 = vadd.f32 %v5728, %v5796
    %v5861 = vadd.f32 %v5729, %v5797
    %v5862 = vadd.f32 %v5730, %v5798
    %v5863 = vadd.f32 %v5731, %v5799
    %v5864 = vadd.f32 %v5732, %v5800
    %v5865 = vadd.f32 %v5733, %v5801
    %v5866 = vadd.f32 %v5734, %v5802
    %v5867 = vadd.f32 %v5735, %v5803
    %v5868 = vadd.f32 %v5736, %v5804
    %v5869 = vadd.f32 %v5737, %v5805
    %v5870 = vadd.f32 %v5738, %v5806
    %v5871 = vadd.f32 %v5739, %v5807
    %v5872 = vadd.f32 %v5740, %v5808
    %v5873 = vadd.f32 %v5741, %v5809
    %v5874 = vadd.f32 %v5742, %v5810
    %v5875 = vadd.f32 %v5743, %v5811
    %v5876 = vadd.f32 %v5744, %v5812
    %v5877 = vadd.f32 %v5745, %v5813
    %v5878 = vadd.f32 %v5746, %v5814
    %v5879 = vadd.f32 %v5747, %v5815
    %v5880 = vadd.f32 %v5748, %v5816
    %v5881 = vadd.f32 %v5749, %v5817
    %v5882 = vadd.f32 %v5750, %v5818
    %v5883 = vadd.f32 %v5751, %v5819
    %v5884 = vadd.f32 %v5752, %v5820
    %v5885 = vadd.f32 %v5753, %v5821
    %v5886 = vadd.f32 %v5754, %v5822
    %v5887 = vadd.f32 %v5755, %v5823
    %v5888 = vadd.f32 %v5756, %v5824
    %v5889 = vadd.f32 %v5757, %v5825
    %v5890 = vadd.f32 %v5758, %v5826
    %v5891 = vadd.f32 %v5759, %v5827
    %v5892 = vadd.f32 %v5760, %v5828
    %v5893 = vadd.f32 %v5761, %v5829
    %v5894 = vadd.f32 %v5762, %v5830
    %v5895 = vadd.f32 %v5763, %v5831
    %v5896 = vadd.f32 %v5764, %v5832
    %v5897 = vadd.f32 %v5765, %v5833
    %v5898 = vadd.f32 %v5766, %v5834
    %v5899 = vadd.f32 %v5767, %v5835
    %v5900 = vadd.f32 %v5768, %v5836
    %v5901 = vadd.f32 %v5769, %v5837
    %v5902 = vadd.f32 %v5770, %v5838
    %v5903 = vadd.f32 %v5771, %v5839
    %v5904 = vadd.f32 %v5772, %v5840
    %v5905 = vadd.f32 %v5773, %v5841
    %v5906 = vadd.f32 %v5774, %v5842
    %v5907 = vadd.f32 %v5775, %v5843
    %v5908 = vadd.f32 %v5776, %v5844
    %v5909 = vadd.f32 %v5777, %v5845
    %v5910 = vadd.f32 %v5778, %v5846
    %v5911 = vadd.f32 %v5779, %v5847
    %v5912 = vrot.slane %v5392, 1
    %v5913 = vrot.slane %v5394, 1
    %v5914 = vrot.slane %v5396, 1
    %v5915 = vrot.slane %v5398, 1
    %v5916 = vrot.slane %v5400, 1
    %v5917 = vrot.slane %v5402, 1
    %v5918 = vrot.slane %v5404, 1
    %v5919 = vrot.slane %v5406, 1
    %v5920 = vrot.slane %v5408, 1
    %v5921 = vrot.slane %v5410, 1
    %v5922 = vrot.slane %v5412, 1
    %v5923 = vrot.slane %v5414, 1
    %v5924 = vrot.slane %v5416, 1
    %v5925 = vrot.slane %v5418, 1
    %v5926 = vrot.slane %v5420, 1
    %v5927 = vrot.slane %v5422, 1
    %v5928 = vrot.slane %v5424, 1
    %v5929 = vrot.slane %v5426, 1
    %v5930 = vrot.slane %v5428, 1
    %v5931 = vrot.slane %v5430, 1
    %v5932 = vrot.slane %v5432, 1
    %v5933 = vrot.slane %v5434, 1
    %v5934 = vrot.slane %v5436, 1
    %v5935 = vrot.slane %v5438, 1
    %v5936 = vrot.slane %v5440, 1
    %v5937 = vrot.slane %v5442, 1
    %v5938 = vrot.slane %v5444, 1
    %v5939 = vrot.slane %v5446, 1
    %v5940 = vrot.slane %v5448, 1
    %v5941 = vrot.slane %v5450, 1
    %v5942 = vrot.slane %v5452, 1
    %v5943 = vrot.slane %v5454, 1
    %v5944 = vrot.slane %v5393, 1
    %v5945 = vrot.slane %v5395, 1
    %v5946 = vrot.slane %v5397, 1
    %v5947 = vrot.slane %v5399, 1
    %v5948 = vrot.slane %v5401, 1
    %v5949 = vrot.slane %v5403, 1
    %v5950 = vrot.slane %v5405, 1
    %v5951 = vrot.slane %v5407, 1
    %v5952 = vrot.slane %v5409, 1
    %v5953 = vrot.slane %v5411, 1
    %v5954 = vrot.slane %v5413, 1
    %v5955 = vrot.slane %v5415, 1
    %v5956 = vrot.slane %v5417, 1
    %v5957 = vrot.slane %v5419, 1
    %v5958 = vrot.slane %v5421, 1
    %v5959 = vrot.slane %v5423, 1
    %v5960 = vrot.slane %v5425, 1
    %v5961 = vrot.slane %v5427, 1
    %v5962 = vrot.slane %v5429, 1
    %v5963 = vrot.slane %v5431, 1
    %v5964 = vrot.slane %v5433, 1
    %v5965 = vrot.slane %v5435, 1
    %v5966 = vrot.slane %v5437, 1
    %v5967 = vrot.slane %v5439, 1
    %v5968 = vrot.slane %v5441, 1
    %v5969 = vrot.slane %v5443, 1
    %v5970 = vrot.slane %v5445, 1
    %v5971 = vrot.slane %v5447, 1
    %v5972 = vrot.slane %v5449, 1
    %v5973 = vrot.slane %v5451, 1
    %v5974 = vrot.slane %v5453, 1
    %v5975 = vrot.slane %v5455, 1
    %v5976 = vsel %vm771, %v5912, %v5944
    %v5977 = vsel %vm771, %v5913, %v5945
    %v5978 = vsel %vm771, %v5914, %v5946
    %v5979 = vsel %vm771, %v5915, %v5947
    %v5980 = vsel %vm771, %v5916, %v5948
    %v5981 = vsel %vm771, %v5917, %v5949
    %v5982 = vsel %vm771, %v5918, %v5950
    %v5983 = vsel %vm771, %v5919, %v5951
    %v5984 = vsel %vm771, %v5920, %v5952
    %v5985 = vsel %vm771, %v5921, %v5953
    %v5986 = vsel %vm771, %v5922, %v5954
    %v5987 = vsel %vm771, %v5923, %v5955
    %v5988 = vsel %vm771, %v5924, %v5956
    %v5989 = vsel %vm771, %v5925, %v5957
    %v5990 = vsel %vm771, %v5926, %v5958
    %v5991 = vsel %vm771, %v5927, %v5959
    %v5992 = vsel %vm771, %v5928, %v5960
    %v5993 = vsel %vm771, %v5929, %v5961
    %v5994 = vsel %vm771, %v5930, %v5962
    %v5995 = vsel %vm771, %v5931, %v5963
    %v5996 = vsel %vm771, %v5932, %v5964
    %v5997 = vsel %vm771, %v5933, %v5965
    %v5998 = vsel %vm771, %v5934, %v5966
    %v5999 = vsel %vm771, %v5935, %v5967
    %v6000 = vsel %vm771, %v5936, %v5968
    %v6001 = vsel %vm771, %v5937, %v5969
    %v6002 = vsel %vm771, %v5938, %v5970
    %v6003 = vsel %vm771, %v5939, %v5971
    %v6004 = vsel %vm771, %v5940, %v5972
    %v6005 = vsel %vm771, %v5941, %v5973
    %v6006 = vsel %vm771, %v5942, %v5974
    %v6007 = vsel %vm771, %v5943, %v5975
    %v6008 = vsel %vm771, %v5944, %v5912
    %v6009 = vsel %vm771, %v5945, %v5913
    %v6010 = vsel %vm771, %v5946, %v5914
    %v6011 = vsel %vm771, %v5947, %v5915
    %v6012 = vsel %vm771, %v5948, %v5916
    %v6013 = vsel %vm771, %v5949, %v5917
    %v6014 = vsel %vm771, %v5950, %v5918
    %v6015 = vsel %vm771, %v5951, %v5919
    %v6016 = vsel %vm771, %v5952, %v5920
    %v6017 = vsel %vm771, %v5953, %v5921
    %v6018 = vsel %vm771, %v5954, %v5922
    %v6019 = vsel %vm771, %v5955, %v5923
    %v6020 = vsel %vm771, %v5956, %v5924
    %v6021 = vsel %vm771, %v5957, %v5925
    %v6022 = vsel %vm771, %v5958, %v5926
    %v6023 = vsel %vm771, %v5959, %v5927
    %v6024 = vsel %vm771, %v5960, %v5928
    %v6025 = vsel %vm771, %v5961, %v5929
    %v6026 = vsel %vm771, %v5962, %v5930
    %v6027 = vsel %vm771, %v5963, %v5931
    %v6028 = vsel %vm771, %v5964, %v5932
    %v6029 = vsel %vm771, %v5965, %v5933
    %v6030 = vsel %vm771, %v5966, %v5934
    %v6031 = vsel %vm771, %v5967, %v5935
    %v6032 = vsel %vm771, %v5968, %v5936
    %v6033 = vsel %vm771, %v5969, %v5937
    %v6034 = vsel %vm771, %v5970, %v5938
    %v6035 = vsel %vm771, %v5971, %v5939
    %v6036 = vsel %vm771, %v5972, %v5940
    %v6037 = vsel %vm771, %v5973, %v5941
    %v6038 = vsel %vm771, %v5974, %v5942
    %v6039 = vsel %vm771, %v5975, %v5943
    %v6040 = vsel %vm184, %v5976, 0.0
    %v6041 = vsel %vm185, %v6008, 0.0
    %v6042 = vsel %vm184, %v5977, 0.0
    %v6043 = vsel %vm185, %v6009, 0.0
    %v6044 = vsel %vm184, %v5978, 0.0
    %v6045 = vsel %vm185, %v6010, 0.0
    %v6046 = vsel %vm184, %v5979, 0.0
    %v6047 = vsel %vm185, %v6011, 0.0
    %v6048 = vsel %vm184, %v5980, 0.0
    %v6049 = vsel %vm185, %v6012, 0.0
    %v6050 = vsel %vm184, %v5981, 0.0
    %v6051 = vsel %vm185, %v6013, 0.0
    %v6052 = vsel %vm184, %v5982, 0.0
    %v6053 = vsel %vm185, %v6014, 0.0
    %v6054 = vsel %vm184, %v5983, 0.0
    %v6055 = vsel %vm185, %v6015, 0.0
    %v6056 = vsel %vm184, %v5984, 0.0
    %v6057 = vsel %vm185, %v6016, 0.0
    %v6058 = vsel %vm184, %v5985, 0.0
    %v6059 = vsel %vm185, %v6017, 0.0
    %v6060 = vsel %vm184, %v5986, 0.0
    %v6061 = vsel %vm185, %v6018, 0.0
    %v6062 = vsel %vm184, %v5987, 0.0
    %v6063 = vsel %vm185, %v6019, 0.0
    %v6064 = vsel %vm184, %v5988, 0.0
    %v6065 = vsel %vm185, %v6020, 0.0
    %v6066 = vsel %vm184, %v5989, 0.0
    %v6067 = vsel %vm185, %v6021, 0.0
    %v6068 = vsel %vm184, %v5990, 0.0
    %v6069 = vsel %vm185, %v6022, 0.0
    %v6070 = vsel %vm184, %v5991, 0.0
    %v6071 = vsel %vm185, %v6023, 0.0
    %v6072 = vsel %vm184, %v5992, 0.0
    %v6073 = vsel %vm185, %v6024, 0.0
    %v6074 = vsel %vm184, %v5993, 0.0
    %v6075 = vsel %vm185, %v6025, 0.0
    %v6076 = vsel %vm184, %v5994, 0.0
    %v6077 = vsel %vm185, %v6026, 0.0
    %v6078 = vsel %vm184, %v5995, 0.0
    %v6079 = vsel %vm185, %v6027, 0.0
    %v6080 = vsel %vm184, %v5996, 0.0
    %v6081 = vsel %vm185, %v6028, 0.0
    %v6082 = vsel %vm184, %v5997, 0.0
    %v6083 = vsel %vm185, %v6029, 0.0
    %v6084 = vsel %vm184, %v5998, 0.0
    %v6085 = vsel %vm185, %v6030, 0.0
    %v6086 = vsel %vm184, %v5999, 0.0
    %v6087 = vsel %vm185, %v6031, 0.0
    %v6088 = vsel %vm184, %v6000, 0.0
    %v6089 = vsel %vm185, %v6032, 0.0
    %v6090 = vsel %vm184, %v6001, 0.0
    %v6091 = vsel %vm185, %v6033, 0.0
    %v6092 = vsel %vm184, %v6002, 0.0
    %v6093 = vsel %vm185, %v6034, 0.0
    %v6094 = vsel %vm184, %v6003, 0.0
    %v6095 = vsel %vm185, %v6035, 0.0
    %v6096 = vsel %vm184, %v6004, 0.0
    %v6097 = vsel %vm185, %v6036, 0.0
    %v6098 = vsel %vm184, %v6005, 0.0
    %v6099 = vsel %vm185, %v6037, 0.0
    %v6100 = vsel %vm184, %v6006, 0.0
    %v6101 = vsel %vm185, %v6038, 0.0
    %v6102 = vsel %vm184, %v6007, 0.0
    %v6103 = vsel %vm185, %v6039, 0.0
    %v6104 = vlaneseq
    %v6105 = vshrl.u32 %v6104, 7
    %v6106 = vsub.s32 5, %v6105
    %v6107 = vrot.slane %v4471, %v6106
    %v6108 = vmul.f32 %v6040, %v6107
    %v6109 = vmul.f32 %v6041, %v6107
    %v6110 = vmul.f32 %v6042, %v6107
    %v6111 = vmul.f32 %v6043, %v6107
    %v6112 = vmul.f32 %v6044, %v6107
    %v6113 = vmul.f32 %v6045, %v6107
    %v6114 = vmul.f32 %v6046, %v6107
    %v6115 = vmul.f32 %v6047, %v6107
    %v6116 = vmul.f32 %v6048, %v6107
    %v6117 = vmul.f32 %v6049, %v6107
    %v6118 = vmul.f32 %v6050, %v6107
    %v6119 = vmul.f32 %v6051, %v6107
    %v6120 = vmul.f32 %v6052, %v6107
    %v6121 = vmul.f32 %v6053, %v6107
    %v6122 = vmul.f32 %v6054, %v6107
    %v6123 = vmul.f32 %v6055, %v6107
    %v6124 = vmul.f32 %v6056, %v6107
    %v6125 = vmul.f32 %v6057, %v6107
    %v6126 = vmul.f32 %v6058, %v6107
    %v6127 = vmul.f32 %v6059, %v6107
    %v6128 = vmul.f32 %v6060, %v6107
    %v6129 = vmul.f32 %v6061, %v6107
    %v6130 = vmul.f32 %v6062, %v6107
    %v6131 = vmul.f32 %v6063, %v6107
    %v6132 = vmul.f32 %v6064, %v6107
    %v6133 = vmul.f32 %v6065, %v6107
    %v6134 = vmul.f32 %v6066, %v6107
    %v6135 = vmul.f32 %v6067, %v6107
    %v6136 = vmul.f32 %v6068, %v6107
    %v6137 = vmul.f32 %v6069, %v6107
    %v6138 = vmul.f32 %v6070, %v6107
    %v6139 = vmul.f32 %v6071, %v6107
    %v6140 = vmul.f32 %v6072, %v6107
    %v6141 = vmul.f32 %v6073, %v6107
    %v6142 = vmul.f32 %v6074, %v6107
    %v6143 = vmul.f32 %v6075, %v6107
    %v6144 = vmul.f32 %v6076, %v6107
    %v6145 = vmul.f32 %v6077, %v6107
    %v6146 = vmul.f32 %v6078, %v6107
    %v6147 = vmul.f32 %v6079, %v6107
    %v6148 = vmul.f32 %v6080, %v6107
    %v6149 = vmul.f32 %v6081, %v6107
    %v6150 = vmul.f32 %v6082, %v6107
    %v6151 = vmul.f32 %v6083, %v6107
    %v6152 = vmul.f32 %v6084, %v6107
    %v6153 = vmul.f32 %v6085, %v6107
    %v6154 = vmul.f32 %v6086, %v6107
    %v6155 = vmul.f32 %v6087, %v6107
    %v6156 = vmul.f32 %v6088, %v6107
    %v6157 = vmul.f32 %v6089, %v6107
    %v6158 = vmul.f32 %v6090, %v6107
    %v6159 = vmul.f32 %v6091, %v6107
    %v6160 = vmul.f32 %v6092, %v6107
    %v6161 = vmul.f32 %v6093, %v6107
    %v6162 = vmul.f32 %v6094, %v6107
    %v6163 = vmul.f32 %v6095, %v6107
    %v6164 = vmul.f32 %v6096, %v6107
    %v6165 = vmul.f32 %v6097, %v6107
    %v6166 = vmul.f32 %v6098, %v6107
    %v6167 = vmul.f32 %v6099, %v6107
    %v6168 = vmul.f32 %v6100, %v6107
    %v6169 = vmul.f32 %v6101, %v6107
    %v6170 = vmul.f32 %v6102, %v6107
    %v6171 = vmul.f32 %v6103, %v6107
    %v6172 = vadd.f32 %v5848, %v6108
    %v6173 = vadd.f32 %v5849, %v6109
    %v6174 = vadd.f32 %v5850, %v6110
    %v6175 = vadd.f32 %v5851, %v6111
    %v6176 = vadd.f32 %v5852, %v6112
    %v6177 = vadd.f32 %v5853, %v6113
    %v6178 = vadd.f32 %v5854, %v6114
    %v6179 = vadd.f32 %v5855, %v6115
    %v6180 = vadd.f32 %v5856, %v6116
    %v6181 = vadd.f32 %v5857, %v6117
    %v6182 = vadd.f32 %v5858, %v6118
    %v6183 = vadd.f32 %v5859, %v6119
    %v6184 = vadd.f32 %v5860, %v6120
    %v6185 = vadd.f32 %v5861, %v6121
    %v6186 = vadd.f32 %v5862, %v6122
    %v6187 = vadd.f32 %v5863, %v6123
    %v6188 = vadd.f32 %v5864, %v6124
    %v6189 = vadd.f32 %v5865, %v6125
    %v6190 = vadd.f32 %v5866, %v6126
    %v6191 = vadd.f32 %v5867, %v6127
    %v6192 = vadd.f32 %v5868, %v6128
    %v6193 = vadd.f32 %v5869, %v6129
    %v6194 = vadd.f32 %v5870, %v6130
    %v6195 = vadd.f32 %v5871, %v6131
    %v6196 = vadd.f32 %v5872, %v6132
    %v6197 = vadd.f32 %v5873, %v6133
    %v6198 = vadd.f32 %v5874, %v6134
    %v6199 = vadd.f32 %v5875, %v6135
    %v6200 = vadd.f32 %v5876, %v6136
    %v6201 = vadd.f32 %v5877, %v6137
    %v6202 = vadd.f32 %v5878, %v6138
    %v6203 = vadd.f32 %v5879, %v6139
    %v6204 = vadd.f32 %v5880, %v6140
    %v6205 = vadd.f32 %v5881, %v6141
    %v6206 = vadd.f32 %v5882, %v6142
    %v6207 = vadd.f32 %v5883, %v6143
    %v6208 = vadd.f32 %v5884, %v6144
    %v6209 = vadd.f32 %v5885, %v6145
    %v6210 = vadd.f32 %v5886, %v6146
    %v6211 = vadd.f32 %v5887, %v6147
    %v6212 = vadd.f32 %v5888, %v6148
    %v6213 = vadd.f32 %v5889, %v6149
    %v6214 = vadd.f32 %v5890, %v6150
    %v6215 = vadd.f32 %v5891, %v6151
    %v6216 = vadd.f32 %v5892, %v6152
    %v6217 = vadd.f32 %v5893, %v6153
    %v6218 = vadd.f32 %v5894, %v6154
    %v6219 = vadd.f32 %v5895, %v6155
    %v6220 = vadd.f32 %v5896, %v6156
    %v6221 = vadd.f32 %v5897, %v6157
    %v6222 = vadd.f32 %v5898, %v6158
    %v6223 = vadd.f32 %v5899, %v6159
    %v6224 = vadd.f32 %v5900, %v6160
    %v6225 = vadd.f32 %v5901, %v6161
    %v6226 = vadd.f32 %v5902, %v6162
    %v6227 = vadd.f32 %v5903, %v6163
    %v6228 = vadd.f32 %v5904, %v6164
    %v6229 = vadd.f32 %v5905, %v6165
    %v6230 = vadd.f32 %v5906, %v6166
    %v6231 = vadd.f32 %v5907, %v6167
    %v6232 = vadd.f32 %v5908, %v6168
    %v6233 = vadd.f32 %v5909, %v6169
    %v6234 = vadd.f32 %v5910, %v6170
    %v6235 = vadd.f32 %v5911, %v6171
    %s6236 = scalar_lea.vmem [#allocation3], 32
    %v6237 = vld [vmem:[%s6236] sm:$0xff]
    %v6238 = vld [vmem:[%s6236 + $0x8] sm:$0xff]
    %v6239 = vld [vmem:[%s6236 + $0x10] sm:$0xff]
    %v6240 = vld [vmem:[%s6236 + $0x18] sm:$0xff]
    %v6241 = vld [vmem:[%s6236 + $0x20] sm:$0xff]
    %v6242 = vld [vmem:[%s6236 + $0x28] sm:$0xff]
    %v6243 = vld [vmem:[%s6236 + $0x30] sm:$0xff]
    %v6244 = vld [vmem:[%s6236 + $0x38] sm:$0xff]
    %v6245 = vld [vmem:[%s6236 + $0x40] sm:$0xff]
    %v6246 = vld [vmem:[%s6236 + $0x48] sm:$0xff]
    %v6247 = vld [vmem:[%s6236 + $0x50] sm:$0xff]
    %v6248 = vld [vmem:[%s6236 + $0x58] sm:$0xff]
    %v6249 = vld [vmem:[%s6236 + $0x60] sm:$0xff]
    %v6250 = vld [vmem:[%s6236 + $0x68] sm:$0xff]
    %v6251 = vld [vmem:[%s6236 + $0x70] sm:$0xff]
    %v6252 = vld [vmem:[%s6236 + $0x78] sm:$0xff]
    %v6253 = vld [vmem:[%s6236 + $0x80] sm:$0xff]
    %v6254 = vld [vmem:[%s6236 + $0x88] sm:$0xff]
    %v6255 = vld [vmem:[%s6236 + $0x90] sm:$0xff]
    %v6256 = vld [vmem:[%s6236 + $0x98] sm:$0xff]
    %v6257 = vld [vmem:[%s6236 + $0xa0] sm:$0xff]
    %v6258 = vld [vmem:[%s6236 + $0xa8] sm:$0xff]
    %v6259 = vld [vmem:[%s6236 + $0xb0] sm:$0xff]
    %v6260 = vld [vmem:[%s6236 + $0xb8] sm:$0xff]
    %v6261 = vld [vmem:[%s6236 + $0xc0] sm:$0xff]
    %v6262 = vld [vmem:[%s6236 + $0xc8] sm:$0xff]
    %v6263 = vld [vmem:[%s6236 + $0xd0] sm:$0xff]
    %v6264 = vld [vmem:[%s6236 + $0xd8] sm:$0xff]
    %v6265 = vld [vmem:[%s6236 + $0xe0] sm:$0xff]
    %v6266 = vld [vmem:[%s6236 + $0xe8] sm:$0xff]
    %v6267 = vld [vmem:[%s6236 + $0xf0] sm:$0xff]
    %v6268 = vld [vmem:[%s6236 + $0xf8] sm:$0xff]
    %v6269 = vld [vmem:[%s6236 + $0x120] sm:$0xff]
    %v6270 = vld [vmem:[%s6236 + $0x128] sm:$0xff]
    %v6271 = vld [vmem:[%s6236 + $0x130] sm:$0xff]
    %v6272 = vld [vmem:[%s6236 + $0x138] sm:$0xff]
    %v6273 = vld [vmem:[%s6236 + $0x140] sm:$0xff]
    %v6274 = vld [vmem:[%s6236 + $0x148] sm:$0xff]
    %v6275 = vld [vmem:[%s6236 + $0x150] sm:$0xff]
    %v6276 = vld [vmem:[%s6236 + $0x158] sm:$0xff]
    %v6277 = vld [vmem:[%s6236 + $0x160] sm:$0xff]
    %v6278 = vld [vmem:[%s6236 + $0x168] sm:$0xff]
    %v6279 = vld [vmem:[%s6236 + $0x170] sm:$0xff]
    %v6280 = vld [vmem:[%s6236 + $0x178] sm:$0xff]
    %v6281 = vld [vmem:[%s6236 + $0x180] sm:$0xff]
    %v6282 = vld [vmem:[%s6236 + $0x188] sm:$0xff]
    %v6283 = vld [vmem:[%s6236 + $0x190] sm:$0xff]
    %v6284 = vld [vmem:[%s6236 + $0x198] sm:$0xff]
    %v6285 = vld [vmem:[%s6236 + $0x1a0] sm:$0xff]
    %v6286 = vld [vmem:[%s6236 + $0x1a8] sm:$0xff]
    %v6287 = vld [vmem:[%s6236 + $0x1b0] sm:$0xff]
    %v6288 = vld [vmem:[%s6236 + $0x1b8] sm:$0xff]
    %v6289 = vld [vmem:[%s6236 + $0x1c0] sm:$0xff]
    %v6290 = vld [vmem:[%s6236 + $0x1c8] sm:$0xff]
    %v6291 = vld [vmem:[%s6236 + $0x1d0] sm:$0xff]
    %v6292 = vld [vmem:[%s6236 + $0x1d8] sm:$0xff]
    %v6293 = vld [vmem:[%s6236 + $0x1e0] sm:$0xff]
    %v6294 = vld [vmem:[%s6236 + $0x1e8] sm:$0xff]
    %v6295 = vld [vmem:[%s6236 + $0x1f0] sm:$0xff]
    %v6296 = vld [vmem:[%s6236 + $0x1f8] sm:$0xff]
    %v6297 = vld [vmem:[%s6236 + $0x200] sm:$0xff]
    %v6298 = vld [vmem:[%s6236 + $0x208] sm:$0xff]
    %v6299 = vld [vmem:[%s6236 + $0x210] sm:$0xff]
    %v6300 = vld [vmem:[%s6236 + $0x218] sm:$0xff]
    %v6301 = vrot.slane %v6237, 7
    %v6302 = vrot.slane %v6239, 7
    %v6303 = vrot.slane %v6241, 7
    %v6304 = vrot.slane %v6243, 7
    %v6305 = vrot.slane %v6245, 7
    %v6306 = vrot.slane %v6247, 7
    %v6307 = vrot.slane %v6249, 7
    %v6308 = vrot.slane %v6251, 7
    %v6309 = vrot.slane %v6253, 7
    %v6310 = vrot.slane %v6255, 7
    %v6311 = vrot.slane %v6257, 7
    %v6312 = vrot.slane %v6259, 7
    %v6313 = vrot.slane %v6261, 7
    %v6314 = vrot.slane %v6263, 7
    %v6315 = vrot.slane %v6265, 7
    %v6316 = vrot.slane %v6267, 7
    %v6317 = vrot.slane %v6269, 7
    %v6318 = vrot.slane %v6271, 7
    %v6319 = vrot.slane %v6273, 7
    %v6320 = vrot.slane %v6275, 7
    %v6321 = vrot.slane %v6277, 7
    %v6322 = vrot.slane %v6279, 7
    %v6323 = vrot.slane %v6281, 7
    %v6324 = vrot.slane %v6283, 7
    %v6325 = vrot.slane %v6285, 7
    %v6326 = vrot.slane %v6287, 7
    %v6327 = vrot.slane %v6289, 7
    %v6328 = vrot.slane %v6291, 7
    %v6329 = vrot.slane %v6293, 7
    %v6330 = vrot.slane %v6295, 7
    %v6331 = vrot.slane %v6297, 7
    %v6332 = vrot.slane %v6299, 7
    %v6333 = vrot.slane %v6238, 7
    %v6334 = vrot.slane %v6240, 7
    %v6335 = vrot.slane %v6242, 7
    %v6336 = vrot.slane %v6244, 7
    %v6337 = vrot.slane %v6246, 7
    %v6338 = vrot.slane %v6248, 7
    %v6339 = vrot.slane %v6250, 7
    %v6340 = vrot.slane %v6252, 7
    %v6341 = vrot.slane %v6254, 7
    %v6342 = vrot.slane %v6256, 7
    %v6343 = vrot.slane %v6258, 7
    %v6344 = vrot.slane %v6260, 7
    %v6345 = vrot.slane %v6262, 7
    %v6346 = vrot.slane %v6264, 7
    %v6347 = vrot.slane %v6266, 7
    %v6348 = vrot.slane %v6268, 7
    %v6349 = vrot.slane %v6270, 7
    %v6350 = vrot.slane %v6272, 7
    %v6351 = vrot.slane %v6274, 7
    %v6352 = vrot.slane %v6276, 7
    %v6353 = vrot.slane %v6278, 7
    %v6354 = vrot.slane %v6280, 7
    %v6355 = vrot.slane %v6282, 7
    %v6356 = vrot.slane %v6284, 7
    %v6357 = vrot.slane %v6286, 7
    %v6358 = vrot.slane %v6288, 7
    %v6359 = vrot.slane %v6290, 7
    %v6360 = vrot.slane %v6292, 7
    %v6361 = vrot.slane %v6294, 7
    %v6362 = vrot.slane %v6296, 7
    %v6363 = vrot.slane %v6298, 7
    %v6364 = vrot.slane %v6300, 7
    %v6365 = vsel %vm314, %v6301, %v6333
    %v6366 = vsel %vm314, %v6302, %v6334
    %v6367 = vsel %vm314, %v6303, %v6335
    %v6368 = vsel %vm314, %v6304, %v6336
    %v6369 = vsel %vm314, %v6305, %v6337
    %v6370 = vsel %vm314, %v6306, %v6338
    %v6371 = vsel %vm314, %v6307, %v6339
    %v6372 = vsel %vm314, %v6308, %v6340
    %v6373 = vsel %vm314, %v6309, %v6341
    %v6374 = vsel %vm314, %v6310, %v6342
    %v6375 = vsel %vm314, %v6311, %v6343
    %v6376 = vsel %vm314, %v6312, %v6344
    %v6377 = vsel %vm314, %v6313, %v6345
    %v6378 = vsel %vm314, %v6314, %v6346
    %v6379 = vsel %vm314, %v6315, %v6347
    %v6380 = vsel %vm314, %v6316, %v6348
    %v6381 = vsel %vm314, %v6317, %v6349
    %v6382 = vsel %vm314, %v6318, %v6350
    %v6383 = vsel %vm314, %v6319, %v6351
    %v6384 = vsel %vm314, %v6320, %v6352
    %v6385 = vsel %vm314, %v6321, %v6353
    %v6386 = vsel %vm314, %v6322, %v6354
    %v6387 = vsel %vm314, %v6323, %v6355
    %v6388 = vsel %vm314, %v6324, %v6356
    %v6389 = vsel %vm314, %v6325, %v6357
    %v6390 = vsel %vm314, %v6326, %v6358
    %v6391 = vsel %vm314, %v6327, %v6359
    %v6392 = vsel %vm314, %v6328, %v6360
    %v6393 = vsel %vm314, %v6329, %v6361
    %v6394 = vsel %vm314, %v6330, %v6362
    %v6395 = vsel %vm314, %v6331, %v6363
    %v6396 = vsel %vm314, %v6332, %v6364
    %v6397 = vsel %vm314, %v6333, %v6301
    %v6398 = vsel %vm314, %v6334, %v6302
    %v6399 = vsel %vm314, %v6335, %v6303
    %v6400 = vsel %vm314, %v6336, %v6304
    %v6401 = vsel %vm314, %v6337, %v6305
    %v6402 = vsel %vm314, %v6338, %v6306
    %v6403 = vsel %vm314, %v6339, %v6307
    %v6404 = vsel %vm314, %v6340, %v6308
    %v6405 = vsel %vm314, %v6341, %v6309
    %v6406 = vsel %vm314, %v6342, %v6310
    %v6407 = vsel %vm314, %v6343, %v6311
    %v6408 = vsel %vm314, %v6344, %v6312
    %v6409 = vsel %vm314, %v6345, %v6313
    %v6410 = vsel %vm314, %v6346, %v6314
    %v6411 = vsel %vm314, %v6347, %v6315
    %v6412 = vsel %vm314, %v6348, %v6316
    %v6413 = vsel %vm314, %v6349, %v6317
    %v6414 = vsel %vm314, %v6350, %v6318
    %v6415 = vsel %vm314, %v6351, %v6319
    %v6416 = vsel %vm314, %v6352, %v6320
    %v6417 = vsel %vm314, %v6353, %v6321
    %v6418 = vsel %vm314, %v6354, %v6322
    %v6419 = vsel %vm314, %v6355, %v6323
    %v6420 = vsel %vm314, %v6356, %v6324
    %v6421 = vsel %vm314, %v6357, %v6325
    %v6422 = vsel %vm314, %v6358, %v6326
    %v6423 = vsel %vm314, %v6359, %v6327
    %v6424 = vsel %vm314, %v6360, %v6328
    %v6425 = vsel %vm314, %v6361, %v6329
    %v6426 = vsel %vm314, %v6362, %v6330
    %v6427 = vsel %vm314, %v6363, %v6331
    %v6428 = vsel %vm314, %v6364, %v6332
    %v6429 = vsel %vm182, %v6397, 0.0
    %v6430 = vsel %vm183, %v6365, 0.0
    %v6431 = vsel %vm182, %v6398, 0.0
    %v6432 = vsel %vm183, %v6366, 0.0
    %v6433 = vsel %vm182, %v6399, 0.0
    %v6434 = vsel %vm183, %v6367, 0.0
    %v6435 = vsel %vm182, %v6400, 0.0
    %v6436 = vsel %vm183, %v6368, 0.0
    %v6437 = vsel %vm182, %v6401, 0.0
    %v6438 = vsel %vm183, %v6369, 0.0
    %v6439 = vsel %vm182, %v6402, 0.0
    %v6440 = vsel %vm183, %v6370, 0.0
    %v6441 = vsel %vm182, %v6403, 0.0
    %v6442 = vsel %vm183, %v6371, 0.0
    %v6443 = vsel %vm182, %v6404, 0.0
    %v6444 = vsel %vm183, %v6372, 0.0
    %v6445 = vsel %vm182, %v6405, 0.0
    %v6446 = vsel %vm183, %v6373, 0.0
    %v6447 = vsel %vm182, %v6406, 0.0
    %v6448 = vsel %vm183, %v6374, 0.0
    %v6449 = vsel %vm182, %v6407, 0.0
    %v6450 = vsel %vm183, %v6375, 0.0
    %v6451 = vsel %vm182, %v6408, 0.0
    %v6452 = vsel %vm183, %v6376, 0.0
    %v6453 = vsel %vm182, %v6409, 0.0
    %v6454 = vsel %vm183, %v6377, 0.0
    %v6455 = vsel %vm182, %v6410, 0.0
    %v6456 = vsel %vm183, %v6378, 0.0
    %v6457 = vsel %vm182, %v6411, 0.0
    %v6458 = vsel %vm183, %v6379, 0.0
    %v6459 = vsel %vm182, %v6412, 0.0
    %v6460 = vsel %vm183, %v6380, 0.0
    %v6461 = vsel %vm182, %v6413, 0.0
    %v6462 = vsel %vm183, %v6381, 0.0
    %v6463 = vsel %vm182, %v6414, 0.0
    %v6464 = vsel %vm183, %v6382, 0.0
    %v6465 = vsel %vm182, %v6415, 0.0
    %v6466 = vsel %vm183, %v6383, 0.0
    %v6467 = vsel %vm182, %v6416, 0.0
    %v6468 = vsel %vm183, %v6384, 0.0
    %v6469 = vsel %vm182, %v6417, 0.0
    %v6470 = vsel %vm183, %v6385, 0.0
    %v6471 = vsel %vm182, %v6418, 0.0
    %v6472 = vsel %vm183, %v6386, 0.0
    %v6473 = vsel %vm182, %v6419, 0.0
    %v6474 = vsel %vm183, %v6387, 0.0
    %v6475 = vsel %vm182, %v6420, 0.0
    %v6476 = vsel %vm183, %v6388, 0.0
    %v6477 = vsel %vm182, %v6421, 0.0
    %v6478 = vsel %vm183, %v6389, 0.0
    %v6479 = vsel %vm182, %v6422, 0.0
    %v6480 = vsel %vm183, %v6390, 0.0
    %v6481 = vsel %vm182, %v6423, 0.0
    %v6482 = vsel %vm183, %v6391, 0.0
    %v6483 = vsel %vm182, %v6424, 0.0
    %v6484 = vsel %vm183, %v6392, 0.0
    %v6485 = vsel %vm182, %v6425, 0.0
    %v6486 = vsel %vm183, %v6393, 0.0
    %v6487 = vsel %vm182, %v6426, 0.0
    %v6488 = vsel %vm183, %v6394, 0.0
    %v6489 = vsel %vm182, %v6427, 0.0
    %v6490 = vsel %vm183, %v6395, 0.0
    %v6491 = vsel %vm182, %v6428, 0.0
    %v6492 = vsel %vm183, %v6396, 0.0
    %v6493 = vlaneseq
    %v6494 = vshrl.u32 %v6493, 7
    %v6495 = vsub.s32 6, %v6494
    %v6496 = vrot.slane %v4471, %v6495
    %v6497 = vmul.f32 %v6429, %v6496
    %v6498 = vmul.f32 %v6430, %v6496
    %v6499 = vmul.f32 %v6431, %v6496
    %v6500 = vmul.f32 %v6432, %v6496
    %v6501 = vmul.f32 %v6433, %v6496
    %v6502 = vmul.f32 %v6434, %v6496
    %v6503 = vmul.f32 %v6435, %v6496
    %v6504 = vmul.f32 %v6436, %v6496
    %v6505 = vmul.f32 %v6437, %v6496
    %v6506 = vmul.f32 %v6438, %v6496
    %v6507 = vmul.f32 %v6439, %v6496
    %v6508 = vmul.f32 %v6440, %v6496
    %v6509 = vmul.f32 %v6441, %v6496
    %v6510 = vmul.f32 %v6442, %v6496
    %v6511 = vmul.f32 %v6443, %v6496
    %v6512 = vmul.f32 %v6444, %v6496
    %v6513 = vmul.f32 %v6445, %v6496
    %v6514 = vmul.f32 %v6446, %v6496
    %v6515 = vmul.f32 %v6447, %v6496
    %v6516 = vmul.f32 %v6448, %v6496
    %v6517 = vmul.f32 %v6449, %v6496
    %v6518 = vmul.f32 %v6450, %v6496
    %v6519 = vmul.f32 %v6451, %v6496
    %v6520 = vmul.f32 %v6452, %v6496
    %v6521 = vmul.f32 %v6453, %v6496
    %v6522 = vmul.f32 %v6454, %v6496
    %v6523 = vmul.f32 %v6455, %v6496
    %v6524 = vmul.f32 %v6456, %v6496
    %v6525 = vmul.f32 %v6457, %v6496
    %v6526 = vmul.f32 %v6458, %v6496
    %v6527 = vmul.f32 %v6459, %v6496
    %v6528 = vmul.f32 %v6460, %v6496
    %v6529 = vmul.f32 %v6461, %v6496
    %v6530 = vmul.f32 %v6462, %v6496
    %v6531 = vmul.f32 %v6463, %v6496
    %v6532 = vmul.f32 %v6464, %v6496
    %v6533 = vmul.f32 %v6465, %v6496
    %v6534 = vmul.f32 %v6466, %v6496
    %v6535 = vmul.f32 %v6467, %v6496
    %v6536 = vmul.f32 %v6468, %v6496
    %v6537 = vmul.f32 %v6469, %v6496
    %v6538 = vmul.f32 %v6470, %v6496
    %v6539 = vmul.f32 %v6471, %v6496
    %v6540 = vmul.f32 %v6472, %v6496
    %v6541 = vmul.f32 %v6473, %v6496
    %v6542 = vmul.f32 %v6474, %v6496
    %v6543 = vmul.f32 %v6475, %v6496
    %v6544 = vmul.f32 %v6476, %v6496
    %v6545 = vmul.f32 %v6477, %v6496
    %v6546 = vmul.f32 %v6478, %v6496
    %v6547 = vmul.f32 %v6479, %v6496
    %v6548 = vmul.f32 %v6480, %v6496
    %v6549 = vmul.f32 %v6481, %v6496
    %v6550 = vmul.f32 %v6482, %v6496
    %v6551 = vmul.f32 %v6483, %v6496
    %v6552 = vmul.f32 %v6484, %v6496
    %v6553 = vmul.f32 %v6485, %v6496
    %v6554 = vmul.f32 %v6486, %v6496
    %v6555 = vmul.f32 %v6487, %v6496
    %v6556 = vmul.f32 %v6488, %v6496
    %v6557 = vmul.f32 %v6489, %v6496
    %v6558 = vmul.f32 %v6490, %v6496
    %v6559 = vmul.f32 %v6491, %v6496
    %v6560 = vmul.f32 %v6492, %v6496
    %v6561 = vadd.f32 %v6172, %v6497
    %v6562 = vadd.f32 %v6173, %v6498
    %v6563 = vadd.f32 %v6174, %v6499
    %v6564 = vadd.f32 %v6175, %v6500
    %v6565 = vadd.f32 %v6176, %v6501
    %v6566 = vadd.f32 %v6177, %v6502
    %v6567 = vadd.f32 %v6178, %v6503
    %v6568 = vadd.f32 %v6179, %v6504
    %v6569 = vadd.f32 %v6180, %v6505
    %v6570 = vadd.f32 %v6181, %v6506
    %v6571 = vadd.f32 %v6182, %v6507
    %v6572 = vadd.f32 %v6183, %v6508
    %v6573 = vadd.f32 %v6184, %v6509
    %v6574 = vadd.f32 %v6185, %v6510
    %v6575 = vadd.f32 %v6186, %v6511
    %v6576 = vadd.f32 %v6187, %v6512
    %v6577 = vadd.f32 %v6188, %v6513
    %v6578 = vadd.f32 %v6189, %v6514
    %v6579 = vadd.f32 %v6190, %v6515
    %v6580 = vadd.f32 %v6191, %v6516
    %v6581 = vadd.f32 %v6192, %v6517
    %v6582 = vadd.f32 %v6193, %v6518
    %v6583 = vadd.f32 %v6194, %v6519
    %v6584 = vadd.f32 %v6195, %v6520
    %v6585 = vadd.f32 %v6196, %v6521
    %v6586 = vadd.f32 %v6197, %v6522
    %v6587 = vadd.f32 %v6198, %v6523
    %v6588 = vadd.f32 %v6199, %v6524
    %v6589 = vadd.f32 %v6200, %v6525
    %v6590 = vadd.f32 %v6201, %v6526
    %v6591 = vadd.f32 %v6202, %v6527
    %v6592 = vadd.f32 %v6203, %v6528
    %v6593 = vadd.f32 %v6204, %v6529
    %v6594 = vadd.f32 %v6205, %v6530
    %v6595 = vadd.f32 %v6206, %v6531
    %v6596 = vadd.f32 %v6207, %v6532
    %v6597 = vadd.f32 %v6208, %v6533
    %v6598 = vadd.f32 %v6209, %v6534
    %v6599 = vadd.f32 %v6210, %v6535
    %v6600 = vadd.f32 %v6211, %v6536
    %v6601 = vadd.f32 %v6212, %v6537
    %v6602 = vadd.f32 %v6213, %v6538
    %v6603 = vadd.f32 %v6214, %v6539
    %v6604 = vadd.f32 %v6215, %v6540
    %v6605 = vadd.f32 %v6216, %v6541
    %v6606 = vadd.f32 %v6217, %v6542
    %v6607 = vadd.f32 %v6218, %v6543
    %v6608 = vadd.f32 %v6219, %v6544
    %v6609 = vadd.f32 %v6220, %v6545
    %v6610 = vadd.f32 %v6221, %v6546
    %v6611 = vadd.f32 %v6222, %v6547
    %v6612 = vadd.f32 %v6223, %v6548
    %v6613 = vadd.f32 %v6224, %v6549
    %v6614 = vadd.f32 %v6225, %v6550
    %v6615 = vadd.f32 %v6226, %v6551
    %v6616 = vadd.f32 %v6227, %v6552
    %v6617 = vadd.f32 %v6228, %v6553
    %v6618 = vadd.f32 %v6229, %v6554
    %v6619 = vadd.f32 %v6230, %v6555
    %v6620 = vadd.f32 %v6231, %v6556
    %v6621 = vadd.f32 %v6232, %v6557
    %v6622 = vadd.f32 %v6233, %v6558
    %v6623 = vadd.f32 %v6234, %v6559
    %v6624 = vadd.f32 %v6235, %v6560
    %v6625 = vlaneseq
    %v6626 = vshrl.u32 %v6625, 7
    %v6627 = vsub.s32 7, %v6626
    %v6628 = vrot.slane %v4471, %v6627
    %v6629 = vmul.f32 %v6237, %v6628
    %v6630 = vmul.f32 %v6238, %v6628
    %v6631 = vmul.f32 %v6239, %v6628
    %v6632 = vmul.f32 %v6240, %v6628
    %v6633 = vmul.f32 %v6241, %v6628
    %v6634 = vmul.f32 %v6242, %v6628
    %v6635 = vmul.f32 %v6243, %v6628
    %v6636 = vmul.f32 %v6244, %v6628
    %v6637 = vmul.f32 %v6245, %v6628
    %v6638 = vmul.f32 %v6246, %v6628
    %v6639 = vmul.f32 %v6247, %v6628
    %v6640 = vmul.f32 %v6248, %v6628
    %v6641 = vmul.f32 %v6249, %v6628
    %v6642 = vmul.f32 %v6250, %v6628
    %v6643 = vmul.f32 %v6251, %v6628
    %v6644 = vmul.f32 %v6252, %v6628
    %v6645 = vmul.f32 %v6253, %v6628
    %v6646 = vmul.f32 %v6254, %v6628
    %v6647 = vmul.f32 %v6255, %v6628
    %v6648 = vmul.f32 %v6256, %v6628
    %v6649 = vmul.f32 %v6257, %v6628
    %v6650 = vmul.f32 %v6258, %v6628
    %v6651 = vmul.f32 %v6259, %v6628
    %v6652 = vmul.f32 %v6260, %v6628
    %v6653 = vmul.f32 %v6261, %v6628
    %v6654 = vmul.f32 %v6262, %v6628
    %v6655 = vmul.f32 %v6263, %v6628
    %v6656 = vmul.f32 %v6264, %v6628
    %v6657 = vmul.f32 %v6265, %v6628
    %v6658 = vmul.f32 %v6266, %v6628
    %v6659 = vmul.f32 %v6267, %v6628
    %v6660 = vmul.f32 %v6268, %v6628
    %v6661 = vmul.f32 %v6269, %v6628
    %v6662 = vmul.f32 %v6270, %v6628
    %v6663 = vmul.f32 %v6271, %v6628
    %v6664 = vmul.f32 %v6272, %v6628
    %v6665 = vmul.f32 %v6273, %v6628
    %v6666 = vmul.f32 %v6274, %v6628
    %v6667 = vmul.f32 %v6275, %v6628
    %v6668 = vmul.f32 %v6276, %v6628
    %v6669 = vmul.f32 %v6277, %v6628
    %v6670 = vmul.f32 %v6278, %v6628
    %v6671 = vmul.f32 %v6279, %v6628
    %v6672 = vmul.f32 %v6280, %v6628
    %v6673 = vmul.f32 %v6281, %v6628
    %v6674 = vmul.f32 %v6282, %v6628
    %v6675 = vmul.f32 %v6283, %v6628
    %v6676 = vmul.f32 %v6284, %v6628
    %v6677 = vmul.f32 %v6285, %v6628
    %v6678 = vmul.f32 %v6286, %v6628
    %v6679 = vmul.f32 %v6287, %v6628
    %v6680 = vmul.f32 %v6288, %v6628
    %v6681 = vmul.f32 %v6289, %v6628
    %v6682 = vmul.f32 %v6290, %v6628
    %v6683 = vmul.f32 %v6291, %v6628
    %v6684 = vmul.f32 %v6292, %v6628
    %v6685 = vmul.f32 %v6293, %v6628
    %v6686 = vmul.f32 %v6294, %v6628
    %v6687 = vmul.f32 %v6295, %v6628
    %v6688 = vmul.f32 %v6296, %v6628
    %v6689 = vmul.f32 %v6297, %v6628
    %v6690 = vmul.f32 %v6298, %v6628
    %v6691 = vmul.f32 %v6299, %v6628
    %v6692 = vmul.f32 %v6300, %v6628
    %v6693 = vadd.f32 %v6561, %v6629
    %v6694 = vadd.f32 %v6562, %v6630
    %v6695 = vadd.f32 %v6563, %v6631
    %v6696 = vadd.f32 %v6564, %v6632
    %v6697 = vadd.f32 %v6565, %v6633
    %v6698 = vadd.f32 %v6566, %v6634
    %v6699 = vadd.f32 %v6567, %v6635
    %v6700 = vadd.f32 %v6568, %v6636
    %v6701 = vadd.f32 %v6569, %v6637
    %v6702 = vadd.f32 %v6570, %v6638
    %v6703 = vadd.f32 %v6571, %v6639
    %v6704 = vadd.f32 %v6572, %v6640
    %v6705 = vadd.f32 %v6573, %v6641
    %v6706 = vadd.f32 %v6574, %v6642
    %v6707 = vadd.f32 %v6575, %v6643
    %v6708 = vadd.f32 %v6576, %v6644
    %v6709 = vadd.f32 %v6577, %v6645
    %v6710 = vadd.f32 %v6578, %v6646
    %v6711 = vadd.f32 %v6579, %v6647
    %v6712 = vadd.f32 %v6580, %v6648
    %v6713 = vadd.f32 %v6581, %v6649
    %v6714 = vadd.f32 %v6582, %v6650
    %v6715 = vadd.f32 %v6583, %v6651
    %v6716 = vadd.f32 %v6584, %v6652
    %v6717 = vadd.f32 %v6585, %v6653
    %v6718 = vadd.f32 %v6586, %v6654
    %v6719 = vadd.f32 %v6587, %v6655
    %v6720 = vadd.f32 %v6588, %v6656
    %v6721 = vadd.f32 %v6589, %v6657
    %v6722 = vadd.f32 %v6590, %v6658
    %v6723 = vadd.f32 %v6591, %v6659
    %v6724 = vadd.f32 %v6592, %v6660
    %v6725 = vadd.f32 %v6593, %v6661
    %v6726 = vadd.f32 %v6594, %v6662
    %v6727 = vadd.f32 %v6595, %v6663
    %v6728 = vadd.f32 %v6596, %v6664
    %v6729 = vadd.f32 %v6597, %v6665
    %v6730 = vadd.f32 %v6598, %v6666
    %v6731 = vadd.f32 %v6599, %v6667
    %v6732 = vadd.f32 %v6600, %v6668
    %v6733 = vadd.f32 %v6601, %v6669
    %v6734 = vadd.f32 %v6602, %v6670
    %v6735 = vadd.f32 %v6603, %v6671
    %v6736 = vadd.f32 %v6604, %v6672
    %v6737 = vadd.f32 %v6605, %v6673
    %v6738 = vadd.f32 %v6606, %v6674
    %v6739 = vadd.f32 %v6607, %v6675
    %v6740 = vadd.f32 %v6608, %v6676
    %v6741 = vadd.f32 %v6609, %v6677
    %v6742 = vadd.f32 %v6610, %v6678
    %v6743 = vadd.f32 %v6611, %v6679
    %v6744 = vadd.f32 %v6612, %v6680
    %v6745 = vadd.f32 %v6613, %v6681
    %v6746 = vadd.f32 %v6614, %v6682
    %v6747 = vadd.f32 %v6615, %v6683
    %v6748 = vadd.f32 %v6616, %v6684
    %v6749 = vadd.f32 %v6617, %v6685
    %v6750 = vadd.f32 %v6618, %v6686
    %v6751 = vadd.f32 %v6619, %v6687
    %v6752 = vadd.f32 %v6620, %v6688
    %v6753 = vadd.f32 %v6621, %v6689
    %v6754 = vadd.f32 %v6622, %v6690
    %v6755 = vadd.f32 %v6623, %v6691
    %v6756 = vadd.f32 %v6624, %v6692
    %v6757 = vrot.slane %v6237, 1
    %v6758 = vrot.slane %v6239, 1
    %v6759 = vrot.slane %v6241, 1
    %v6760 = vrot.slane %v6243, 1
    %v6761 = vrot.slane %v6245, 1
    %v6762 = vrot.slane %v6247, 1
    %v6763 = vrot.slane %v6249, 1
    %v6764 = vrot.slane %v6251, 1
    %v6765 = vrot.slane %v6253, 1
    %v6766 = vrot.slane %v6255, 1
    %v6767 = vrot.slane %v6257, 1
    %v6768 = vrot.slane %v6259, 1
    %v6769 = vrot.slane %v6261, 1
    %v6770 = vrot.slane %v6263, 1
    %v6771 = vrot.slane %v6265, 1
    %v6772 = vrot.slane %v6267, 1
    %v6773 = vrot.slane %v6269, 1
    %v6774 = vrot.slane %v6271, 1
    %v6775 = vrot.slane %v6273, 1
    %v6776 = vrot.slane %v6275, 1
    %v6777 = vrot.slane %v6277, 1
    %v6778 = vrot.slane %v6279, 1
    %v6779 = vrot.slane %v6281, 1
    %v6780 = vrot.slane %v6283, 1
    %v6781 = vrot.slane %v6285, 1
    %v6782 = vrot.slane %v6287, 1
    %v6783 = vrot.slane %v6289, 1
    %v6784 = vrot.slane %v6291, 1
    %v6785 = vrot.slane %v6293, 1
    %v6786 = vrot.slane %v6295, 1
    %v6787 = vrot.slane %v6297, 1
    %v6788 = vrot.slane %v6299, 1
    %v6789 = vrot.slane %v6238, 1
    %v6790 = vrot.slane %v6240, 1
    %v6791 = vrot.slane %v6242, 1
    %v6792 = vrot.slane %v6244, 1
    %v6793 = vrot.slane %v6246, 1
    %v6794 = vrot.slane %v6248, 1
    %v6795 = vrot.slane %v6250, 1
    %v6796 = vrot.slane %v6252, 1
    %v6797 = vrot.slane %v6254, 1
    %v6798 = vrot.slane %v6256, 1
    %v6799 = vrot.slane %v6258, 1
    %v6800 = vrot.slane %v6260, 1
    %v6801 = vrot.slane %v6262, 1
    %v6802 = vrot.slane %v6264, 1
    %v6803 = vrot.slane %v6266, 1
    %v6804 = vrot.slane %v6268, 1
    %v6805 = vrot.slane %v6270, 1
    %v6806 = vrot.slane %v6272, 1
    %v6807 = vrot.slane %v6274, 1
    %v6808 = vrot.slane %v6276, 1
    %v6809 = vrot.slane %v6278, 1
    %v6810 = vrot.slane %v6280, 1
    %v6811 = vrot.slane %v6282, 1
    %v6812 = vrot.slane %v6284, 1
    %v6813 = vrot.slane %v6286, 1
    %v6814 = vrot.slane %v6288, 1
    %v6815 = vrot.slane %v6290, 1
    %v6816 = vrot.slane %v6292, 1
    %v6817 = vrot.slane %v6294, 1
    %v6818 = vrot.slane %v6296, 1
    %v6819 = vrot.slane %v6298, 1
    %v6820 = vrot.slane %v6300, 1
    %v6821 = vsel %vm771, %v6757, %v6789
    %v6822 = vsel %vm771, %v6758, %v6790
    %v6823 = vsel %vm771, %v6759, %v6791
    %v6824 = vsel %vm771, %v6760, %v6792
    %v6825 = vsel %vm771, %v6761, %v6793
    %v6826 = vsel %vm771, %v6762, %v6794
    %v6827 = vsel %vm771, %v6763, %v6795
    %v6828 = vsel %vm771, %v6764, %v6796
    %v6829 = vsel %vm771, %v6765, %v6797
    %v6830 = vsel %vm771, %v6766, %v6798
    %v6831 = vsel %vm771, %v6767, %v6799
    %v6832 = vsel %vm771, %v6768, %v6800
    %v6833 = vsel %vm771, %v6769, %v6801
    %v6834 = vsel %vm771, %v6770, %v6802
    %v6835 = vsel %vm771, %v6771, %v6803
    %v6836 = vsel %vm771, %v6772, %v6804
    %v6837 = vsel %vm771, %v6773, %v6805
    %v6838 = vsel %vm771, %v6774, %v6806
    %v6839 = vsel %vm771, %v6775, %v6807
    %v6840 = vsel %vm771, %v6776, %v6808
    %v6841 = vsel %vm771, %v6777, %v6809
    %v6842 = vsel %vm771, %v6778, %v6810
    %v6843 = vsel %vm771, %v6779, %v6811
    %v6844 = vsel %vm771, %v6780, %v6812
    %v6845 = vsel %vm771, %v6781, %v6813
    %v6846 = vsel %vm771, %v6782, %v6814
    %v6847 = vsel %vm771, %v6783, %v6815
    %v6848 = vsel %vm771, %v6784, %v6816
    %v6849 = vsel %vm771, %v6785, %v6817
    %v6850 = vsel %vm771, %v6786, %v6818
    %v6851 = vsel %vm771, %v6787, %v6819
    %v6852 = vsel %vm771, %v6788, %v6820
    %v6853 = vsel %vm771, %v6789, %v6757
    %v6854 = vsel %vm771, %v6790, %v6758
    %v6855 = vsel %vm771, %v6791, %v6759
    %v6856 = vsel %vm771, %v6792, %v6760
    %v6857 = vsel %vm771, %v6793, %v6761
    %v6858 = vsel %vm771, %v6794, %v6762
    %v6859 = vsel %vm771, %v6795, %v6763
    %v6860 = vsel %vm771, %v6796, %v6764
    %v6861 = vsel %vm771, %v6797, %v6765
    %v6862 = vsel %vm771, %v6798, %v6766
    %v6863 = vsel %vm771, %v6799, %v6767
    %v6864 = vsel %vm771, %v6800, %v6768
    %v6865 = vsel %vm771, %v6801, %v6769
    %v6866 = vsel %vm771, %v6802, %v6770
    %v6867 = vsel %vm771, %v6803, %v6771
    %v6868 = vsel %vm771, %v6804, %v6772
    %v6869 = vsel %vm771, %v6805, %v6773
    %v6870 = vsel %vm771, %v6806, %v6774
    %v6871 = vsel %vm771, %v6807, %v6775
    %v6872 = vsel %vm771, %v6808, %v6776
    %v6873 = vsel %vm771, %v6809, %v6777
    %v6874 = vsel %vm771, %v6810, %v6778
    %v6875 = vsel %vm771, %v6811, %v6779
    %v6876 = vsel %vm771, %v6812, %v6780
    %v6877 = vsel %vm771, %v6813, %v6781
    %v6878 = vsel %vm771, %v6814, %v6782
    %v6879 = vsel %vm771, %v6815, %v6783
    %v6880 = vsel %vm771, %v6816, %v6784
    %v6881 = vsel %vm771, %v6817, %v6785
    %v6882 = vsel %vm771, %v6818, %v6786
    %v6883 = vsel %vm771, %v6819, %v6787
    %v6884 = vsel %vm771, %v6820, %v6788
    %v6885 = vsel %vm184, %v6821, 0.0
    %v6886 = vsel %vm185, %v6853, 0.0
    %v6887 = vsel %vm184, %v6822, 0.0
    %v6888 = vsel %vm185, %v6854, 0.0
    %v6889 = vsel %vm184, %v6823, 0.0
    %v6890 = vsel %vm185, %v6855, 0.0
    %v6891 = vsel %vm184, %v6824, 0.0
    %v6892 = vsel %vm185, %v6856, 0.0
    %v6893 = vsel %vm184, %v6825, 0.0
    %v6894 = vsel %vm185, %v6857, 0.0
    %v6895 = vsel %vm184, %v6826, 0.0
    %v6896 = vsel %vm185, %v6858, 0.0
    %v6897 = vsel %vm184, %v6827, 0.0
    %v6898 = vsel %vm185, %v6859, 0.0
    %v6899 = vsel %vm184, %v6828, 0.0
    %v6900 = vsel %vm185, %v6860, 0.0
    %v6901 = vsel %vm184, %v6829, 0.0
    %v6902 = vsel %vm185, %v6861, 0.0
    %v6903 = vsel %vm184, %v6830, 0.0
    %v6904 = vsel %vm185, %v6862, 0.0
    %v6905 = vsel %vm184, %v6831, 0.0
    %v6906 = vsel %vm185, %v6863, 0.0
    %v6907 = vsel %vm184, %v6832, 0.0
    %v6908 = vsel %vm185, %v6864, 0.0
    %v6909 = vsel %vm184, %v6833, 0.0
    %v6910 = vsel %vm185, %v6865, 0.0
    %v6911 = vsel %vm184, %v6834, 0.0
    %v6912 = vsel %vm185, %v6866, 0.0
    %v6913 = vsel %vm184, %v6835, 0.0
    %v6914 = vsel %vm185, %v6867, 0.0
    %v6915 = vsel %vm184, %v6836, 0.0
    %v6916 = vsel %vm185, %v6868, 0.0
    %v6917 = vsel %vm184, %v6837, 0.0
    %v6918 = vsel %vm185, %v6869, 0.0
    %v6919 = vsel %vm184, %v6838, 0.0
    %v6920 = vsel %vm185, %v6870, 0.0
    %v6921 = vsel %vm184, %v6839, 0.0
    %v6922 = vsel %vm185, %v6871, 0.0
    %v6923 = vsel %vm184, %v6840, 0.0
    %v6924 = vsel %vm185, %v6872, 0.0
    %v6925 = vsel %vm184, %v6841, 0.0
    %v6926 = vsel %vm185, %v6873, 0.0
    %v6927 = vsel %vm184, %v6842, 0.0
    %v6928 = vsel %vm185, %v6874, 0.0
    %v6929 = vsel %vm184, %v6843, 0.0
    %v6930 = vsel %vm185, %v6875, 0.0
    %v6931 = vsel %vm184, %v6844, 0.0
    %v6932 = vsel %vm185, %v6876, 0.0
    %v6933 = vsel %vm184, %v6845, 0.0
    %v6934 = vsel %vm185, %v6877, 0.0
    %v6935 = vsel %vm184, %v6846, 0.0
    %v6936 = vsel %vm185, %v6878, 0.0
    %v6937 = vsel %vm184, %v6847, 0.0
    %v6938 = vsel %vm185, %v6879, 0.0
    %v6939 = vsel %vm184, %v6848, 0.0
    %v6940 = vsel %vm185, %v6880, 0.0
    %v6941 = vsel %vm184, %v6849, 0.0
    %v6942 = vsel %vm185, %v6881, 0.0
    %v6943 = vsel %vm184, %v6850, 0.0
    %v6944 = vsel %vm185, %v6882, 0.0
    %v6945 = vsel %vm184, %v6851, 0.0
    %v6946 = vsel %vm185, %v6883, 0.0
    %v6947 = vsel %vm184, %v6852, 0.0
    %v6948 = vsel %vm185, %v6884, 0.0
    %v6949 = vlaneseq
    %v6950 = vshrl.u32 %v6949, 7
    %v6951 = vsub.s32 0, %v6950
    %v6952 = vrot.slane %v4472, %v6951
    %v6953 = vmul.f32 %v6885, %v6952
    %v6954 = vmul.f32 %v6886, %v6952
    %v6955 = vmul.f32 %v6887, %v6952
    %v6956 = vmul.f32 %v6888, %v6952
    %v6957 = vmul.f32 %v6889, %v6952
    %v6958 = vmul.f32 %v6890, %v6952
    %v6959 = vmul.f32 %v6891, %v6952
    %v6960 = vmul.f32 %v6892, %v6952
    %v6961 = vmul.f32 %v6893, %v6952
    %v6962 = vmul.f32 %v6894, %v6952
    %v6963 = vmul.f32 %v6895, %v6952
    %v6964 = vmul.f32 %v6896, %v6952
    %v6965 = vmul.f32 %v6897, %v6952
    %v6966 = vmul.f32 %v6898, %v6952
    %v6967 = vmul.f32 %v6899, %v6952
    %v6968 = vmul.f32 %v6900, %v6952
    %v6969 = vmul.f32 %v6901, %v6952
    %v6970 = vmul.f32 %v6902, %v6952
    %v6971 = vmul.f32 %v6903, %v6952
    %v6972 = vmul.f32 %v6904, %v6952
    %v6973 = vmul.f32 %v6905, %v6952
    %v6974 = vmul.f32 %v6906, %v6952
    %v6975 = vmul.f32 %v6907, %v6952
    %v6976 = vmul.f32 %v6908, %v6952
    %v6977 = vmul.f32 %v6909, %v6952
    %v6978 = vmul.f32 %v6910, %v6952
    %v6979 = vmul.f32 %v6911, %v6952
    %v6980 = vmul.f32 %v6912, %v6952
    %v6981 = vmul.f32 %v6913, %v6952
    %v6982 = vmul.f32 %v6914, %v6952
    %v6983 = vmul.f32 %v6915, %v6952
    %v6984 = vmul.f32 %v6916, %v6952
    %v6985 = vmul.f32 %v6917, %v6952
    %v6986 = vmul.f32 %v6918, %v6952
    %v6987 = vmul.f32 %v6919, %v6952
    %v6988 = vmul.f32 %v6920, %v6952
    %v6989 = vmul.f32 %v6921, %v6952
    %v6990 = vmul.f32 %v6922, %v6952
    %v6991 = vmul.f32 %v6923, %v6952
    %v6992 = vmul.f32 %v6924, %v6952
    %v6993 = vmul.f32 %v6925, %v6952
    %v6994 = vmul.f32 %v6926, %v6952
    %v6995 = vmul.f32 %v6927, %v6952
    %v6996 = vmul.f32 %v6928, %v6952
    %v6997 = vmul.f32 %v6929, %v6952
    %v6998 = vmul.f32 %v6930, %v6952
    %v6999 = vmul.f32 %v6931, %v6952
    %v7000 = vmul.f32 %v6932, %v6952
    %v7001 = vmul.f32 %v6933, %v6952
    %v7002 = vmul.f32 %v6934, %v6952
    %v7003 = vmul.f32 %v6935, %v6952
    %v7004 = vmul.f32 %v6936, %v6952
    %v7005 = vmul.f32 %v6937, %v6952
    %v7006 = vmul.f32 %v6938, %v6952
    %v7007 = vmul.f32 %v6939, %v6952
    %v7008 = vmul.f32 %v6940, %v6952
    %v7009 = vmul.f32 %v6941, %v6952
    %v7010 = vmul.f32 %v6942, %v6952
    %v7011 = vmul.f32 %v6943, %v6952
    %v7012 = vmul.f32 %v6944, %v6952
    %v7013 = vmul.f32 %v6945, %v6952
    %v7014 = vmul.f32 %v6946, %v6952
    %v7015 = vmul.f32 %v6947, %v6952
    %v7016 = vmul.f32 %v6948, %v6952
    %v7017 = vadd.f32 %v6693, %v6953
    %v7018 = vadd.f32 %v6694, %v6954
    %v7019 = vadd.f32 %v6695, %v6955
    %v7020 = vadd.f32 %v6696, %v6956
    %v7021 = vadd.f32 %v6697, %v6957
    %v7022 = vadd.f32 %v6698, %v6958
    %v7023 = vadd.f32 %v6699, %v6959
    %v7024 = vadd.f32 %v6700, %v6960
    %v7025 = vadd.f32 %v6701, %v6961
    %v7026 = vadd.f32 %v6702, %v6962
    %v7027 = vadd.f32 %v6703, %v6963
    %v7028 = vadd.f32 %v6704, %v6964
    %v7029 = vadd.f32 %v6705, %v6965
    %v7030 = vadd.f32 %v6706, %v6966
    %v7031 = vadd.f32 %v6707, %v6967
    %v7032 = vadd.f32 %v6708, %v6968
    %v7033 = vadd.f32 %v6709, %v6969
    %v7034 = vadd.f32 %v6710, %v6970
    %v7035 = vadd.f32 %v6711, %v6971
    %v7036 = vadd.f32 %v6712, %v6972
    %v7037 = vadd.f32 %v6713, %v6973
    %v7038 = vadd.f32 %v6714, %v6974
    %v7039 = vadd.f32 %v6715, %v6975
    %v7040 = vadd.f32 %v6716, %v6976
    %v7041 = vadd.f32 %v6717, %v6977
    %v7042 = vadd.f32 %v6718, %v6978
    %v7043 = vadd.f32 %v6719, %v6979
    %v7044 = vadd.f32 %v6720, %v6980
    %v7045 = vadd.f32 %v6721, %v6981
    %v7046 = vadd.f32 %v6722, %v6982
    %v7047 = vadd.f32 %v6723, %v6983
    %v7048 = vadd.f32 %v6724, %v6984
    %v7049 = vadd.f32 %v6725, %v6985
    %v7050 = vadd.f32 %v6726, %v6986
    %v7051 = vadd.f32 %v6727, %v6987
    %v7052 = vadd.f32 %v6728, %v6988
    %v7053 = vadd.f32 %v6729, %v6989
    %v7054 = vadd.f32 %v6730, %v6990
    %v7055 = vadd.f32 %v6731, %v6991
    %v7056 = vadd.f32 %v6732, %v6992
    %v7057 = vadd.f32 %v6733, %v6993
    %v7058 = vadd.f32 %v6734, %v6994
    %v7059 = vadd.f32 %v6735, %v6995
    %v7060 = vadd.f32 %v6736, %v6996
    %v7061 = vadd.f32 %v6737, %v6997
    %v7062 = vadd.f32 %v6738, %v6998
    %v7063 = vadd.f32 %v6739, %v6999
    %v7064 = vadd.f32 %v6740, %v7000
    %v7065 = vadd.f32 %v6741, %v7001
    %v7066 = vadd.f32 %v6742, %v7002
    %v7067 = vadd.f32 %v6743, %v7003
    %v7068 = vadd.f32 %v6744, %v7004
    %v7069 = vadd.f32 %v6745, %v7005
    %v7070 = vadd.f32 %v6746, %v7006
    %v7071 = vadd.f32 %v6747, %v7007
    %v7072 = vadd.f32 %v6748, %v7008
    %v7073 = vadd.f32 %v6749, %v7009
    %v7074 = vadd.f32 %v6750, %v7010
    %v7075 = vadd.f32 %v6751, %v7011
    %v7076 = vadd.f32 %v6752, %v7012
    %v7077 = vadd.f32 %v6753, %v7013
    %v7078 = vadd.f32 %v6754, %v7014
    %v7079 = vadd.f32 %v6755, %v7015
    %v7080 = vadd.f32 %v6756, %v7016
    %v7081 = vlaneseq
    %v7082 = vshrl.u32 %v7081, 7
    %v7083 = vsub.s32 1, %v7082
    %v7084 = vrot.slane %v4472, %v7083
    %v7085 = vmul.f32 %v7017, %v7084
    %v7086 = vmul.f32 %v7018, %v7084
    %v7087 = vmul.f32 %v7019, %v7084
    %v7088 = vmul.f32 %v7020, %v7084
    %v7089 = vmul.f32 %v7021, %v7084
    %v7090 = vmul.f32 %v7022, %v7084
    %v7091 = vmul.f32 %v7023, %v7084
    %v7092 = vmul.f32 %v7024, %v7084
    %v7093 = vmul.f32 %v7025, %v7084
    %v7094 = vmul.f32 %v7026, %v7084
    %v7095 = vmul.f32 %v7027, %v7084
    %v7096 = vmul.f32 %v7028, %v7084
    %v7097 = vmul.f32 %v7029, %v7084
    %v7098 = vmul.f32 %v7030, %v7084
    %v7099 = vmul.f32 %v7031, %v7084
    %v7100 = vmul.f32 %v7032, %v7084
    %v7101 = vmul.f32 %v7033, %v7084
    %v7102 = vmul.f32 %v7034, %v7084
    %v7103 = vmul.f32 %v7035, %v7084
    %v7104 = vmul.f32 %v7036, %v7084
    %v7105 = vmul.f32 %v7037, %v7084
    %v7106 = vmul.f32 %v7038, %v7084
    %v7107 = vmul.f32 %v7039, %v7084
    %v7108 = vmul.f32 %v7040, %v7084
    %v7109 = vmul.f32 %v7041, %v7084
    %v7110 = vmul.f32 %v7042, %v7084
    %v7111 = vmul.f32 %v7043, %v7084
    %v7112 = vmul.f32 %v7044, %v7084
    %v7113 = vmul.f32 %v7045, %v7084
    %v7114 = vmul.f32 %v7046, %v7084
    %v7115 = vmul.f32 %v7047, %v7084
    %v7116 = vmul.f32 %v7048, %v7084
    %v7117 = vmul.f32 %v7049, %v7084
    %v7118 = vmul.f32 %v7050, %v7084
    %v7119 = vmul.f32 %v7051, %v7084
    %v7120 = vmul.f32 %v7052, %v7084
    %v7121 = vmul.f32 %v7053, %v7084
    %v7122 = vmul.f32 %v7054, %v7084
    %v7123 = vmul.f32 %v7055, %v7084
    %v7124 = vmul.f32 %v7056, %v7084
    %v7125 = vmul.f32 %v7057, %v7084
    %v7126 = vmul.f32 %v7058, %v7084
    %v7127 = vmul.f32 %v7059, %v7084
    %v7128 = vmul.f32 %v7060, %v7084
    %v7129 = vmul.f32 %v7061, %v7084
    %v7130 = vmul.f32 %v7062, %v7084
    %v7131 = vmul.f32 %v7063, %v7084
    %v7132 = vmul.f32 %v7064, %v7084
    %v7133 = vmul.f32 %v7065, %v7084
    %v7134 = vmul.f32 %v7066, %v7084
    %v7135 = vmul.f32 %v7067, %v7084
    %v7136 = vmul.f32 %v7068, %v7084
    %v7137 = vmul.f32 %v7069, %v7084
    %v7138 = vmul.f32 %v7070, %v7084
    %v7139 = vmul.f32 %v7071, %v7084
    %v7140 = vmul.f32 %v7072, %v7084
    %v7141 = vmul.f32 %v7073, %v7084
    %v7142 = vmul.f32 %v7074, %v7084
    %v7143 = vmul.f32 %v7075, %v7084
    %v7144 = vmul.f32 %v7076, %v7084
    %v7145 = vmul.f32 %v7077, %v7084
    %v7146 = vmul.f32 %v7078, %v7084
    %v7147 = vmul.f32 %v7079, %v7084
    %v7148 = vmul.f32 %v7080, %v7084
    %v7149 = vlaneseq
    %v7150 = vshrl.u32 %v7149, 7
    %v7151 = vsub.s32 2, %v7150
    %v7152 = vrot.slane %v4472, %v7151
    %v7153 = vadd.f32 %v7085, %v7152
    %v7154 = vadd.f32 %v7086, %v7152
    %v7155 = vadd.f32 %v7087, %v7152
    %v7156 = vadd.f32 %v7088, %v7152
    %v7157 = vadd.f32 %v7089, %v7152
    %v7158 = vadd.f32 %v7090, %v7152
    %v7159 = vadd.f32 %v7091, %v7152
    %v7160 = vadd.f32 %v7092, %v7152
    %v7161 = vadd.f32 %v7093, %v7152
    %v7162 = vadd.f32 %v7094, %v7152
    %v7163 = vadd.f32 %v7095, %v7152
    %v7164 = vadd.f32 %v7096, %v7152
    %v7165 = vadd.f32 %v7097, %v7152
    %v7166 = vadd.f32 %v7098, %v7152
    %v7167 = vadd.f32 %v7099, %v7152
    %v7168 = vadd.f32 %v7100, %v7152
    %v7169 = vadd.f32 %v7101, %v7152
    %v7170 = vadd.f32 %v7102, %v7152
    %v7171 = vadd.f32 %v7103, %v7152
    %v7172 = vadd.f32 %v7104, %v7152
    %v7173 = vadd.f32 %v7105, %v7152
    %v7174 = vadd.f32 %v7106, %v7152
    %v7175 = vadd.f32 %v7107, %v7152
    %v7176 = vadd.f32 %v7108, %v7152
    %v7177 = vadd.f32 %v7109, %v7152
    %v7178 = vadd.f32 %v7110, %v7152
    %v7179 = vadd.f32 %v7111, %v7152
    %v7180 = vadd.f32 %v7112, %v7152
    %v7181 = vadd.f32 %v7113, %v7152
    %v7182 = vadd.f32 %v7114, %v7152
    %v7183 = vadd.f32 %v7115, %v7152
    %v7184 = vadd.f32 %v7116, %v7152
    %v7185 = vadd.f32 %v7117, %v7152
    %v7186 = vadd.f32 %v7118, %v7152
    %v7187 = vadd.f32 %v7119, %v7152
    %v7188 = vadd.f32 %v7120, %v7152
    %v7189 = vadd.f32 %v7121, %v7152
    %v7190 = vadd.f32 %v7122, %v7152
    %v7191 = vadd.f32 %v7123, %v7152
    %v7192 = vadd.f32 %v7124, %v7152
    %v7193 = vadd.f32 %v7125, %v7152
    %v7194 = vadd.f32 %v7126, %v7152
    %v7195 = vadd.f32 %v7127, %v7152
    %v7196 = vadd.f32 %v7128, %v7152
    %v7197 = vadd.f32 %v7129, %v7152
    %v7198 = vadd.f32 %v7130, %v7152
    %v7199 = vadd.f32 %v7131, %v7152
    %v7200 = vadd.f32 %v7132, %v7152
    %v7201 = vadd.f32 %v7133, %v7152
    %v7202 = vadd.f32 %v7134, %v7152
    %v7203 = vadd.f32 %v7135, %v7152
    %v7204 = vadd.f32 %v7136, %v7152
    %v7205 = vadd.f32 %v7137, %v7152
    %v7206 = vadd.f32 %v7138, %v7152
    %v7207 = vadd.f32 %v7139, %v7152
    %v7208 = vadd.f32 %v7140, %v7152
    %v7209 = vadd.f32 %v7141, %v7152
    %v7210 = vadd.f32 %v7142, %v7152
    %v7211 = vadd.f32 %v7143, %v7152
    %v7212 = vadd.f32 %v7144, %v7152
    %v7213 = vadd.f32 %v7145, %v7152
    %v7214 = vadd.f32 %v7146, %v7152
    %v7215 = vadd.f32 %v7147, %v7152
    %v7216 = vadd.f32 %v7148, %v7152
    %v7217 = vxor.u32 %v7153, 2147483648
    %v7218 = vxor.u32 %v7154, 2147483648
    %v7219 = vxor.u32 %v7155, 2147483648
    %v7220 = vxor.u32 %v7156, 2147483648
    %v7221 = vxor.u32 %v7157, 2147483648
    %v7222 = vxor.u32 %v7158, 2147483648
    %v7223 = vxor.u32 %v7159, 2147483648
    %v7224 = vxor.u32 %v7160, 2147483648
    %v7225 = vxor.u32 %v7161, 2147483648
    %v7226 = vxor.u32 %v7162, 2147483648
    %v7227 = vxor.u32 %v7163, 2147483648
    %v7228 = vxor.u32 %v7164, 2147483648
    %v7229 = vxor.u32 %v7165, 2147483648
    %v7230 = vxor.u32 %v7166, 2147483648
    %v7231 = vxor.u32 %v7167, 2147483648
    %v7232 = vxor.u32 %v7168, 2147483648
    %v7233 = vxor.u32 %v7169, 2147483648
    %v7234 = vxor.u32 %v7170, 2147483648
    %v7235 = vxor.u32 %v7171, 2147483648
    %v7236 = vxor.u32 %v7172, 2147483648
    %v7237 = vxor.u32 %v7173, 2147483648
    %v7238 = vxor.u32 %v7174, 2147483648
    %v7239 = vxor.u32 %v7175, 2147483648
    %v7240 = vxor.u32 %v7176, 2147483648
    %v7241 = vxor.u32 %v7177, 2147483648
    %v7242 = vxor.u32 %v7178, 2147483648
    %v7243 = vxor.u32 %v7179, 2147483648
    %v7244 = vxor.u32 %v7180, 2147483648
    %v7245 = vxor.u32 %v7181, 2147483648
    %v7246 = vxor.u32 %v7182, 2147483648
    %v7247 = vxor.u32 %v7183, 2147483648
    %v7248 = vxor.u32 %v7184, 2147483648
    %v7249 = vxor.u32 %v7185, 2147483648
    %v7250 = vxor.u32 %v7186, 2147483648
    %v7251 = vxor.u32 %v7187, 2147483648
    %v7252 = vxor.u32 %v7188, 2147483648
    %v7253 = vxor.u32 %v7189, 2147483648
    %v7254 = vxor.u32 %v7190, 2147483648
    %v7255 = vxor.u32 %v7191, 2147483648
    %v7256 = vxor.u32 %v7192, 2147483648
    %v7257 = vxor.u32 %v7193, 2147483648
    %v7258 = vxor.u32 %v7194, 2147483648
    %v7259 = vxor.u32 %v7195, 2147483648
    %v7260 = vxor.u32 %v7196, 2147483648
    %v7261 = vxor.u32 %v7197, 2147483648
    %v7262 = vxor.u32 %v7198, 2147483648
    %v7263 = vxor.u32 %v7199, 2147483648
    %v7264 = vxor.u32 %v7200, 2147483648
    %v7265 = vxor.u32 %v7201, 2147483648
    %v7266 = vxor.u32 %v7202, 2147483648
    %v7267 = vxor.u32 %v7203, 2147483648
    %v7268 = vxor.u32 %v7204, 2147483648
    %v7269 = vxor.u32 %v7205, 2147483648
    %v7270 = vxor.u32 %v7206, 2147483648
    %v7271 = vxor.u32 %v7207, 2147483648
    %v7272 = vxor.u32 %v7208, 2147483648
    %v7273 = vxor.u32 %v7209, 2147483648
    %v7274 = vxor.u32 %v7210, 2147483648
    %v7275 = vxor.u32 %v7211, 2147483648
    %v7276 = vxor.u32 %v7212, 2147483648
    %v7277 = vxor.u32 %v7213, 2147483648
    %v7278 = vxor.u32 %v7214, 2147483648
    %v7279 = vxor.u32 %v7215, 2147483648
    %v7280 = vxor.u32 %v7216, 2147483648
    %v7281 = vmul.f32 %v7217, 1.442695
    %v7282 = vpow.pop %v7281
    %v7283 = vmul.f32 %v7218, 1.442695
    %v7284 = vpow.pop %v7283
    %v7285 = vmul.f32 %v7219, 1.442695
    %v7286 = vpow.pop %v7285
    %v7287 = vmul.f32 %v7220, 1.442695
    %v7288 = vpow.pop %v7287
    %v7289 = vmul.f32 %v7221, 1.442695
    %v7290 = vpow.pop %v7289
    %v7291 = vmul.f32 %v7222, 1.442695
    %v7292 = vpow.pop %v7291
    %v7293 = vmul.f32 %v7223, 1.442695
    %v7294 = vpow.pop %v7293
    %v7295 = vmul.f32 %v7224, 1.442695
    %v7296 = vpow.pop %v7295
    %v7297 = vmul.f32 %v7225, 1.442695
    %v7298 = vpow.pop %v7297
    %v7299 = vmul.f32 %v7226, 1.442695
    %v7300 = vpow.pop %v7299
    %v7301 = vmul.f32 %v7227, 1.442695
    %v7302 = vpow.pop %v7301
    %v7303 = vmul.f32 %v7228, 1.442695
    %v7304 = vpow.pop %v7303
    %v7305 = vmul.f32 %v7229, 1.442695
    %v7306 = vpow.pop %v7305
    %v7307 = vmul.f32 %v7230, 1.442695
    %v7308 = vpow.pop %v7307
    %v7309 = vmul.f32 %v7231, 1.442695
    %v7310 = vpow.pop %v7309
    %v7311 = vmul.f32 %v7232, 1.442695
    %v7312 = vpow.pop %v7311
    %v7313 = vmul.f32 %v7233, 1.442695
    %v7314 = vpow.pop %v7313
    %v7315 = vmul.f32 %v7234, 1.442695
    %v7316 = vpow.pop %v7315
    %v7317 = vmul.f32 %v7235, 1.442695
    %v7318 = vpow.pop %v7317
    %v7319 = vmul.f32 %v7236, 1.442695
    %v7320 = vpow.pop %v7319
    %v7321 = vmul.f32 %v7237, 1.442695
    %v7322 = vpow.pop %v7321
    %v7323 = vmul.f32 %v7238, 1.442695
    %v7324 = vpow.pop %v7323
    %v7325 = vmul.f32 %v7239, 1.442695
    %v7326 = vpow.pop %v7325
    %v7327 = vmul.f32 %v7240, 1.442695
    %v7328 = vpow.pop %v7327
    %v7329 = vmul.f32 %v7241, 1.442695
    %v7330 = vpow.pop %v7329
    %v7331 = vmul.f32 %v7242, 1.442695
    %v7332 = vpow.pop %v7331
    %v7333 = vmul.f32 %v7243, 1.442695
    %v7334 = vpow.pop %v7333
    %v7335 = vmul.f32 %v7244, 1.442695
    %v7336 = vpow.pop %v7335
    %v7337 = vmul.f32 %v7245, 1.442695
    %v7338 = vpow.pop %v7337
    %v7339 = vmul.f32 %v7246, 1.442695
    %v7340 = vpow.pop %v7339
    %v7341 = vmul.f32 %v7247, 1.442695
    %v7342 = vpow.pop %v7341
    %v7343 = vmul.f32 %v7248, 1.442695
    %v7344 = vpow.pop %v7343
    %v7345 = vmul.f32 %v7249, 1.442695
    %v7346 = vpow.pop %v7345
    %v7347 = vmul.f32 %v7250, 1.442695
    %v7348 = vpow.pop %v7347
    %v7349 = vmul.f32 %v7251, 1.442695
    %v7350 = vpow.pop %v7349
    %v7351 = vmul.f32 %v7252, 1.442695
    %v7352 = vpow.pop %v7351
    %v7353 = vmul.f32 %v7253, 1.442695
    %v7354 = vpow.pop %v7353
    %v7355 = vmul.f32 %v7254, 1.442695
    %v7356 = vpow.pop %v7355
    %v7357 = vmul.f32 %v7255, 1.442695
    %v7358 = vpow.pop %v7357
    %v7359 = vmul.f32 %v7256, 1.442695
    %v7360 = vpow.pop %v7359
    %v7361 = vmul.f32 %v7257, 1.442695
    %v7362 = vpow.pop %v7361
    %v7363 = vmul.f32 %v7258, 1.442695
    %v7364 = vpow.pop %v7363
    %v7365 = vmul.f32 %v7259, 1.442695
    %v7366 = vpow.pop %v7365
    %v7367 = vmul.f32 %v7260, 1.442695
    %v7368 = vpow.pop %v7367
    %v7369 = vmul.f32 %v7261, 1.442695
    %v7370 = vpow.pop %v7369
    %v7371 = vmul.f32 %v7262, 1.442695
    %v7372 = vpow.pop %v7371
    %v7373 = vmul.f32 %v7263, 1.442695
    %v7374 = vpow.pop %v7373
    %v7375 = vmul.f32 %v7264, 1.442695
    %v7376 = vpow.pop %v7375
    %v7377 = vmul.f32 %v7265, 1.442695
    %v7378 = vpow.pop %v7377
    %v7379 = vmul.f32 %v7266, 1.442695
    %v7380 = vpow.pop %v7379
    %v7381 = vmul.f32 %v7267, 1.442695
    %v7382 = vpow.pop %v7381
    %v7383 = vmul.f32 %v7268, 1.442695
    %v7384 = vpow.pop %v7383
    %v7385 = vmul.f32 %v7269, 1.442695
    %v7386 = vpow.pop %v7385
    %v7387 = vmul.f32 %v7270, 1.442695
    %v7388 = vpow.pop %v7387
    %v7389 = vmul.f32 %v7271, 1.442695
    %v7390 = vpow.pop %v7389
    %v7391 = vmul.f32 %v7272, 1.442695
    %v7392 = vpow.pop %v7391
    %v7393 = vmul.f32 %v7273, 1.442695
    %v7394 = vpow.pop %v7393
    %v7395 = vmul.f32 %v7274, 1.442695
    %v7396 = vpow.pop %v7395
    %v7397 = vmul.f32 %v7275, 1.442695
    %v7398 = vpow.pop %v7397
    %v7399 = vmul.f32 %v7276, 1.442695
    %v7400 = vpow.pop %v7399
    %v7401 = vmul.f32 %v7277, 1.442695
    %v7402 = vpow.pop %v7401
    %v7403 = vmul.f32 %v7278, 1.442695
    %v7404 = vpow.pop %v7403
    %v7405 = vmul.f32 %v7279, 1.442695
    %v7406 = vpow.pop %v7405
    %v7407 = vmul.f32 %v7280, 1.442695
    %v7408 = vpow.pop %v7407
    %v7409 = vadd.f32 %v7282, 1.0
    %v7410 = vadd.f32 %v7284, 1.0
    %v7411 = vadd.f32 %v7286, 1.0
    %v7412 = vadd.f32 %v7288, 1.0
    %v7413 = vadd.f32 %v7290, 1.0
    %v7414 = vadd.f32 %v7292, 1.0
    %v7415 = vadd.f32 %v7294, 1.0
    %v7416 = vadd.f32 %v7296, 1.0
    %v7417 = vadd.f32 %v7298, 1.0
    %v7418 = vadd.f32 %v7300, 1.0
    %v7419 = vadd.f32 %v7302, 1.0
    %v7420 = vadd.f32 %v7304, 1.0
    %v7421 = vadd.f32 %v7306, 1.0
    %v7422 = vadd.f32 %v7308, 1.0
    %v7423 = vadd.f32 %v7310, 1.0
    %v7424 = vadd.f32 %v7312, 1.0
    %v7425 = vadd.f32 %v7314, 1.0
    %v7426 = vadd.f32 %v7316, 1.0
    %v7427 = vadd.f32 %v7318, 1.0
    %v7428 = vadd.f32 %v7320, 1.0
    %v7429 = vadd.f32 %v7322, 1.0
    %v7430 = vadd.f32 %v7324, 1.0
    %v7431 = vadd.f32 %v7326, 1.0
    %v7432 = vadd.f32 %v7328, 1.0
    %v7433 = vadd.f32 %v7330, 1.0
    %v7434 = vadd.f32 %v7332, 1.0
    %v7435 = vadd.f32 %v7334, 1.0
    %v7436 = vadd.f32 %v7336, 1.0
    %v7437 = vadd.f32 %v7338, 1.0
    %v7438 = vadd.f32 %v7340, 1.0
    %v7439 = vadd.f32 %v7342, 1.0
    %v7440 = vadd.f32 %v7344, 1.0
    %v7441 = vadd.f32 %v7346, 1.0
    %v7442 = vadd.f32 %v7348, 1.0
    %v7443 = vadd.f32 %v7350, 1.0
    %v7444 = vadd.f32 %v7352, 1.0
    %v7445 = vadd.f32 %v7354, 1.0
    %v7446 = vadd.f32 %v7356, 1.0
    %v7447 = vadd.f32 %v7358, 1.0
    %v7448 = vadd.f32 %v7360, 1.0
    %v7449 = vadd.f32 %v7362, 1.0
    %v7450 = vadd.f32 %v7364, 1.0
    %v7451 = vadd.f32 %v7366, 1.0
    %v7452 = vadd.f32 %v7368, 1.0
    %v7453 = vadd.f32 %v7370, 1.0
    %v7454 = vadd.f32 %v7372, 1.0
    %v7455 = vadd.f32 %v7374, 1.0
    %v7456 = vadd.f32 %v7376, 1.0
    %v7457 = vadd.f32 %v7378, 1.0
    %v7458 = vadd.f32 %v7380, 1.0
    %v7459 = vadd.f32 %v7382, 1.0
    %v7460 = vadd.f32 %v7384, 1.0
    %v7461 = vadd.f32 %v7386, 1.0
    %v7462 = vadd.f32 %v7388, 1.0
    %v7463 = vadd.f32 %v7390, 1.0
    %v7464 = vadd.f32 %v7392, 1.0
    %v7465 = vadd.f32 %v7394, 1.0
    %v7466 = vadd.f32 %v7396, 1.0
    %v7467 = vadd.f32 %v7398, 1.0
    %v7468 = vadd.f32 %v7400, 1.0
    %v7469 = vadd.f32 %v7402, 1.0
    %v7470 = vadd.f32 %v7404, 1.0
    %v7471 = vadd.f32 %v7406, 1.0
    %v7472 = vadd.f32 %v7408, 1.0
    %v7473 = vrcp.pop %v7409
    %v7474 = vmul.f32 1.0, %v7473
    %v7475 = vrcp.pop %v7410
    %v7476 = vmul.f32 1.0, %v7475
    %v7477 = vrcp.pop %v7411
    %v7478 = vmul.f32 1.0, %v7477
    %v7479 = vrcp.pop %v7412
    %v7480 = vmul.f32 1.0, %v7479
    %v7481 = vrcp.pop %v7413
    %v7482 = vmul.f32 1.0, %v7481
    %v7483 = vrcp.pop %v7414
    %v7484 = vmul.f32 1.0, %v7483
    %v7485 = vrcp.pop %v7415
    %v7486 = vmul.f32 1.0, %v7485
    %v7487 = vrcp.pop %v7416
    %v7488 = vmul.f32 1.0, %v7487
    %v7489 = vrcp.pop %v7417
    %v7490 = vmul.f32 1.0, %v7489
    %v7491 = vrcp.pop %v7418
    %v7492 = vmul.f32 1.0, %v7491
    %v7493 = vrcp.pop %v7419
    %v7494 = vmul.f32 1.0, %v7493
    %v7495 = vrcp.pop %v7420
    %v7496 = vmul.f32 1.0, %v7495
    %v7497 = vrcp.pop %v7421
    %v7498 = vmul.f32 1.0, %v7497
    %v7499 = vrcp.pop %v7422
    %v7500 = vmul.f32 1.0, %v7499
    %v7501 = vrcp.pop %v7423
    %v7502 = vmul.f32 1.0, %v7501
    %v7503 = vrcp.pop %v7424
    %v7504 = vmul.f32 1.0, %v7503
    %v7505 = vrcp.pop %v7425
    %v7506 = vmul.f32 1.0, %v7505
    %v7507 = vrcp.pop %v7426
    %v7508 = vmul.f32 1.0, %v7507
    %v7509 = vrcp.pop %v7427
    %v7510 = vmul.f32 1.0, %v7509
    %v7511 = vrcp.pop %v7428
    %v7512 = vmul.f32 1.0, %v7511
    %v7513 = vrcp.pop %v7429
    %v7514 = vmul.f32 1.0, %v7513
    %v7515 = vrcp.pop %v7430
    %v7516 = vmul.f32 1.0, %v7515
    %v7517 = vrcp.pop %v7431
    %v7518 = vmul.f32 1.0, %v7517
    %v7519 = vrcp.pop %v7432
    %v7520 = vmul.f32 1.0, %v7519
    %v7521 = vrcp.pop %v7433
    %v7522 = vmul.f32 1.0, %v7521
    %v7523 = vrcp.pop %v7434
    %v7524 = vmul.f32 1.0, %v7523
    %v7525 = vrcp.pop %v7435
    %v7526 = vmul.f32 1.0, %v7525
    %v7527 = vrcp.pop %v7436
    %v7528 = vmul.f32 1.0, %v7527
    %v7529 = vrcp.pop %v7437
    %v7530 = vmul.f32 1.0, %v7529
    %v7531 = vrcp.pop %v7438
    %v7532 = vmul.f32 1.0, %v7531
    %v7533 = vrcp.pop %v7439
    %v7534 = vmul.f32 1.0, %v7533
    %v7535 = vrcp.pop %v7440
    %v7536 = vmul.f32 1.0, %v7535
    %v7537 = vrcp.pop %v7441
    %v7538 = vmul.f32 1.0, %v7537
    %v7539 = vrcp.pop %v7442
    %v7540 = vmul.f32 1.0, %v7539
    %v7541 = vrcp.pop %v7443
    %v7542 = vmul.f32 1.0, %v7541
    %v7543 = vrcp.pop %v7444
    %v7544 = vmul.f32 1.0, %v7543
    %v7545 = vrcp.pop %v7445
    %v7546 = vmul.f32 1.0, %v7545
    %v7547 = vrcp.pop %v7446
    %v7548 = vmul.f32 1.0, %v7547
    %v7549 = vrcp.pop %v7447
    %v7550 = vmul.f32 1.0, %v7549
    %v7551 = vrcp.pop %v7448
    %v7552 = vmul.f32 1.0, %v7551
    %v7553 = vrcp.pop %v7449
    %v7554 = vmul.f32 1.0, %v7553
    %v7555 = vrcp.pop %v7450
    %v7556 = vmul.f32 1.0, %v7555
    %v7557 = vrcp.pop %v7451
    %v7558 = vmul.f32 1.0, %v7557
    %v7559 = vrcp.pop %v7452
    %v7560 = vmul.f32 1.0, %v7559
    %v7561 = vrcp.pop %v7453
    %v7562 = vmul.f32 1.0, %v7561
    %v7563 = vrcp.pop %v7454
    %v7564 = vmul.f32 1.0, %v7563
    %v7565 = vrcp.pop %v7455
    %v7566 = vmul.f32 1.0, %v7565
    %v7567 = vrcp.pop %v7456
    %v7568 = vmul.f32 1.0, %v7567
    %v7569 = vrcp.pop %v7457
    %v7570 = vmul.f32 1.0, %v7569
    %v7571 = vrcp.pop %v7458
    %v7572 = vmul.f32 1.0, %v7571
    %v7573 = vrcp.pop %v7459
    %v7574 = vmul.f32 1.0, %v7573
    %v7575 = vrcp.pop %v7460
    %v7576 = vmul.f32 1.0, %v7575
    %v7577 = vrcp.pop %v7461
    %v7578 = vmul.f32 1.0, %v7577
    %v7579 = vrcp.pop %v7462
    %v7580 = vmul.f32 1.0, %v7579
    %v7581 = vrcp.pop %v7463
    %v7582 = vmul.f32 1.0, %v7581
    %v7583 = vrcp.pop %v7464
    %v7584 = vmul.f32 1.0, %v7583
    %v7585 = vrcp.pop %v7465
    %v7586 = vmul.f32 1.0, %v7585
    %v7587 = vrcp.pop %v7466
    %v7588 = vmul.f32 1.0, %v7587
    %v7589 = vrcp.pop %v7467
    %v7590 = vmul.f32 1.0, %v7589
    %v7591 = vrcp.pop %v7468
    %v7592 = vmul.f32 1.0, %v7591
    %v7593 = vrcp.pop %v7469
    %v7594 = vmul.f32 1.0, %v7593
    %v7595 = vrcp.pop %v7470
    %v7596 = vmul.f32 1.0, %v7595
    %v7597 = vrcp.pop %v7471
    %v7598 = vmul.f32 1.0, %v7597
    %v7599 = vrcp.pop %v7472
    %v7600 = vmul.f32 1.0, %v7599
    %v7601 = vmul.f32 %v7153, %v7474
    %v7602 = vmul.f32 %v7154, %v7476
    %v7603 = vmul.f32 %v7155, %v7478
    %v7604 = vmul.f32 %v7156, %v7480
    %v7605 = vmul.f32 %v7157, %v7482
    %v7606 = vmul.f32 %v7158, %v7484
    %v7607 = vmul.f32 %v7159, %v7486
    %v7608 = vmul.f32 %v7160, %v7488
    %v7609 = vmul.f32 %v7161, %v7490
    %v7610 = vmul.f32 %v7162, %v7492
    %v7611 = vmul.f32 %v7163, %v7494
    %v7612 = vmul.f32 %v7164, %v7496
    %v7613 = vmul.f32 %v7165, %v7498
    %v7614 = vmul.f32 %v7166, %v7500
    %v7615 = vmul.f32 %v7167, %v7502
    %v7616 = vmul.f32 %v7168, %v7504
    %v7617 = vmul.f32 %v7169, %v7506
    %v7618 = vmul.f32 %v7170, %v7508
    %v7619 = vmul.f32 %v7171, %v7510
    %v7620 = vmul.f32 %v7172, %v7512
    %v7621 = vmul.f32 %v7173, %v7514
    %v7622 = vmul.f32 %v7174, %v7516
    %v7623 = vmul.f32 %v7175, %v7518
    %v7624 = vmul.f32 %v7176, %v7520
    %v7625 = vmul.f32 %v7177, %v7522
    %v7626 = vmul.f32 %v7178, %v7524
    %v7627 = vmul.f32 %v7179, %v7526
    %v7628 = vmul.f32 %v7180, %v7528
    %v7629 = vmul.f32 %v7181, %v7530
    %v7630 = vmul.f32 %v7182, %v7532
    %v7631 = vmul.f32 %v7183, %v7534
    %v7632 = vmul.f32 %v7184, %v7536
    %v7633 = vmul.f32 %v7185, %v7538
    %v7634 = vmul.f32 %v7186, %v7540
    %v7635 = vmul.f32 %v7187, %v7542
    %v7636 = vmul.f32 %v7188, %v7544
    %v7637 = vmul.f32 %v7189, %v7546
    %v7638 = vmul.f32 %v7190, %v7548
    %v7639 = vmul.f32 %v7191, %v7550
    %v7640 = vmul.f32 %v7192, %v7552
    %v7641 = vmul.f32 %v7193, %v7554
    %v7642 = vmul.f32 %v7194, %v7556
    %v7643 = vmul.f32 %v7195, %v7558
    %v7644 = vmul.f32 %v7196, %v7560
    %v7645 = vmul.f32 %v7197, %v7562
    %v7646 = vmul.f32 %v7198, %v7564
    %v7647 = vmul.f32 %v7199, %v7566
    %v7648 = vmul.f32 %v7200, %v7568
    %v7649 = vmul.f32 %v7201, %v7570
    %v7650 = vmul.f32 %v7202, %v7572
    %v7651 = vmul.f32 %v7203, %v7574
    %v7652 = vmul.f32 %v7204, %v7576
    %v7653 = vmul.f32 %v7205, %v7578
    %v7654 = vmul.f32 %v7206, %v7580
    %v7655 = vmul.f32 %v7207, %v7582
    %v7656 = vmul.f32 %v7208, %v7584
    %v7657 = vmul.f32 %v7209, %v7586
    %v7658 = vmul.f32 %v7210, %v7588
    %v7659 = vmul.f32 %v7211, %v7590
    %v7660 = vmul.f32 %v7212, %v7592
    %v7661 = vmul.f32 %v7213, %v7594
    %v7662 = vmul.f32 %v7214, %v7596
    %v7663 = vmul.f32 %v7215, %v7598
    %v7664 = vmul.f32 %v7216, %v7600
    %v7665 = vld [vmem:[%s4] sm:$0xff]
    %v7666 = vld [vmem:[%s4 + $0x8] sm:$0xff]
    %v7667 = vld [vmem:[%s4 + $0x10] sm:$0xff]
    %v7668 = vld [vmem:[%s4 + $0x18] sm:$0xff]
    %v7669 = vld [vmem:[%s4 + $0x20] sm:$0xff]
    %v7670 = vld [vmem:[%s4 + $0x28] sm:$0xff]
    %v7671 = vld [vmem:[%s4 + $0x30] sm:$0xff]
    %v7672 = vld [vmem:[%s4 + $0x38] sm:$0xff]
    %v7673 = vld [vmem:[%s4 + $0x40] sm:$0x3]
    %v7675 = vsel %vm4473, %v7601, 0
    %v7678 = vsel %vm4473, %v7602, 0
    %v7681 = vsel %vm4473, %v7603, 0
    %v7684 = vsel %vm4473, %v7604, 0
    %v7687 = vsel %vm4473, %v7605, 0
    %v7690 = vsel %vm4473, %v7606, 0
    %v7693 = vsel %vm4473, %v7607, 0
    %v7696 = vsel %vm4473, %v7608, 0
    %v7699 = vsel %vm4473, %v7609, 0
    %v7702 = vsel %vm4473, %v7610, 0
    %v7705 = vsel %vm4473, %v7611, 0
    %v7708 = vsel %vm4473, %v7612, 0
    %v7711 = vsel %vm4473, %v7613, 0
    %v7714 = vsel %vm4473, %v7614, 0
    %v7717 = vsel %vm4473, %v7615, 0
    %v7720 = vsel %vm4473, %v7616, 0
    %v7723 = vsel %vm4473, %v7617, 0
    %v7726 = vsel %vm4473, %v7618, 0
    %v7729 = vsel %vm4473, %v7619, 0
    %v7732 = vsel %vm4473, %v7620, 0
    %v7735 = vsel %vm4473, %v7621, 0
    %v7738 = vsel %vm4473, %v7622, 0
    %v7741 = vsel %vm4473, %v7623, 0
    %v7744 = vsel %vm4473, %v7624, 0
    %v7747 = vsel %vm4473, %v7625, 0
    %v7750 = vsel %vm4473, %v7626, 0
    %v7753 = vsel %vm4473, %v7627, 0
    %v7756 = vsel %vm4473, %v7628, 0
    %v7759 = vsel %vm4473, %v7629, 0
    %v7762 = vsel %vm4473, %v7630, 0
    %v7765 = vsel %vm4473, %v7631, 0
    %v7768 = vsel %vm4473, %v7632, 0
    %v7771 = vsel %vm4473, %v7633, 0
    %v7774 = vsel %vm4473, %v7634, 0
    %v7777 = vsel %vm4473, %v7635, 0
    %v7780 = vsel %vm4473, %v7636, 0
    %v7783 = vsel %vm4473, %v7637, 0
    %v7786 = vsel %vm4473, %v7638, 0
    %v7789 = vsel %vm4473, %v7639, 0
    %v7792 = vsel %vm4473, %v7640, 0
    %v7795 = vsel %vm4473, %v7641, 0
    %v7798 = vsel %vm4473, %v7642, 0
    %v7801 = vsel %vm4473, %v7643, 0
    %v7804 = vsel %vm4473, %v7644, 0
    %v7807 = vsel %vm4473, %v7645, 0
    %v7810 = vsel %vm4473, %v7646, 0
    %v7813 = vsel %vm4473, %v7647, 0
    %v7816 = vsel %vm4473, %v7648, 0
    %v7819 = vsel %vm4473, %v7649, 0
    %v7822 = vsel %vm4473, %v7650, 0
    %v7825 = vsel %vm4473, %v7651, 0
    %v7828 = vsel %vm4473, %v7652, 0
    %v7831 = vsel %vm4473, %v7653, 0
    %v7834 = vsel %vm4473, %v7654, 0
    %v7837 = vsel %vm4473, %v7655, 0
    %v7840 = vsel %vm4473, %v7656, 0
    %v7843 = vsel %vm4473, %v7657, 0
    %v7846 = vsel %vm4473, %v7658, 0
    %v7849 = vsel %vm4473, %v7659, 0
    %v7852 = vsel %vm4473, %v7660, 0
    %v7855 = vsel %vm4473, %v7661, 0
    %v7858 = vsel %vm4473, %v7662, 0
    %v7861 = vsel %vm4473, %v7663, 0
    %v7864 = vsel %vm4473, %v7664, 0
    %7866 = vmatprep.subr.mxu0 0.0
    %7867 = vmatpush1.msra.mxu0 %v7665
    %7868 = vmatprep.subr.mxu0 0.0
    %7869 = vmatpush1.msra.mxu0 %v7666
    %7870 = vmatprep.subr.mxu0 0.0
    %7871 = vmatpush1.msra.mxu0 %v7667
    %7872 = vmatprep.subr.mxu0 0.0
    %7873 = vmatpush1.msra.mxu0 %v7668
    %7874 = vmatprep.subr.mxu0 0.0
    %7875 = vmatpush1.msra.mxu0 %v7669
    %7876 = vmatprep.subr.mxu0 0.0
    %7877 = vmatpush1.msra.mxu0 %v7670
    %7878 = vmatprep.subr.mxu0 0.0
    %7879 = vmatpush1.msra.mxu0 %v7671
    %7880 = vmatprep.subr.mxu0 0.0
    %7881 = vmatpush1.msra.mxu0 %v7672
    %7882 = vmatprep.subr.mxu0 0.0
    %7883 = vmatpush1.msra.mxu0 0.0
    %7884 = vmatprep.subr.mxu0 0.0
    %7885 = vmatpush1.msra.mxu0 0.0
    %7886 = vmatprep.subr.mxu0 0.0
    %7887 = vmatpush1.msra.mxu0 0.0
    %7888 = vmatprep.subr.mxu0 0.0
    %7889 = vmatpush1.msra.mxu0 0.0
    %7890 = vmatprep.subr.mxu0 0.0
    %7891 = vmatpush1.msra.mxu0 0.0
    %7892 = vmatprep.subr.mxu0 0.0
    %7893 = vmatpush1.msra.mxu0 0.0
    %7894 = vmatprep.subr.mxu0 0.0
    %7895 = vmatpush1.msra.mxu0 0.0
    %7896 = vmatprep.subr.mxu0 0.0
    %7897 = vmatpush1.msra.mxu0 0.0
    %7898 = vmatprep.subr.mxu0 0.0
    %7899 = vmatpush1.msra.mxu0 0.0
    %7900 = vmatprep.subr.mxu0 0.0
    %7901 = vmatpush1.msra.mxu0 0.0
    %7902 = vmatprep.subr.mxu0 0.0
    %7903 = vmatpush1.msra.mxu0 0.0
    %7904 = vmatprep.subr.mxu0 0.0
    %7905 = vmatpush1.msra.mxu0 0.0
    %7906 = vmatprep.subr.mxu0 0.0
    %7907 = vmatpush1.msra.mxu0 0.0
    %7908 = vmatprep.subr.mxu0 0.0
    %7909 = vmatpush1.msra.mxu0 0.0
    %7910 = vmatprep.subr.mxu0 0.0
    %7911 = vmatpush1.msra.mxu0 0.0
    %7912 = vmatprep.subr.mxu0 0.0
    %7913 = vmatpush1.msra.mxu0 0.0
    %7914 = vmatprep.subr.mxu0 0.0
    %7915 = vmatpush1.msra.mxu0 0.0
    %7916 = vmatprep.subr.mxu0 0.0
    %7917 = vmatpush1.msra.mxu0 0.0
    %7918 = vmatprep.subr.mxu0 0.0
    %7919 = vmatpush1.msra.mxu0 0.0
    %7920 = vmatprep.subr.mxu0 0.0
    %7921 = vmatpush1.msra.mxu0 0.0
    %7922 = vmatprep.subr.mxu0 0.0
    %7923 = vmatpush1.msra.mxu0 0.0
    %7924 = vmatprep.subr.mxu0 0.0
    %7925 = vmatpush1.msra.mxu0 0.0
    %7926 = vmatprep.subr.mxu0 0.0
    %7927 = vmatpush1.msra.mxu0 0.0
    %7928 = vmatprep.subr.mxu0 0.0
    %7929 = vmatpush1.msra.mxu0 0.0
    %7930 = vmatprep.mubr.f32.mxu0 0.0
    %7931 = vmatmul.mubr.f32.gmra.mrb[0].mxu0 %v7675
    %v7932 = vpop.f32.mrb[0].mxu0
    %v7933 = vadd.f32 0.0, %v7932
    %v7934 = vpop.f32.mrb[0].mxu0
    %7935 = vmatprep.mubr.f32.mxu0 0.0
    %7936 = vmatmul.mubr.f32.gmra.mrb[0].mxu0 %v7678
    %v7937 = vpop.f32.mrb[0].mxu0
    %v7938 = vadd.f32 0.0, %v7937
    %v7939 = vpop.f32.mrb[0].mxu0
    %7940 = vmatprep.mubr.f32.mxu0 0.0
    %7941 = vmatmul.mubr.f32.gmra.mrb[0].mxu0 %v7681
    %v7942 = vpop.f32.mrb[0].mxu0
    %v7943 = vadd.f32 0.0, %v7942
    %v7944 = vpop.f32.mrb[0].mxu0
    %7945 = vmatprep.mubr.f32.mxu0 0.0
    %7946 = vmatmul.mubr.f32.gmra.mrb[0].mxu0 %v7684
    %v7947 = vpop.f32.mrb[0].mxu0
    %v7948 = vadd.f32 0.0, %v7947
    %v7949 = vpop.f32.mrb[0].mxu0
    %7950 = vmatprep.mubr.f32.mxu0 0.0
    %7951 = vmatmul.mubr.f32.gmra.mrb[0].mxu0 %v7687
    %v7952 = vpop.f32.mrb[0].mxu0
    %v7953 = vadd.f32 0.0, %v7952
    %v7954 = vpop.f32.mrb[0].mxu0
    %7955 = vmatprep.mubr.f32.mxu0 0.0
    %7956 = vmatmul.mubr.f32.gmra.mrb[0].mxu0 %v7690
    %v7957 = vpop.f32.mrb[0].mxu0
    %v7958 = vadd.f32 0.0, %v7957
    %v7959 = vpop.f32.mrb[0].mxu0
    %7960 = vmatprep.mubr.f32.mxu0 0.0
    %7961 = vmatmul.mubr.f32.gmra.mrb[0].mxu0 %v7693
    %v7962 = vpop.f32.mrb[0].mxu0
    %v7963 = vadd.f32 0.0, %v7962
    %v7964 = vpop.f32.mrb[0].mxu0
    %7965 = vmatprep.mubr.f32.mxu0 0.0
    %7966 = vmatmul.mubr.f32.gmra.mrb[0].mxu0 %v7696
    %v7967 = vpop.f32.mrb[0].mxu0
    %v7968 = vadd.f32 0.0, %v7967
    %v7969 = vpop.f32.mrb[0].mxu0
    %7970 = vmatprep.mubr.f32.mxu0 0.0
    %7971 = vmatmul.mubr.f32.gmra.mrb[0].mxu0 %v7699
    %v7972 = vpop.f32.mrb[0].mxu0
    %v7973 = vadd.f32 0.0, %v7972
    %v7974 = vpop.f32.mrb[0].mxu0
    %7975 = vmatprep.mubr.f32.mxu0 0.0
    %7976 = vmatmul.mubr.f32.gmra.mrb[0].mxu0 %v7702
    %v7977 = vpop.f32.mrb[0].mxu0
    %v7978 = vadd.f32 0.0, %v7977
    %v7979 = vpop.f32.mrb[0].mxu0
    %7980 = vmatprep.mubr.f32.mxu0 0.0
    %7981 = vmatmul.mubr.f32.gmra.mrb[0].mxu0 %v7705
    %v7982 = vpop.f32.mrb[0].mxu0
    %v7983 = vadd.f32 0.0, %v7982
    %v7984 = vpop.f32.mrb[0].mxu0
    %7985 = vmatprep.mubr.f32.mxu0 0.0
    %7986 = vmatmul.mubr.f32.gmra.mrb[0].mxu0 %v7708
    %v7987 = vpop.f32.mrb[0].mxu0
    %v7988 = vadd.f32 0.0, %v7987
    %v7989 = vpop.f32.mrb[0].mxu0
    %7990 = vmatprep.mubr.f32.mxu0 0.0
    %7991 = vmatmul.mubr.f32.gmra.mrb[0].mxu0 %v7711
    %v7992 = vpop.f32.mrb[0].mxu0
    %v7993 = vadd.f32 0.0, %v7992
    %v7994 = vpop.f32.mrb[0].mxu0
    %7995 = vmatprep.mubr.f32.mxu0 0.0
    %7996 = vmatmul.mubr.f32.gmra.mrb[0].mxu0 %v7714
    %v7997 = vpop.f32.mrb[0].mxu0
    %v7998 = vadd.f32 0.0, %v7997
    %v7999 = vpop.f32.mrb[0].mxu0
    %8000 = vmatprep.mubr.f32.mxu0 0.0
    %8001 = vmatmul.mubr.f32.gmra.mrb[0].mxu0 %v7717
    %v8002 = vpop.f32.mrb[0].mxu0
    %v8003 = vadd.f32 0.0, %v8002
    %v8004 = vpop.f32.mrb[0].mxu0
    %8005 = vmatprep.mubr.f32.mxu0 0.0
    %8006 = vmatmul.mubr.f32.gmra.mrb[0].mxu0 %v7720
    %v8007 = vpop.f32.mrb[0].mxu0
    %v8008 = vadd.f32 0.0, %v8007
    %v8009 = vpop.f32.mrb[0].mxu0
    %8010 = vmatprep.mubr.f32.mxu0 0.0
    %8011 = vmatmul.mubr.f32.gmra.mrb[0].mxu0 %v7723
    %v8012 = vpop.f32.mrb[0].mxu0
    %v8013 = vadd.f32 0.0, %v8012
    %v8014 = vpop.f32.mrb[0].mxu0
    %8015 = vmatprep.mubr.f32.mxu0 0.0
    %8016 = vmatmul.mubr.f32.gmra.mrb[0].mxu0 %v7726
    %v8017 = vpop.f32.mrb[0].mxu0
    %v8018 = vadd.f32 0.0, %v8017
    %v8019 = vpop.f32.mrb[0].mxu0
    %8020 = vmatprep.mubr.f32.mxu0 0.0
    %8021 = vmatmul.mubr.f32.gmra.mrb[0].mxu0 %v7729
    %v8022 = vpop.f32.mrb[0].mxu0
    %v8023 = vadd.f32 0.0, %v8022
    %v8024 = vpop.f32.mrb[0].mxu0
    %8025 = vmatprep.mubr.f32.mxu0 0.0
    %8026 = vmatmul.mubr.f32.gmra.mrb[0].mxu0 %v7732
    %v8027 = vpop.f32.mrb[0].mxu0
    %v8028 = vadd.f32 0.0, %v8027
    %v8029 = vpop.f32.mrb[0].mxu0
    %8030 = vmatprep.mubr.f32.mxu0 0.0
    %8031 = vmatmul.mubr.f32.gmra.mrb[0].mxu0 %v7735
    %v8032 = vpop.f32.mrb[0].mxu0
    %v8033 = vadd.f32 0.0, %v8032
    %v8034 = vpop.f32.mrb[0].mxu0
    %8035 = vmatprep.mubr.f32.mxu0 0.0
    %8036 = vmatmul.mubr.f32.gmra.mrb[0].mxu0 %v7738
    %v8037 = vpop.f32.mrb[0].mxu0
    %v8038 = vadd.f32 0.0, %v8037
    %v8039 = vpop.f32.mrb[0].mxu0
    %8040 = vmatprep.mubr.f32.mxu0 0.0
    %8041 = vmatmul.mubr.f32.gmra.mrb[0].mxu0 %v7741
    %v8042 = vpop.f32.mrb[0].mxu0
    %v8043 = vadd.f32 0.0, %v8042
    %v8044 = vpop.f32.mrb[0].mxu0
    %8045 = vmatprep.mubr.f32.mxu0 0.0
    %8046 = vmatmul.mubr.f32.gmra.mrb[0].mxu0 %v7744
    %v8047 = vpop.f32.mrb[0].mxu0
    %v8048 = vadd.f32 0.0, %v8047
    %v8049 = vpop.f32.mrb[0].mxu0
    %8050 = vmatprep.mubr.f32.mxu0 0.0
    %8051 = vmatmul.mubr.f32.gmra.mrb[0].mxu0 %v7747
    %v8052 = vpop.f32.mrb[0].mxu0
    %v8053 = vadd.f32 0.0, %v8052
    %v8054 = vpop.f32.mrb[0].mxu0
    %8055 = vmatprep.mubr.f32.mxu0 0.0
    %8056 = vmatmul.mubr.f32.gmra.mrb[0].mxu0 %v7750
    %v8057 = vpop.f32.mrb[0].mxu0
    %v8058 = vadd.f32 0.0, %v8057
    %v8059 = vpop.f32.mrb[0].mxu0
    %8060 = vmatprep.mubr.f32.mxu0 0.0
    %8061 = vmatmul.mubr.f32.gmra.mrb[0].mxu0 %v7753
    %v8062 = vpop.f32.mrb[0].mxu0
    %v8063 = vadd.f32 0.0, %v8062
    %v8064 = vpop.f32.mrb[0].mxu0
    %8065 = vmatprep.mubr.f32.mxu0 0.0
    %8066 = vmatmul.mubr.f32.gmra.mrb[0].mxu0 %v7756
    %v8067 = vpop.f32.mrb[0].mxu0
    %v8068 = vadd.f32 0.0, %v8067
    %v8069 = vpop.f32.mrb[0].mxu0
    %8070 = vmatprep.mubr.f32.mxu0 0.0
    %8071 = vmatmul.mubr.f32.gmra.mrb[0].mxu0 %v7759
    %v8072 = vpop.f32.mrb[0].mxu0
    %v8073 = vadd.f32 0.0, %v8072
    %v8074 = vpop.f32.mrb[0].mxu0
    %8075 = vmatprep.mubr.f32.mxu0 0.0
    %8076 = vmatmul.mubr.f32.gmra.mrb[0].mxu0 %v7762
    %v8077 = vpop.f32.mrb[0].mxu0
    %v8078 = vadd.f32 0.0, %v8077
    %v8079 = vpop.f32.mrb[0].mxu0
    %8080 = vmatprep.mubr.f32.mxu0 0.0
    %8081 = vmatmul.mubr.f32.gmra.mrb[0].mxu0 %v7765
    %v8082 = vpop.f32.mrb[0].mxu0
    %v8083 = vadd.f32 0.0, %v8082
    %v8084 = vpop.f32.mrb[0].mxu0
    %8085 = vmatprep.mubr.f32.mxu0 0.0
    %8086 = vmatmul.mubr.f32.gmra.mrb[0].mxu0 %v7768
    %v8087 = vpop.f32.mrb[0].mxu0
    %v8088 = vadd.f32 0.0, %v8087
    %v8089 = vpop.f32.mrb[0].mxu0
    %8090 = vmatprep.mubr.f32.mxu0 0.0
    %8091 = vmatmul.mubr.f32.gmra.mrb[0].mxu0 %v7771
    %v8092 = vpop.f32.mrb[0].mxu0
    %v8093 = vadd.f32 0.0, %v8092
    %v8094 = vpop.f32.mrb[0].mxu0
    %8095 = vmatprep.mubr.f32.mxu0 0.0
    %8096 = vmatmul.mubr.f32.gmra.mrb[0].mxu0 %v7774
    %v8097 = vpop.f32.mrb[0].mxu0
    %v8098 = vadd.f32 0.0, %v8097
    %v8099 = vpop.f32.mrb[0].mxu0
    %8100 = vmatprep.mubr.f32.mxu0 0.0
    %8101 = vmatmul.mubr.f32.gmra.mrb[0].mxu0 %v7777
    %v8102 = vpop.f32.mrb[0].mxu0
    %v8103 = vadd.f32 0.0, %v8102
    %v8104 = vpop.f32.mrb[0].mxu0
    %8105 = vmatprep.mubr.f32.mxu0 0.0
    %8106 = vmatmul.mubr.f32.gmra.mrb[0].mxu0 %v7780
    %v8107 = vpop.f32.mrb[0].mxu0
    %v8108 = vadd.f32 0.0, %v8107
    %v8109 = vpop.f32.mrb[0].mxu0
    %8110 = vmatprep.mubr.f32.mxu0 0.0
    %8111 = vmatmul.mubr.f32.gmra.mrb[0].mxu0 %v7783
    %v8112 = vpop.f32.mrb[0].mxu0
    %v8113 = vadd.f32 0.0, %v8112
    %v8114 = vpop.f32.mrb[0].mxu0
    %8115 = vmatprep.mubr.f32.mxu0 0.0
    %8116 = vmatmul.mubr.f32.gmra.mrb[0].mxu0 %v7786
    %v8117 = vpop.f32.mrb[0].mxu0
    %v8118 = vadd.f32 0.0, %v8117
    %v8119 = vpop.f32.mrb[0].mxu0
    %8120 = vmatprep.mubr.f32.mxu0 0.0
    %8121 = vmatmul.mubr.f32.gmra.mrb[0].mxu0 %v7789
    %v8122 = vpop.f32.mrb[0].mxu0
    %v8123 = vadd.f32 0.0, %v8122
    %v8124 = vpop.f32.mrb[0].mxu0
    %8125 = vmatprep.mubr.f32.mxu0 0.0
    %8126 = vmatmul.mubr.f32.gmra.mrb[0].mxu0 %v7792
    %v8127 = vpop.f32.mrb[0].mxu0
    %v8128 = vadd.f32 0.0, %v8127
    %v8129 = vpop.f32.mrb[0].mxu0
    %8130 = vmatprep.mubr.f32.mxu0 0.0
    %8131 = vmatmul.mubr.f32.gmra.mrb[0].mxu0 %v7795
    %v8132 = vpop.f32.mrb[0].mxu0
    %v8133 = vadd.f32 0.0, %v8132
    %v8134 = vpop.f32.mrb[0].mxu0
    %8135 = vmatprep.mubr.f32.mxu0 0.0
    %8136 = vmatmul.mubr.f32.gmra.mrb[0].mxu0 %v7798
    %v8137 = vpop.f32.mrb[0].mxu0
    %v8138 = vadd.f32 0.0, %v8137
    %v8139 = vpop.f32.mrb[0].mxu0
    %8140 = vmatprep.mubr.f32.mxu0 0.0
    %8141 = vmatmul.mubr.f32.gmra.mrb[0].mxu0 %v7801
    %v8142 = vpop.f32.mrb[0].mxu0
    %v8143 = vadd.f32 0.0, %v8142
    %v8144 = vpop.f32.mrb[0].mxu0
    %8145 = vmatprep.mubr.f32.mxu0 0.0
    %8146 = vmatmul.mubr.f32.gmra.mrb[0].mxu0 %v7804
    %v8147 = vpop.f32.mrb[0].mxu0
    %v8148 = vadd.f32 0.0, %v8147
    %v8149 = vpop.f32.mrb[0].mxu0
    %8150 = vmatprep.mubr.f32.mxu0 0.0
    %8151 = vmatmul.mubr.f32.gmra.mrb[0].mxu0 %v7807
    %v8152 = vpop.f32.mrb[0].mxu0
    %v8153 = vadd.f32 0.0, %v8152
    %v8154 = vpop.f32.mrb[0].mxu0
    %8155 = vmatprep.mubr.f32.mxu0 0.0
    %8156 = vmatmul.mubr.f32.gmra.mrb[0].mxu0 %v7810
    %v8157 = vpop.f32.mrb[0].mxu0
    %v8158 = vadd.f32 0.0, %v8157
    %v8159 = vpop.f32.mrb[0].mxu0
    %8160 = vmatprep.mubr.f32.mxu0 0.0
    %8161 = vmatmul.mubr.f32.gmra.mrb[0].mxu0 %v7813
    %v8162 = vpop.f32.mrb[0].mxu0
    %v8163 = vadd.f32 0.0, %v8162
    %v8164 = vpop.f32.mrb[0].mxu0
    %8165 = vmatprep.mubr.f32.mxu0 0.0
    %8166 = vmatmul.mubr.f32.gmra.mrb[0].mxu0 %v7816
    %v8167 = vpop.f32.mrb[0].mxu0
    %v8168 = vadd.f32 0.0, %v8167
    %v8169 = vpop.f32.mrb[0].mxu0
    %8170 = vmatprep.mubr.f32.mxu0 0.0
    %8171 = vmatmul.mubr.f32.gmra.mrb[0].mxu0 %v7819
    %v8172 = vpop.f32.mrb[0].mxu0
    %v8173 = vadd.f32 0.0, %v8172
    %v8174 = vpop.f32.mrb[0].mxu0
    %8175 = vmatprep.mubr.f32.mxu0 0.0
    %8176 = vmatmul.mubr.f32.gmra.mrb[0].mxu0 %v7822
    %v8177 = vpop.f32.mrb[0].mxu0
    %v8178 = vadd.f32 0.0, %v8177
    %v8179 = vpop.f32.mrb[0].mxu0
    %8180 = vmatprep.mubr.f32.mxu0 0.0
    %8181 = vmatmul.mubr.f32.gmra.mrb[0].mxu0 %v7825
    %v8182 = vpop.f32.mrb[0].mxu0
    %v8183 = vadd.f32 0.0, %v8182
    %v8184 = vpop.f32.mrb[0].mxu0
    %8185 = vmatprep.mubr.f32.mxu0 0.0
    %8186 = vmatmul.mubr.f32.gmra.mrb[0].mxu0 %v7828
    %v8187 = vpop.f32.mrb[0].mxu0
    %v8188 = vadd.f32 0.0, %v8187
    %v8189 = vpop.f32.mrb[0].mxu0
    %8190 = vmatprep.mubr.f32.mxu0 0.0
    %8191 = vmatmul.mubr.f32.gmra.mrb[0].mxu0 %v7831
    %v8192 = vpop.f32.mrb[0].mxu0
    %v8193 = vadd.f32 0.0, %v8192
    %v8194 = vpop.f32.mrb[0].mxu0
    %8195 = vmatprep.mubr.f32.mxu0 0.0
    %8196 = vmatmul.mubr.f32.gmra.mrb[0].mxu0 %v7834
    %v8197 = vpop.f32.mrb[0].mxu0
    %v8198 = vadd.f32 0.0, %v8197
    %v8199 = vpop.f32.mrb[0].mxu0
    %8200 = vmatprep.mubr.f32.mxu0 0.0
    %8201 = vmatmul.mubr.f32.gmra.mrb[0].mxu0 %v7837
    %v8202 = vpop.f32.mrb[0].mxu0
    %v8203 = vadd.f32 0.0, %v8202
    %v8204 = vpop.f32.mrb[0].mxu0
    %8205 = vmatprep.mubr.f32.mxu0 0.0
    %8206 = vmatmul.mubr.f32.gmra.mrb[0].mxu0 %v7840
    %v8207 = vpop.f32.mrb[0].mxu0
    %v8208 = vadd.f32 0.0, %v8207
    %v8209 = vpop.f32.mrb[0].mxu0
    %8210 = vmatprep.mubr.f32.mxu0 0.0
    %8211 = vmatmul.mubr.f32.gmra.mrb[0].mxu0 %v7843
    %v8212 = vpop.f32.mrb[0].mxu0
    %v8213 = vadd.f32 0.0, %v8212
    %v8214 = vpop.f32.mrb[0].mxu0
    %8215 = vmatprep.mubr.f32.mxu0 0.0
    %8216 = vmatmul.mubr.f32.gmra.mrb[0].mxu0 %v7846
    %v8217 = vpop.f32.mrb[0].mxu0
    %v8218 = vadd.f32 0.0, %v8217
    %v8219 = vpop.f32.mrb[0].mxu0
    %8220 = vmatprep.mubr.f32.mxu0 0.0
    %8221 = vmatmul.mubr.f32.gmra.mrb[0].mxu0 %v7849
    %v8222 = vpop.f32.mrb[0].mxu0
    %v8223 = vadd.f32 0.0, %v8222
    %v8224 = vpop.f32.mrb[0].mxu0
    %8225 = vmatprep.mubr.f32.mxu0 0.0
    %8226 = vmatmul.mubr.f32.gmra.mrb[0].mxu0 %v7852
    %v8227 = vpop.f32.mrb[0].mxu0
    %v8228 = vadd.f32 0.0, %v8227
    %v8229 = vpop.f32.mrb[0].mxu0
    %8230 = vmatprep.mubr.f32.mxu0 0.0
    %8231 = vmatmul.mubr.f32.gmra.mrb[0].mxu0 %v7855
    %v8232 = vpop.f32.mrb[0].mxu0
    %v8233 = vadd.f32 0.0, %v8232
    %v8234 = vpop.f32.mrb[0].mxu0
    %8235 = vmatprep.mubr.f32.mxu0 0.0
    %8236 = vmatmul.mubr.f32.gmra.mrb[0].mxu0 %v7858
    %v8237 = vpop.f32.mrb[0].mxu0
    %v8238 = vadd.f32 0.0, %v8237
    %v8239 = vpop.f32.mrb[0].mxu0
    %8240 = vmatprep.mubr.f32.mxu0 0.0
    %8241 = vmatmul.mubr.f32.gmra.mrb[0].mxu0 %v7861
    %v8242 = vpop.f32.mrb[0].mxu0
    %v8243 = vadd.f32 0.0, %v8242
    %v8244 = vpop.f32.mrb[0].mxu0
    %8245 = vmatprep.mubr.f32.mxu0 0.0
    %8246 = vmatmul.mubr.f32.gmra.mrb[0].mxu0 %v7864
    %v8247 = vpop.f32.mrb[0].mxu0
    %v8248 = vadd.f32 0.0, %v8247
    %v8249 = vpop.f32.mrb[0].mxu0
    %8250 = vdwg.mxu0
    %v8251 = vlaneseq
    %v8252 = vshrl.u32 %v8251, 7
    %v8253 = vsub.s32 0, %v8252
    %v8254 = vrot.slane %v7673, %v8253
    %v8255 = vmul.f32 %v7933, %v8254
    %v8256 = vmul.f32 %v7938, %v8254
    %v8257 = vmul.f32 %v7943, %v8254
    %v8258 = vmul.f32 %v7948, %v8254
    %v8259 = vmul.f32 %v7953, %v8254
    %v8260 = vmul.f32 %v7958, %v8254
    %v8261 = vmul.f32 %v7963, %v8254
    %v8262 = vmul.f32 %v7968, %v8254
    %v8263 = vmul.f32 %v7973, %v8254
    %v8264 = vmul.f32 %v7978, %v8254
    %v8265 = vmul.f32 %v7983, %v8254
    %v8266 = vmul.f32 %v7988, %v8254
    %v8267 = vmul.f32 %v7993, %v8254
    %v8268 = vmul.f32 %v7998, %v8254
    %v8269 = vmul.f32 %v8003, %v8254
    %v8270 = vmul.f32 %v8008, %v8254
    %v8271 = vmul.f32 %v8013, %v8254
    %v8272 = vmul.f32 %v8018, %v8254
    %v8273 = vmul.f32 %v8023, %v8254
    %v8274 = vmul.f32 %v8028, %v8254
    %v8275 = vmul.f32 %v8033, %v8254
    %v8276 = vmul.f32 %v8038, %v8254
    %v8277 = vmul.f32 %v8043, %v8254
    %v8278 = vmul.f32 %v8048, %v8254
    %v8279 = vmul.f32 %v8053, %v8254
    %v8280 = vmul.f32 %v8058, %v8254
    %v8281 = vmul.f32 %v8063, %v8254
    %v8282 = vmul.f32 %v8068, %v8254
    %v8283 = vmul.f32 %v8073, %v8254
    %v8284 = vmul.f32 %v8078, %v8254
    %v8285 = vmul.f32 %v8083, %v8254
    %v8286 = vmul.f32 %v8088, %v8254
    %v8287 = vmul.f32 %v8093, %v8254
    %v8288 = vmul.f32 %v8098, %v8254
    %v8289 = vmul.f32 %v8103, %v8254
    %v8290 = vmul.f32 %v8108, %v8254
    %v8291 = vmul.f32 %v8113, %v8254
    %v8292 = vmul.f32 %v8118, %v8254
    %v8293 = vmul.f32 %v8123, %v8254
    %v8294 = vmul.f32 %v8128, %v8254
    %v8295 = vmul.f32 %v8133, %v8254
    %v8296 = vmul.f32 %v8138, %v8254
    %v8297 = vmul.f32 %v8143, %v8254
    %v8298 = vmul.f32 %v8148, %v8254
    %v8299 = vmul.f32 %v8153, %v8254
    %v8300 = vmul.f32 %v8158, %v8254
    %v8301 = vmul.f32 %v8163, %v8254
    %v8302 = vmul.f32 %v8168, %v8254
    %v8303 = vmul.f32 %v8173, %v8254
    %v8304 = vmul.f32 %v8178, %v8254
    %v8305 = vmul.f32 %v8183, %v8254
    %v8306 = vmul.f32 %v8188, %v8254
    %v8307 = vmul.f32 %v8193, %v8254
    %v8308 = vmul.f32 %v8198, %v8254
    %v8309 = vmul.f32 %v8203, %v8254
    %v8310 = vmul.f32 %v8208, %v8254
    %v8311 = vmul.f32 %v8213, %v8254
    %v8312 = vmul.f32 %v8218, %v8254
    %v8313 = vmul.f32 %v8223, %v8254
    %v8314 = vmul.f32 %v8228, %v8254
    %v8315 = vmul.f32 %v8233, %v8254
    %v8316 = vmul.f32 %v8238, %v8254
    %v8317 = vmul.f32 %v8243, %v8254
    %v8318 = vmul.f32 %v8248, %v8254
    %v8319 = vlaneseq
    %v8320 = vshrl.u32 %v8319, 7
    %v8321 = vsub.s32 1, %v8320
    %v8322 = vrot.slane %v7673, %v8321
    %v8323 = vadd.f32 %v8255, %v8322
    %v8324 = vadd.f32 %v8256, %v8322
    %v8325 = vadd.f32 %v8257, %v8322
    %v8326 = vadd.f32 %v8258, %v8322
    %v8327 = vadd.f32 %v8259, %v8322
    %v8328 = vadd.f32 %v8260, %v8322
    %v8329 = vadd.f32 %v8261, %v8322
    %v8330 = vadd.f32 %v8262, %v8322
    %v8331 = vadd.f32 %v8263, %v8322
    %v8332 = vadd.f32 %v8264, %v8322
    %v8333 = vadd.f32 %v8265, %v8322
    %v8334 = vadd.f32 %v8266, %v8322
    %v8335 = vadd.f32 %v8267, %v8322
    %v8336 = vadd.f32 %v8268, %v8322
    %v8337 = vadd.f32 %v8269, %v8322
    %v8338 = vadd.f32 %v8270, %v8322
    %v8339 = vadd.f32 %v8271, %v8322
    %v8340 = vadd.f32 %v8272, %v8322
    %v8341 = vadd.f32 %v8273, %v8322
    %v8342 = vadd.f32 %v8274, %v8322
    %v8343 = vadd.f32 %v8275, %v8322
    %v8344 = vadd.f32 %v8276, %v8322
    %v8345 = vadd.f32 %v8277, %v8322
    %v8346 = vadd.f32 %v8278, %v8322
    %v8347 = vadd.f32 %v8279, %v8322
    %v8348 = vadd.f32 %v8280, %v8322
    %v8349 = vadd.f32 %v8281, %v8322
    %v8350 = vadd.f32 %v8282, %v8322
    %v8351 = vadd.f32 %v8283, %v8322
    %v8352 = vadd.f32 %v8284, %v8322
    %v8353 = vadd.f32 %v8285, %v8322
    %v8354 = vadd.f32 %v8286, %v8322
    %v8355 = vadd.f32 %v8287, %v8322
    %v8356 = vadd.f32 %v8288, %v8322
    %v8357 = vadd.f32 %v8289, %v8322
    %v8358 = vadd.f32 %v8290, %v8322
    %v8359 = vadd.f32 %v8291, %v8322
    %v8360 = vadd.f32 %v8292, %v8322
    %v8361 = vadd.f32 %v8293, %v8322
    %v8362 = vadd.f32 %v8294, %v8322
    %v8363 = vadd.f32 %v8295, %v8322
    %v8364 = vadd.f32 %v8296, %v8322
    %v8365 = vadd.f32 %v8297, %v8322
    %v8366 = vadd.f32 %v8298, %v8322
    %v8367 = vadd.f32 %v8299, %v8322
    %v8368 = vadd.f32 %v8300, %v8322
    %v8369 = vadd.f32 %v8301, %v8322
    %v8370 = vadd.f32 %v8302, %v8322
    %v8371 = vadd.f32 %v8303, %v8322
    %v8372 = vadd.f32 %v8304, %v8322
    %v8373 = vadd.f32 %v8305, %v8322
    %v8374 = vadd.f32 %v8306, %v8322
    %v8375 = vadd.f32 %v8307, %v8322
    %v8376 = vadd.f32 %v8308, %v8322
    %v8377 = vadd.f32 %v8309, %v8322
    %v8378 = vadd.f32 %v8310, %v8322
    %v8379 = vadd.f32 %v8311, %v8322
    %v8380 = vadd.f32 %v8312, %v8322
    %v8381 = vadd.f32 %v8313, %v8322
    %v8382 = vadd.f32 %v8314, %v8322
    %v8383 = vadd.f32 %v8315, %v8322
    %v8384 = vadd.f32 %v8316, %v8322
    %v8385 = vadd.f32 %v8317, %v8322
    %v8386 = vadd.f32 %v8318, %v8322
    %v8387 = vxor.u32 %v8323, 2147483648
    %v8388 = vxor.u32 %v8324, 2147483648
    %v8389 = vxor.u32 %v8325, 2147483648
    %v8390 = vxor.u32 %v8326, 2147483648
    %v8391 = vxor.u32 %v8327, 2147483648
    %v8392 = vxor.u32 %v8328, 2147483648
    %v8393 = vxor.u32 %v8329, 2147483648
    %v8394 = vxor.u32 %v8330, 2147483648
    %v8395 = vxor.u32 %v8331, 2147483648
    %v8396 = vxor.u32 %v8332, 2147483648
    %v8397 = vxor.u32 %v8333, 2147483648
    %v8398 = vxor.u32 %v8334, 2147483648
    %v8399 = vxor.u32 %v8335, 2147483648
    %v8400 = vxor.u32 %v8336, 2147483648
    %v8401 = vxor.u32 %v8337, 2147483648
    %v8402 = vxor.u32 %v8338, 2147483648
    %v8403 = vxor.u32 %v8339, 2147483648
    %v8404 = vxor.u32 %v8340, 2147483648
    %v8405 = vxor.u32 %v8341, 2147483648
    %v8406 = vxor.u32 %v8342, 2147483648
    %v8407 = vxor.u32 %v8343, 2147483648
    %v8408 = vxor.u32 %v8344, 2147483648
    %v8409 = vxor.u32 %v8345, 2147483648
    %v8410 = vxor.u32 %v8346, 2147483648
    %v8411 = vxor.u32 %v8347, 2147483648
    %v8412 = vxor.u32 %v8348, 2147483648
    %v8413 = vxor.u32 %v8349, 2147483648
    %v8414 = vxor.u32 %v8350, 2147483648
    %v8415 = vxor.u32 %v8351, 2147483648
    %v8416 = vxor.u32 %v8352, 2147483648
    %v8417 = vxor.u32 %v8353, 2147483648
    %v8418 = vxor.u32 %v8354, 2147483648
    %v8419 = vxor.u32 %v8355, 2147483648
    %v8420 = vxor.u32 %v8356, 2147483648
    %v8421 = vxor.u32 %v8357, 2147483648
    %v8422 = vxor.u32 %v8358, 2147483648
    %v8423 = vxor.u32 %v8359, 2147483648
    %v8424 = vxor.u32 %v8360, 2147483648
    %v8425 = vxor.u32 %v8361, 2147483648
    %v8426 = vxor.u32 %v8362, 2147483648
    %v8427 = vxor.u32 %v8363, 2147483648
    %v8428 = vxor.u32 %v8364, 2147483648
    %v8429 = vxor.u32 %v8365, 2147483648
    %v8430 = vxor.u32 %v8366, 2147483648
    %v8431 = vxor.u32 %v8367, 2147483648
    %v8432 = vxor.u32 %v8368, 2147483648
    %v8433 = vxor.u32 %v8369, 2147483648
    %v8434 = vxor.u32 %v8370, 2147483648
    %v8435 = vxor.u32 %v8371, 2147483648
    %v8436 = vxor.u32 %v8372, 2147483648
    %v8437 = vxor.u32 %v8373, 2147483648
    %v8438 = vxor.u32 %v8374, 2147483648
    %v8439 = vxor.u32 %v8375, 2147483648
    %v8440 = vxor.u32 %v8376, 2147483648
    %v8441 = vxor.u32 %v8377, 2147483648
    %v8442 = vxor.u32 %v8378, 2147483648
    %v8443 = vxor.u32 %v8379, 2147483648
    %v8444 = vxor.u32 %v8380, 2147483648
    %v8445 = vxor.u32 %v8381, 2147483648
    %v8446 = vxor.u32 %v8382, 2147483648
    %v8447 = vxor.u32 %v8383, 2147483648
    %v8448 = vxor.u32 %v8384, 2147483648
    %v8449 = vxor.u32 %v8385, 2147483648
    %v8450 = vxor.u32 %v8386, 2147483648
    %v8451 = vmul.f32 %v8387, 1.442695
    %v8452 = vpow.pop %v8451
    %v8453 = vmul.f32 %v8388, 1.442695
    %v8454 = vpow.pop %v8453
    %v8455 = vmul.f32 %v8389, 1.442695
    %v8456 = vpow.pop %v8455
    %v8457 = vmul.f32 %v8390, 1.442695
    %v8458 = vpow.pop %v8457
    %v8459 = vmul.f32 %v8391, 1.442695
    %v8460 = vpow.pop %v8459
    %v8461 = vmul.f32 %v8392, 1.442695
    %v8462 = vpow.pop %v8461
    %v8463 = vmul.f32 %v8393, 1.442695
    %v8464 = vpow.pop %v8463
    %v8465 = vmul.f32 %v8394, 1.442695
    %v8466 = vpow.pop %v8465
    %v8467 = vmul.f32 %v8395, 1.442695
    %v8468 = vpow.pop %v8467
    %v8469 = vmul.f32 %v8396, 1.442695
    %v8470 = vpow.pop %v8469
    %v8471 = vmul.f32 %v8397, 1.442695
    %v8472 = vpow.pop %v8471
    %v8473 = vmul.f32 %v8398, 1.442695
    %v8474 = vpow.pop %v8473
    %v8475 = vmul.f32 %v8399, 1.442695
    %v8476 = vpow.pop %v8475
    %v8477 = vmul.f32 %v8400, 1.442695
    %v8478 = vpow.pop %v8477
    %v8479 = vmul.f32 %v8401, 1.442695
    %v8480 = vpow.pop %v8479
    %v8481 = vmul.f32 %v8402, 1.442695
    %v8482 = vpow.pop %v8481
    %v8483 = vmul.f32 %v8403, 1.442695
    %v8484 = vpow.pop %v8483
    %v8485 = vmul.f32 %v8404, 1.442695
    %v8486 = vpow.pop %v8485
    %v8487 = vmul.f32 %v8405, 1.442695
    %v8488 = vpow.pop %v8487
    %v8489 = vmul.f32 %v8406, 1.442695
    %v8490 = vpow.pop %v8489
    %v8491 = vmul.f32 %v8407, 1.442695
    %v8492 = vpow.pop %v8491
    %v8493 = vmul.f32 %v8408, 1.442695
    %v8494 = vpow.pop %v8493
    %v8495 = vmul.f32 %v8409, 1.442695
    %v8496 = vpow.pop %v8495
    %v8497 = vmul.f32 %v8410, 1.442695
    %v8498 = vpow.pop %v8497
    %v8499 = vmul.f32 %v8411, 1.442695
    %v8500 = vpow.pop %v8499
    %v8501 = vmul.f32 %v8412, 1.442695
    %v8502 = vpow.pop %v8501
    %v8503 = vmul.f32 %v8413, 1.442695
    %v8504 = vpow.pop %v8503
    %v8505 = vmul.f32 %v8414, 1.442695
    %v8506 = vpow.pop %v8505
    %v8507 = vmul.f32 %v8415, 1.442695
    %v8508 = vpow.pop %v8507
    %v8509 = vmul.f32 %v8416, 1.442695
    %v8510 = vpow.pop %v8509
    %v8511 = vmul.f32 %v8417, 1.442695
    %v8512 = vpow.pop %v8511
    %v8513 = vmul.f32 %v8418, 1.442695
    %v8514 = vpow.pop %v8513
    %v8515 = vmul.f32 %v8419, 1.442695
    %v8516 = vpow.pop %v8515
    %v8517 = vmul.f32 %v8420, 1.442695
    %v8518 = vpow.pop %v8517
    %v8519 = vmul.f32 %v8421, 1.442695
    %v8520 = vpow.pop %v8519
    %v8521 = vmul.f32 %v8422, 1.442695
    %v8522 = vpow.pop %v8521
    %v8523 = vmul.f32 %v8423, 1.442695
    %v8524 = vpow.pop %v8523
    %v8525 = vmul.f32 %v8424, 1.442695
    %v8526 = vpow.pop %v8525
    %v8527 = vmul.f32 %v8425, 1.442695
    %v8528 = vpow.pop %v8527
    %v8529 = vmul.f32 %v8426, 1.442695
    %v8530 = vpow.pop %v8529
    %v8531 = vmul.f32 %v8427, 1.442695
    %v8532 = vpow.pop %v8531
    %v8533 = vmul.f32 %v8428, 1.442695
    %v8534 = vpow.pop %v8533
    %v8535 = vmul.f32 %v8429, 1.442695
    %v8536 = vpow.pop %v8535
    %v8537 = vmul.f32 %v8430, 1.442695
    %v8538 = vpow.pop %v8537
    %v8539 = vmul.f32 %v8431, 1.442695
    %v8540 = vpow.pop %v8539
    %v8541 = vmul.f32 %v8432, 1.442695
    %v8542 = vpow.pop %v8541
    %v8543 = vmul.f32 %v8433, 1.442695
    %v8544 = vpow.pop %v8543
    %v8545 = vmul.f32 %v8434, 1.442695
    %v8546 = vpow.pop %v8545
    %v8547 = vmul.f32 %v8435, 1.442695
    %v8548 = vpow.pop %v8547
    %v8549 = vmul.f32 %v8436, 1.442695
    %v8550 = vpow.pop %v8549
    %v8551 = vmul.f32 %v8437, 1.442695
    %v8552 = vpow.pop %v8551
    %v8553 = vmul.f32 %v8438, 1.442695
    %v8554 = vpow.pop %v8553
    %v8555 = vmul.f32 %v8439, 1.442695
    %v8556 = vpow.pop %v8555
    %v8557 = vmul.f32 %v8440, 1.442695
    %v8558 = vpow.pop %v8557
    %v8559 = vmul.f32 %v8441, 1.442695
    %v8560 = vpow.pop %v8559
    %v8561 = vmul.f32 %v8442, 1.442695
    %v8562 = vpow.pop %v8561
    %v8563 = vmul.f32 %v8443, 1.442695
    %v8564 = vpow.pop %v8563
    %v8565 = vmul.f32 %v8444, 1.442695
    %v8566 = vpow.pop %v8565
    %v8567 = vmul.f32 %v8445, 1.442695
    %v8568 = vpow.pop %v8567
    %v8569 = vmul.f32 %v8446, 1.442695
    %v8570 = vpow.pop %v8569
    %v8571 = vmul.f32 %v8447, 1.442695
    %v8572 = vpow.pop %v8571
    %v8573 = vmul.f32 %v8448, 1.442695
    %v8574 = vpow.pop %v8573
    %v8575 = vmul.f32 %v8449, 1.442695
    %v8576 = vpow.pop %v8575
    %v8577 = vmul.f32 %v8450, 1.442695
    %v8578 = vpow.pop %v8577
    %v8579 = vadd.f32 %v8452, 1.0
    %v8580 = vadd.f32 %v8454, 1.0
    %v8581 = vadd.f32 %v8456, 1.0
    %v8582 = vadd.f32 %v8458, 1.0
    %v8583 = vadd.f32 %v8460, 1.0
    %v8584 = vadd.f32 %v8462, 1.0
    %v8585 = vadd.f32 %v8464, 1.0
    %v8586 = vadd.f32 %v8466, 1.0
    %v8587 = vadd.f32 %v8468, 1.0
    %v8588 = vadd.f32 %v8470, 1.0
    %v8589 = vadd.f32 %v8472, 1.0
    %v8590 = vadd.f32 %v8474, 1.0
    %v8591 = vadd.f32 %v8476, 1.0
    %v8592 = vadd.f32 %v8478, 1.0
    %v8593 = vadd.f32 %v8480, 1.0
    %v8594 = vadd.f32 %v8482, 1.0
    %v8595 = vadd.f32 %v8484, 1.0
    %v8596 = vadd.f32 %v8486, 1.0
    %v8597 = vadd.f32 %v8488, 1.0
    %v8598 = vadd.f32 %v8490, 1.0
    %v8599 = vadd.f32 %v8492, 1.0
    %v8600 = vadd.f32 %v8494, 1.0
    %v8601 = vadd.f32 %v8496, 1.0
    %v8602 = vadd.f32 %v8498, 1.0
    %v8603 = vadd.f32 %v8500, 1.0
    %v8604 = vadd.f32 %v8502, 1.0
    %v8605 = vadd.f32 %v8504, 1.0
    %v8606 = vadd.f32 %v8506, 1.0
    %v8607 = vadd.f32 %v8508, 1.0
    %v8608 = vadd.f32 %v8510, 1.0
    %v8609 = vadd.f32 %v8512, 1.0
    %v8610 = vadd.f32 %v8514, 1.0
    %v8611 = vadd.f32 %v8516, 1.0
    %v8612 = vadd.f32 %v8518, 1.0
    %v8613 = vadd.f32 %v8520, 1.0
    %v8614 = vadd.f32 %v8522, 1.0
    %v8615 = vadd.f32 %v8524, 1.0
    %v8616 = vadd.f32 %v8526, 1.0
    %v8617 = vadd.f32 %v8528, 1.0
    %v8618 = vadd.f32 %v8530, 1.0
    %v8619 = vadd.f32 %v8532, 1.0
    %v8620 = vadd.f32 %v8534, 1.0
    %v8621 = vadd.f32 %v8536, 1.0
    %v8622 = vadd.f32 %v8538, 1.0
    %v8623 = vadd.f32 %v8540, 1.0
    %v8624 = vadd.f32 %v8542, 1.0
    %v8625 = vadd.f32 %v8544, 1.0
    %v8626 = vadd.f32 %v8546, 1.0
    %v8627 = vadd.f32 %v8548, 1.0
    %v8628 = vadd.f32 %v8550, 1.0
    %v8629 = vadd.f32 %v8552, 1.0
    %v8630 = vadd.f32 %v8554, 1.0
    %v8631 = vadd.f32 %v8556, 1.0
    %v8632 = vadd.f32 %v8558, 1.0
    %v8633 = vadd.f32 %v8560, 1.0
    %v8634 = vadd.f32 %v8562, 1.0
    %v8635 = vadd.f32 %v8564, 1.0
    %v8636 = vadd.f32 %v8566, 1.0
    %v8637 = vadd.f32 %v8568, 1.0
    %v8638 = vadd.f32 %v8570, 1.0
    %v8639 = vadd.f32 %v8572, 1.0
    %v8640 = vadd.f32 %v8574, 1.0
    %v8641 = vadd.f32 %v8576, 1.0
    %v8642 = vadd.f32 %v8578, 1.0
    %v8643 = vrcp.pop %v8579
    %v8644 = vmul.f32 1.0, %v8643
    %v8645 = vrcp.pop %v8580
    %v8646 = vmul.f32 1.0, %v8645
    %v8647 = vrcp.pop %v8581
    %v8648 = vmul.f32 1.0, %v8647
    %v8649 = vrcp.pop %v8582
    %v8650 = vmul.f32 1.0, %v8649
    %v8651 = vrcp.pop %v8583
    %v8652 = vmul.f32 1.0, %v8651
    %v8653 = vrcp.pop %v8584
    %v8654 = vmul.f32 1.0, %v8653
    %v8655 = vrcp.pop %v8585
    %v8656 = vmul.f32 1.0, %v8655
    %v8657 = vrcp.pop %v8586
    %v8658 = vmul.f32 1.0, %v8657
    %v8659 = vrcp.pop %v8587
    %v8660 = vmul.f32 1.0, %v8659
    %v8661 = vrcp.pop %v8588
    %v8662 = vmul.f32 1.0, %v8661
    %v8663 = vrcp.pop %v8589
    %v8664 = vmul.f32 1.0, %v8663
    %v8665 = vrcp.pop %v8590
    %v8666 = vmul.f32 1.0, %v8665
    %v8667 = vrcp.pop %v8591
    %v8668 = vmul.f32 1.0, %v8667
    %v8669 = vrcp.pop %v8592
    %v8670 = vmul.f32 1.0, %v8669
    %v8671 = vrcp.pop %v8593
    %v8672 = vmul.f32 1.0, %v8671
    %v8673 = vrcp.pop %v8594
    %v8674 = vmul.f32 1.0, %v8673
    %v8675 = vrcp.pop %v8595
    %v8676 = vmul.f32 1.0, %v8675
    %v8677 = vrcp.pop %v8596
    %v8678 = vmul.f32 1.0, %v8677
    %v8679 = vrcp.pop %v8597
    %v8680 = vmul.f32 1.0, %v8679
    %v8681 = vrcp.pop %v8598
    %v8682 = vmul.f32 1.0, %v8681
    %v8683 = vrcp.pop %v8599
    %v8684 = vmul.f32 1.0, %v8683
    %v8685 = vrcp.pop %v8600
    %v8686 = vmul.f32 1.0, %v8685
    %v8687 = vrcp.pop %v8601
    %v8688 = vmul.f32 1.0, %v8687
    %v8689 = vrcp.pop %v8602
    %v8690 = vmul.f32 1.0, %v8689
    %v8691 = vrcp.pop %v8603
    %v8692 = vmul.f32 1.0, %v8691
    %v8693 = vrcp.pop %v8604
    %v8694 = vmul.f32 1.0, %v8693
    %v8695 = vrcp.pop %v8605
    %v8696 = vmul.f32 1.0, %v8695
    %v8697 = vrcp.pop %v8606
    %v8698 = vmul.f32 1.0, %v8697
    %v8699 = vrcp.pop %v8607
    %v8700 = vmul.f32 1.0, %v8699
    %v8701 = vrcp.pop %v8608
    %v8702 = vmul.f32 1.0, %v8701
    %v8703 = vrcp.pop %v8609
    %v8704 = vmul.f32 1.0, %v8703
    %v8705 = vrcp.pop %v8610
    %v8706 = vmul.f32 1.0, %v8705
    %v8707 = vrcp.pop %v8611
    %v8708 = vmul.f32 1.0, %v8707
    %v8709 = vrcp.pop %v8612
    %v8710 = vmul.f32 1.0, %v8709
    %v8711 = vrcp.pop %v8613
    %v8712 = vmul.f32 1.0, %v8711
    %v8713 = vrcp.pop %v8614
    %v8714 = vmul.f32 1.0, %v8713
    %v8715 = vrcp.pop %v8615
    %v8716 = vmul.f32 1.0, %v8715
    %v8717 = vrcp.pop %v8616
    %v8718 = vmul.f32 1.0, %v8717
    %v8719 = vrcp.pop %v8617
    %v8720 = vmul.f32 1.0, %v8719
    %v8721 = vrcp.pop %v8618
    %v8722 = vmul.f32 1.0, %v8721
    %v8723 = vrcp.pop %v8619
    %v8724 = vmul.f32 1.0, %v8723
    %v8725 = vrcp.pop %v8620
    %v8726 = vmul.f32 1.0, %v8725
    %v8727 = vrcp.pop %v8621
    %v8728 = vmul.f32 1.0, %v8727
    %v8729 = vrcp.pop %v8622
    %v8730 = vmul.f32 1.0, %v8729
    %v8731 = vrcp.pop %v8623
    %v8732 = vmul.f32 1.0, %v8731
    %v8733 = vrcp.pop %v8624
    %v8734 = vmul.f32 1.0, %v8733
    %v8735 = vrcp.pop %v8625
    %v8736 = vmul.f32 1.0, %v8735
    %v8737 = vrcp.pop %v8626
    %v8738 = vmul.f32 1.0, %v8737
    %v8739 = vrcp.pop %v8627
    %v8740 = vmul.f32 1.0, %v8739
    %v8741 = vrcp.pop %v8628
    %v8742 = vmul.f32 1.0, %v8741
    %v8743 = vrcp.pop %v8629
    %v8744 = vmul.f32 1.0, %v8743
    %v8745 = vrcp.pop %v8630
    %v8746 = vmul.f32 1.0, %v8745
    %v8747 = vrcp.pop %v8631
    %v8748 = vmul.f32 1.0, %v8747
    %v8749 = vrcp.pop %v8632
    %v8750 = vmul.f32 1.0, %v8749
    %v8751 = vrcp.pop %v8633
    %v8752 = vmul.f32 1.0, %v8751
    %v8753 = vrcp.pop %v8634
    %v8754 = vmul.f32 1.0, %v8753
    %v8755 = vrcp.pop %v8635
    %v8756 = vmul.f32 1.0, %v8755
    %v8757 = vrcp.pop %v8636
    %v8758 = vmul.f32 1.0, %v8757
    %v8759 = vrcp.pop %v8637
    %v8760 = vmul.f32 1.0, %v8759
    %v8761 = vrcp.pop %v8638
    %v8762 = vmul.f32 1.0, %v8761
    %v8763 = vrcp.pop %v8639
    %v8764 = vmul.f32 1.0, %v8763
    %v8765 = vrcp.pop %v8640
    %v8766 = vmul.f32 1.0, %v8765
    %v8767 = vrcp.pop %v8641
    %v8768 = vmul.f32 1.0, %v8767
    %v8769 = vrcp.pop %v8642
    %v8770 = vmul.f32 1.0, %v8769
    %v8771 = vmul.f32 %v8323, %v8644
    %v8772 = vmul.f32 %v8324, %v8646
    %v8773 = vmul.f32 %v8325, %v8648
    %v8774 = vmul.f32 %v8326, %v8650
    %v8775 = vmul.f32 %v8327, %v8652
    %v8776 = vmul.f32 %v8328, %v8654
    %v8777 = vmul.f32 %v8329, %v8656
    %v8778 = vmul.f32 %v8330, %v8658
    %v8779 = vmul.f32 %v8331, %v8660
    %v8780 = vmul.f32 %v8332, %v8662
    %v8781 = vmul.f32 %v8333, %v8664
    %v8782 = vmul.f32 %v8334, %v8666
    %v8783 = vmul.f32 %v8335, %v8668
    %v8784 = vmul.f32 %v8336, %v8670
    %v8785 = vmul.f32 %v8337, %v8672
    %v8786 = vmul.f32 %v8338, %v8674
    %v8787 = vmul.f32 %v8339, %v8676
    %v8788 = vmul.f32 %v8340, %v8678
    %v8789 = vmul.f32 %v8341, %v8680
    %v8790 = vmul.f32 %v8342, %v8682
    %v8791 = vmul.f32 %v8343, %v8684
    %v8792 = vmul.f32 %v8344, %v8686
    %v8793 = vmul.f32 %v8345, %v8688
    %v8794 = vmul.f32 %v8346, %v8690
    %v8795 = vmul.f32 %v8347, %v8692
    %v8796 = vmul.f32 %v8348, %v8694
    %v8797 = vmul.f32 %v8349, %v8696
    %v8798 = vmul.f32 %v8350, %v8698
    %v8799 = vmul.f32 %v8351, %v8700
    %v8800 = vmul.f32 %v8352, %v8702
    %v8801 = vmul.f32 %v8353, %v8704
    %v8802 = vmul.f32 %v8354, %v8706
    %v8803 = vmul.f32 %v8355, %v8708
    %v8804 = vmul.f32 %v8356, %v8710
    %v8805 = vmul.f32 %v8357, %v8712
    %v8806 = vmul.f32 %v8358, %v8714
    %v8807 = vmul.f32 %v8359, %v8716
    %v8808 = vmul.f32 %v8360, %v8718
    %v8809 = vmul.f32 %v8361, %v8720
    %v8810 = vmul.f32 %v8362, %v8722
    %v8811 = vmul.f32 %v8363, %v8724
    %v8812 = vmul.f32 %v8364, %v8726
    %v8813 = vmul.f32 %v8365, %v8728
    %v8814 = vmul.f32 %v8366, %v8730
    %v8815 = vmul.f32 %v8367, %v8732
    %v8816 = vmul.f32 %v8368, %v8734
    %v8817 = vmul.f32 %v8369, %v8736
    %v8818 = vmul.f32 %v8370, %v8738
    %v8819 = vmul.f32 %v8371, %v8740
    %v8820 = vmul.f32 %v8372, %v8742
    %v8821 = vmul.f32 %v8373, %v8744
    %v8822 = vmul.f32 %v8374, %v8746
    %v8823 = vmul.f32 %v8375, %v8748
    %v8824 = vmul.f32 %v8376, %v8750
    %v8825 = vmul.f32 %v8377, %v8752
    %v8826 = vmul.f32 %v8378, %v8754
    %v8827 = vmul.f32 %v8379, %v8756
    %v8828 = vmul.f32 %v8380, %v8758
    %v8829 = vmul.f32 %v8381, %v8760
    %v8830 = vmul.f32 %v8382, %v8762
    %v8831 = vmul.f32 %v8383, %v8764
    %v8832 = vmul.f32 %v8384, %v8766
    %v8833 = vmul.f32 %v8385, %v8768
    %v8834 = vmul.f32 %v8386, %v8770
    %v8835 = vld [vmem:[%s5] sm:$0xff]
    %v8836 = vld [vmem:[%s5 + $0x8] sm:$0xff]
    %v8837 = vld [vmem:[%s5 + $0x10] sm:$0xff]
    %v8838 = vld [vmem:[%s5 + $0x18] sm:$0xff]
    %v8839 = vld [vmem:[%s5 + $0x20] sm:$0xff]
    %v8840 = vld [vmem:[%s5 + $0x28] sm:$0xff]
    %v8841 = vld [vmem:[%s5 + $0x30] sm:$0xff]
    %v8842 = vld [vmem:[%s5 + $0x38] sm:$0xff]
    %v8843 = vld [vmem:[%s5 + $0x40] sm:$0x1]
    %v8844 = vlaneseq
    %v8845 = vshrl.u32 %v8844, 7
    %v8846 = vsub.s32 0, %v8845
    %v8847 = vrot.slane %v8843, %v8846
    %v8849 = vsel %vm4473, %v8771, 0
    %v8852 = vsel %vm4473, %v8772, 0
    %v8855 = vsel %vm4473, %v8773, 0
    %v8858 = vsel %vm4473, %v8774, 0
    %v8861 = vsel %vm4473, %v8775, 0
    %v8864 = vsel %vm4473, %v8776, 0
    %v8867 = vsel %vm4473, %v8777, 0
    %v8870 = vsel %vm4473, %v8778, 0
    %v8873 = vsel %vm4473, %v8779, 0
    %v8876 = vsel %vm4473, %v8780, 0
    %v8879 = vsel %vm4473, %v8781, 0
    %v8882 = vsel %vm4473, %v8782, 0
    %v8885 = vsel %vm4473, %v8783, 0
    %v8888 = vsel %vm4473, %v8784, 0
    %v8891 = vsel %vm4473, %v8785, 0
    %v8894 = vsel %vm4473, %v8786, 0
    %v8897 = vsel %vm4473, %v8787, 0
    %v8900 = vsel %vm4473, %v8788, 0
    %v8903 = vsel %vm4473, %v8789, 0
    %v8906 = vsel %vm4473, %v8790, 0
    %v8909 = vsel %vm4473, %v8791, 0
    %v8912 = vsel %vm4473, %v8792, 0
    %v8915 = vsel %vm4473, %v8793, 0
    %v8918 = vsel %vm4473, %v8794, 0
    %v8921 = vsel %vm4473, %v8795, 0
    %v8924 = vsel %vm4473, %v8796, 0
    %v8927 = vsel %vm4473, %v8797, 0
    %v8930 = vsel %vm4473, %v8798, 0
    %v8933 = vsel %vm4473, %v8799, 0
    %v8936 = vsel %vm4473, %v8800, 0
    %v8939 = vsel %vm4473, %v8801, 0
    %v8942 = vsel %vm4473, %v8802, 0
    %v8945 = vsel %vm4473, %v8803, 0
    %v8948 = vsel %vm4473, %v8804, 0
    %v8951 = vsel %vm4473, %v8805, 0
    %v8954 = vsel %vm4473, %v8806, 0
    %v8957 = vsel %vm4473, %v8807, 0
    %v8960 = vsel %vm4473, %v8808, 0
    %v8963 = vsel %vm4473, %v8809, 0
    %v8966 = vsel %vm4473, %v8810, 0
    %v8969 = vsel %vm4473, %v8811, 0
    %v8972 = vsel %vm4473, %v8812, 0
    %v8975 = vsel %vm4473, %v8813, 0
    %v8978 = vsel %vm4473, %v8814, 0
    %v8981 = vsel %vm4473, %v8815, 0
    %v8984 = vsel %vm4473, %v8816, 0
    %v8987 = vsel %vm4473, %v8817, 0
    %v8990 = vsel %vm4473, %v8818, 0
    %v8993 = vsel %vm4473, %v8819, 0
    %v8996 = vsel %vm4473, %v8820, 0
    %v8999 = vsel %vm4473, %v8821, 0
    %v9002 = vsel %vm4473, %v8822, 0
    %v9005 = vsel %vm4473, %v8823, 0
    %v9008 = vsel %vm4473, %v8824, 0
    %v9011 = vsel %vm4473, %v8825, 0
    %v9014 = vsel %vm4473, %v8826, 0
    %v9017 = vsel %vm4473, %v8827, 0
    %v9020 = vsel %vm4473, %v8828, 0
    %v9023 = vsel %vm4473, %v8829, 0
    %v9026 = vsel %vm4473, %v8830, 0
    %v9029 = vsel %vm4473, %v8831, 0
    %v9032 = vsel %vm4473, %v8832, 0
    %v9035 = vsel %vm4473, %v8833, 0
    %v9038 = vsel %vm4473, %v8834, 0
    %9040 = vmatprep.subr.mxu0 0.0
    %9041 = vmatpush1.msra.mxu0 %v8835
    %9042 = vmatprep.subr.mxu0 0.0
    %9043 = vmatpush1.msra.mxu0 %v8836
    %9044 = vmatprep.subr.mxu0 0.0
    %9045 = vmatpush1.msra.mxu0 %v8837
    %9046 = vmatprep.subr.mxu0 0.0
    %9047 = vmatpush1.msra.mxu0 %v8838
    %9048 = vmatprep.subr.mxu0 0.0
    %9049 = vmatpush1.msra.mxu0 %v8839
    %9050 = vmatprep.subr.mxu0 0.0
    %9051 = vmatpush1.msra.mxu0 %v8840
    %9052 = vmatprep.subr.mxu0 0.0
    %9053 = vmatpush1.msra.mxu0 %v8841
    %9054 = vmatprep.subr.mxu0 0.0
    %9055 = vmatpush1.msra.mxu0 %v8842
    %9056 = vmatprep.subr.mxu0 0.0
    %9057 = vmatpush1.msra.mxu0 0.0
    %9058 = vmatprep.subr.mxu0 0.0
    %9059 = vmatpush1.msra.mxu0 0.0
    %9060 = vmatprep.subr.mxu0 0.0
    %9061 = vmatpush1.msra.mxu0 0.0
    %9062 = vmatprep.subr.mxu0 0.0
    %9063 = vmatpush1.msra.mxu0 0.0
    %9064 = vmatprep.subr.mxu0 0.0
    %9065 = vmatpush1.msra.mxu0 0.0
    %9066 = vmatprep.subr.mxu0 0.0
    %9067 = vmatpush1.msra.mxu0 0.0
    %9068 = vmatprep.subr.mxu0 0.0
    %9069 = vmatpush1.msra.mxu0 0.0
    %9070 = vmatprep.subr.mxu0 0.0
    %9071 = vmatpush1.msra.mxu0 0.0
    %9072 = vmatprep.subr.mxu0 0.0
    %9073 = vmatpush1.msra.mxu0 0.0
    %9074 = vmatprep.subr.mxu0 0.0
    %9075 = vmatpush1.msra.mxu0 0.0
    %9076 = vmatprep.subr.mxu0 0.0
    %9077 = vmatpush1.msra.mxu0 0.0
    %9078 = vmatprep.subr.mxu0 0.0
    %9079 = vmatpush1.msra.mxu0 0.0
    %9080 = vmatprep.subr.mxu0 0.0
    %9081 = vmatpush1.msra.mxu0 0.0
    %9082 = vmatprep.subr.mxu0 0.0
    %9083 = vmatpush1.msra.mxu0 0.0
    %9084 = vmatprep.subr.mxu0 0.0
    %9085 = vmatpush1.msra.mxu0 0.0
    %9086 = vmatprep.subr.mxu0 0.0
    %9087 = vmatpush1.msra.mxu0 0.0
    %9088 = vmatprep.subr.mxu0 0.0
    %9089 = vmatpush1.msra.mxu0 0.0
    %9090 = vmatprep.subr.mxu0 0.0
    %9091 = vmatpush1.msra.mxu0 0.0
    %9092 = vmatprep.subr.mxu0 0.0
    %9093 = vmatpush1.msra.mxu0 0.0
    %9094 = vmatprep.subr.mxu0 0.0
    %9095 = vmatpush1.msra.mxu0 0.0
    %9096 = vmatprep.subr.mxu0 0.0
    %9097 = vmatpush1.msra.mxu0 0.0
    %9098 = vmatprep.subr.mxu0 0.0
    %9099 = vmatpush1.msra.mxu0 0.0
    %9100 = vmatprep.subr.mxu0 0.0
    %9101 = vmatpush1.msra.mxu0 0.0
    %9102 = vmatprep.subr.mxu0 0.0
    %9103 = vmatpush1.msra.mxu0 0.0
    %9104 = vmatprep.mubr.f32.mxu0 0.0
    %9105 = vmatmul.mubr.f32.gmra.mrb[0].mxu0 %v8849
    %v9106 = vpop.f32.mrb[0].mxu0
    %v9107 = vadd.f32 %v8847, %v9106
    %v9108 = vpop.f32.mrb[0].mxu0
    %9109 = vmatprep.mubr.f32.mxu0 0.0
    %9110 = vmatmul.mubr.f32.gmra.mrb[0].mxu0 %v8852
    %v9111 = vpop.f32.mrb[0].mxu0
    %v9112 = vadd.f32 %v8847, %v9111
    %v9113 = vpop.f32.mrb[0].mxu0
    %9114 = vmatprep.mubr.f32.mxu0 0.0
    %9115 = vmatmul.mubr.f32.gmra.mrb[0].mxu0 %v8855
    %v9116 = vpop.f32.mrb[0].mxu0
    %v9117 = vadd.f32 %v8847, %v9116
    %v9118 = vpop.f32.mrb[0].mxu0
    %9119 = vmatprep.mubr.f32.mxu0 0.0
    %9120 = vmatmul.mubr.f32.gmra.mrb[0].mxu0 %v8858
    %v9121 = vpop.f32.mrb[0].mxu0
    %v9122 = vadd.f32 %v8847, %v9121
    %v9123 = vpop.f32.mrb[0].mxu0
    %9124 = vmatprep.mubr.f32.mxu0 0.0
    %9125 = vmatmul.mubr.f32.gmra.mrb[0].mxu0 %v8861
    %v9126 = vpop.f32.mrb[0].mxu0
    %v9127 = vadd.f32 %v8847, %v9126
    %v9128 = vpop.f32.mrb[0].mxu0
    %9129 = vmatprep.mubr.f32.mxu0 0.0
    %9130 = vmatmul.mubr.f32.gmra.mrb[0].mxu0 %v8864
    %v9131 = vpop.f32.mrb[0].mxu0
    %v9132 = vadd.f32 %v8847, %v9131
    %v9133 = vpop.f32.mrb[0].mxu0
    %9134 = vmatprep.mubr.f32.mxu0 0.0
    %9135 = vmatmul.mubr.f32.gmra.mrb[0].mxu0 %v8867
    %v9136 = vpop.f32.mrb[0].mxu0
    %v9137 = vadd.f32 %v8847, %v9136
    %v9138 = vpop.f32.mrb[0].mxu0
    %9139 = vmatprep.mubr.f32.mxu0 0.0
    %9140 = vmatmul.mubr.f32.gmra.mrb[0].mxu0 %v8870
    %v9141 = vpop.f32.mrb[0].mxu0
    %v9142 = vadd.f32 %v8847, %v9141
    %v9143 = vpop.f32.mrb[0].mxu0
    %9144 = vmatprep.mubr.f32.mxu0 0.0
    %9145 = vmatmul.mubr.f32.gmra.mrb[0].mxu0 %v8873
    %v9146 = vpop.f32.mrb[0].mxu0
    %v9147 = vadd.f32 %v8847, %v9146
    %v9148 = vpop.f32.mrb[0].mxu0
    %9149 = vmatprep.mubr.f32.mxu0 0.0
    %9150 = vmatmul.mubr.f32.gmra.mrb[0].mxu0 %v8876
    %v9151 = vpop.f32.mrb[0].mxu0
    %v9152 = vadd.f32 %v8847, %v9151
    %v9153 = vpop.f32.mrb[0].mxu0
    %9154 = vmatprep.mubr.f32.mxu0 0.0
    %9155 = vmatmul.mubr.f32.gmra.mrb[0].mxu0 %v8879
    %v9156 = vpop.f32.mrb[0].mxu0
    %v9157 = vadd.f32 %v8847, %v9156
    %v9158 = vpop.f32.mrb[0].mxu0
    %9159 = vmatprep.mubr.f32.mxu0 0.0
    %9160 = vmatmul.mubr.f32.gmra.mrb[0].mxu0 %v8882
    %v9161 = vpop.f32.mrb[0].mxu0
    %v9162 = vadd.f32 %v8847, %v9161
    %v9163 = vpop.f32.mrb[0].mxu0
    %9164 = vmatprep.mubr.f32.mxu0 0.0
    %9165 = vmatmul.mubr.f32.gmra.mrb[0].mxu0 %v8885
    %v9166 = vpop.f32.mrb[0].mxu0
    %v9167 = vadd.f32 %v8847, %v9166
    %v9168 = vpop.f32.mrb[0].mxu0
    %9169 = vmatprep.mubr.f32.mxu0 0.0
    %9170 = vmatmul.mubr.f32.gmra.mrb[0].mxu0 %v8888
    %v9171 = vpop.f32.mrb[0].mxu0
    %v9172 = vadd.f32 %v8847, %v9171
    %v9173 = vpop.f32.mrb[0].mxu0
    %9174 = vmatprep.mubr.f32.mxu0 0.0
    %9175 = vmatmul.mubr.f32.gmra.mrb[0].mxu0 %v8891
    %v9176 = vpop.f32.mrb[0].mxu0
    %v9177 = vadd.f32 %v8847, %v9176
    %v9178 = vpop.f32.mrb[0].mxu0
    %9179 = vmatprep.mubr.f32.mxu0 0.0
    %9180 = vmatmul.mubr.f32.gmra.mrb[0].mxu0 %v8894
    %v9181 = vpop.f32.mrb[0].mxu0
    %v9182 = vadd.f32 %v8847, %v9181
    %v9183 = vpop.f32.mrb[0].mxu0
    %9184 = vmatprep.mubr.f32.mxu0 0.0
    %9185 = vmatmul.mubr.f32.gmra.mrb[0].mxu0 %v8897
    %v9186 = vpop.f32.mrb[0].mxu0
    %v9187 = vadd.f32 %v8847, %v9186
    %v9188 = vpop.f32.mrb[0].mxu0
    %9189 = vmatprep.mubr.f32.mxu0 0.0
    %9190 = vmatmul.mubr.f32.gmra.mrb[0].mxu0 %v8900
    %v9191 = vpop.f32.mrb[0].mxu0
    %v9192 = vadd.f32 %v8847, %v9191
    %v9193 = vpop.f32.mrb[0].mxu0
    %9194 = vmatprep.mubr.f32.mxu0 0.0
    %9195 = vmatmul.mubr.f32.gmra.mrb[0].mxu0 %v8903
    %v9196 = vpop.f32.mrb[0].mxu0
    %v9197 = vadd.f32 %v8847, %v9196
    %v9198 = vpop.f32.mrb[0].mxu0
    %9199 = vmatprep.mubr.f32.mxu0 0.0
    %9200 = vmatmul.mubr.f32.gmra.mrb[0].mxu0 %v8906
    %v9201 = vpop.f32.mrb[0].mxu0
    %v9202 = vadd.f32 %v8847, %v9201
    %v9203 = vpop.f32.mrb[0].mxu0
    %9204 = vmatprep.mubr.f32.mxu0 0.0
    %9205 = vmatmul.mubr.f32.gmra.mrb[0].mxu0 %v8909
    %v9206 = vpop.f32.mrb[0].mxu0
    %v9207 = vadd.f32 %v8847, %v9206
    %v9208 = vpop.f32.mrb[0].mxu0
    %9209 = vmatprep.mubr.f32.mxu0 0.0
    %9210 = vmatmul.mubr.f32.gmra.mrb[0].mxu0 %v8912
    %v9211 = vpop.f32.mrb[0].mxu0
    %v9212 = vadd.f32 %v8847, %v9211
    %v9213 = vpop.f32.mrb[0].mxu0
    %9214 = vmatprep.mubr.f32.mxu0 0.0
    %9215 = vmatmul.mubr.f32.gmra.mrb[0].mxu0 %v8915
    %v9216 = vpop.f32.mrb[0].mxu0
    %v9217 = vadd.f32 %v8847, %v9216
    %v9218 = vpop.f32.mrb[0].mxu0
    %9219 = vmatprep.mubr.f32.mxu0 0.0
    %9220 = vmatmul.mubr.f32.gmra.mrb[0].mxu0 %v8918
    %v9221 = vpop.f32.mrb[0].mxu0
    %v9222 = vadd.f32 %v8847, %v9221
    %v9223 = vpop.f32.mrb[0].mxu0
    %9224 = vmatprep.mubr.f32.mxu0 0.0
    %9225 = vmatmul.mubr.f32.gmra.mrb[0].mxu0 %v8921
    %v9226 = vpop.f32.mrb[0].mxu0
    %v9227 = vadd.f32 %v8847, %v9226
    %v9228 = vpop.f32.mrb[0].mxu0
    %9229 = vmatprep.mubr.f32.mxu0 0.0
    %9230 = vmatmul.mubr.f32.gmra.mrb[0].mxu0 %v8924
    %v9231 = vpop.f32.mrb[0].mxu0
    %v9232 = vadd.f32 %v8847, %v9231
    %v9233 = vpop.f32.mrb[0].mxu0
    %9234 = vmatprep.mubr.f32.mxu0 0.0
    %9235 = vmatmul.mubr.f32.gmra.mrb[0].mxu0 %v8927
    %v9236 = vpop.f32.mrb[0].mxu0
    %v9237 = vadd.f32 %v8847, %v9236
    %v9238 = vpop.f32.mrb[0].mxu0
    %9239 = vmatprep.mubr.f32.mxu0 0.0
    %9240 = vmatmul.mubr.f32.gmra.mrb[0].mxu0 %v8930
    %v9241 = vpop.f32.mrb[0].mxu0
    %v9242 = vadd.f32 %v8847, %v9241
    %v9243 = vpop.f32.mrb[0].mxu0
    %9244 = vmatprep.mubr.f32.mxu0 0.0
    %9245 = vmatmul.mubr.f32.gmra.mrb[0].mxu0 %v8933
    %v9246 = vpop.f32.mrb[0].mxu0
    %v9247 = vadd.f32 %v8847, %v9246
    %v9248 = vpop.f32.mrb[0].mxu0
    %9249 = vmatprep.mubr.f32.mxu0 0.0
    %9250 = vmatmul.mubr.f32.gmra.mrb[0].mxu0 %v8936
    %v9251 = vpop.f32.mrb[0].mxu0
    %v9252 = vadd.f32 %v8847, %v9251
    %v9253 = vpop.f32.mrb[0].mxu0
    %9254 = vmatprep.mubr.f32.mxu0 0.0
    %9255 = vmatmul.mubr.f32.gmra.mrb[0].mxu0 %v8939
    %v9256 = vpop.f32.mrb[0].mxu0
    %v9257 = vadd.f32 %v8847, %v9256
    %v9258 = vpop.f32.mrb[0].mxu0
    %9259 = vmatprep.mubr.f32.mxu0 0.0
    %9260 = vmatmul.mubr.f32.gmra.mrb[0].mxu0 %v8942
    %v9261 = vpop.f32.mrb[0].mxu0
    %v9262 = vadd.f32 %v8847, %v9261
    %v9263 = vpop.f32.mrb[0].mxu0
    %9264 = vmatprep.mubr.f32.mxu0 0.0
    %9265 = vmatmul.mubr.f32.gmra.mrb[0].mxu0 %v8945
    %v9266 = vpop.f32.mrb[0].mxu0
    %v9267 = vadd.f32 %v8847, %v9266
    %v9268 = vpop.f32.mrb[0].mxu0
    %9269 = vmatprep.mubr.f32.mxu0 0.0
    %9270 = vmatmul.mubr.f32.gmra.mrb[0].mxu0 %v8948
    %v9271 = vpop.f32.mrb[0].mxu0
    %v9272 = vadd.f32 %v8847, %v9271
    %v9273 = vpop.f32.mrb[0].mxu0
    %9274 = vmatprep.mubr.f32.mxu0 0.0
    %9275 = vmatmul.mubr.f32.gmra.mrb[0].mxu0 %v8951
    %v9276 = vpop.f32.mrb[0].mxu0
    %v9277 = vadd.f32 %v8847, %v9276
    %v9278 = vpop.f32.mrb[0].mxu0
    %9279 = vmatprep.mubr.f32.mxu0 0.0
    %9280 = vmatmul.mubr.f32.gmra.mrb[0].mxu0 %v8954
    %v9281 = vpop.f32.mrb[0].mxu0
    %v9282 = vadd.f32 %v8847, %v9281
    %v9283 = vpop.f32.mrb[0].mxu0
    %9284 = vmatprep.mubr.f32.mxu0 0.0
    %9285 = vmatmul.mubr.f32.gmra.mrb[0].mxu0 %v8957
    %v9286 = vpop.f32.mrb[0].mxu0
    %v9287 = vadd.f32 %v8847, %v9286
    %v9288 = vpop.f32.mrb[0].mxu0
    %9289 = vmatprep.mubr.f32.mxu0 0.0
    %9290 = vmatmul.mubr.f32.gmra.mrb[0].mxu0 %v8960
    %v9291 = vpop.f32.mrb[0].mxu0
    %v9292 = vadd.f32 %v8847, %v9291
    %v9293 = vpop.f32.mrb[0].mxu0
    %9294 = vmatprep.mubr.f32.mxu0 0.0
    %9295 = vmatmul.mubr.f32.gmra.mrb[0].mxu0 %v8963
    %v9296 = vpop.f32.mrb[0].mxu0
    %v9297 = vadd.f32 %v8847, %v9296
    %v9298 = vpop.f32.mrb[0].mxu0
    %9299 = vmatprep.mubr.f32.mxu0 0.0
    %9300 = vmatmul.mubr.f32.gmra.mrb[0].mxu0 %v8966
    %v9301 = vpop.f32.mrb[0].mxu0
    %v9302 = vadd.f32 %v8847, %v9301
    %v9303 = vpop.f32.mrb[0].mxu0
    %9304 = vmatprep.mubr.f32.mxu0 0.0
    %9305 = vmatmul.mubr.f32.gmra.mrb[0].mxu0 %v8969
    %v9306 = vpop.f32.mrb[0].mxu0
    %v9307 = vadd.f32 %v8847, %v9306
    %v9308 = vpop.f32.mrb[0].mxu0
    %9309 = vmatprep.mubr.f32.mxu0 0.0
    %9310 = vmatmul.mubr.f32.gmra.mrb[0].mxu0 %v8972
    %v9311 = vpop.f32.mrb[0].mxu0
    %v9312 = vadd.f32 %v8847, %v9311
    %v9313 = vpop.f32.mrb[0].mxu0
    %9314 = vmatprep.mubr.f32.mxu0 0.0
    %9315 = vmatmul.mubr.f32.gmra.mrb[0].mxu0 %v8975
    %v9316 = vpop.f32.mrb[0].mxu0
    %v9317 = vadd.f32 %v8847, %v9316
    %v9318 = vpop.f32.mrb[0].mxu0
    %9319 = vmatprep.mubr.f32.mxu0 0.0
    %9320 = vmatmul.mubr.f32.gmra.mrb[0].mxu0 %v8978
    %v9321 = vpop.f32.mrb[0].mxu0
    %v9322 = vadd.f32 %v8847, %v9321
    %v9323 = vpop.f32.mrb[0].mxu0
    %9324 = vmatprep.mubr.f32.mxu0 0.0
    %9325 = vmatmul.mubr.f32.gmra.mrb[0].mxu0 %v8981
    %v9326 = vpop.f32.mrb[0].mxu0
    %v9327 = vadd.f32 %v8847, %v9326
    %v9328 = vpop.f32.mrb[0].mxu0
    %9329 = vmatprep.mubr.f32.mxu0 0.0
    %9330 = vmatmul.mubr.f32.gmra.mrb[0].mxu0 %v8984
    %v9331 = vpop.f32.mrb[0].mxu0
    %v9332 = vadd.f32 %v8847, %v9331
    %v9333 = vpop.f32.mrb[0].mxu0
    %9334 = vmatprep.mubr.f32.mxu0 0.0
    %9335 = vmatmul.mubr.f32.gmra.mrb[0].mxu0 %v8987
    %v9336 = vpop.f32.mrb[0].mxu0
    %v9337 = vadd.f32 %v8847, %v9336
    %v9338 = vpop.f32.mrb[0].mxu0
    %9339 = vmatprep.mubr.f32.mxu0 0.0
    %9340 = vmatmul.mubr.f32.gmra.mrb[0].mxu0 %v8990
    %v9341 = vpop.f32.mrb[0].mxu0
    %v9342 = vadd.f32 %v8847, %v9341
    %v9343 = vpop.f32.mrb[0].mxu0
    %9344 = vmatprep.mubr.f32.mxu0 0.0
    %9345 = vmatmul.mubr.f32.gmra.mrb[0].mxu0 %v8993
    %v9346 = vpop.f32.mrb[0].mxu0
    %v9347 = vadd.f32 %v8847, %v9346
    %v9348 = vpop.f32.mrb[0].mxu0
    %9349 = vmatprep.mubr.f32.mxu0 0.0
    %9350 = vmatmul.mubr.f32.gmra.mrb[0].mxu0 %v8996
    %v9351 = vpop.f32.mrb[0].mxu0
    %v9352 = vadd.f32 %v8847, %v9351
    %v9353 = vpop.f32.mrb[0].mxu0
    %9354 = vmatprep.mubr.f32.mxu0 0.0
    %9355 = vmatmul.mubr.f32.gmra.mrb[0].mxu0 %v8999
    %v9356 = vpop.f32.mrb[0].mxu0
    %v9357 = vadd.f32 %v8847, %v9356
    %v9358 = vpop.f32.mrb[0].mxu0
    %9359 = vmatprep.mubr.f32.mxu0 0.0
    %9360 = vmatmul.mubr.f32.gmra.mrb[0].mxu0 %v9002
    %v9361 = vpop.f32.mrb[0].mxu0
    %v9362 = vadd.f32 %v8847, %v9361
    %v9363 = vpop.f32.mrb[0].mxu0
    %9364 = vmatprep.mubr.f32.mxu0 0.0
    %9365 = vmatmul.mubr.f32.gmra.mrb[0].mxu0 %v9005
    %v9366 = vpop.f32.mrb[0].mxu0
    %v9367 = vadd.f32 %v8847, %v9366
    %v9368 = vpop.f32.mrb[0].mxu0
    %9369 = vmatprep.mubr.f32.mxu0 0.0
    %9370 = vmatmul.mubr.f32.gmra.mrb[0].mxu0 %v9008
    %v9371 = vpop.f32.mrb[0].mxu0
    %v9372 = vadd.f32 %v8847, %v9371
    %v9373 = vpop.f32.mrb[0].mxu0
    %9374 = vmatprep.mubr.f32.mxu0 0.0
    %9375 = vmatmul.mubr.f32.gmra.mrb[0].mxu0 %v9011
    %v9376 = vpop.f32.mrb[0].mxu0
    %v9377 = vadd.f32 %v8847, %v9376
    %v9378 = vpop.f32.mrb[0].mxu0
    %9379 = vmatprep.mubr.f32.mxu0 0.0
    %9380 = vmatmul.mubr.f32.gmra.mrb[0].mxu0 %v9014
    %v9381 = vpop.f32.mrb[0].mxu0
    %v9382 = vadd.f32 %v8847, %v9381
    %v9383 = vpop.f32.mrb[0].mxu0
    %9384 = vmatprep.mubr.f32.mxu0 0.0
    %9385 = vmatmul.mubr.f32.gmra.mrb[0].mxu0 %v9017
    %v9386 = vpop.f32.mrb[0].mxu0
    %v9387 = vadd.f32 %v8847, %v9386
    %v9388 = vpop.f32.mrb[0].mxu0
    %9389 = vmatprep.mubr.f32.mxu0 0.0
    %9390 = vmatmul.mubr.f32.gmra.mrb[0].mxu0 %v9020
    %v9391 = vpop.f32.mrb[0].mxu0
    %v9392 = vadd.f32 %v8847, %v9391
    %v9393 = vpop.f32.mrb[0].mxu0
    %9394 = vmatprep.mubr.f32.mxu0 0.0
    %9395 = vmatmul.mubr.f32.gmra.mrb[0].mxu0 %v9023
    %v9396 = vpop.f32.mrb[0].mxu0
    %v9397 = vadd.f32 %v8847, %v9396
    %v9398 = vpop.f32.mrb[0].mxu0
    %9399 = vmatprep.mubr.f32.mxu0 0.0
    %9400 = vmatmul.mubr.f32.gmra.mrb[0].mxu0 %v9026
    %v9401 = vpop.f32.mrb[0].mxu0
    %v9402 = vadd.f32 %v8847, %v9401
    %v9403 = vpop.f32.mrb[0].mxu0
    %9404 = vmatprep.mubr.f32.mxu0 0.0
    %9405 = vmatmul.mubr.f32.gmra.mrb[0].mxu0 %v9029
    %v9406 = vpop.f32.mrb[0].mxu0
    %v9407 = vadd.f32 %v8847, %v9406
    %v9408 = vpop.f32.mrb[0].mxu0
    %9409 = vmatprep.mubr.f32.mxu0 0.0
    %9410 = vmatmul.mubr.f32.gmra.mrb[0].mxu0 %v9032
    %v9411 = vpop.f32.mrb[0].mxu0
    %v9412 = vadd.f32 %v8847, %v9411
    %v9413 = vpop.f32.mrb[0].mxu0
    %9414 = vmatprep.mubr.f32.mxu0 0.0
    %9415 = vmatmul.mubr.f32.gmra.mrb[0].mxu0 %v9035
    %v9416 = vpop.f32.mrb[0].mxu0
    %v9417 = vadd.f32 %v8847, %v9416
    %v9418 = vpop.f32.mrb[0].mxu0
    %9419 = vmatprep.mubr.f32.mxu0 0.0
    %9420 = vmatmul.mubr.f32.gmra.mrb[0].mxu0 %v9038
    %v9421 = vpop.f32.mrb[0].mxu0
    %v9422 = vadd.f32 %v8847, %v9421
    %v9423 = vpop.f32.mrb[0].mxu0
    %9424 = vdwg.mxu0
    %9425 = vst [vmem:[#allocation7] sm:$0xff] %v9107
    %9426 = vst [vmem:[#allocation7 + $0x8] sm:$0xff] %v9112
    %9427 = vst [vmem:[#allocation7 + $0x10] sm:$0xff] %v9117
    %9428 = vst [vmem:[#allocation7 + $0x18] sm:$0xff] %v9122
    %9429 = vst [vmem:[#allocation7 + $0x20] sm:$0xff] %v9127
    %9430 = vst [vmem:[#allocation7 + $0x28] sm:$0xff] %v9132
    %9431 = vst [vmem:[#allocation7 + $0x30] sm:$0xff] %v9137
    %9432 = vst [vmem:[#allocation7 + $0x38] sm:$0xff] %v9142
    %9433 = vst [vmem:[#allocation7 + $0x40] sm:$0xff] %v9147
    %9434 = vst [vmem:[#allocation7 + $0x48] sm:$0xff] %v9152
    %9435 = vst [vmem:[#allocation7 + $0x50] sm:$0xff] %v9157
    %9436 = vst [vmem:[#allocation7 + $0x58] sm:$0xff] %v9162
    %9437 = vst [vmem:[#allocation7 + $0x60] sm:$0xff] %v9167
    %9438 = vst [vmem:[#allocation7 + $0x68] sm:$0xff] %v9172
    %9439 = vst [vmem:[#allocation7 + $0x70] sm:$0xff] %v9177
    %9440 = vst [vmem:[#allocation7 + $0x78] sm:$0xff] %v9182
    %9441 = vst [vmem:[#allocation7 + $0x80] sm:$0xff] %v9187
    %9442 = vst [vmem:[#allocation7 + $0x88] sm:$0xff] %v9192
    %9443 = vst [vmem:[#allocation7 + $0x90] sm:$0xff] %v9197
    %9444 = vst [vmem:[#allocation7 + $0x98] sm:$0xff] %v9202
    %9445 = vst [vmem:[#allocation7 + $0xa0] sm:$0xff] %v9207
    %9446 = vst [vmem:[#allocation7 + $0xa8] sm:$0xff] %v9212
    %9447 = vst [vmem:[#allocation7 + $0xb0] sm:$0xff] %v9217
    %9448 = vst [vmem:[#allocation7 + $0xb8] sm:$0xff] %v9222
    %9449 = vst [vmem:[#allocation7 + $0xc0] sm:$0xff] %v9227
    %9450 = vst [vmem:[#allocation7 + $0xc8] sm:$0xff] %v9232
    %9451 = vst [vmem:[#allocation7 + $0xd0] sm:$0xff] %v9237
    %9452 = vst [vmem:[#allocation7 + $0xd8] sm:$0xff] %v9242
    %9453 = vst [vmem:[#allocation7 + $0xe0] sm:$0xff] %v9247
    %9454 = vst [vmem:[#allocation7 + $0xe8] sm:$0xff] %v9252
    %9455 = vst [vmem:[#allocation7 + $0xf0] sm:$0xff] %v9257
    %9456 = vst [vmem:[#allocation7 + $0xf8] sm:$0xff] %v9262
    %9457 = vst [vmem:[#allocation7 + $0x100] sm:$0xff] %v9267
    %9458 = vst [vmem:[#allocation7 + $0x108] sm:$0xff] %v9272
    %9459 = vst [vmem:[#allocation7 + $0x110] sm:$0xff] %v9277
    %9460 = vst [vmem:[#allocation7 + $0x118] sm:$0xff] %v9282
    %9461 = vst [vmem:[#allocation7 + $0x120] sm:$0xff] %v9287
    %9462 = vst [vmem:[#allocation7 + $0x128] sm:$0xff] %v9292
    %9463 = vst [vmem:[#allocation7 + $0x130] sm:$0xff] %v9297
    %9464 = vst [vmem:[#allocation7 + $0x138] sm:$0xff] %v9302
    %9465 = vst [vmem:[#allocation7 + $0x140] sm:$0xff] %v9307
    %9466 = vst [vmem:[#allocation7 + $0x148] sm:$0xff] %v9312
    %9467 = vst [vmem:[#allocation7 + $0x150] sm:$0xff] %v9317
    %9468 = vst [vmem:[#allocation7 + $0x158] sm:$0xff] %v9322
    %9469 = vst [vmem:[#allocation7 + $0x160] sm:$0xff] %v9327
    %9470 = vst [vmem:[#allocation7 + $0x168] sm:$0xff] %v9332
    %9471 = vst [vmem:[#allocation7 + $0x170] sm:$0xff] %v9337
    %9472 = vst [vmem:[#allocation7 + $0x178] sm:$0xff] %v9342
    %9473 = vst [vmem:[#allocation7 + $0x180] sm:$0xff] %v9347
    %9474 = vst [vmem:[#allocation7 + $0x188] sm:$0xff] %v9352
    %9475 = vst [vmem:[#allocation7 + $0x190] sm:$0xff] %v9357
    %9476 = vst [vmem:[#allocation7 + $0x198] sm:$0xff] %v9362
    %9477 = vst [vmem:[#allocation7 + $0x1a0] sm:$0xff] %v9367
    %9478 = vst [vmem:[#allocation7 + $0x1a8] sm:$0xff] %v9372
    %9479 = vst [vmem:[#allocation7 + $0x1b0] sm:$0xff] %v9377
    %9480 = vst [vmem:[#allocation7 + $0x1b8] sm:$0xff] %v9382
    %9481 = vst [vmem:[#allocation7 + $0x1c0] sm:$0xff] %v9387
    %9482 = vst [vmem:[#allocation7 + $0x1c8] sm:$0xff] %v9392
    %9483 = vst [vmem:[#allocation7 + $0x1d0] sm:$0xff] %v9397
    %9484 = vst [vmem:[#allocation7 + $0x1d8] sm:$0xff] %v9402
    %9485 = vst [vmem:[#allocation7 + $0x1e0] sm:$0xff] %v9407
    %9486 = vst [vmem:[#allocation7 + $0x1e8] sm:$0xff] %v9412
    %9487 = vst [vmem:[#allocation7 + $0x1f0] sm:$0xff] %v9417
    %9488 = vst [vmem:[#allocation7 + $0x1f8] sm:$0xff] %v9422
    // Predicated region
    $region30: #{tpu_custom_call.1} parent=1 // pred_check
      _
    $region31: #{tpu_custom_call.1} parent=1 // pred_check_branch
      %9490 = sbr.rel (0) target = $region33
    $region32: #{tpu_custom_call.1} parent=1 // pred_region
      %s9492 = ssub.s32 8192, 8192
      %9493 = vsyncadd [#allocation6], %s9492
      %s9494 = sshll.u32 [#allocation7], 4
      %s9495 = int_to_ptr.vmem [resolvable:$true] %s9494
      %9500 = dma.vmem_to_hbm [thread:$0]  %s9495, 8192, %s6, [#allocation6], 128, 128, 8
    $region33: #{tpu_custom_call.1} parent=1 // pred_fallthru
      _
    // Predicated region
    $region34: #{tpu_custom_call.1} parent=1 // pred_check
      _
    $region35: #{tpu_custom_call.1} parent=1 // pred_check_branch
      %9502 = sbr.rel (0) target = $region37
    $region36: #{tpu_custom_call.1} parent=1 // pred_region
      %9503 = dma.done [#allocation6], 8192
    $region37: #{tpu_custom_call.1} parent=1 // pred_fallthru
      _
    %9504 = vsyncpa [#allocation5], 1
    %9505 = vsyncpa [#allocation6], 1

</llo_original>
